<compile_context>
chip_gen: v5e
topology: v5e:2x2
jax: 0.10.0
libtpu: 0.0.40
codegen_flags: <defaults>
</compile_context>

<pallas_src>
import jax
import jax.numpy as jnp
from jax import lax
from jax.experimental import pallas as pl
from jax.experimental.pallas import tpu as pltpu

SELU_ALPHA = 1.6732632423543772
SELU_SCALE = 1.0507009873554805
IN_EPS = 1e-5


def _conv_in_selu(x, w, gamma, beta, width, m_left, m_right):
    """ConvBlock for one sample in a lane-dense (C, H*W) layout.

    x       : (Cin, H*W)    f32
    w       : (Cout, 9*Cin) bf16   (K ordered tap-major / channel-minor)
    gamma   : (Cout, 1)     f32
    beta    : (Cout, 1)     f32
    width   : W (static python int)
    m_left  : (1, H*W) bf16 mask, valid lanes for dx == -1
    m_right : (1, H*W) bf16 mask, valid lanes for dx == +1
    """
    cin, hw = x.shape

    # Cast once to bf16, then build the 9 taps directly in bf16.
    # A flat zero pad of W+1 elements on both sides covers every tap offset
    # dy*W+dx in [-(W+1), W+1]; the only wrap-around reads that land back
    # inside the image are exactly the ones killed by the dx masks.
    xb = x.astype(jnp.bfloat16)
    zpad = jnp.zeros((cin, width + 1), jnp.bfloat16)
    xpad = jnp.concatenate([zpad, xb, zpad], axis=1)          # (Cin, HW+2W+2)

    taps = []
    for dy in (-1, 0, 1):
        for dx in (-1, 0, 1):
            off = (width + 1) + dy * width + dx
            t = lax.slice_in_dim(xpad, off, off + hw, axis=1)
            if dx == -1:
                t = t * m_left                                # exact (0/1 mask)
            elif dx == 1:
                t = t * m_right
            taps.append(t)
    x9 = jnp.concatenate(taps, axis=0)                        # (9*Cin, HW) bf16

    # One fused MXU contraction (K = 9*Cin), f32 accumulation.
    acc = jnp.dot(w, x9, preferred_element_type=jnp.float32)  # (Cout, HW) f32

    # InstanceNorm2d: per-channel spatial stats, biased variance, one pass
    # (two independent reductions), gamma folded into the scale.
    inv_hw = jnp.float32(1.0 / hw)
    s1 = jnp.sum(acc, axis=1, keepdims=True)
    s2 = jnp.sum(acc * acc, axis=1, keepdims=True)
    mean = s1 * inv_hw
    var = s2 * inv_hw - mean * mean
    scale = gamma * lax.rsqrt(var + IN_EPS)
    y = (acc - mean) * scale + beta

    # SELU; exp() evaluated on the clamped negative branch only.
    neg = SELU_ALPHA * (jnp.exp(jnp.minimum(y, 0.0)) - 1.0)
    return SELU_SCALE * jnp.where(y > 0, y, neg)


def _make_stage_kernel(width):
    """One encoder stage = two fused ConvBlocks for one sample."""

    def kernel(x_ref, w1_ref, g1_ref, b1_ref, w2_ref, g2_ref, b2_ref, out_ref):
        x = x_ref[0]                                          # (Cin, HW) f32
        hw = x.shape[1]
        # dx-border masks built ONCE per stage (shared by both blocks).
        px = lax.broadcasted_iota(jnp.int32, (1, hw), 1) % width
        m_left = (px >= 1).astype(jnp.bfloat16)               # valid for dx=-1
        m_right = (px <= width - 2).astype(jnp.bfloat16)      # valid for dx=+1

        a = _conv_in_selu(x, w1_ref[...], g1_ref[...], b1_ref[...],
                          width, m_left, m_right)
        a = _conv_in_selu(a, w2_ref[...], g2_ref[...], b2_ref[...],
                          width, m_left, m_right)
        out_ref[0] = a

    return kernel


def _stage_vmem_bytes(cin, cout, hw):
    """Explicit scoped-VMEM budget from the per-grid-step working set."""
    io = 2 * 4 * hw * (cin + cout)              # double-buffered f32 in/out blocks
    cmax = max(cin, cout)
    tmp = hw * (2 * 9 * cmax                    # bf16 tap matrix
                + 2 * (cmax + 4)                # bf16 padded activation
                + 4 * 4 * cout)                 # f32 acc / norm / SELU temporaries
    est = 2 * (io + tmp) + (2 << 20)            # 2x headroom + weights + slack
    return int(min(max(est, 8 << 20), 64 << 20))  # fits v7x's 64 MiB physical


def _stage_forward(x_nchw, w1, g1, b1, w2, g2, b2):
    """Run one encoder stage (2 ConvBlocks) as a single pallas_call."""
    n, cin, h, w = x_nchw.shape
    cout = w1.shape[0]
    hw = h * w
    out = pl.pallas_call(
        _make_stage_kernel(w),
        out_shape=jax.ShapeDtypeStruct((n, cout, hw), jnp.float32),
        grid=(n,),
        in_specs=[
            pl.BlockSpec((1, cin, hw), lambda g: (g, 0, 0)),
            pl.BlockSpec(w1.shape, lambda g: (0, 0)),   # constant-index: one DMA
            pl.BlockSpec(g1.shape, lambda g: (0, 0)),
            pl.BlockSpec(b1.shape, lambda g: (0, 0)),
            pl.BlockSpec(w2.shape, lambda g: (0, 0)),
            pl.BlockSpec(g2.shape, lambda g: (0, 0)),
            pl.BlockSpec(b2.shape, lambda g: (0, 0)),
        ],
        out_specs=pl.BlockSpec((1, cout, hw), lambda g: (g, 0, 0)),
        compiler_params=pltpu.CompilerParams(
            dimension_semantics=("parallel",),            # batch across TCs (v7x)
            vmem_limit_bytes=_stage_vmem_bytes(cin, cout, hw)),
    )(x_nchw.reshape(n, cin, hw), w1, g1, b1, w2, g2, b2)
    return out.reshape(n, cout, h, w)


def _pack_block(wgt, gamma, beta):
    """(3,3,Cin,Cout) HWIO -> (Cout, 9*Cin) bf16, tap-major/channel-minor K."""
    kh, kw, ci, co = wgt.shape
    w9 = jnp.transpose(wgt.reshape(kh * kw * ci, co)).astype(jnp.bfloat16)
    return (w9,
            gamma.reshape(co, 1).astype(jnp.float32),
            beta.reshape(co, 1).astype(jnp.float32))


def _maxpool2x2(x):
    """MaxPool2d(2,2) in plain XLA on the HBM-resident stage output."""
    n, c, h, w = x.shape
    return jnp.max(x.reshape(n, c, h // 2, 2, w // 2, 2), axis=(3, 5))


def init_encoder_params(key, in_dim, hidden_dims):
    """Deterministic parameter init (weights HWIO; gamma=1, beta=0)."""
    dims = [in_dim] + list(hidden_dims)
    params = []
    for li in range(5):
        cout = dims[li + 1]
        cins = (dims[li], dims[li + 1])
        blocks = []
        for bi in range(2):
            key, wk = jax.random.split(key)
            cin = cins[bi]
            fan_in = 9 * cin
            wgt = jax.random.normal(wk, (3, 3, cin, cout), jnp.float32) / jnp.sqrt(
                jnp.float32(fan_in))
            gamma = jnp.ones((cout,), jnp.float32)
            beta = jnp.zeros((cout,), jnp.float32)
            blocks.append((wgt, gamma, beta))
        params.append(blocks)
    return params


@jax.jit
def encoder_forward(x_nchw, params):
    """Forward pass of `encoder` (drop_p = 0.0 => Dropout is identity).

    x_nchw : (N, in_dim, H, W) f32
    returns: (out (N, h4, H/16, W/16), {"stage1".."stage4"}) -- all NCHW.
    """
    n, cin0, h0, w0 = x_nchw.shape
    assert h0 % 16 == 0 and w0 % 16 == 0, "spatial dims must survive 4 maxpools"

    stages = {}
    x = x_nchw
    for li in range(5):
        (wa, ga, ba), (wb, gb, bb) = params[li]
        w1, g1, b1 = _pack_block(wa, ga, ba)
        w2, g2, b2 = _pack_block(wb, gb, bb)
        x = _stage_forward(x, w1, g1, b1, w2, g2, b2)
        if li < 4:
            stages["stage%d" % (li + 1)] = x
            x = _maxpool2x2(x)
    return x, stages


def _reference_encoder(x_nchw, params):
    """Pure-JAX reference mirroring the kernel's precision choices
    (bf16 conv inputs, f32 accumulation / InstanceNorm / SELU)."""
    x = x_nchw
    stages = {}
    for li in range(5):
        for (wgt, gamma, beta) in params[li]:
            y = lax.conv_general_dilated(
                x.astype(jnp.bfloat16), wgt.astype(jnp.bfloat16),
                window_strides=(1, 1), padding=((1, 1), (1, 1)),
                dimension_numbers=("NCHW", "HWIO", "NCHW"),
                preferred_element_type=jnp.float32)
            mean = jnp.mean(y, axis=(2, 3), keepdims=True)
            cen = y - mean
            var = jnp.mean(cen * cen, axis=(2, 3), keepdims=True)
            y = cen * lax.rsqrt(var + IN_EPS)
            y = y * gamma[None, :, None, None] + beta[None, :, None, None]
            x = SELU_SCALE * jnp.where(
                y > 0, y, SELU_ALPHA * (jnp.exp(jnp.minimum(y, 0.0)) - 1.0))
        if li < 4:
            stages["stage%d" % (li + 1)] = x
            nn, cc, hh, ww = x.shape
            x = jnp.max(x.reshape(nn, cc, hh // 2, 2, ww // 2, 2), axis=(3, 5))
    return x, stages


if __name__ == "__main__":
    key = jax.random.PRNGKey(0)
    kx, kp = jax.random.split(key)

    in_dim = 2
    hidden_dims = [4, 8, 16, 32, 32]
    n, h, w = 2, 32, 32  # NCHW input; 4 pools -> final spatial 2x2

    x = jax.random.normal(kx, (n, in_dim, h, w), jnp.float32)
    params = init_encoder_params(kp, in_dim, hidden_dims)

    out, stages = encoder_forward(x, params)
    out = jax.block_until_ready(out)
    stages = jax.tree_util.tree_map(jax.block_until_ready, stages)

    assert out.shape == (n, hidden_dims[4], h // 16, w // 16), out.shape
    assert stages["stage1"].shape == (n, hidden_dims[0], h, w)
    assert stages["stage2"].shape == (n, hidden_dims[1], h // 2, w // 2)
    assert stages["stage3"].shape == (n, hidden_dims[2], h // 4, w // 4)
    assert stages["stage4"].shape == (n, hidden_dims[3], h // 8, w // 8)
    assert bool(jnp.isfinite(out).all())

    # Numerical parity against a pure-JAX reference with matching precision.
    ref_out, ref_stages = _reference_encoder(x, params)
    tol = 5e-2
    assert float(jnp.max(jnp.abs(out - ref_out))) < tol
    for name in ("stage1", "stage2", "stage3", "stage4"):
        assert float(jnp.max(jnp.abs(stages[name] - ref_stages[name]))) < tol

    print("KERNEL_OK")
</pallas_src>

<mosaic_0001>
module attributes {stable_mosaic.version = 11 : i64} {
  func.func @kernel(%arg0: i32, %arg1: memref<1x2x1024xf32, #tpu.memory_space<vmem>>, %arg2: memref<4x18xbf16, #tpu.memory_space<vmem>>, %arg3: memref<4x1xf32, #tpu.memory_space<vmem>>, %arg4: memref<4x1xf32, #tpu.memory_space<vmem>>, %arg5: memref<4x36xbf16, #tpu.memory_space<vmem>>, %arg6: memref<4x1xf32, #tpu.memory_space<vmem>>, %arg7: memref<4x1xf32, #tpu.memory_space<vmem>>, %arg8: memref<1x4x1024xf32, #tpu.memory_space<vmem>>) attributes {dimension_semantics = [#tpu.dimension_semantics<parallel>], iteration_bounds = array<i64: 2>, scalar_prefetch = 0 : i64, scratch_operands = 0 : i64, tpu.core_type = #tpu.core_type<tc>, window_params = [{transform_indices = @transform_0, window_bounds = array<i64: 1, 2, 1024>}, {pipeline_mode = #tpu.pipeline_mode<synchronous>, transform_indices = @transform_1, window_bounds = array<i64: 4, 18>}, {pipeline_mode = #tpu.pipeline_mode<synchronous>, transform_indices = @transform_2, window_bounds = array<i64: 4, 1>}, {pipeline_mode = #tpu.pipeline_mode<synchronous>, transform_indices = @transform_3, window_bounds = array<i64: 4, 1>}, {pipeline_mode = #tpu.pipeline_mode<synchronous>, transform_indices = @transform_4, window_bounds = array<i64: 4, 36>}, {pipeline_mode = #tpu.pipeline_mode<synchronous>, transform_indices = @transform_5, window_bounds = array<i64: 4, 1>}, {pipeline_mode = #tpu.pipeline_mode<synchronous>, transform_indices = @transform_6, window_bounds = array<i64: 4, 1>}, {transform_indices = @transform_7, window_bounds = array<i64: 1, 4, 1024>}]} {
    %c0 = arith.constant 0 : index
    %c0_0 = arith.constant 0 : index
    %c0_1 = arith.constant 0 : index
    %0 = vector.load %arg1[%c0, %c0_0, %c0_1] : memref<1x2x1024xf32, #tpu.memory_space<vmem>>, vector<1x2x1024xf32>
    %1 = vector.shape_cast %0 : vector<1x2x1024xf32> to vector<2x1024xf32>
    %2 = tpu.iota {dimensions = array<i32: 1>} : vector<1x1024xi32>
    %c32_i32 = arith.constant 32 : i32
    %c0_i32 = arith.constant 0 : i32
    %3 = arith.cmpi eq, %c32_i32, %c0_i32 : i32
    %c1_i32 = arith.constant 1 : i32
    %4 = arith.select %3, %c1_i32, %c32_i32 : i32
    %5 = vector.broadcast %4 : i32 to vector<1x1024xi32>
    %6 = arith.remsi %2, %5 : vector<1x1024xi32>
    %c0_i32_2 = arith.constant 0 : i32
    %7 = vector.broadcast %c0_i32_2 : i32 to vector<1x1024xi32>
    %8 = arith.cmpi ne, %6, %7 : vector<1x1024xi32>
    %c0_i32_3 = arith.constant 0 : i32
    %9 = vector.broadcast %c0_i32_3 : i32 to vector<1x1024xi32>
    %10 = arith.cmpi slt, %6, %9 : vector<1x1024xi32>
    %c0_i32_4 = arith.constant 0 : i32
    %11 = arith.cmpi slt, %4, %c0_i32_4 : i32
    %12 = vector.broadcast %11 : i1 to vector<1x1024xi1>
    %13 = vector.broadcast %12 : vector<1x1024xi1> to vector<1x1024xi1>
    %14 = arith.xori %10, %13 : vector<1x1024xi1>
    %15 = arith.andi %14, %8 : vector<1x1024xi1>
    %16 = vector.broadcast %4 : i32 to vector<1x1024xi32>
    %17 = arith.addi %6, %16 : vector<1x1024xi32>
    %18 = arith.select %15, %17, %6 : vector<1x1024xi1>, vector<1x1024xi32>
    %c1_i32_5 = arith.constant 1 : i32
    %19 = vector.broadcast %c1_i32_5 : i32 to vector<1x1024xi32>
    %20 = arith.cmpi sge, %18, %19 : vector<1x1024xi32>
    %21 = arith.extui %20 : vector<1x1024xi1> to vector<1x1024xi32>
    %22 = arith.sitofp %21 : vector<1x1024xi32> to vector<1x1024xf32>
    %23 = arith.truncf %22 : vector<1x1024xf32> to vector<1x1024xbf16>
    %c30_i32 = arith.constant 30 : i32
    %24 = vector.broadcast %c30_i32 : i32 to vector<1x1024xi32>
    %25 = arith.cmpi sle, %18, %24 : vector<1x1024xi32>
    %26 = arith.extui %25 : vector<1x1024xi1> to vector<1x1024xi32>
    %27 = arith.sitofp %26 : vector<1x1024xi32> to vector<1x1024xf32>
    %28 = arith.truncf %27 : vector<1x1024xf32> to vector<1x1024xbf16>
    %c0_6 = arith.constant 0 : index
    %c0_7 = arith.constant 0 : index
    %29 = vector.load %arg2[%c0_6, %c0_7] : memref<4x18xbf16, #tpu.memory_space<vmem>>, vector<4x18xbf16>
    %c0_8 = arith.constant 0 : index
    %c0_9 = arith.constant 0 : index
    %30 = vector.load %arg3[%c0_8, %c0_9] : memref<4x1xf32, #tpu.memory_space<vmem>>, vector<4x1xf32>
    %c0_10 = arith.constant 0 : index
    %c0_11 = arith.constant 0 : index
    %31 = vector.load %arg4[%c0_10, %c0_11] : memref<4x1xf32, #tpu.memory_space<vmem>>, vector<4x1xf32>
    %32 = arith.truncf %1 : vector<2x1024xf32> to vector<2x1024xbf16>
    %cst = arith.constant 0.000000e+00 : bf16
    %33 = vector.broadcast %cst : bf16 to vector<2x33xbf16>
    %34 = tpu.concatenate %33, %32, %33 in 1 : vector<2x33xbf16>, vector<2x1024xbf16>, vector<2x33xbf16> -> vector<2x1090xbf16>
    %35 = vector.extract_strided_slice %34 {offsets = [0, 0], sizes = [2, 1024], strides = [1, 1]} : vector<2x1090xbf16> to vector<2x1024xbf16>
    %36 = vector.broadcast %23 : vector<1x1024xbf16> to vector<2x1024xbf16>
    %37 = arith.mulf %35, %36 : vector<2x1024xbf16>
    %38 = vector.extract_strided_slice %34 {offsets = [0, 1], sizes = [2, 1024], strides = [1, 1]} : vector<2x1090xbf16> to vector<2x1024xbf16>
    %39 = vector.extract_strided_slice %34 {offsets = [0, 2], sizes = [2, 1024], strides = [1, 1]} : vector<2x1090xbf16> to vector<2x1024xbf16>
    %40 = vector.broadcast %28 : vector<1x1024xbf16> to vector<2x1024xbf16>
    %41 = arith.mulf %39, %40 : vector<2x1024xbf16>
    %42 = vector.extract_strided_slice %34 {offsets = [0, 32], sizes = [2, 1024], strides = [1, 1]} : vector<2x1090xbf16> to vector<2x1024xbf16>
    %43 = vector.broadcast %23 : vector<1x1024xbf16> to vector<2x1024xbf16>
    %44 = arith.mulf %42, %43 : vector<2x1024xbf16>
    %45 = vector.extract_strided_slice %34 {offsets = [0, 33], sizes = [2, 1024], strides = [1, 1]} : vector<2x1090xbf16> to vector<2x1024xbf16>
    %46 = vector.extract_strided_slice %34 {offsets = [0, 34], sizes = [2, 1024], strides = [1, 1]} : vector<2x1090xbf16> to vector<2x1024xbf16>
    %47 = vector.broadcast %28 : vector<1x1024xbf16> to vector<2x1024xbf16>
    %48 = arith.mulf %46, %47 : vector<2x1024xbf16>
    %49 = vector.extract_strided_slice %34 {offsets = [0, 64], sizes = [2, 1024], strides = [1, 1]} : vector<2x1090xbf16> to vector<2x1024xbf16>
    %50 = vector.broadcast %23 : vector<1x1024xbf16> to vector<2x1024xbf16>
    %51 = arith.mulf %49, %50 : vector<2x1024xbf16>
    %52 = vector.extract_strided_slice %34 {offsets = [0, 65], sizes = [2, 1024], strides = [1, 1]} : vector<2x1090xbf16> to vector<2x1024xbf16>
    %53 = vector.extract_strided_slice %34 {offsets = [0, 66], sizes = [2, 1024], strides = [1, 1]} : vector<2x1090xbf16> to vector<2x1024xbf16>
    %54 = vector.broadcast %28 : vector<1x1024xbf16> to vector<2x1024xbf16>
    %55 = arith.mulf %53, %54 : vector<2x1024xbf16>
    %56 = tpu.concatenate %37, %38, %41, %44, %45, %48, %51, %52, %55 in 0 : vector<2x1024xbf16>, vector<2x1024xbf16>, vector<2x1024xbf16>, vector<2x1024xbf16>, vector<2x1024xbf16>, vector<2x1024xbf16>, vector<2x1024xbf16>, vector<2x1024xbf16>, vector<2x1024xbf16> -> vector<18x1024xbf16>
    %cst_12 = arith.constant dense<0.000000e+00> : vector<4x1024xf32>
    %57 = tpu.matmul %29, %56, %cst_12 {dimension_numbers = #tpu.dot_dimension_numbers<[1], [0], [0], [1], [0, 0, 1, 1], [], []>} : vector<4x18xbf16>, vector<18x1024xbf16>, vector<4x1024xf32> -> vector<4x1024xf32>
    %cst_13 = arith.constant dense<0.000000e+00> : vector<4xf32>
    %58 = vector.multi_reduction <add>, %57, %cst_13 [1] : vector<4x1024xf32> to vector<4xf32>
    %59 = vector.shape_cast %58 : vector<4xf32> to vector<4x1xf32>
    %60 = arith.mulf %57, %57 : vector<4x1024xf32>
    %cst_14 = arith.constant dense<0.000000e+00> : vector<4xf32>
    %61 = vector.multi_reduction <add>, %60, %cst_14 [1] : vector<4x1024xf32> to vector<4xf32>
    %62 = vector.shape_cast %61 : vector<4xf32> to vector<4x1xf32>
    %cst_15 = arith.constant 9.765625E-4 : f32
    %63 = vector.broadcast %cst_15 : f32 to vector<4x1xf32>
    %64 = arith.mulf %59, %63 : vector<4x1xf32>
    %cst_16 = arith.constant 9.765625E-4 : f32
    %65 = vector.broadcast %cst_16 : f32 to vector<4x1xf32>
    %66 = arith.mulf %62, %65 : vector<4x1xf32>
    %67 = arith.mulf %64, %64 : vector<4x1xf32>
    %68 = arith.subf %66, %67 : vector<4x1xf32>
    %cst_17 = arith.constant 9.99999974E-6 : f32
    %69 = vector.broadcast %cst_17 : f32 to vector<4x1xf32>
    %70 = arith.addf %68, %69 : vector<4x1xf32>
    %71 = math.rsqrt %70 : vector<4x1xf32>
    %72 = arith.mulf %30, %71 : vector<4x1xf32>
    %73 = vector.broadcast %64 : vector<4x1xf32> to vector<4x1024xf32>
    %74 = arith.subf %57, %73 : vector<4x1024xf32>
    %75 = vector.broadcast %72 : vector<4x1xf32> to vector<4x1024xf32>
    %76 = arith.mulf %74, %75 : vector<4x1024xf32>
    %77 = vector.broadcast %31 : vector<4x1xf32> to vector<4x1024xf32>
    %78 = arith.addf %76, %77 : vector<4x1024xf32>
    %cst_18 = arith.constant 0.000000e+00 : f32
    %79 = vector.broadcast %cst_18 : f32 to vector<4x1024xf32>
    %80 = arith.minimumf %78, %79 : vector<4x1024xf32>
    %81 = math.exp %80 : vector<4x1024xf32>
    %cst_19 = arith.constant 1.000000e+00 : f32
    %82 = vector.broadcast %cst_19 : f32 to vector<4x1024xf32>
    %83 = arith.subf %81, %82 : vector<4x1024xf32>
    %cst_20 = arith.constant 1.67326319 : f32
    %84 = vector.broadcast %cst_20 : f32 to vector<4x1024xf32>
    %85 = arith.mulf %84, %83 : vector<4x1024xf32>
    %cst_21 = arith.constant 0.000000e+00 : f32
    %86 = vector.broadcast %cst_21 : f32 to vector<4x1024xf32>
    %87 = arith.cmpf ogt, %78, %86 : vector<4x1024xf32>
    %88 = arith.select %87, %78, %85 : vector<4x1024xi1>, vector<4x1024xf32>
    %cst_22 = arith.constant 1.05070102 : f32
    %89 = vector.broadcast %cst_22 : f32 to vector<4x1024xf32>
    %90 = arith.mulf %89, %88 : vector<4x1024xf32>
    %c0_23 = arith.constant 0 : index
    %c0_24 = arith.constant 0 : index
    %91 = vector.load %arg5[%c0_23, %c0_24] : memref<4x36xbf16, #tpu.memory_space<vmem>>, vector<4x36xbf16>
    %c0_25 = arith.constant 0 : index
    %c0_26 = arith.constant 0 : index
    %92 = vector.load %arg6[%c0_25, %c0_26] : memref<4x1xf32, #tpu.memory_space<vmem>>, vector<4x1xf32>
    %c0_27 = arith.constant 0 : index
    %c0_28 = arith.constant 0 : index
    %93 = vector.load %arg7[%c0_27, %c0_28] : memref<4x1xf32, #tpu.memory_space<vmem>>, vector<4x1xf32>
    %94 = arith.truncf %90 : vector<4x1024xf32> to vector<4x1024xbf16>
    %cst_29 = arith.constant 0.000000e+00 : bf16
    %95 = vector.broadcast %cst_29 : bf16 to vector<4x33xbf16>
    %96 = tpu.concatenate %95, %94, %95 in 1 : vector<4x33xbf16>, vector<4x1024xbf16>, vector<4x33xbf16> -> vector<4x1090xbf16>
    %97 = vector.extract_strided_slice %96 {offsets = [0, 0], sizes = [4, 1024], strides = [1, 1]} : vector<4x1090xbf16> to vector<4x1024xbf16>
    %98 = vector.broadcast %23 : vector<1x1024xbf16> to vector<4x1024xbf16>
    %99 = arith.mulf %97, %98 : vector<4x1024xbf16>
    %100 = vector.extract_strided_slice %96 {offsets = [0, 1], sizes = [4, 1024], strides = [1, 1]} : vector<4x1090xbf16> to vector<4x1024xbf16>
    %101 = vector.extract_strided_slice %96 {offsets = [0, 2], sizes = [4, 1024], strides = [1, 1]} : vector<4x1090xbf16> to vector<4x1024xbf16>
    %102 = vector.broadcast %28 : vector<1x1024xbf16> to vector<4x1024xbf16>
    %103 = arith.mulf %101, %102 : vector<4x1024xbf16>
    %104 = vector.extract_strided_slice %96 {offsets = [0, 32], sizes = [4, 1024], strides = [1, 1]} : vector<4x1090xbf16> to vector<4x1024xbf16>
    %105 = vector.broadcast %23 : vector<1x1024xbf16> to vector<4x1024xbf16>
    %106 = arith.mulf %104, %105 : vector<4x1024xbf16>
    %107 = vector.extract_strided_slice %96 {offsets = [0, 33], sizes = [4, 1024], strides = [1, 1]} : vector<4x1090xbf16> to vector<4x1024xbf16>
    %108 = vector.extract_strided_slice %96 {offsets = [0, 34], sizes = [4, 1024], strides = [1, 1]} : vector<4x1090xbf16> to vector<4x1024xbf16>
    %109 = vector.broadcast %28 : vector<1x1024xbf16> to vector<4x1024xbf16>
    %110 = arith.mulf %108, %109 : vector<4x1024xbf16>
    %111 = vector.extract_strided_slice %96 {offsets = [0, 64], sizes = [4, 1024], strides = [1, 1]} : vector<4x1090xbf16> to vector<4x1024xbf16>
    %112 = vector.broadcast %23 : vector<1x1024xbf16> to vector<4x1024xbf16>
    %113 = arith.mulf %111, %112 : vector<4x1024xbf16>
    %114 = vector.extract_strided_slice %96 {offsets = [0, 65], sizes = [4, 1024], strides = [1, 1]} : vector<4x1090xbf16> to vector<4x1024xbf16>
    %115 = vector.extract_strided_slice %96 {offsets = [0, 66], sizes = [4, 1024], strides = [1, 1]} : vector<4x1090xbf16> to vector<4x1024xbf16>
    %116 = vector.broadcast %28 : vector<1x1024xbf16> to vector<4x1024xbf16>
    %117 = arith.mulf %115, %116 : vector<4x1024xbf16>
    %118 = tpu.concatenate %99, %100, %103, %106, %107, %110, %113, %114, %117 in 0 : vector<4x1024xbf16>, vector<4x1024xbf16>, vector<4x1024xbf16>, vector<4x1024xbf16>, vector<4x1024xbf16>, vector<4x1024xbf16>, vector<4x1024xbf16>, vector<4x1024xbf16>, vector<4x1024xbf16> -> vector<36x1024xbf16>
    %cst_30 = arith.constant dense<0.000000e+00> : vector<4x1024xf32>
    %119 = tpu.matmul %91, %118, %cst_30 {dimension_numbers = #tpu.dot_dimension_numbers<[1], [0], [0], [1], [0, 0, 1, 1], [], []>} : vector<4x36xbf16>, vector<36x1024xbf16>, vector<4x1024xf32> -> vector<4x1024xf32>
    %cst_31 = arith.constant dense<0.000000e+00> : vector<4xf32>
    %120 = vector.multi_reduction <add>, %119, %cst_31 [1] : vector<4x1024xf32> to vector<4xf32>
    %121 = vector.shape_cast %120 : vector<4xf32> to vector<4x1xf32>
    %122 = arith.mulf %119, %119 : vector<4x1024xf32>
    %cst_32 = arith.constant dense<0.000000e+00> : vector<4xf32>
    %123 = vector.multi_reduction <add>, %122, %cst_32 [1] : vector<4x1024xf32> to vector<4xf32>
    %124 = vector.shape_cast %123 : vector<4xf32> to vector<4x1xf32>
    %cst_33 = arith.constant 9.765625E-4 : f32
    %125 = vector.broadcast %cst_33 : f32 to vector<4x1xf32>
    %126 = arith.mulf %121, %125 : vector<4x1xf32>
    %cst_34 = arith.constant 9.765625E-4 : f32
    %127 = vector.broadcast %cst_34 : f32 to vector<4x1xf32>
    %128 = arith.mulf %124, %127 : vector<4x1xf32>
    %129 = arith.mulf %126, %126 : vector<4x1xf32>
    %130 = arith.subf %128, %129 : vector<4x1xf32>
    %cst_35 = arith.constant 9.99999974E-6 : f32
    %131 = vector.broadcast %cst_35 : f32 to vector<4x1xf32>
    %132 = arith.addf %130, %131 : vector<4x1xf32>
    %133 = math.rsqrt %132 : vector<4x1xf32>
    %134 = arith.mulf %92, %133 : vector<4x1xf32>
    %135 = vector.broadcast %126 : vector<4x1xf32> to vector<4x1024xf32>
    %136 = arith.subf %119, %135 : vector<4x1024xf32>
    %137 = vector.broadcast %134 : vector<4x1xf32> to vector<4x1024xf32>
    %138 = arith.mulf %136, %137 : vector<4x1024xf32>
    %139 = vector.broadcast %93 : vector<4x1xf32> to vector<4x1024xf32>
    %140 = arith.addf %138, %139 : vector<4x1024xf32>
    %cst_36 = arith.constant 0.000000e+00 : f32
    %141 = vector.broadcast %cst_36 : f32 to vector<4x1024xf32>
    %142 = arith.minimumf %140, %141 : vector<4x1024xf32>
    %143 = math.exp %142 : vector<4x1024xf32>
    %cst_37 = arith.constant 1.000000e+00 : f32
    %144 = vector.broadcast %cst_37 : f32 to vector<4x1024xf32>
    %145 = arith.subf %143, %144 : vector<4x1024xf32>
    %cst_38 = arith.constant 1.67326319 : f32
    %146 = vector.broadcast %cst_38 : f32 to vector<4x1024xf32>
    %147 = arith.mulf %146, %145 : vector<4x1024xf32>
    %cst_39 = arith.constant 0.000000e+00 : f32
    %148 = vector.broadcast %cst_39 : f32 to vector<4x1024xf32>
    %149 = arith.cmpf ogt, %140, %148 : vector<4x1024xf32>
    %150 = arith.select %149, %140, %147 : vector<4x1024xi1>, vector<4x1024xf32>
    %cst_40 = arith.constant 1.05070102 : f32
    %151 = vector.broadcast %cst_40 : f32 to vector<4x1024xf32>
    %152 = arith.mulf %151, %150 : vector<4x1024xf32>
    %c0_41 = arith.constant 0 : index
    %c0_42 = arith.constant 0 : index
    %c0_43 = arith.constant 0 : index
    %153 = vector.load %arg8[%c0_41, %c0_42, %c0_43] : memref<1x4x1024xf32, #tpu.memory_space<vmem>>, vector<1x4x1024xf32>
    %154 = vector.shape_cast %153 : vector<1x4x1024xf32> to vector<4x1024xf32>
    %155 = vector.shape_cast %152 : vector<4x1024xf32> to vector<1x4x1024xf32>
    tpu.vector_store %arg8[%c0_41, %c0_42, %c0_43], %155 {strides = array<i32>} : memref<1x4x1024xf32, #tpu.memory_space<vmem>>, vector<1x4x1024xf32>,
    return
  }
  func.func @transform_0(%arg0: i32) -> (i32, i32, i32) {
    %c0_i32 = arith.constant 0 : i32
    %c0_i32_0 = arith.constant 0 : i32
    %c0_i32_1 = arith.constant 0 : i32
    return %arg0, %c0_i32, %c0_i32_0 : i32, i32, i32
  }
  func.func @transform_1(%arg0: i32) -> (i32, i32) {
    %c0_i32 = arith.constant 0 : i32
    %c0_i32_0 = arith.constant 0 : i32
    %c0_i32_1 = arith.constant 0 : i32
    return %c0_i32, %c0_i32_0 : i32, i32
  }
  func.func @transform_2(%arg0: i32) -> (i32, i32) {
    %c0_i32 = arith.constant 0 : i32
    %c0_i32_0 = arith.constant 0 : i32
    %c0_i32_1 = arith.constant 0 : i32
    return %c0_i32, %c0_i32_0 : i32, i32
  }
  func.func @transform_3(%arg0: i32) -> (i32, i32) {
    %c0_i32 = arith.constant 0 : i32
    %c0_i32_0 = arith.constant 0 : i32
    %c0_i32_1 = arith.constant 0 : i32
    return %c0_i32, %c0_i32_0 : i32, i32
  }
  func.func @transform_4(%arg0: i32) -> (i32, i32) {
    %c0_i32 = arith.constant 0 : i32
    %c0_i32_0 = arith.constant 0 : i32
    %c0_i32_1 = arith.constant 0 : i32
    return %c0_i32, %c0_i32_0 : i32, i32
  }
  func.func @transform_5(%arg0: i32) -> (i32, i32) {
    %c0_i32 = arith.constant 0 : i32
    %c0_i32_0 = arith.constant 0 : i32
    %c0_i32_1 = arith.constant 0 : i32
    return %c0_i32, %c0_i32_0 : i32, i32
  }
  func.func @transform_6(%arg0: i32) -> (i32, i32) {
    %c0_i32 = arith.constant 0 : i32
    %c0_i32_0 = arith.constant 0 : i32
    %c0_i32_1 = arith.constant 0 : i32
    return %c0_i32, %c0_i32_0 : i32, i32
  }
  func.func @transform_7(%arg0: i32) -> (i32, i32, i32) {
    %c0_i32 = arith.constant 0 : i32
    %c0_i32_0 = arith.constant 0 : i32
    %c0_i32_1 = arith.constant 0 : i32
    return %arg0, %c0_i32, %c0_i32_0 : i32, i32, i32
  }
}

module attributes {stable_mosaic.version = 11 : i64} {
  func.func @kernel(%arg0: i32, %arg1: memref<1x4x256xf32, #tpu.memory_space<vmem>>, %arg2: memref<8x36xbf16, #tpu.memory_space<vmem>>, %arg3: memref<8x1xf32, #tpu.memory_space<vmem>>, %arg4: memref<8x1xf32, #tpu.memory_space<vmem>>, %arg5: memref<8x72xbf16, #tpu.memory_space<vmem>>, %arg6: memref<8x1xf32, #tpu.memory_space<vmem>>, %arg7: memref<8x1xf32, #tpu.memory_space<vmem>>, %arg8: memref<1x8x256xf32, #tpu.memory_space<vmem>>) attributes {dimension_semantics = [#tpu.dimension_semantics<parallel>], iteration_bounds = array<i64: 2>, scalar_prefetch = 0 : i64, scratch_operands = 0 : i64, tpu.core_type = #tpu.core_type<tc>, window_params = [{transform_indices = @transform_0, window_bounds = array<i64: 1, 4, 256>}, {pipeline_mode = #tpu.pipeline_mode<synchronous>, transform_indices = @transform_1, window_bounds = array<i64: 8, 36>}, {pipeline_mode = #tpu.pipeline_mode<synchronous>, transform_indices = @transform_2, window_bounds = array<i64: 8, 1>}, {pipeline_mode = #tpu.pipeline_mode<synchronous>, transform_indices = @transform_3, window_bounds = array<i64: 8, 1>}, {pipeline_mode = #tpu.pipeline_mode<synchronous>, transform_indices = @transform_4, window_bounds = array<i64: 8, 72>}, {pipeline_mode = #tpu.pipeline_mode<synchronous>, transform_indices = @transform_5, window_bounds = array<i64: 8, 1>}, {pipeline_mode = #tpu.pipeline_mode<synchronous>, transform_indices = @transform_6, window_bounds = array<i64: 8, 1>}, {transform_indices = @transform_7, window_bounds = array<i64: 1, 8, 256>}]} {
    %c0 = arith.constant 0 : index
    %c0_0 = arith.constant 0 : index
    %c0_1 = arith.constant 0 : index
    %0 = vector.load %arg1[%c0, %c0_0, %c0_1] : memref<1x4x256xf32, #tpu.memory_space<vmem>>, vector<1x4x256xf32>
    %1 = vector.shape_cast %0 : vector<1x4x256xf32> to vector<4x256xf32>
    %2 = tpu.iota {dimensions = array<i32: 1>} : vector<1x256xi32>
    %c16_i32 = arith.constant 16 : i32
    %c0_i32 = arith.constant 0 : i32
    %3 = arith.cmpi eq, %c16_i32, %c0_i32 : i32
    %c1_i32 = arith.constant 1 : i32
    %4 = arith.select %3, %c1_i32, %c16_i32 : i32
    %5 = vector.broadcast %4 : i32 to vector<1x256xi32>
    %6 = arith.remsi %2, %5 : vector<1x256xi32>
    %c0_i32_2 = arith.constant 0 : i32
    %7 = vector.broadcast %c0_i32_2 : i32 to vector<1x256xi32>
    %8 = arith.cmpi ne, %6, %7 : vector<1x256xi32>
    %c0_i32_3 = arith.constant 0 : i32
    %9 = vector.broadcast %c0_i32_3 : i32 to vector<1x256xi32>
    %10 = arith.cmpi slt, %6, %9 : vector<1x256xi32>
    %c0_i32_4 = arith.constant 0 : i32
    %11 = arith.cmpi slt, %4, %c0_i32_4 : i32
    %12 = vector.broadcast %11 : i1 to vector<1x256xi1>
    %13 = vector.broadcast %12 : vector<1x256xi1> to vector<1x256xi1>
    %14 = arith.xori %10, %13 : vector<1x256xi1>
    %15 = arith.andi %14, %8 : vector<1x256xi1>
    %16 = vector.broadcast %4 : i32 to vector<1x256xi32>
    %17 = arith.addi %6, %16 : vector<1x256xi32>
    %18 = arith.select %15, %17, %6 : vector<1x256xi1>, vector<1x256xi32>
    %c1_i32_5 = arith.constant 1 : i32
    %19 = vector.broadcast %c1_i32_5 : i32 to vector<1x256xi32>
    %20 = arith.cmpi sge, %18, %19 : vector<1x256xi32>
    %21 = arith.extui %20 : vector<1x256xi1> to vector<1x256xi32>
    %22 = arith.sitofp %21 : vector<1x256xi32> to vector<1x256xf32>
    %23 = arith.truncf %22 : vector<1x256xf32> to vector<1x256xbf16>
    %c14_i32 = arith.constant 14 : i32
    %24 = vector.broadcast %c14_i32 : i32 to vector<1x256xi32>
    %25 = arith.cmpi sle, %18, %24 : vector<1x256xi32>
    %26 = arith.extui %25 : vector<1x256xi1> to vector<1x256xi32>
    %27 = arith.sitofp %26 : vector<1x256xi32> to vector<1x256xf32>
    %28 = arith.truncf %27 : vector<1x256xf32> to vector<1x256xbf16>
    %c0_6 = arith.constant 0 : index
    %c0_7 = arith.constant 0 : index
    %29 = vector.load %arg2[%c0_6, %c0_7] : memref<8x36xbf16, #tpu.memory_space<vmem>>, vector<8x36xbf16>
    %c0_8 = arith.constant 0 : index
    %c0_9 = arith.constant 0 : index
    %30 = vector.load %arg3[%c0_8, %c0_9] : memref<8x1xf32, #tpu.memory_space<vmem>>, vector<8x1xf32>
    %c0_10 = arith.constant 0 : index
    %c0_11 = arith.constant 0 : index
    %31 = vector.load %arg4[%c0_10, %c0_11] : memref<8x1xf32, #tpu.memory_space<vmem>>, vector<8x1xf32>
    %32 = arith.truncf %1 : vector<4x256xf32> to vector<4x256xbf16>
    %cst = arith.constant 0.000000e+00 : bf16
    %33 = vector.broadcast %cst : bf16 to vector<4x17xbf16>
    %34 = tpu.concatenate %33, %32, %33 in 1 : vector<4x17xbf16>, vector<4x256xbf16>, vector<4x17xbf16> -> vector<4x290xbf16>
    %35 = vector.extract_strided_slice %34 {offsets = [0, 0], sizes = [4, 256], strides = [1, 1]} : vector<4x290xbf16> to vector<4x256xbf16>
    %36 = vector.broadcast %23 : vector<1x256xbf16> to vector<4x256xbf16>
    %37 = arith.mulf %35, %36 : vector<4x256xbf16>
    %38 = vector.extract_strided_slice %34 {offsets = [0, 1], sizes = [4, 256], strides = [1, 1]} : vector<4x290xbf16> to vector<4x256xbf16>
    %39 = vector.extract_strided_slice %34 {offsets = [0, 2], sizes = [4, 256], strides = [1, 1]} : vector<4x290xbf16> to vector<4x256xbf16>
    %40 = vector.broadcast %28 : vector<1x256xbf16> to vector<4x256xbf16>
    %41 = arith.mulf %39, %40 : vector<4x256xbf16>
    %42 = vector.extract_strided_slice %34 {offsets = [0, 16], sizes = [4, 256], strides = [1, 1]} : vector<4x290xbf16> to vector<4x256xbf16>
    %43 = vector.broadcast %23 : vector<1x256xbf16> to vector<4x256xbf16>
    %44 = arith.mulf %42, %43 : vector<4x256xbf16>
    %45 = vector.extract_strided_slice %34 {offsets = [0, 17], sizes = [4, 256], strides = [1, 1]} : vector<4x290xbf16> to vector<4x256xbf16>
    %46 = vector.extract_strided_slice %34 {offsets = [0, 18], sizes = [4, 256], strides = [1, 1]} : vector<4x290xbf16> to vector<4x256xbf16>
    %47 = vector.broadcast %28 : vector<1x256xbf16> to vector<4x256xbf16>
    %48 = arith.mulf %46, %47 : vector<4x256xbf16>
    %49 = vector.extract_strided_slice %34 {offsets = [0, 32], sizes = [4, 256], strides = [1, 1]} : vector<4x290xbf16> to vector<4x256xbf16>
    %50 = vector.broadcast %23 : vector<1x256xbf16> to vector<4x256xbf16>
    %51 = arith.mulf %49, %50 : vector<4x256xbf16>
    %52 = vector.extract_strided_slice %34 {offsets = [0, 33], sizes = [4, 256], strides = [1, 1]} : vector<4x290xbf16> to vector<4x256xbf16>
    %53 = vector.extract_strided_slice %34 {offsets = [0, 34], sizes = [4, 256], strides = [1, 1]} : vector<4x290xbf16> to vector<4x256xbf16>
    %54 = vector.broadcast %28 : vector<1x256xbf16> to vector<4x256xbf16>
    %55 = arith.mulf %53, %54 : vector<4x256xbf16>
    %56 = tpu.concatenate %37, %38, %41, %44, %45, %48, %51, %52, %55 in 0 : vector<4x256xbf16>, vector<4x256xbf16>, vector<4x256xbf16>, vector<4x256xbf16>, vector<4x256xbf16>, vector<4x256xbf16>, vector<4x256xbf16>, vector<4x256xbf16>, vector<4x256xbf16> -> vector<36x256xbf16>
    %cst_12 = arith.constant dense<0.000000e+00> : vector<8x256xf32>
    %57 = tpu.matmul %29, %56, %cst_12 {dimension_numbers = #tpu.dot_dimension_numbers<[1], [0], [0], [1], [0, 0, 1, 1], [], []>} : vector<8x36xbf16>, vector<36x256xbf16>, vector<8x256xf32> -> vector<8x256xf32>
    %cst_13 = arith.constant dense<0.000000e+00> : vector<8xf32>
    %58 = vector.multi_reduction <add>, %57, %cst_13 [1] : vector<8x256xf32> to vector<8xf32>
    %59 = vector.shape_cast %58 : vector<8xf32> to vector<8x1xf32>
    %60 = arith.mulf %57, %57 : vector<8x256xf32>
    %cst_14 = arith.constant dense<0.000000e+00> : vector<8xf32>
    %61 = vector.multi_reduction <add>, %60, %cst_14 [1] : vector<8x256xf32> to vector<8xf32>
    %62 = vector.shape_cast %61 : vector<8xf32> to vector<8x1xf32>
    %cst_15 = arith.constant 3.906250e-03 : f32
    %63 = vector.broadcast %cst_15 : f32 to vector<8x1xf32>
    %64 = arith.mulf %59, %63 : vector<8x1xf32>
    %cst_16 = arith.constant 3.906250e-03 : f32
    %65 = vector.broadcast %cst_16 : f32 to vector<8x1xf32>
    %66 = arith.mulf %62, %65 : vector<8x1xf32>
    %67 = arith.mulf %64, %64 : vector<8x1xf32>
    %68 = arith.subf %66, %67 : vector<8x1xf32>
    %cst_17 = arith.constant 9.99999974E-6 : f32
    %69 = vector.broadcast %cst_17 : f32 to vector<8x1xf32>
    %70 = arith.addf %68, %69 : vector<8x1xf32>
    %71 = math.rsqrt %70 : vector<8x1xf32>
    %72 = arith.mulf %30, %71 : vector<8x1xf32>
    %73 = vector.broadcast %64 : vector<8x1xf32> to vector<8x256xf32>
    %74 = arith.subf %57, %73 : vector<8x256xf32>
    %75 = vector.broadcast %72 : vector<8x1xf32> to vector<8x256xf32>
    %76 = arith.mulf %74, %75 : vector<8x256xf32>
    %77 = vector.broadcast %31 : vector<8x1xf32> to vector<8x256xf32>
    %78 = arith.addf %76, %77 : vector<8x256xf32>
    %cst_18 = arith.constant 0.000000e+00 : f32
    %79 = vector.broadcast %cst_18 : f32 to vector<8x256xf32>
    %80 = arith.minimumf %78, %79 : vector<8x256xf32>
    %81 = math.exp %80 : vector<8x256xf32>
    %cst_19 = arith.constant 1.000000e+00 : f32
    %82 = vector.broadcast %cst_19 : f32 to vector<8x256xf32>
    %83 = arith.subf %81, %82 : vector<8x256xf32>
    %cst_20 = arith.constant 1.67326319 : f32
    %84 = vector.broadcast %cst_20 : f32 to vector<8x256xf32>
    %85 = arith.mulf %84, %83 : vector<8x256xf32>
    %cst_21 = arith.constant 0.000000e+00 : f32
    %86 = vector.broadcast %cst_21 : f32 to vector<8x256xf32>
    %87 = arith.cmpf ogt, %78, %86 : vector<8x256xf32>
    %88 = arith.select %87, %78, %85 : vector<8x256xi1>, vector<8x256xf32>
    %cst_22 = arith.constant 1.05070102 : f32
    %89 = vector.broadcast %cst_22 : f32 to vector<8x256xf32>
    %90 = arith.mulf %89, %88 : vector<8x256xf32>
    %c0_23 = arith.constant 0 : index
    %c0_24 = arith.constant 0 : index
    %91 = vector.load %arg5[%c0_23, %c0_24] : memref<8x72xbf16, #tpu.memory_space<vmem>>, vector<8x72xbf16>
    %c0_25 = arith.constant 0 : index
    %c0_26 = arith.constant 0 : index
    %92 = vector.load %arg6[%c0_25, %c0_26] : memref<8x1xf32, #tpu.memory_space<vmem>>, vector<8x1xf32>
    %c0_27 = arith.constant 0 : index
    %c0_28 = arith.constant 0 : index
    %93 = vector.load %arg7[%c0_27, %c0_28] : memref<8x1xf32, #tpu.memory_space<vmem>>, vector<8x1xf32>
    %94 = arith.truncf %90 : vector<8x256xf32> to vector<8x256xbf16>
    %cst_29 = arith.constant 0.000000e+00 : bf16
    %95 = vector.broadcast %cst_29 : bf16 to vector<8x17xbf16>
    %96 = tpu.concatenate %95, %94, %95 in 1 : vector<8x17xbf16>, vector<8x256xbf16>, vector<8x17xbf16> -> vector<8x290xbf16>
    %97 = vector.extract_strided_slice %96 {offsets = [0, 0], sizes = [8, 256], strides = [1, 1]} : vector<8x290xbf16> to vector<8x256xbf16>
    %98 = vector.broadcast %23 : vector<1x256xbf16> to vector<8x256xbf16>
    %99 = arith.mulf %97, %98 : vector<8x256xbf16>
    %100 = vector.extract_strided_slice %96 {offsets = [0, 1], sizes = [8, 256], strides = [1, 1]} : vector<8x290xbf16> to vector<8x256xbf16>
    %101 = vector.extract_strided_slice %96 {offsets = [0, 2], sizes = [8, 256], strides = [1, 1]} : vector<8x290xbf16> to vector<8x256xbf16>
    %102 = vector.broadcast %28 : vector<1x256xbf16> to vector<8x256xbf16>
    %103 = arith.mulf %101, %102 : vector<8x256xbf16>
    %104 = vector.extract_strided_slice %96 {offsets = [0, 16], sizes = [8, 256], strides = [1, 1]} : vector<8x290xbf16> to vector<8x256xbf16>
    %105 = vector.broadcast %23 : vector<1x256xbf16> to vector<8x256xbf16>
    %106 = arith.mulf %104, %105 : vector<8x256xbf16>
    %107 = vector.extract_strided_slice %96 {offsets = [0, 17], sizes = [8, 256], strides = [1, 1]} : vector<8x290xbf16> to vector<8x256xbf16>
    %108 = vector.extract_strided_slice %96 {offsets = [0, 18], sizes = [8, 256], strides = [1, 1]} : vector<8x290xbf16> to vector<8x256xbf16>
    %109 = vector.broadcast %28 : vector<1x256xbf16> to vector<8x256xbf16>
    %110 = arith.mulf %108, %109 : vector<8x256xbf16>
    %111 = vector.extract_strided_slice %96 {offsets = [0, 32], sizes = [8, 256], strides = [1, 1]} : vector<8x290xbf16> to vector<8x256xbf16>
    %112 = vector.broadcast %23 : vector<1x256xbf16> to vector<8x256xbf16>
    %113 = arith.mulf %111, %112 : vector<8x256xbf16>
    %114 = vector.extract_strided_slice %96 {offsets = [0, 33], sizes = [8, 256], strides = [1, 1]} : vector<8x290xbf16> to vector<8x256xbf16>
    %115 = vector.extract_strided_slice %96 {offsets = [0, 34], sizes = [8, 256], strides = [1, 1]} : vector<8x290xbf16> to vector<8x256xbf16>
    %116 = vector.broadcast %28 : vector<1x256xbf16> to vector<8x256xbf16>
    %117 = arith.mulf %115, %116 : vector<8x256xbf16>
    %118 = tpu.concatenate %99, %100, %103, %106, %107, %110, %113, %114, %117 in 0 : vector<8x256xbf16>, vector<8x256xbf16>, vector<8x256xbf16>, vector<8x256xbf16>, vector<8x256xbf16>, vector<8x256xbf16>, vector<8x256xbf16>, vector<8x256xbf16>, vector<8x256xbf16> -> vector<72x256xbf16>
    %cst_30 = arith.constant dense<0.000000e+00> : vector<8x256xf32>
    %119 = tpu.matmul %91, %118, %cst_30 {dimension_numbers = #tpu.dot_dimension_numbers<[1], [0], [0], [1], [0, 0, 1, 1], [], []>} : vector<8x72xbf16>, vector<72x256xbf16>, vector<8x256xf32> -> vector<8x256xf32>
    %cst_31 = arith.constant dense<0.000000e+00> : vector<8xf32>
    %120 = vector.multi_reduction <add>, %119, %cst_31 [1] : vector<8x256xf32> to vector<8xf32>
    %121 = vector.shape_cast %120 : vector<8xf32> to vector<8x1xf32>
    %122 = arith.mulf %119, %119 : vector<8x256xf32>
    %cst_32 = arith.constant dense<0.000000e+00> : vector<8xf32>
    %123 = vector.multi_reduction <add>, %122, %cst_32 [1] : vector<8x256xf32> to vector<8xf32>
    %124 = vector.shape_cast %123 : vector<8xf32> to vector<8x1xf32>
    %cst_33 = arith.constant 3.906250e-03 : f32
    %125 = vector.broadcast %cst_33 : f32 to vector<8x1xf32>
    %126 = arith.mulf %121, %125 : vector<8x1xf32>
    %cst_34 = arith.constant 3.906250e-03 : f32
    %127 = vector.broadcast %cst_34 : f32 to vector<8x1xf32>
    %128 = arith.mulf %124, %127 : vector<8x1xf32>
    %129 = arith.mulf %126, %126 : vector<8x1xf32>
    %130 = arith.subf %128, %129 : vector<8x1xf32>
    %cst_35 = arith.constant 9.99999974E-6 : f32
    %131 = vector.broadcast %cst_35 : f32 to vector<8x1xf32>
    %132 = arith.addf %130, %131 : vector<8x1xf32>
    %133 = math.rsqrt %132 : vector<8x1xf32>
    %134 = arith.mulf %92, %133 : vector<8x1xf32>
    %135 = vector.broadcast %126 : vector<8x1xf32> to vector<8x256xf32>
    %136 = arith.subf %119, %135 : vector<8x256xf32>
    %137 = vector.broadcast %134 : vector<8x1xf32> to vector<8x256xf32>
    %138 = arith.mulf %136, %137 : vector<8x256xf32>
    %139 = vector.broadcast %93 : vector<8x1xf32> to vector<8x256xf32>
    %140 = arith.addf %138, %139 : vector<8x256xf32>
    %cst_36 = arith.constant 0.000000e+00 : f32
    %141 = vector.broadcast %cst_36 : f32 to vector<8x256xf32>
    %142 = arith.minimumf %140, %141 : vector<8x256xf32>
    %143 = math.exp %142 : vector<8x256xf32>
    %cst_37 = arith.constant 1.000000e+00 : f32
    %144 = vector.broadcast %cst_37 : f32 to vector<8x256xf32>
    %145 = arith.subf %143, %144 : vector<8x256xf32>
    %cst_38 = arith.constant 1.67326319 : f32
    %146 = vector.broadcast %cst_38 : f32 to vector<8x256xf32>
    %147 = arith.mulf %146, %145 : vector<8x256xf32>
    %cst_39 = arith.constant 0.000000e+00 : f32
    %148 = vector.broadcast %cst_39 : f32 to vector<8x256xf32>
    %149 = arith.cmpf ogt, %140, %148 : vector<8x256xf32>
    %150 = arith.select %149, %140, %147 : vector<8x256xi1>, vector<8x256xf32>
    %cst_40 = arith.constant 1.05070102 : f32
    %151 = vector.broadcast %cst_40 : f32 to vector<8x256xf32>
    %152 = arith.mulf %151, %150 : vector<8x256xf32>
    %c0_41 = arith.constant 0 : index
    %c0_42 = arith.constant 0 : index
    %c0_43 = arith.constant 0 : index
    %153 = vector.load %arg8[%c0_41, %c0_42, %c0_43] : memref<1x8x256xf32, #tpu.memory_space<vmem>>, vector<1x8x256xf32>
    %154 = vector.shape_cast %153 : vector<1x8x256xf32> to vector<8x256xf32>
    %155 = vector.shape_cast %152 : vector<8x256xf32> to vector<1x8x256xf32>
    tpu.vector_store %arg8[%c0_41, %c0_42, %c0_43], %155 {strides = array<i32>} : memref<1x8x256xf32, #tpu.memory_space<vmem>>, vector<1x8x256xf32>,
    return
  }
  func.func @transform_0(%arg0: i32) -> (i32, i32, i32) {
    %c0_i32 = arith.constant 0 : i32
    %c0_i32_0 = arith.constant 0 : i32
    %c0_i32_1 = arith.constant 0 : i32
    return %arg0, %c0_i32, %c0_i32_0 : i32, i32, i32
  }
  func.func @transform_1(%arg0: i32) -> (i32, i32) {
    %c0_i32 = arith.constant 0 : i32
    %c0_i32_0 = arith.constant 0 : i32
    %c0_i32_1 = arith.constant 0 : i32
    return %c0_i32, %c0_i32_0 : i32, i32
  }
  func.func @transform_2(%arg0: i32) -> (i32, i32) {
    %c0_i32 = arith.constant 0 : i32
    %c0_i32_0 = arith.constant 0 : i32
    %c0_i32_1 = arith.constant 0 : i32
    return %c0_i32, %c0_i32_0 : i32, i32
  }
  func.func @transform_3(%arg0: i32) -> (i32, i32) {
    %c0_i32 = arith.constant 0 : i32
    %c0_i32_0 = arith.constant 0 : i32
    %c0_i32_1 = arith.constant 0 : i32
    return %c0_i32, %c0_i32_0 : i32, i32
  }
  func.func @transform_4(%arg0: i32) -> (i32, i32) {
    %c0_i32 = arith.constant 0 : i32
    %c0_i32_0 = arith.constant 0 : i32
    %c0_i32_1 = arith.constant 0 : i32
    return %c0_i32, %c0_i32_0 : i32, i32
  }
  func.func @transform_5(%arg0: i32) -> (i32, i32) {
    %c0_i32 = arith.constant 0 : i32
    %c0_i32_0 = arith.constant 0 : i32
    %c0_i32_1 = arith.constant 0 : i32
    return %c0_i32, %c0_i32_0 : i32, i32
  }
  func.func @transform_6(%arg0: i32) -> (i32, i32) {
    %c0_i32 = arith.constant 0 : i32
    %c0_i32_0 = arith.constant 0 : i32
    %c0_i32_1 = arith.constant 0 : i32
    return %c0_i32, %c0_i32_0 : i32, i32
  }
  func.func @transform_7(%arg0: i32) -> (i32, i32, i32) {
    %c0_i32 = arith.constant 0 : i32
    %c0_i32_0 = arith.constant 0 : i32
    %c0_i32_1 = arith.constant 0 : i32
    return %arg0, %c0_i32, %c0_i32_0 : i32, i32, i32
  }
}

module attributes {stable_mosaic.version = 11 : i64} {
  func.func @kernel(%arg0: i32, %arg1: memref<1x8x64xf32, #tpu.memory_space<vmem>>, %arg2: memref<16x72xbf16, #tpu.memory_space<vmem>>, %arg3: memref<16x1xf32, #tpu.memory_space<vmem>>, %arg4: memref<16x1xf32, #tpu.memory_space<vmem>>, %arg5: memref<16x144xbf16, #tpu.memory_space<vmem>>, %arg6: memref<16x1xf32, #tpu.memory_space<vmem>>, %arg7: memref<16x1xf32, #tpu.memory_space<vmem>>, %arg8: memref<1x16x64xf32, #tpu.memory_space<vmem>>) attributes {dimension_semantics = [#tpu.dimension_semantics<parallel>], iteration_bounds = array<i64: 2>, scalar_prefetch = 0 : i64, scratch_operands = 0 : i64, tpu.core_type = #tpu.core_type<tc>, window_params = [{transform_indices = @transform_0, window_bounds = array<i64: 1, 8, 64>}, {pipeline_mode = #tpu.pipeline_mode<synchronous>, transform_indices = @transform_1, window_bounds = array<i64: 16, 72>}, {pipeline_mode = #tpu.pipeline_mode<synchronous>, transform_indices = @transform_2, window_bounds = array<i64: 16, 1>}, {pipeline_mode = #tpu.pipeline_mode<synchronous>, transform_indices = @transform_3, window_bounds = array<i64: 16, 1>}, {pipeline_mode = #tpu.pipeline_mode<synchronous>, transform_indices = @transform_4, window_bounds = array<i64: 16, 144>}, {pipeline_mode = #tpu.pipeline_mode<synchronous>, transform_indices = @transform_5, window_bounds = array<i64: 16, 1>}, {pipeline_mode = #tpu.pipeline_mode<synchronous>, transform_indices = @transform_6, window_bounds = array<i64: 16, 1>}, {transform_indices = @transform_7, window_bounds = array<i64: 1, 16, 64>}]} {
    %c0 = arith.constant 0 : index
    %c0_0 = arith.constant 0 : index
    %c0_1 = arith.constant 0 : index
    %0 = vector.load %arg1[%c0, %c0_0, %c0_1] : memref<1x8x64xf32, #tpu.memory_space<vmem>>, vector<1x8x64xf32>
    %1 = vector.shape_cast %0 : vector<1x8x64xf32> to vector<8x64xf32>
    %2 = tpu.iota {dimensions = array<i32: 1>} : vector<1x64xi32>
    %c8_i32 = arith.constant 8 : i32
    %c0_i32 = arith.constant 0 : i32
    %3 = arith.cmpi eq, %c8_i32, %c0_i32 : i32
    %c1_i32 = arith.constant 1 : i32
    %4 = arith.select %3, %c1_i32, %c8_i32 : i32
    %5 = vector.broadcast %4 : i32 to vector<1x64xi32>
    %6 = arith.remsi %2, %5 : vector<1x64xi32>
    %c0_i32_2 = arith.constant 0 : i32
    %7 = vector.broadcast %c0_i32_2 : i32 to vector<1x64xi32>
    %8 = arith.cmpi ne, %6, %7 : vector<1x64xi32>
    %c0_i32_3 = arith.constant 0 : i32
    %9 = vector.broadcast %c0_i32_3 : i32 to vector<1x64xi32>
    %10 = arith.cmpi slt, %6, %9 : vector<1x64xi32>
    %c0_i32_4 = arith.constant 0 : i32
    %11 = arith.cmpi slt, %4, %c0_i32_4 : i32
    %12 = vector.broadcast %11 : i1 to vector<1x64xi1>
    %13 = vector.broadcast %12 : vector<1x64xi1> to vector<1x64xi1>
    %14 = arith.xori %10, %13 : vector<1x64xi1>
    %15 = arith.andi %14, %8 : vector<1x64xi1>
    %16 = vector.broadcast %4 : i32 to vector<1x64xi32>
    %17 = arith.addi %6, %16 : vector<1x64xi32>
    %18 = arith.select %15, %17, %6 : vector<1x64xi1>, vector<1x64xi32>
    %c1_i32_5 = arith.constant 1 : i32
    %19 = vector.broadcast %c1_i32_5 : i32 to vector<1x64xi32>
    %20 = arith.cmpi sge, %18, %19 : vector<1x64xi32>
    %21 = arith.extui %20 : vector<1x64xi1> to vector<1x64xi32>
    %22 = arith.sitofp %21 : vector<1x64xi32> to vector<1x64xf32>
    %23 = arith.truncf %22 : vector<1x64xf32> to vector<1x64xbf16>
    %c6_i32 = arith.constant 6 : i32
    %24 = vector.broadcast %c6_i32 : i32 to vector<1x64xi32>
    %25 = arith.cmpi sle, %18, %24 : vector<1x64xi32>
    %26 = arith.extui %25 : vector<1x64xi1> to vector<1x64xi32>
    %27 = arith.sitofp %26 : vector<1x64xi32> to vector<1x64xf32>
    %28 = arith.truncf %27 : vector<1x64xf32> to vector<1x64xbf16>
    %c0_6 = arith.constant 0 : index
    %c0_7 = arith.constant 0 : index
    %29 = vector.load %arg2[%c0_6, %c0_7] : memref<16x72xbf16, #tpu.memory_space<vmem>>, vector<16x72xbf16>
    %c0_8 = arith.constant 0 : index
    %c0_9 = arith.constant 0 : index
    %30 = vector.load %arg3[%c0_8, %c0_9] : memref<16x1xf32, #tpu.memory_space<vmem>>, vector<16x1xf32>
    %c0_10 = arith.constant 0 : index
    %c0_11 = arith.constant 0 : index
    %31 = vector.load %arg4[%c0_10, %c0_11] : memref<16x1xf32, #tpu.memory_space<vmem>>, vector<16x1xf32>
    %32 = arith.truncf %1 : vector<8x64xf32> to vector<8x64xbf16>
    %cst = arith.constant 0.000000e+00 : bf16
    %33 = vector.broadcast %cst : bf16 to vector<8x9xbf16>
    %34 = tpu.concatenate %33, %32, %33 in 1 : vector<8x9xbf16>, vector<8x64xbf16>, vector<8x9xbf16> -> vector<8x82xbf16>
    %35 = vector.extract_strided_slice %34 {offsets = [0, 0], sizes = [8, 64], strides = [1, 1]} : vector<8x82xbf16> to vector<8x64xbf16>
    %36 = vector.broadcast %23 : vector<1x64xbf16> to vector<8x64xbf16>
    %37 = arith.mulf %35, %36 : vector<8x64xbf16>
    %38 = vector.extract_strided_slice %34 {offsets = [0, 1], sizes = [8, 64], strides = [1, 1]} : vector<8x82xbf16> to vector<8x64xbf16>
    %39 = vector.extract_strided_slice %34 {offsets = [0, 2], sizes = [8, 64], strides = [1, 1]} : vector<8x82xbf16> to vector<8x64xbf16>
    %40 = vector.broadcast %28 : vector<1x64xbf16> to vector<8x64xbf16>
    %41 = arith.mulf %39, %40 : vector<8x64xbf16>
    %42 = vector.extract_strided_slice %34 {offsets = [0, 8], sizes = [8, 64], strides = [1, 1]} : vector<8x82xbf16> to vector<8x64xbf16>
    %43 = vector.broadcast %23 : vector<1x64xbf16> to vector<8x64xbf16>
    %44 = arith.mulf %42, %43 : vector<8x64xbf16>
    %45 = vector.extract_strided_slice %34 {offsets = [0, 9], sizes = [8, 64], strides = [1, 1]} : vector<8x82xbf16> to vector<8x64xbf16>
    %46 = vector.extract_strided_slice %34 {offsets = [0, 10], sizes = [8, 64], strides = [1, 1]} : vector<8x82xbf16> to vector<8x64xbf16>
    %47 = vector.broadcast %28 : vector<1x64xbf16> to vector<8x64xbf16>
    %48 = arith.mulf %46, %47 : vector<8x64xbf16>
    %49 = vector.extract_strided_slice %34 {offsets = [0, 16], sizes = [8, 64], strides = [1, 1]} : vector<8x82xbf16> to vector<8x64xbf16>
    %50 = vector.broadcast %23 : vector<1x64xbf16> to vector<8x64xbf16>
    %51 = arith.mulf %49, %50 : vector<8x64xbf16>
    %52 = vector.extract_strided_slice %34 {offsets = [0, 17], sizes = [8, 64], strides = [1, 1]} : vector<8x82xbf16> to vector<8x64xbf16>
    %53 = vector.extract_strided_slice %34 {offsets = [0, 18], sizes = [8, 64], strides = [1, 1]} : vector<8x82xbf16> to vector<8x64xbf16>
    %54 = vector.broadcast %28 : vector<1x64xbf16> to vector<8x64xbf16>
    %55 = arith.mulf %53, %54 : vector<8x64xbf16>
    %56 = tpu.concatenate %37, %38, %41, %44, %45, %48, %51, %52, %55 in 0 : vector<8x64xbf16>, vector<8x64xbf16>, vector<8x64xbf16>, vector<8x64xbf16>, vector<8x64xbf16>, vector<8x64xbf16>, vector<8x64xbf16>, vector<8x64xbf16>, vector<8x64xbf16> -> vector<72x64xbf16>
    %cst_12 = arith.constant dense<0.000000e+00> : vector<16x64xf32>
    %57 = tpu.matmul %29, %56, %cst_12 {dimension_numbers = #tpu.dot_dimension_numbers<[1], [0], [0], [1], [0, 0, 1, 1], [], []>} : vector<16x72xbf16>, vector<72x64xbf16>, vector<16x64xf32> -> vector<16x64xf32>
    %cst_13 = arith.constant dense<0.000000e+00> : vector<16xf32>
    %58 = vector.multi_reduction <add>, %57, %cst_13 [1] : vector<16x64xf32> to vector<16xf32>
    %59 = vector.shape_cast %58 : vector<16xf32> to vector<16x1xf32>
    %60 = arith.mulf %57, %57 : vector<16x64xf32>
    %cst_14 = arith.constant dense<0.000000e+00> : vector<16xf32>
    %61 = vector.multi_reduction <add>, %60, %cst_14 [1] : vector<16x64xf32> to vector<16xf32>
    %62 = vector.shape_cast %61 : vector<16xf32> to vector<16x1xf32>
    %cst_15 = arith.constant 1.562500e-02 : f32
    %63 = vector.broadcast %cst_15 : f32 to vector<16x1xf32>
    %64 = arith.mulf %59, %63 : vector<16x1xf32>
    %cst_16 = arith.constant 1.562500e-02 : f32
    %65 = vector.broadcast %cst_16 : f32 to vector<16x1xf32>
    %66 = arith.mulf %62, %65 : vector<16x1xf32>
    %67 = arith.mulf %64, %64 : vector<16x1xf32>
    %68 = arith.subf %66, %67 : vector<16x1xf32>
    %cst_17 = arith.constant 9.99999974E-6 : f32
    %69 = vector.broadcast %cst_17 : f32 to vector<16x1xf32>
    %70 = arith.addf %68, %69 : vector<16x1xf32>
    %71 = math.rsqrt %70 : vector<16x1xf32>
    %72 = arith.mulf %30, %71 : vector<16x1xf32>
    %73 = vector.broadcast %64 : vector<16x1xf32> to vector<16x64xf32>
    %74 = arith.subf %57, %73 : vector<16x64xf32>
    %75 = vector.broadcast %72 : vector<16x1xf32> to vector<16x64xf32>
    %76 = arith.mulf %74, %75 : vector<16x64xf32>
    %77 = vector.broadcast %31 : vector<16x1xf32> to vector<16x64xf32>
    %78 = arith.addf %76, %77 : vector<16x64xf32>
    %cst_18 = arith.constant 0.000000e+00 : f32
    %79 = vector.broadcast %cst_18 : f32 to vector<16x64xf32>
    %80 = arith.minimumf %78, %79 : vector<16x64xf32>
    %81 = math.exp %80 : vector<16x64xf32>
    %cst_19 = arith.constant 1.000000e+00 : f32
    %82 = vector.broadcast %cst_19 : f32 to vector<16x64xf32>
    %83 = arith.subf %81, %82 : vector<16x64xf32>
    %cst_20 = arith.constant 1.67326319 : f32
    %84 = vector.broadcast %cst_20 : f32 to vector<16x64xf32>
    %85 = arith.mulf %84, %83 : vector<16x64xf32>
    %cst_21 = arith.constant 0.000000e+00 : f32
    %86 = vector.broadcast %cst_21 : f32 to vector<16x64xf32>
    %87 = arith.cmpf ogt, %78, %86 : vector<16x64xf32>
    %88 = arith.select %87, %78, %85 : vector<16x64xi1>, vector<16x64xf32>
    %cst_22 = arith.constant 1.05070102 : f32
    %89 = vector.broadcast %cst_22 : f32 to vector<16x64xf32>
    %90 = arith.mulf %89, %88 : vector<16x64xf32>
    %c0_23 = arith.constant 0 : index
    %c0_24 = arith.constant 0 : index
    %91 = vector.load %arg5[%c0_23, %c0_24] : memref<16x144xbf16, #tpu.memory_space<vmem>>, vector<16x144xbf16>
    %c0_25 = arith.constant 0 : index
    %c0_26 = arith.constant 0 : index
    %92 = vector.load %arg6[%c0_25, %c0_26] : memref<16x1xf32, #tpu.memory_space<vmem>>, vector<16x1xf32>
    %c0_27 = arith.constant 0 : index
    %c0_28 = arith.constant 0 : index
    %93 = vector.load %arg7[%c0_27, %c0_28] : memref<16x1xf32, #tpu.memory_space<vmem>>, vector<16x1xf32>
    %94 = arith.truncf %90 : vector<16x64xf32> to vector<16x64xbf16>
    %cst_29 = arith.constant 0.000000e+00 : bf16
    %95 = vector.broadcast %cst_29 : bf16 to vector<16x9xbf16>
    %96 = tpu.concatenate %95, %94, %95 in 1 : vector<16x9xbf16>, vector<16x64xbf16>, vector<16x9xbf16> -> vector<16x82xbf16>
    %97 = vector.extract_strided_slice %96 {offsets = [0, 0], sizes = [16, 64], strides = [1, 1]} : vector<16x82xbf16> to vector<16x64xbf16>
    %98 = vector.broadcast %23 : vector<1x64xbf16> to vector<16x64xbf16>
    %99 = arith.mulf %97, %98 : vector<16x64xbf16>
    %100 = vector.extract_strided_slice %96 {offsets = [0, 1], sizes = [16, 64], strides = [1, 1]} : vector<16x82xbf16> to vector<16x64xbf16>
    %101 = vector.extract_strided_slice %96 {offsets = [0, 2], sizes = [16, 64], strides = [1, 1]} : vector<16x82xbf16> to vector<16x64xbf16>
    %102 = vector.broadcast %28 : vector<1x64xbf16> to vector<16x64xbf16>
    %103 = arith.mulf %101, %102 : vector<16x64xbf16>
    %104 = vector.extract_strided_slice %96 {offsets = [0, 8], sizes = [16, 64], strides = [1, 1]} : vector<16x82xbf16> to vector<16x64xbf16>
    %105 = vector.broadcast %23 : vector<1x64xbf16> to vector<16x64xbf16>
    %106 = arith.mulf %104, %105 : vector<16x64xbf16>
    %107 = vector.extract_strided_slice %96 {offsets = [0, 9], sizes = [16, 64], strides = [1, 1]} : vector<16x82xbf16> to vector<16x64xbf16>
    %108 = vector.extract_strided_slice %96 {offsets = [0, 10], sizes = [16, 64], strides = [1, 1]} : vector<16x82xbf16> to vector<16x64xbf16>
    %109 = vector.broadcast %28 : vector<1x64xbf16> to vector<16x64xbf16>
    %110 = arith.mulf %108, %109 : vector<16x64xbf16>
    %111 = vector.extract_strided_slice %96 {offsets = [0, 16], sizes = [16, 64], strides = [1, 1]} : vector<16x82xbf16> to vector<16x64xbf16>
    %112 = vector.broadcast %23 : vector<1x64xbf16> to vector<16x64xbf16>
    %113 = arith.mulf %111, %112 : vector<16x64xbf16>
    %114 = vector.extract_strided_slice %96 {offsets = [0, 17], sizes = [16, 64], strides = [1, 1]} : vector<16x82xbf16> to vector<16x64xbf16>
    %115 = vector.extract_strided_slice %96 {offsets = [0, 18], sizes = [16, 64], strides = [1, 1]} : vector<16x82xbf16> to vector<16x64xbf16>
    %116 = vector.broadcast %28 : vector<1x64xbf16> to vector<16x64xbf16>
    %117 = arith.mulf %115, %116 : vector<16x64xbf16>
    %118 = tpu.concatenate %99, %100, %103, %106, %107, %110, %113, %114, %117 in 0 : vector<16x64xbf16>, vector<16x64xbf16>, vector<16x64xbf16>, vector<16x64xbf16>, vector<16x64xbf16>, vector<16x64xbf16>, vector<16x64xbf16>, vector<16x64xbf16>, vector<16x64xbf16> -> vector<144x64xbf16>
    %cst_30 = arith.constant dense<0.000000e+00> : vector<16x64xf32>
    %119 = tpu.matmul %91, %118, %cst_30 {dimension_numbers = #tpu.dot_dimension_numbers<[1], [0], [0], [1], [0, 0, 1, 1], [], []>} : vector<16x144xbf16>, vector<144x64xbf16>, vector<16x64xf32> -> vector<16x64xf32>
    %cst_31 = arith.constant dense<0.000000e+00> : vector<16xf32>
    %120 = vector.multi_reduction <add>, %119, %cst_31 [1] : vector<16x64xf32> to vector<16xf32>
    %121 = vector.shape_cast %120 : vector<16xf32> to vector<16x1xf32>
    %122 = arith.mulf %119, %119 : vector<16x64xf32>
    %cst_32 = arith.constant dense<0.000000e+00> : vector<16xf32>
    %123 = vector.multi_reduction <add>, %122, %cst_32 [1] : vector<16x64xf32> to vector<16xf32>
    %124 = vector.shape_cast %123 : vector<16xf32> to vector<16x1xf32>
    %cst_33 = arith.constant 1.562500e-02 : f32
    %125 = vector.broadcast %cst_33 : f32 to vector<16x1xf32>
    %126 = arith.mulf %121, %125 : vector<16x1xf32>
    %cst_34 = arith.constant 1.562500e-02 : f32
    %127 = vector.broadcast %cst_34 : f32 to vector<16x1xf32>
    %128 = arith.mulf %124, %127 : vector<16x1xf32>
    %129 = arith.mulf %126, %126 : vector<16x1xf32>
    %130 = arith.subf %128, %129 : vector<16x1xf32>
    %cst_35 = arith.constant 9.99999974E-6 : f32
    %131 = vector.broadcast %cst_35 : f32 to vector<16x1xf32>
    %132 = arith.addf %130, %131 : vector<16x1xf32>
    %133 = math.rsqrt %132 : vector<16x1xf32>
    %134 = arith.mulf %92, %133 : vector<16x1xf32>
    %135 = vector.broadcast %126 : vector<16x1xf32> to vector<16x64xf32>
    %136 = arith.subf %119, %135 : vector<16x64xf32>
    %137 = vector.broadcast %134 : vector<16x1xf32> to vector<16x64xf32>
    %138 = arith.mulf %136, %137 : vector<16x64xf32>
    %139 = vector.broadcast %93 : vector<16x1xf32> to vector<16x64xf32>
    %140 = arith.addf %138, %139 : vector<16x64xf32>
    %cst_36 = arith.constant 0.000000e+00 : f32
    %141 = vector.broadcast %cst_36 : f32 to vector<16x64xf32>
    %142 = arith.minimumf %140, %141 : vector<16x64xf32>
    %143 = math.exp %142 : vector<16x64xf32>
    %cst_37 = arith.constant 1.000000e+00 : f32
    %144 = vector.broadcast %cst_37 : f32 to vector<16x64xf32>
    %145 = arith.subf %143, %144 : vector<16x64xf32>
    %cst_38 = arith.constant 1.67326319 : f32
    %146 = vector.broadcast %cst_38 : f32 to vector<16x64xf32>
    %147 = arith.mulf %146, %145 : vector<16x64xf32>
    %cst_39 = arith.constant 0.000000e+00 : f32
    %148 = vector.broadcast %cst_39 : f32 to vector<16x64xf32>
    %149 = arith.cmpf ogt, %140, %148 : vector<16x64xf32>
    %150 = arith.select %149, %140, %147 : vector<16x64xi1>, vector<16x64xf32>
    %cst_40 = arith.constant 1.05070102 : f32
    %151 = vector.broadcast %cst_40 : f32 to vector<16x64xf32>
    %152 = arith.mulf %151, %150 : vector<16x64xf32>
    %c0_41 = arith.constant 0 : index
    %c0_42 = arith.constant 0 : index
    %c0_43 = arith.constant 0 : index
    %153 = vector.load %arg8[%c0_41, %c0_42, %c0_43] : memref<1x16x64xf32, #tpu.memory_space<vmem>>, vector<1x16x64xf32>
    %154 = vector.shape_cast %153 : vector<1x16x64xf32> to vector<16x64xf32>
    %155 = vector.shape_cast %152 : vector<16x64xf32> to vector<1x16x64xf32>
    tpu.vector_store %arg8[%c0_41, %c0_42, %c0_43], %155 {strides = array<i32>} : memref<1x16x64xf32, #tpu.memory_space<vmem>>, vector<1x16x64xf32>,
    return
  }
  func.func @transform_0(%arg0: i32) -> (i32, i32, i32) {
    %c0_i32 = arith.constant 0 : i32
    %c0_i32_0 = arith.constant 0 : i32
    %c0_i32_1 = arith.constant 0 : i32
    return %arg0, %c0_i32, %c0_i32_0 : i32, i32, i32
  }
  func.func @transform_1(%arg0: i32) -> (i32, i32) {
    %c0_i32 = arith.constant 0 : i32
    %c0_i32_0 = arith.constant 0 : i32
    %c0_i32_1 = arith.constant 0 : i32
    return %c0_i32, %c0_i32_0 : i32, i32
  }
  func.func @transform_2(%arg0: i32) -> (i32, i32) {
    %c0_i32 = arith.constant 0 : i32
    %c0_i32_0 = arith.constant 0 : i32
    %c0_i32_1 = arith.constant 0 : i32
    return %c0_i32, %c0_i32_0 : i32, i32
  }
  func.func @transform_3(%arg0: i32) -> (i32, i32) {
    %c0_i32 = arith.constant 0 : i32
    %c0_i32_0 = arith.constant 0 : i32
    %c0_i32_1 = arith.constant 0 : i32
    return %c0_i32, %c0_i32_0 : i32, i32
  }
  func.func @transform_4(%arg0: i32) -> (i32, i32) {
    %c0_i32 = arith.constant 0 : i32
    %c0_i32_0 = arith.constant 0 : i32
    %c0_i32_1 = arith.constant 0 : i32
    return %c0_i32, %c0_i32_0 : i32, i32
  }
  func.func @transform_5(%arg0: i32) -> (i32, i32) {
    %c0_i32 = arith.constant 0 : i32
    %c0_i32_0 = arith.constant 0 : i32
    %c0_i32_1 = arith.constant 0 : i32
    return %c0_i32, %c0_i32_0 : i32, i32
  }
  func.func @transform_6(%arg0: i32) -> (i32, i32) {
    %c0_i32 = arith.constant 0 : i32
    %c0_i32_0 = arith.constant 0 : i32
    %c0_i32_1 = arith.constant 0 : i32
    return %c0_i32, %c0_i32_0 : i32, i32
  }
  func.func @transform_7(%arg0: i32) -> (i32, i32, i32) {
    %c0_i32 = arith.constant 0 : i32
    %c0_i32_0 = arith.constant 0 : i32
    %c0_i32_1 = arith.constant 0 : i32
    return %arg0, %c0_i32, %c0_i32_0 : i32, i32, i32
  }
}

module attributes {stable_mosaic.version = 11 : i64} {
  func.func @kernel(%arg0: i32, %arg1: memref<1x16x16xf32, #tpu.memory_space<vmem>>, %arg2: memref<32x144xbf16, #tpu.memory_space<vmem>>, %arg3: memref<32x1xf32, #tpu.memory_space<vmem>>, %arg4: memref<32x1xf32, #tpu.memory_space<vmem>>, %arg5: memref<32x288xbf16, #tpu.memory_space<vmem>>, %arg6: memref<32x1xf32, #tpu.memory_space<vmem>>, %arg7: memref<32x1xf32, #tpu.memory_space<vmem>>, %arg8: memref<1x32x16xf32, #tpu.memory_space<vmem>>) attributes {dimension_semantics = [#tpu.dimension_semantics<parallel>], iteration_bounds = array<i64: 2>, scalar_prefetch = 0 : i64, scratch_operands = 0 : i64, tpu.core_type = #tpu.core_type<tc>, window_params = [{transform_indices = @transform_0, window_bounds = array<i64: 1, 16, 16>}, {pipeline_mode = #tpu.pipeline_mode<synchronous>, transform_indices = @transform_1, window_bounds = array<i64: 32, 144>}, {pipeline_mode = #tpu.pipeline_mode<synchronous>, transform_indices = @transform_2, window_bounds = array<i64: 32, 1>}, {pipeline_mode = #tpu.pipeline_mode<synchronous>, transform_indices = @transform_3, window_bounds = array<i64: 32, 1>}, {pipeline_mode = #tpu.pipeline_mode<synchronous>, transform_indices = @transform_4, window_bounds = array<i64: 32, 288>}, {pipeline_mode = #tpu.pipeline_mode<synchronous>, transform_indices = @transform_5, window_bounds = array<i64: 32, 1>}, {pipeline_mode = #tpu.pipeline_mode<synchronous>, transform_indices = @transform_6, window_bounds = array<i64: 32, 1>}, {transform_indices = @transform_7, window_bounds = array<i64: 1, 32, 16>}]} {
    %c0 = arith.constant 0 : index
    %c0_0 = arith.constant 0 : index
    %c0_1 = arith.constant 0 : index
    %0 = vector.load %arg1[%c0, %c0_0, %c0_1] : memref<1x16x16xf32, #tpu.memory_space<vmem>>, vector<1x16x16xf32>
    %1 = vector.shape_cast %0 : vector<1x16x16xf32> to vector<16x16xf32>
    %2 = tpu.iota {dimensions = array<i32: 1>} : vector<1x16xi32>
    %c4_i32 = arith.constant 4 : i32
    %c0_i32 = arith.constant 0 : i32
    %3 = arith.cmpi eq, %c4_i32, %c0_i32 : i32
    %c1_i32 = arith.constant 1 : i32
    %4 = arith.select %3, %c1_i32, %c4_i32 : i32
    %5 = vector.broadcast %4 : i32 to vector<1x16xi32>
    %6 = arith.remsi %2, %5 : vector<1x16xi32>
    %c0_i32_2 = arith.constant 0 : i32
    %7 = vector.broadcast %c0_i32_2 : i32 to vector<1x16xi32>
    %8 = arith.cmpi ne, %6, %7 : vector<1x16xi32>
    %c0_i32_3 = arith.constant 0 : i32
    %9 = vector.broadcast %c0_i32_3 : i32 to vector<1x16xi32>
    %10 = arith.cmpi slt, %6, %9 : vector<1x16xi32>
    %c0_i32_4 = arith.constant 0 : i32
    %11 = arith.cmpi slt, %4, %c0_i32_4 : i32
    %12 = vector.broadcast %11 : i1 to vector<1x16xi1>
    %13 = vector.broadcast %12 : vector<1x16xi1> to vector<1x16xi1>
    %14 = arith.xori %10, %13 : vector<1x16xi1>
    %15 = arith.andi %14, %8 : vector<1x16xi1>
    %16 = vector.broadcast %4 : i32 to vector<1x16xi32>
    %17 = arith.addi %6, %16 : vector<1x16xi32>
    %18 = arith.select %15, %17, %6 : vector<1x16xi1>, vector<1x16xi32>
    %c1_i32_5 = arith.constant 1 : i32
    %19 = vector.broadcast %c1_i32_5 : i32 to vector<1x16xi32>
    %20 = arith.cmpi sge, %18, %19 : vector<1x16xi32>
    %21 = arith.extui %20 : vector<1x16xi1> to vector<1x16xi32>
    %22 = arith.sitofp %21 : vector<1x16xi32> to vector<1x16xf32>
    %23 = arith.truncf %22 : vector<1x16xf32> to vector<1x16xbf16>
    %c2_i32 = arith.constant 2 : i32
    %24 = vector.broadcast %c2_i32 : i32 to vector<1x16xi32>
    %25 = arith.cmpi sle, %18, %24 : vector<1x16xi32>
    %26 = arith.extui %25 : vector<1x16xi1> to vector<1x16xi32>
    %27 = arith.sitofp %26 : vector<1x16xi32> to vector<1x16xf32>
    %28 = arith.truncf %27 : vector<1x16xf32> to vector<1x16xbf16>
    %c0_6 = arith.constant 0 : index
    %c0_7 = arith.constant 0 : index
    %29 = vector.load %arg2[%c0_6, %c0_7] : memref<32x144xbf16, #tpu.memory_space<vmem>>, vector<32x144xbf16>
    %c0_8 = arith.constant 0 : index
    %c0_9 = arith.constant 0 : index
    %30 = vector.load %arg3[%c0_8, %c0_9] : memref<32x1xf32, #tpu.memory_space<vmem>>, vector<32x1xf32>
    %c0_10 = arith.constant 0 : index
    %c0_11 = arith.constant 0 : index
    %31 = vector.load %arg4[%c0_10, %c0_11] : memref<32x1xf32, #tpu.memory_space<vmem>>, vector<32x1xf32>
    %32 = arith.truncf %1 : vector<16x16xf32> to vector<16x16xbf16>
    %cst = arith.constant 0.000000e+00 : bf16
    %33 = vector.broadcast %cst : bf16 to vector<16x5xbf16>
    %34 = tpu.concatenate %33, %32, %33 in 1 : vector<16x5xbf16>, vector<16x16xbf16>, vector<16x5xbf16> -> vector<16x26xbf16>
    %35 = vector.extract_strided_slice %34 {offsets = [0, 0], sizes = [16, 16], strides = [1, 1]} : vector<16x26xbf16> to vector<16x16xbf16>
    %36 = vector.broadcast %23 : vector<1x16xbf16> to vector<16x16xbf16>
    %37 = arith.mulf %35, %36 : vector<16x16xbf16>
    %38 = vector.extract_strided_slice %34 {offsets = [0, 1], sizes = [16, 16], strides = [1, 1]} : vector<16x26xbf16> to vector<16x16xbf16>
    %39 = vector.extract_strided_slice %34 {offsets = [0, 2], sizes = [16, 16], strides = [1, 1]} : vector<16x26xbf16> to vector<16x16xbf16>
    %40 = vector.broadcast %28 : vector<1x16xbf16> to vector<16x16xbf16>
    %41 = arith.mulf %39, %40 : vector<16x16xbf16>
    %42 = vector.extract_strided_slice %34 {offsets = [0, 4], sizes = [16, 16], strides = [1, 1]} : vector<16x26xbf16> to vector<16x16xbf16>
    %43 = vector.broadcast %23 : vector<1x16xbf16> to vector<16x16xbf16>
    %44 = arith.mulf %42, %43 : vector<16x16xbf16>
    %45 = vector.extract_strided_slice %34 {offsets = [0, 5], sizes = [16, 16], strides = [1, 1]} : vector<16x26xbf16> to vector<16x16xbf16>
    %46 = vector.extract_strided_slice %34 {offsets = [0, 6], sizes = [16, 16], strides = [1, 1]} : vector<16x26xbf16> to vector<16x16xbf16>
    %47 = vector.broadcast %28 : vector<1x16xbf16> to vector<16x16xbf16>
    %48 = arith.mulf %46, %47 : vector<16x16xbf16>
    %49 = vector.extract_strided_slice %34 {offsets = [0, 8], sizes = [16, 16], strides = [1, 1]} : vector<16x26xbf16> to vector<16x16xbf16>
    %50 = vector.broadcast %23 : vector<1x16xbf16> to vector<16x16xbf16>
    %51 = arith.mulf %49, %50 : vector<16x16xbf16>
    %52 = vector.extract_strided_slice %34 {offsets = [0, 9], sizes = [16, 16], strides = [1, 1]} : vector<16x26xbf16> to vector<16x16xbf16>
    %53 = vector.extract_strided_slice %34 {offsets = [0, 10], sizes = [16, 16], strides = [1, 1]} : vector<16x26xbf16> to vector<16x16xbf16>
    %54 = vector.broadcast %28 : vector<1x16xbf16> to vector<16x16xbf16>
    %55 = arith.mulf %53, %54 : vector<16x16xbf16>
    %56 = tpu.concatenate %37, %38, %41, %44, %45, %48, %51, %52, %55 in 0 : vector<16x16xbf16>, vector<16x16xbf16>, vector<16x16xbf16>, vector<16x16xbf16>, vector<16x16xbf16>, vector<16x16xbf16>, vector<16x16xbf16>, vector<16x16xbf16>, vector<16x16xbf16> -> vector<144x16xbf16>
    %cst_12 = arith.constant dense<0.000000e+00> : vector<32x16xf32>
    %57 = tpu.matmul %29, %56, %cst_12 {dimension_numbers = #tpu.dot_dimension_numbers<[1], [0], [0], [1], [0, 0, 1, 1], [], []>} : vector<32x144xbf16>, vector<144x16xbf16>, vector<32x16xf32> -> vector<32x16xf32>
    %cst_13 = arith.constant dense<0.000000e+00> : vector<32xf32>
    %58 = vector.multi_reduction <add>, %57, %cst_13 [1] : vector<32x16xf32> to vector<32xf32>
    %59 = vector.shape_cast %58 : vector<32xf32> to vector<32x1xf32>
    %60 = arith.mulf %57, %57 : vector<32x16xf32>
    %cst_14 = arith.constant dense<0.000000e+00> : vector<32xf32>
    %61 = vector.multi_reduction <add>, %60, %cst_14 [1] : vector<32x16xf32> to vector<32xf32>
    %62 = vector.shape_cast %61 : vector<32xf32> to vector<32x1xf32>
    %cst_15 = arith.constant 6.250000e-02 : f32
    %63 = vector.broadcast %cst_15 : f32 to vector<32x1xf32>
    %64 = arith.mulf %59, %63 : vector<32x1xf32>
    %cst_16 = arith.constant 6.250000e-02 : f32
    %65 = vector.broadcast %cst_16 : f32 to vector<32x1xf32>
    %66 = arith.mulf %62, %65 : vector<32x1xf32>
    %67 = arith.mulf %64, %64 : vector<32x1xf32>
    %68 = arith.subf %66, %67 : vector<32x1xf32>
    %cst_17 = arith.constant 9.99999974E-6 : f32
    %69 = vector.broadcast %cst_17 : f32 to vector<32x1xf32>
    %70 = arith.addf %68, %69 : vector<32x1xf32>
    %71 = math.rsqrt %70 : vector<32x1xf32>
    %72 = arith.mulf %30, %71 : vector<32x1xf32>
    %73 = vector.broadcast %64 : vector<32x1xf32> to vector<32x16xf32>
    %74 = arith.subf %57, %73 : vector<32x16xf32>
    %75 = vector.broadcast %72 : vector<32x1xf32> to vector<32x16xf32>
    %76 = arith.mulf %74, %75 : vector<32x16xf32>
    %77 = vector.broadcast %31 : vector<32x1xf32> to vector<32x16xf32>
    %78 = arith.addf %76, %77 : vector<32x16xf32>
    %cst_18 = arith.constant 0.000000e+00 : f32
    %79 = vector.broadcast %cst_18 : f32 to vector<32x16xf32>
    %80 = arith.minimumf %78, %79 : vector<32x16xf32>
    %81 = math.exp %80 : vector<32x16xf32>
    %cst_19 = arith.constant 1.000000e+00 : f32
    %82 = vector.broadcast %cst_19 : f32 to vector<32x16xf32>
    %83 = arith.subf %81, %82 : vector<32x16xf32>
    %cst_20 = arith.constant 1.67326319 : f32
    %84 = vector.broadcast %cst_20 : f32 to vector<32x16xf32>
    %85 = arith.mulf %84, %83 : vector<32x16xf32>
    %cst_21 = arith.constant 0.000000e+00 : f32
    %86 = vector.broadcast %cst_21 : f32 to vector<32x16xf32>
    %87 = arith.cmpf ogt, %78, %86 : vector<32x16xf32>
    %88 = arith.select %87, %78, %85 : vector<32x16xi1>, vector<32x16xf32>
    %cst_22 = arith.constant 1.05070102 : f32
    %89 = vector.broadcast %cst_22 : f32 to vector<32x16xf32>
    %90 = arith.mulf %89, %88 : vector<32x16xf32>
    %c0_23 = arith.constant 0 : index
    %c0_24 = arith.constant 0 : index
    %91 = vector.load %arg5[%c0_23, %c0_24] : memref<32x288xbf16, #tpu.memory_space<vmem>>, vector<32x288xbf16>
    %c0_25 = arith.constant 0 : index
    %c0_26 = arith.constant 0 : index
    %92 = vector.load %arg6[%c0_25, %c0_26] : memref<32x1xf32, #tpu.memory_space<vmem>>, vector<32x1xf32>
    %c0_27 = arith.constant 0 : index
    %c0_28 = arith.constant 0 : index
    %93 = vector.load %arg7[%c0_27, %c0_28] : memref<32x1xf32, #tpu.memory_space<vmem>>, vector<32x1xf32>
    %94 = arith.truncf %90 : vector<32x16xf32> to vector<32x16xbf16>
    %cst_29 = arith.constant 0.000000e+00 : bf16
    %95 = vector.broadcast %cst_29 : bf16 to vector<32x5xbf16>
    %96 = tpu.concatenate %95, %94, %95 in 1 : vector<32x5xbf16>, vector<32x16xbf16>, vector<32x5xbf16> -> vector<32x26xbf16>
    %97 = vector.extract_strided_slice %96 {offsets = [0, 0], sizes = [32, 16], strides = [1, 1]} : vector<32x26xbf16> to vector<32x16xbf16>
    %98 = vector.broadcast %23 : vector<1x16xbf16> to vector<32x16xbf16>
    %99 = arith.mulf %97, %98 : vector<32x16xbf16>
    %100 = vector.extract_strided_slice %96 {offsets = [0, 1], sizes = [32, 16], strides = [1, 1]} : vector<32x26xbf16> to vector<32x16xbf16>
    %101 = vector.extract_strided_slice %96 {offsets = [0, 2], sizes = [32, 16], strides = [1, 1]} : vector<32x26xbf16> to vector<32x16xbf16>
    %102 = vector.broadcast %28 : vector<1x16xbf16> to vector<32x16xbf16>
    %103 = arith.mulf %101, %102 : vector<32x16xbf16>
    %104 = vector.extract_strided_slice %96 {offsets = [0, 4], sizes = [32, 16], strides = [1, 1]} : vector<32x26xbf16> to vector<32x16xbf16>
    %105 = vector.broadcast %23 : vector<1x16xbf16> to vector<32x16xbf16>
    %106 = arith.mulf %104, %105 : vector<32x16xbf16>
    %107 = vector.extract_strided_slice %96 {offsets = [0, 5], sizes = [32, 16], strides = [1, 1]} : vector<32x26xbf16> to vector<32x16xbf16>
    %108 = vector.extract_strided_slice %96 {offsets = [0, 6], sizes = [32, 16], strides = [1, 1]} : vector<32x26xbf16> to vector<32x16xbf16>
    %109 = vector.broadcast %28 : vector<1x16xbf16> to vector<32x16xbf16>
    %110 = arith.mulf %108, %109 : vector<32x16xbf16>
    %111 = vector.extract_strided_slice %96 {offsets = [0, 8], sizes = [32, 16], strides = [1, 1]} : vector<32x26xbf16> to vector<32x16xbf16>
    %112 = vector.broadcast %23 : vector<1x16xbf16> to vector<32x16xbf16>
    %113 = arith.mulf %111, %112 : vector<32x16xbf16>
    %114 = vector.extract_strided_slice %96 {offsets = [0, 9], sizes = [32, 16], strides = [1, 1]} : vector<32x26xbf16> to vector<32x16xbf16>
    %115 = vector.extract_strided_slice %96 {offsets = [0, 10], sizes = [32, 16], strides = [1, 1]} : vector<32x26xbf16> to vector<32x16xbf16>
    %116 = vector.broadcast %28 : vector<1x16xbf16> to vector<32x16xbf16>
    %117 = arith.mulf %115, %116 : vector<32x16xbf16>
    %118 = tpu.concatenate %99, %100, %103, %106, %107, %110, %113, %114, %117 in 0 : vector<32x16xbf16>, vector<32x16xbf16>, vector<32x16xbf16>, vector<32x16xbf16>, vector<32x16xbf16>, vector<32x16xbf16>, vector<32x16xbf16>, vector<32x16xbf16>, vector<32x16xbf16> -> vector<288x16xbf16>
    %cst_30 = arith.constant dense<0.000000e+00> : vector<32x16xf32>
    %119 = tpu.matmul %91, %118, %cst_30 {dimension_numbers = #tpu.dot_dimension_numbers<[1], [0], [0], [1], [0, 0, 1, 1], [], []>} : vector<32x288xbf16>, vector<288x16xbf16>, vector<32x16xf32> -> vector<32x16xf32>
    %cst_31 = arith.constant dense<0.000000e+00> : vector<32xf32>
    %120 = vector.multi_reduction <add>, %119, %cst_31 [1] : vector<32x16xf32> to vector<32xf32>
    %121 = vector.shape_cast %120 : vector<32xf32> to vector<32x1xf32>
    %122 = arith.mulf %119, %119 : vector<32x16xf32>
    %cst_32 = arith.constant dense<0.000000e+00> : vector<32xf32>
    %123 = vector.multi_reduction <add>, %122, %cst_32 [1] : vector<32x16xf32> to vector<32xf32>
    %124 = vector.shape_cast %123 : vector<32xf32> to vector<32x1xf32>
    %cst_33 = arith.constant 6.250000e-02 : f32
    %125 = vector.broadcast %cst_33 : f32 to vector<32x1xf32>
    %126 = arith.mulf %121, %125 : vector<32x1xf32>
    %cst_34 = arith.constant 6.250000e-02 : f32
    %127 = vector.broadcast %cst_34 : f32 to vector<32x1xf32>
    %128 = arith.mulf %124, %127 : vector<32x1xf32>
    %129 = arith.mulf %126, %126 : vector<32x1xf32>
    %130 = arith.subf %128, %129 : vector<32x1xf32>
    %cst_35 = arith.constant 9.99999974E-6 : f32
    %131 = vector.broadcast %cst_35 : f32 to vector<32x1xf32>
    %132 = arith.addf %130, %131 : vector<32x1xf32>
    %133 = math.rsqrt %132 : vector<32x1xf32>
    %134 = arith.mulf %92, %133 : vector<32x1xf32>
    %135 = vector.broadcast %126 : vector<32x1xf32> to vector<32x16xf32>
    %136 = arith.subf %119, %135 : vector<32x16xf32>
    %137 = vector.broadcast %134 : vector<32x1xf32> to vector<32x16xf32>
    %138 = arith.mulf %136, %137 : vector<32x16xf32>
    %139 = vector.broadcast %93 : vector<32x1xf32> to vector<32x16xf32>
    %140 = arith.addf %138, %139 : vector<32x16xf32>
    %cst_36 = arith.constant 0.000000e+00 : f32
    %141 = vector.broadcast %cst_36 : f32 to vector<32x16xf32>
    %142 = arith.minimumf %140, %141 : vector<32x16xf32>
    %143 = math.exp %142 : vector<32x16xf32>
    %cst_37 = arith.constant 1.000000e+00 : f32
    %144 = vector.broadcast %cst_37 : f32 to vector<32x16xf32>
    %145 = arith.subf %143, %144 : vector<32x16xf32>
    %cst_38 = arith.constant 1.67326319 : f32
    %146 = vector.broadcast %cst_38 : f32 to vector<32x16xf32>
    %147 = arith.mulf %146, %145 : vector<32x16xf32>
    %cst_39 = arith.constant 0.000000e+00 : f32
    %148 = vector.broadcast %cst_39 : f32 to vector<32x16xf32>
    %149 = arith.cmpf ogt, %140, %148 : vector<32x16xf32>
    %150 = arith.select %149, %140, %147 : vector<32x16xi1>, vector<32x16xf32>
    %cst_40 = arith.constant 1.05070102 : f32
    %151 = vector.broadcast %cst_40 : f32 to vector<32x16xf32>
    %152 = arith.mulf %151, %150 : vector<32x16xf32>
    %c0_41 = arith.constant 0 : index
    %c0_42 = arith.constant 0 : index
    %c0_43 = arith.constant 0 : index
    %153 = vector.load %arg8[%c0_41, %c0_42, %c0_43] : memref<1x32x16xf32, #tpu.memory_space<vmem>>, vector<1x32x16xf32>
    %154 = vector.shape_cast %153 : vector<1x32x16xf32> to vector<32x16xf32>
    %155 = vector.shape_cast %152 : vector<32x16xf32> to vector<1x32x16xf32>
    tpu.vector_store %arg8[%c0_41, %c0_42, %c0_43], %155 {strides = array<i32>} : memref<1x32x16xf32, #tpu.memory_space<vmem>>, vector<1x32x16xf32>,
    return
  }
  func.func @transform_0(%arg0: i32) -> (i32, i32, i32) {
    %c0_i32 = arith.constant 0 : i32
    %c0_i32_0 = arith.constant 0 : i32
    %c0_i32_1 = arith.constant 0 : i32
    return %arg0, %c0_i32, %c0_i32_0 : i32, i32, i32
  }
  func.func @transform_1(%arg0: i32) -> (i32, i32) {
    %c0_i32 = arith.constant 0 : i32
    %c0_i32_0 = arith.constant 0 : i32
    %c0_i32_1 = arith.constant 0 : i32
    return %c0_i32, %c0_i32_0 : i32, i32
  }
  func.func @transform_2(%arg0: i32) -> (i32, i32) {
    %c0_i32 = arith.constant 0 : i32
    %c0_i32_0 = arith.constant 0 : i32
    %c0_i32_1 = arith.constant 0 : i32
    return %c0_i32, %c0_i32_0 : i32, i32
  }
  func.func @transform_3(%arg0: i32) -> (i32, i32) {
    %c0_i32 = arith.constant 0 : i32
    %c0_i32_0 = arith.constant 0 : i32
    %c0_i32_1 = arith.constant 0 : i32
    return %c0_i32, %c0_i32_0 : i32, i32
  }
  func.func @transform_4(%arg0: i32) -> (i32, i32) {
    %c0_i32 = arith.constant 0 : i32
    %c0_i32_0 = arith.constant 0 : i32
    %c0_i32_1 = arith.constant 0 : i32
    return %c0_i32, %c0_i32_0 : i32, i32
  }
  func.func @transform_5(%arg0: i32) -> (i32, i32) {
    %c0_i32 = arith.constant 0 : i32
    %c0_i32_0 = arith.constant 0 : i32
    %c0_i32_1 = arith.constant 0 : i32
    return %c0_i32, %c0_i32_0 : i32, i32
  }
  func.func @transform_6(%arg0: i32) -> (i32, i32) {
    %c0_i32 = arith.constant 0 : i32
    %c0_i32_0 = arith.constant 0 : i32
    %c0_i32_1 = arith.constant 0 : i32
    return %c0_i32, %c0_i32_0 : i32, i32
  }
  func.func @transform_7(%arg0: i32) -> (i32, i32, i32) {
    %c0_i32 = arith.constant 0 : i32
    %c0_i32_0 = arith.constant 0 : i32
    %c0_i32_1 = arith.constant 0 : i32
    return %arg0, %c0_i32, %c0_i32_0 : i32, i32, i32
  }
}

module attributes {stable_mosaic.version = 11 : i64} {
  func.func @kernel(%arg0: i32, %arg1: memref<1x32x4xf32, #tpu.memory_space<vmem>>, %arg2: memref<32x288xbf16, #tpu.memory_space<vmem>>, %arg3: memref<32x1xf32, #tpu.memory_space<vmem>>, %arg4: memref<32x1xf32, #tpu.memory_space<vmem>>, %arg5: memref<32x288xbf16, #tpu.memory_space<vmem>>, %arg6: memref<32x1xf32, #tpu.memory_space<vmem>>, %arg7: memref<32x1xf32, #tpu.memory_space<vmem>>, %arg8: memref<1x32x4xf32, #tpu.memory_space<vmem>>) attributes {dimension_semantics = [#tpu.dimension_semantics<parallel>], iteration_bounds = array<i64: 2>, scalar_prefetch = 0 : i64, scratch_operands = 0 : i64, tpu.core_type = #tpu.core_type<tc>, window_params = [{transform_indices = @transform_0, window_bounds = array<i64: 1, 32, 4>}, {pipeline_mode = #tpu.pipeline_mode<synchronous>, transform_indices = @transform_1, window_bounds = array<i64: 32, 288>}, {pipeline_mode = #tpu.pipeline_mode<synchronous>, transform_indices = @transform_2, window_bounds = array<i64: 32, 1>}, {pipeline_mode = #tpu.pipeline_mode<synchronous>, transform_indices = @transform_3, window_bounds = array<i64: 32, 1>}, {pipeline_mode = #tpu.pipeline_mode<synchronous>, transform_indices = @transform_4, window_bounds = array<i64: 32, 288>}, {pipeline_mode = #tpu.pipeline_mode<synchronous>, transform_indices = @transform_5, window_bounds = array<i64: 32, 1>}, {pipeline_mode = #tpu.pipeline_mode<synchronous>, transform_indices = @transform_6, window_bounds = array<i64: 32, 1>}, {transform_indices = @transform_7, window_bounds = array<i64: 1, 32, 4>}]} {
    %c0 = arith.constant 0 : index
    %c0_0 = arith.constant 0 : index
    %c0_1 = arith.constant 0 : index
    %0 = vector.load %arg1[%c0, %c0_0, %c0_1] : memref<1x32x4xf32, #tpu.memory_space<vmem>>, vector<1x32x4xf32>
    %1 = vector.shape_cast %0 : vector<1x32x4xf32> to vector<32x4xf32>
    %2 = tpu.iota {dimensions = array<i32: 1>} : vector<1x4xi32>
    %c2_i32 = arith.constant 2 : i32
    %c0_i32 = arith.constant 0 : i32
    %3 = arith.cmpi eq, %c2_i32, %c0_i32 : i32
    %c1_i32 = arith.constant 1 : i32
    %4 = arith.select %3, %c1_i32, %c2_i32 : i32
    %5 = vector.broadcast %4 : i32 to vector<1x4xi32>
    %6 = arith.remsi %2, %5 : vector<1x4xi32>
    %c0_i32_2 = arith.constant 0 : i32
    %7 = vector.broadcast %c0_i32_2 : i32 to vector<1x4xi32>
    %8 = arith.cmpi ne, %6, %7 : vector<1x4xi32>
    %c0_i32_3 = arith.constant 0 : i32
    %9 = vector.broadcast %c0_i32_3 : i32 to vector<1x4xi32>
    %10 = arith.cmpi slt, %6, %9 : vector<1x4xi32>
    %c0_i32_4 = arith.constant 0 : i32
    %11 = arith.cmpi slt, %4, %c0_i32_4 : i32
    %12 = vector.broadcast %11 : i1 to vector<1x4xi1>
    %13 = vector.broadcast %12 : vector<1x4xi1> to vector<1x4xi1>
    %14 = arith.xori %10, %13 : vector<1x4xi1>
    %15 = arith.andi %14, %8 : vector<1x4xi1>
    %16 = vector.broadcast %4 : i32 to vector<1x4xi32>
    %17 = arith.addi %6, %16 : vector<1x4xi32>
    %18 = arith.select %15, %17, %6 : vector<1x4xi1>, vector<1x4xi32>
    %c1_i32_5 = arith.constant 1 : i32
    %19 = vector.broadcast %c1_i32_5 : i32 to vector<1x4xi32>
    %20 = arith.cmpi sge, %18, %19 : vector<1x4xi32>
    %21 = arith.extui %20 : vector<1x4xi1> to vector<1x4xi32>
    %22 = arith.sitofp %21 : vector<1x4xi32> to vector<1x4xf32>
    %23 = arith.truncf %22 : vector<1x4xf32> to vector<1x4xbf16>
    %c0_i32_6 = arith.constant 0 : i32
    %24 = vector.broadcast %c0_i32_6 : i32 to vector<1x4xi32>
    %25 = arith.cmpi sle, %18, %24 : vector<1x4xi32>
    %26 = arith.extui %25 : vector<1x4xi1> to vector<1x4xi32>
    %27 = arith.sitofp %26 : vector<1x4xi32> to vector<1x4xf32>
    %28 = arith.truncf %27 : vector<1x4xf32> to vector<1x4xbf16>
    %c0_7 = arith.constant 0 : index
    %c0_8 = arith.constant 0 : index
    %29 = vector.load %arg2[%c0_7, %c0_8] : memref<32x288xbf16, #tpu.memory_space<vmem>>, vector<32x288xbf16>
    %c0_9 = arith.constant 0 : index
    %c0_10 = arith.constant 0 : index
    %30 = vector.load %arg3[%c0_9, %c0_10] : memref<32x1xf32, #tpu.memory_space<vmem>>, vector<32x1xf32>
    %c0_11 = arith.constant 0 : index
    %c0_12 = arith.constant 0 : index
    %31 = vector.load %arg4[%c0_11, %c0_12] : memref<32x1xf32, #tpu.memory_space<vmem>>, vector<32x1xf32>
    %32 = arith.truncf %1 : vector<32x4xf32> to vector<32x4xbf16>
    %cst = arith.constant 0.000000e+00 : bf16
    %33 = vector.broadcast %cst : bf16 to vector<32x3xbf16>
    %34 = tpu.concatenate %33, %32, %33 in 1 : vector<32x3xbf16>, vector<32x4xbf16>, vector<32x3xbf16> -> vector<32x10xbf16>
    %35 = vector.extract_strided_slice %34 {offsets = [0, 0], sizes = [32, 4], strides = [1, 1]} : vector<32x10xbf16> to vector<32x4xbf16>
    %36 = vector.broadcast %23 : vector<1x4xbf16> to vector<32x4xbf16>
    %37 = arith.mulf %35, %36 : vector<32x4xbf16>
    %38 = vector.extract_strided_slice %34 {offsets = [0, 1], sizes = [32, 4], strides = [1, 1]} : vector<32x10xbf16> to vector<32x4xbf16>
    %39 = vector.extract_strided_slice %34 {offsets = [0, 2], sizes = [32, 4], strides = [1, 1]} : vector<32x10xbf16> to vector<32x4xbf16>
    %40 = vector.broadcast %28 : vector<1x4xbf16> to vector<32x4xbf16>
    %41 = arith.mulf %39, %40 : vector<32x4xbf16>
    %42 = vector.extract_strided_slice %34 {offsets = [0, 2], sizes = [32, 4], strides = [1, 1]} : vector<32x10xbf16> to vector<32x4xbf16>
    %43 = vector.broadcast %23 : vector<1x4xbf16> to vector<32x4xbf16>
    %44 = arith.mulf %42, %43 : vector<32x4xbf16>
    %45 = vector.extract_strided_slice %34 {offsets = [0, 3], sizes = [32, 4], strides = [1, 1]} : vector<32x10xbf16> to vector<32x4xbf16>
    %46 = vector.extract_strided_slice %34 {offsets = [0, 4], sizes = [32, 4], strides = [1, 1]} : vector<32x10xbf16> to vector<32x4xbf16>
    %47 = vector.broadcast %28 : vector<1x4xbf16> to vector<32x4xbf16>
    %48 = arith.mulf %46, %47 : vector<32x4xbf16>
    %49 = vector.extract_strided_slice %34 {offsets = [0, 4], sizes = [32, 4], strides = [1, 1]} : vector<32x10xbf16> to vector<32x4xbf16>
    %50 = vector.broadcast %23 : vector<1x4xbf16> to vector<32x4xbf16>
    %51 = arith.mulf %49, %50 : vector<32x4xbf16>
    %52 = vector.extract_strided_slice %34 {offsets = [0, 5], sizes = [32, 4], strides = [1, 1]} : vector<32x10xbf16> to vector<32x4xbf16>
    %53 = vector.extract_strided_slice %34 {offsets = [0, 6], sizes = [32, 4], strides = [1, 1]} : vector<32x10xbf16> to vector<32x4xbf16>
    %54 = vector.broadcast %28 : vector<1x4xbf16> to vector<32x4xbf16>
    %55 = arith.mulf %53, %54 : vector<32x4xbf16>
    %56 = tpu.concatenate %37, %38, %41, %44, %45, %48, %51, %52, %55 in 0 : vector<32x4xbf16>, vector<32x4xbf16>, vector<32x4xbf16>, vector<32x4xbf16>, vector<32x4xbf16>, vector<32x4xbf16>, vector<32x4xbf16>, vector<32x4xbf16>, vector<32x4xbf16> -> vector<288x4xbf16>
    %cst_13 = arith.constant dense<0.000000e+00> : vector<32x4xf32>
    %57 = tpu.matmul %29, %56, %cst_13 {dimension_numbers = #tpu.dot_dimension_numbers<[1], [0], [0], [1], [0, 0, 1, 1], [], []>} : vector<32x288xbf16>, vector<288x4xbf16>, vector<32x4xf32> -> vector<32x4xf32>
    %cst_14 = arith.constant dense<0.000000e+00> : vector<32xf32>
    %58 = vector.multi_reduction <add>, %57, %cst_14 [1] : vector<32x4xf32> to vector<32xf32>
    %59 = vector.shape_cast %58 : vector<32xf32> to vector<32x1xf32>
    %60 = arith.mulf %57, %57 : vector<32x4xf32>
    %cst_15 = arith.constant dense<0.000000e+00> : vector<32xf32>
    %61 = vector.multi_reduction <add>, %60, %cst_15 [1] : vector<32x4xf32> to vector<32xf32>
    %62 = vector.shape_cast %61 : vector<32xf32> to vector<32x1xf32>
    %cst_16 = arith.constant 2.500000e-01 : f32
    %63 = vector.broadcast %cst_16 : f32 to vector<32x1xf32>
    %64 = arith.mulf %59, %63 : vector<32x1xf32>
    %cst_17 = arith.constant 2.500000e-01 : f32
    %65 = vector.broadcast %cst_17 : f32 to vector<32x1xf32>
    %66 = arith.mulf %62, %65 : vector<32x1xf32>
    %67 = arith.mulf %64, %64 : vector<32x1xf32>
    %68 = arith.subf %66, %67 : vector<32x1xf32>
    %cst_18 = arith.constant 9.99999974E-6 : f32
    %69 = vector.broadcast %cst_18 : f32 to vector<32x1xf32>
    %70 = arith.addf %68, %69 : vector<32x1xf32>
    %71 = math.rsqrt %70 : vector<32x1xf32>
    %72 = arith.mulf %30, %71 : vector<32x1xf32>
    %73 = vector.broadcast %64 : vector<32x1xf32> to vector<32x4xf32>
    %74 = arith.subf %57, %73 : vector<32x4xf32>
    %75 = vector.broadcast %72 : vector<32x1xf32> to vector<32x4xf32>
    %76 = arith.mulf %74, %75 : vector<32x4xf32>
    %77 = vector.broadcast %31 : vector<32x1xf32> to vector<32x4xf32>
    %78 = arith.addf %76, %77 : vector<32x4xf32>
    %cst_19 = arith.constant 0.000000e+00 : f32
    %79 = vector.broadcast %cst_19 : f32 to vector<32x4xf32>
    %80 = arith.minimumf %78, %79 : vector<32x4xf32>
    %81 = math.exp %80 : vector<32x4xf32>
    %cst_20 = arith.constant 1.000000e+00 : f32
    %82 = vector.broadcast %cst_20 : f32 to vector<32x4xf32>
    %83 = arith.subf %81, %82 : vector<32x4xf32>
    %cst_21 = arith.constant 1.67326319 : f32
    %84 = vector.broadcast %cst_21 : f32 to vector<32x4xf32>
    %85 = arith.mulf %84, %83 : vector<32x4xf32>
    %cst_22 = arith.constant 0.000000e+00 : f32
    %86 = vector.broadcast %cst_22 : f32 to vector<32x4xf32>
    %87 = arith.cmpf ogt, %78, %86 : vector<32x4xf32>
    %88 = arith.select %87, %78, %85 : vector<32x4xi1>, vector<32x4xf32>
    %cst_23 = arith.constant 1.05070102 : f32
    %89 = vector.broadcast %cst_23 : f32 to vector<32x4xf32>
    %90 = arith.mulf %89, %88 : vector<32x4xf32>
    %c0_24 = arith.constant 0 : index
    %c0_25 = arith.constant 0 : index
    %91 = vector.load %arg5[%c0_24, %c0_25] : memref<32x288xbf16, #tpu.memory_space<vmem>>, vector<32x288xbf16>
    %c0_26 = arith.constant 0 : index
    %c0_27 = arith.constant 0 : index
    %92 = vector.load %arg6[%c0_26, %c0_27] : memref<32x1xf32, #tpu.memory_space<vmem>>, vector<32x1xf32>
    %c0_28 = arith.constant 0 : index
    %c0_29 = arith.constant 0 : index
    %93 = vector.load %arg7[%c0_28, %c0_29] : memref<32x1xf32, #tpu.memory_space<vmem>>, vector<32x1xf32>
    %94 = arith.truncf %90 : vector<32x4xf32> to vector<32x4xbf16>
    %cst_30 = arith.constant 0.000000e+00 : bf16
    %95 = vector.broadcast %cst_30 : bf16 to vector<32x3xbf16>
    %96 = tpu.concatenate %95, %94, %95 in 1 : vector<32x3xbf16>, vector<32x4xbf16>, vector<32x3xbf16> -> vector<32x10xbf16>
    %97 = vector.extract_strided_slice %96 {offsets = [0, 0], sizes = [32, 4], strides = [1, 1]} : vector<32x10xbf16> to vector<32x4xbf16>
    %98 = vector.broadcast %23 : vector<1x4xbf16> to vector<32x4xbf16>
    %99 = arith.mulf %97, %98 : vector<32x4xbf16>
    %100 = vector.extract_strided_slice %96 {offsets = [0, 1], sizes = [32, 4], strides = [1, 1]} : vector<32x10xbf16> to vector<32x4xbf16>
    %101 = vector.extract_strided_slice %96 {offsets = [0, 2], sizes = [32, 4], strides = [1, 1]} : vector<32x10xbf16> to vector<32x4xbf16>
    %102 = vector.broadcast %28 : vector<1x4xbf16> to vector<32x4xbf16>
    %103 = arith.mulf %101, %102 : vector<32x4xbf16>
    %104 = vector.extract_strided_slice %96 {offsets = [0, 2], sizes = [32, 4], strides = [1, 1]} : vector<32x10xbf16> to vector<32x4xbf16>
    %105 = vector.broadcast %23 : vector<1x4xbf16> to vector<32x4xbf16>
    %106 = arith.mulf %104, %105 : vector<32x4xbf16>
    %107 = vector.extract_strided_slice %96 {offsets = [0, 3], sizes = [32, 4], strides = [1, 1]} : vector<32x10xbf16> to vector<32x4xbf16>
    %108 = vector.extract_strided_slice %96 {offsets = [0, 4], sizes = [32, 4], strides = [1, 1]} : vector<32x10xbf16> to vector<32x4xbf16>
    %109 = vector.broadcast %28 : vector<1x4xbf16> to vector<32x4xbf16>
    %110 = arith.mulf %108, %109 : vector<32x4xbf16>
    %111 = vector.extract_strided_slice %96 {offsets = [0, 4], sizes = [32, 4], strides = [1, 1]} : vector<32x10xbf16> to vector<32x4xbf16>
    %112 = vector.broadcast %23 : vector<1x4xbf16> to vector<32x4xbf16>
    %113 = arith.mulf %111, %112 : vector<32x4xbf16>
    %114 = vector.extract_strided_slice %96 {offsets = [0, 5], sizes = [32, 4], strides = [1, 1]} : vector<32x10xbf16> to vector<32x4xbf16>
    %115 = vector.extract_strided_slice %96 {offsets = [0, 6], sizes = [32, 4], strides = [1, 1]} : vector<32x10xbf16> to vector<32x4xbf16>
    %116 = vector.broadcast %28 : vector<1x4xbf16> to vector<32x4xbf16>
    %117 = arith.mulf %115, %116 : vector<32x4xbf16>
    %118 = tpu.concatenate %99, %100, %103, %106, %107, %110, %113, %114, %117 in 0 : vector<32x4xbf16>, vector<32x4xbf16>, vector<32x4xbf16>, vector<32x4xbf16>, vector<32x4xbf16>, vector<32x4xbf16>, vector<32x4xbf16>, vector<32x4xbf16>, vector<32x4xbf16> -> vector<288x4xbf16>
    %cst_31 = arith.constant dense<0.000000e+00> : vector<32x4xf32>
    %119 = tpu.matmul %91, %118, %cst_31 {dimension_numbers = #tpu.dot_dimension_numbers<[1], [0], [0], [1], [0, 0, 1, 1], [], []>} : vector<32x288xbf16>, vector<288x4xbf16>, vector<32x4xf32> -> vector<32x4xf32>
    %cst_32 = arith.constant dense<0.000000e+00> : vector<32xf32>
    %120 = vector.multi_reduction <add>, %119, %cst_32 [1] : vector<32x4xf32> to vector<32xf32>
    %121 = vector.shape_cast %120 : vector<32xf32> to vector<32x1xf32>
    %122 = arith.mulf %119, %119 : vector<32x4xf32>
    %cst_33 = arith.constant dense<0.000000e+00> : vector<32xf32>
    %123 = vector.multi_reduction <add>, %122, %cst_33 [1] : vector<32x4xf32> to vector<32xf32>
    %124 = vector.shape_cast %123 : vector<32xf32> to vector<32x1xf32>
    %cst_34 = arith.constant 2.500000e-01 : f32
    %125 = vector.broadcast %cst_34 : f32 to vector<32x1xf32>
    %126 = arith.mulf %121, %125 : vector<32x1xf32>
    %cst_35 = arith.constant 2.500000e-01 : f32
    %127 = vector.broadcast %cst_35 : f32 to vector<32x1xf32>
    %128 = arith.mulf %124, %127 : vector<32x1xf32>
    %129 = arith.mulf %126, %126 : vector<32x1xf32>
    %130 = arith.subf %128, %129 : vector<32x1xf32>
    %cst_36 = arith.constant 9.99999974E-6 : f32
    %131 = vector.broadcast %cst_36 : f32 to vector<32x1xf32>
    %132 = arith.addf %130, %131 : vector<32x1xf32>
    %133 = math.rsqrt %132 : vector<32x1xf32>
    %134 = arith.mulf %92, %133 : vector<32x1xf32>
    %135 = vector.broadcast %126 : vector<32x1xf32> to vector<32x4xf32>
    %136 = arith.subf %119, %135 : vector<32x4xf32>
    %137 = vector.broadcast %134 : vector<32x1xf32> to vector<32x4xf32>
    %138 = arith.mulf %136, %137 : vector<32x4xf32>
    %139 = vector.broadcast %93 : vector<32x1xf32> to vector<32x4xf32>
    %140 = arith.addf %138, %139 : vector<32x4xf32>
    %cst_37 = arith.constant 0.000000e+00 : f32
    %141 = vector.broadcast %cst_37 : f32 to vector<32x4xf32>
    %142 = arith.minimumf %140, %141 : vector<32x4xf32>
    %143 = math.exp %142 : vector<32x4xf32>
    %cst_38 = arith.constant 1.000000e+00 : f32
    %144 = vector.broadcast %cst_38 : f32 to vector<32x4xf32>
    %145 = arith.subf %143, %144 : vector<32x4xf32>
    %cst_39 = arith.constant 1.67326319 : f32
    %146 = vector.broadcast %cst_39 : f32 to vector<32x4xf32>
    %147 = arith.mulf %146, %145 : vector<32x4xf32>
    %cst_40 = arith.constant 0.000000e+00 : f32
    %148 = vector.broadcast %cst_40 : f32 to vector<32x4xf32>
    %149 = arith.cmpf ogt, %140, %148 : vector<32x4xf32>
    %150 = arith.select %149, %140, %147 : vector<32x4xi1>, vector<32x4xf32>
    %cst_41 = arith.constant 1.05070102 : f32
    %151 = vector.broadcast %cst_41 : f32 to vector<32x4xf32>
    %152 = arith.mulf %151, %150 : vector<32x4xf32>
    %c0_42 = arith.constant 0 : index
    %c0_43 = arith.constant 0 : index
    %c0_44 = arith.constant 0 : index
    %153 = vector.load %arg8[%c0_42, %c0_43, %c0_44] : memref<1x32x4xf32, #tpu.memory_space<vmem>>, vector<1x32x4xf32>
    %154 = vector.shape_cast %153 : vector<1x32x4xf32> to vector<32x4xf32>
    %155 = vector.shape_cast %152 : vector<32x4xf32> to vector<1x32x4xf32>
    tpu.vector_store %arg8[%c0_42, %c0_43, %c0_44], %155 {strides = array<i32>} : memref<1x32x4xf32, #tpu.memory_space<vmem>>, vector<1x32x4xf32>,
    return
  }
  func.func @transform_0(%arg0: i32) -> (i32, i32, i32) {
    %c0_i32 = arith.constant 0 : i32
    %c0_i32_0 = arith.constant 0 : i32
    %c0_i32_1 = arith.constant 0 : i32
    return %arg0, %c0_i32, %c0_i32_0 : i32, i32, i32
  }
  func.func @transform_1(%arg0: i32) -> (i32, i32) {
    %c0_i32 = arith.constant 0 : i32
    %c0_i32_0 = arith.constant 0 : i32
    %c0_i32_1 = arith.constant 0 : i32
    return %c0_i32, %c0_i32_0 : i32, i32
  }
  func.func @transform_2(%arg0: i32) -> (i32, i32) {
    %c0_i32 = arith.constant 0 : i32
    %c0_i32_0 = arith.constant 0 : i32
    %c0_i32_1 = arith.constant 0 : i32
    return %c0_i32, %c0_i32_0 : i32, i32
  }
  func.func @transform_3(%arg0: i32) -> (i32, i32) {
    %c0_i32 = arith.constant 0 : i32
    %c0_i32_0 = arith.constant 0 : i32
    %c0_i32_1 = arith.constant 0 : i32
    return %c0_i32, %c0_i32_0 : i32, i32
  }
  func.func @transform_4(%arg0: i32) -> (i32, i32) {
    %c0_i32 = arith.constant 0 : i32
    %c0_i32_0 = arith.constant 0 : i32
    %c0_i32_1 = arith.constant 0 : i32
    return %c0_i32, %c0_i32_0 : i32, i32
  }
  func.func @transform_5(%arg0: i32) -> (i32, i32) {
    %c0_i32 = arith.constant 0 : i32
    %c0_i32_0 = arith.constant 0 : i32
    %c0_i32_1 = arith.constant 0 : i32
    return %c0_i32, %c0_i32_0 : i32, i32
  }
  func.func @transform_6(%arg0: i32) -> (i32, i32) {
    %c0_i32 = arith.constant 0 : i32
    %c0_i32_0 = arith.constant 0 : i32
    %c0_i32_1 = arith.constant 0 : i32
    return %c0_i32, %c0_i32_0 : i32, i32
  }
  func.func @transform_7(%arg0: i32) -> (i32, i32, i32) {
    %c0_i32 = arith.constant 0 : i32
    %c0_i32_0 = arith.constant 0 : i32
    %c0_i32_1 = arith.constant 0 : i32
    return %arg0, %c0_i32, %c0_i32_0 : i32, i32, i32
  }
}

</mosaic_0001>

<llo_original>
// kernel: encoder_forward.6
$region0: #{encoder_forward.6}
  #allocation0 [shape = 'u32[]', space=smem, size = 0x4, offset = 0x4, fixed_abs, tag = 'smem constant byte address 0x4 - core index']
  #allocation1 [shape = 'u32[72,128]{1,0:T(1,128)}', space=vmem, size = 0x9000, scoped, tag = 'internal scratch']
  %s0 = inlined_call_operand.vmem [shape: f32[2,4,256], index: 0, kind: input, shape index: {}]
  %s1 = inlined_call_operand.vmem [shape: bf16[8,36], index: 1, kind: input, shape index: {}]
  %s2 = inlined_call_operand.vmem [shape: f32[8,1], index: 2, kind: input, shape index: {}]
  %s3 = inlined_call_operand.vmem [shape: f32[8,1], index: 3, kind: input, shape index: {}]
  %s4 = inlined_call_operand.vmem [shape: bf16[8,72], index: 4, kind: input, shape index: {}]
  %s5 = inlined_call_operand.vmem [shape: f32[8,1], index: 5, kind: input, shape index: {}]
  %s6 = inlined_call_operand.vmem [shape: f32[8,1], index: 6, kind: input, shape index: {}]
  %s7 = inlined_call_operand.vmem [shape: f32[2,8,256], index: 7, kind: output, shape index: {}]
  %s8 = sld [smem:[#allocation0]]
  $region61: #{encoder_forward.6} parent=0
    _
  %s10 = ssub.s32 1, %s8
  %s11 = scalar_select 0, %s10, %s8
  loop: start=0, step=1, limit=4
  $region2: #{encoder_forward.6} parent=0 // loop_pre_header
    _
  $region3: #{encoder_forward.6} parent=0 // loop_header
    %s13 = sphi 0, %s17
    %p14 = scmp.ge.s32.totalorder %s13, 4
    %s23 = sphi 0, %s25
    %s26 = sphi 0, %s23
    %s27 = sphi 0, %s26
    %s43 = sphi 0, %s27
    %s47 = sphi 0, %s47
    %s49 = sphi 0, %s47
    %s50 = sphi 0, %s49
    %s64 = sphi 0, %s50
    %s68 = sphi 0, %s68
    %s70 = sphi 0, %s68
    %s71 = sphi 0, %s70
    %s85 = sphi 0, %s71
    %s89 = sphi 0, %s89
    %s91 = sphi 0, %s89
    %s92 = sphi 0, %s91
    %s106 = sphi 0, %s92
    %s110 = sphi 0, %s110
    %s112 = sphi 0, %s110
    %s113 = sphi 0, %s112
    %s127 = sphi 0, %s113
    %s131 = sphi 0, %s131
    %s133 = sphi 0, %s131
    %s134 = sphi 0, %s133
    %s148 = sphi 0, %s134
    %s152 = sphi 0, %s152
    %s154 = sphi 0, %s152
    %s155 = sphi 0, %s154
    %s169 = sphi 0, %s155
    %s175 = sphi 0, %s177
    %s178 = sphi 0, %s175
    %s179 = sphi 0, %s178
    %s195 = sphi 0, %s179
  $region4: #{encoder_forward.6} parent=0 // loop_header_branch
    %16 = sbr.rel (%p14) target = $region8
  $region5: #{encoder_forward.6} parent=0 // loop_body
    %s18 = ssub.s32 %s13, 1
    %s19 = ssub.s32 %s13, 2
    %s20 = sadd.s32 %s13, 1
    %s21 = ssub.s32 %s13, %s20
    %p22 = scmp.eq.s32.totalorder %s21, 0
    %s24 = sadd.s32 %s23, 1
    %s25 = scalar_select %p22, %s23, %s24
    %p28 = pneg %p22
    %p29 = scmp.eq.s32.totalorder %s13, 1
    %p30 = por %p28, %p29
    %p31 = scmp.ne.s32.totalorder %s23, %s26
    %p32 = scmp.eq.s32.totalorder %s13, 0
    %p33 = por %p31, %p32
    %p34 = scmp.ne.s32.totalorder %s23, %s26
    %p35 = scmp.eq.s32.totalorder %s18, 1
    %p36 = por %p34, %p35
    %p37 = scmp.ne.s32.totalorder %s26, %s27
    %p38 = scmp.eq.s32.totalorder %s18, 0
    %p39 = por %p37, %p38
    %p40 = scmp.ne.s32.totalorder %s26, %s27
    %p41 = scmp.eq.s32.totalorder %s19, 1
    %p42 = por %p40, %p41
    %p44 = scmp.ne.s32.totalorder %s27, %s43
    %p45 = scmp.eq.s32.totalorder %s19, 0
    %p46 = por %p44, %p45
    %s48 = sadd.s32 %s47, 1
    %p51 = scmp.eq.s32.totalorder %s13, 1
    %p52 = scmp.ne.s32.totalorder %s47, %s49
    %p53 = scmp.eq.s32.totalorder %s13, 0
    %p54 = por %p52, %p53
    %p55 = scmp.ne.s32.totalorder %s47, %s49
    %p56 = scmp.eq.s32.totalorder %s18, 1
    %p57 = por %p55, %p56
    %p58 = scmp.ne.s32.totalorder %s49, %s50
    %p59 = scmp.eq.s32.totalorder %s18, 0
    %p60 = por %p58, %p59
    %p61 = scmp.ne.s32.totalorder %s49, %s50
    %p62 = scmp.eq.s32.totalorder %s19, 1
    %p63 = por %p61, %p62
    %p65 = scmp.ne.s32.totalorder %s50, %s64
    %p66 = scmp.eq.s32.totalorder %s19, 0
    %p67 = por %p65, %p66
    %s69 = sadd.s32 %s68, 1
    %p72 = scmp.eq.s32.totalorder %s13, 1
    %p73 = scmp.ne.s32.totalorder %s68, %s70
    %p74 = scmp.eq.s32.totalorder %s13, 0
    %p75 = por %p73, %p74
    %p76 = scmp.ne.s32.totalorder %s68, %s70
    %p77 = scmp.eq.s32.totalorder %s18, 1
    %p78 = por %p76, %p77
    %p79 = scmp.ne.s32.totalorder %s70, %s71
    %p80 = scmp.eq.s32.totalorder %s18, 0
    %p81 = por %p79, %p80
    %p82 = scmp.ne.s32.totalorder %s70, %s71
    %p83 = scmp.eq.s32.totalorder %s19, 1
    %p84 = por %p82, %p83
    %p86 = scmp.ne.s32.totalorder %s71, %s85
    %p87 = scmp.eq.s32.totalorder %s19, 0
    %p88 = por %p86, %p87
    %s90 = sadd.s32 %s89, 1
    %p93 = scmp.eq.s32.totalorder %s13, 1
    %p94 = scmp.ne.s32.totalorder %s89, %s91
    %p95 = scmp.eq.s32.totalorder %s13, 0
    %p96 = por %p94, %p95
    %p97 = scmp.ne.s32.totalorder %s89, %s91
    %p98 = scmp.eq.s32.totalorder %s18, 1
    %p99 = por %p97, %p98
    %p100 = scmp.ne.s32.totalorder %s91, %s92
    %p101 = scmp.eq.s32.totalorder %s18, 0
    %p102 = por %p100, %p101
    %p103 = scmp.ne.s32.totalorder %s91, %s92
    %p104 = scmp.eq.s32.totalorder %s19, 1
    %p105 = por %p103, %p104
    %p107 = scmp.ne.s32.totalorder %s92, %s106
    %p108 = scmp.eq.s32.totalorder %s19, 0
    %p109 = por %p107, %p108
    %s111 = sadd.s32 %s110, 1
    %p114 = scmp.eq.s32.totalorder %s13, 1
    %p115 = scmp.ne.s32.totalorder %s110, %s112
    %p116 = scmp.eq.s32.totalorder %s13, 0
    %p117 = por %p115, %p116
    %p118 = scmp.ne.s32.totalorder %s110, %s112
    %p119 = scmp.eq.s32.totalorder %s18, 1
    %p120 = por %p118, %p119
    %p121 = scmp.ne.s32.totalorder %s112, %s113
    %p122 = scmp.eq.s32.totalorder %s18, 0
    %p123 = por %p121, %p122
    %p124 = scmp.ne.s32.totalorder %s112, %s113
    %p125 = scmp.eq.s32.totalorder %s19, 1
    %p126 = por %p124, %p125
    %p128 = scmp.ne.s32.totalorder %s113, %s127
    %p129 = scmp.eq.s32.totalorder %s19, 0
    %p130 = por %p128, %p129
    %s132 = sadd.s32 %s131, 1
    %p135 = scmp.eq.s32.totalorder %s13, 1
    %p136 = scmp.ne.s32.totalorder %s131, %s133
    %p137 = scmp.eq.s32.totalorder %s13, 0
    %p138 = por %p136, %p137
    %p139 = scmp.ne.s32.totalorder %s131, %s133
    %p140 = scmp.eq.s32.totalorder %s18, 1
    %p141 = por %p139, %p140
    %p142 = scmp.ne.s32.totalorder %s133, %s134
    %p143 = scmp.eq.s32.totalorder %s18, 0
    %p144 = por %p142, %p143
    %p145 = scmp.ne.s32.totalorder %s133, %s134
    %p146 = scmp.eq.s32.totalorder %s19, 1
    %p147 = por %p145, %p146
    %p149 = scmp.ne.s32.totalorder %s134, %s148
    %p150 = scmp.eq.s32.totalorder %s19, 0
    %p151 = por %p149, %p150
    %s153 = sadd.s32 %s152, 1
    %p156 = scmp.eq.s32.totalorder %s13, 1
    %p157 = scmp.ne.s32.totalorder %s152, %s154
    %p158 = scmp.eq.s32.totalorder %s13, 0
    %p159 = por %p157, %p158
    %p160 = scmp.ne.s32.totalorder %s152, %s154
    %p161 = scmp.eq.s32.totalorder %s18, 1
    %p162 = por %p160, %p161
    %p163 = scmp.ne.s32.totalorder %s154, %s155
    %p164 = scmp.eq.s32.totalorder %s18, 0
    %p165 = por %p163, %p164
    %p166 = scmp.ne.s32.totalorder %s154, %s155
    %p167 = scmp.eq.s32.totalorder %s19, 1
    %p168 = por %p166, %p167
    %p170 = scmp.ne.s32.totalorder %s155, %s169
    %p171 = scmp.eq.s32.totalorder %s19, 0
    %p172 = por %p170, %p171
    %s173 = ssub.s32 %s13, %s20
    %p174 = scmp.eq.s32.totalorder %s173, 0
    %s176 = sadd.s32 %s175, 1
    %s177 = scalar_select %p174, %s175, %s176
    %p180 = pneg %p174
    %p181 = scmp.eq.s32.totalorder %s13, 1
    %p182 = por %p180, %p181
    %p183 = scmp.ne.s32.totalorder %s175, %s178
    %p184 = scmp.eq.s32.totalorder %s13, 0
    %p185 = por %p183, %p184
    %p186 = scmp.ne.s32.totalorder %s175, %s178
    %p187 = scmp.eq.s32.totalorder %s18, 1
    %p188 = por %p186, %p187
    %p189 = scmp.ne.s32.totalorder %s178, %s179
    %p190 = scmp.eq.s32.totalorder %s18, 0
    %p191 = por %p189, %p190
    %p192 = scmp.ne.s32.totalorder %s178, %s179
    %p193 = scmp.eq.s32.totalorder %s19, 1
    %p194 = por %p192, %p193
    %p196 = scmp.ne.s32.totalorder %s179, %s195
    %p197 = scmp.eq.s32.totalorder %s19, 0
    %p198 = por %p196, %p197
    %p199 = scmp.le.s32.totalorder 1, %s13
    %p200 = scmp.lt.s32.totalorder %s13, 3
    %p201 = pnand %p199, %p200
    %p202 = pneg %p201
    // Predicated region
    $region9: #{encoder_forward.6} parent=5 // pred_check
      _
    $region10: #{encoder_forward.6} parent=5 // pred_check_branch
      %204 = sbr.rel (%p201) target = $region12
    $region11: #{encoder_forward.6} parent=5 // pred_region
      %s205 = ssub.s32 %s13, 1
      // Predicated region
      $region13: #{encoder_forward.6} parent=11 // pred_check
        %p206 = pneg %p60
      $region14: #{encoder_forward.6} parent=11 // pred_check_branch
        %208 = sbr.rel (%p206) target = $region16
      $region15: #{encoder_forward.6} parent=11 // pred_region
        _
      $region16: #{encoder_forward.6} parent=11 // pred_fallthru
        _
      // Predicated region
      $region17: #{encoder_forward.6} parent=11 // pred_check
        %p209 = pneg %p81
      $region18: #{encoder_forward.6} parent=11 // pred_check_branch
        %211 = sbr.rel (%p209) target = $region20
      $region19: #{encoder_forward.6} parent=11 // pred_region
        _
      $region20: #{encoder_forward.6} parent=11 // pred_fallthru
        _
      // Predicated region
      $region21: #{encoder_forward.6} parent=11 // pred_check
        %p212 = pneg %p102
      $region22: #{encoder_forward.6} parent=11 // pred_check_branch
        %214 = sbr.rel (%p212) target = $region24
      $region23: #{encoder_forward.6} parent=11 // pred_region
        _
      $region24: #{encoder_forward.6} parent=11 // pred_fallthru
        _
      // Predicated region
      $region25: #{encoder_forward.6} parent=11 // pred_check
        %p215 = pneg %p123
      $region26: #{encoder_forward.6} parent=11 // pred_check_branch
        %217 = sbr.rel (%p215) target = $region28
      $region27: #{encoder_forward.6} parent=11 // pred_region
        _
      $region28: #{encoder_forward.6} parent=11 // pred_fallthru
        _
      // Predicated region
      $region29: #{encoder_forward.6} parent=11 // pred_check
        %p218 = pneg %p144
      $region30: #{encoder_forward.6} parent=11 // pred_check_branch
        %220 = sbr.rel (%p218) target = $region32
      $region31: #{encoder_forward.6} parent=11 // pred_region
        _
      $region32: #{encoder_forward.6} parent=11 // pred_fallthru
        _
      // Predicated region
      $region33: #{encoder_forward.6} parent=11 // pred_check
        %p221 = pneg %p165
      $region34: #{encoder_forward.6} parent=11 // pred_check_branch
        %223 = sbr.rel (%p221) target = $region36
      $region35: #{encoder_forward.6} parent=11 // pred_region
        _
      $region36: #{encoder_forward.6} parent=11 // pred_fallthru
        _
    $region12: #{encoder_forward.6} parent=5 // pred_fallthru
      _
    %p224 = scmp.lt.s32.totalorder %s13, 2
    // Predicated region
    $region37: #{encoder_forward.6} parent=5 // pred_check
      %p225 = pneg %p224
    $region38: #{encoder_forward.6} parent=5 // pred_check_branch
      %227 = sbr.rel (%p225) target = $region40
    $region39: #{encoder_forward.6} parent=5 // pred_region
      // Predicated region
      $region41: #{encoder_forward.6} parent=39 // pred_check
        %p228 = pneg %p33
      $region42: #{encoder_forward.6} parent=39 // pred_check_branch
        %230 = sbr.rel (%p228) target = $region44
      $region43: #{encoder_forward.6} parent=39 // pred_region
        %p231 = scmp.lt.s32.totalorder %s13, 1
        %s232 = scalar_select %p231, %s13, 1
        %s233 = smul.addr %s232, 2
        %s234 = smul.addr %s233, 4
        %s235 = scalar_lea.vmem %s0, %s234
      $region44: #{encoder_forward.6} parent=39 // pred_fallthru
        _
    $region40: #{encoder_forward.6} parent=5 // pred_fallthru
      _
    %p236 = scmp.le.s32.totalorder 1, %s13
    %p237 = scmp.lt.s32.totalorder %s13, 3
    %p238 = pnand %p236, %p237
    %p239 = pneg %p238
    // Predicated region
    $region45: #{encoder_forward.6} parent=5 // pred_check
      _
    $region46: #{encoder_forward.6} parent=5 // pred_check_branch
      %241 = sbr.rel (%p238) target = $region48
    $region47: #{encoder_forward.6} parent=5 // pred_region
      %s242 = ssub.s32 %s13, 1
      %p243 = scmp.lt.s32.totalorder %s18, 1
      %s244 = scalar_select %p243, %s18, 1
      %s245 = smul.addr %s244, 2
      %s246 = smul.addr %s245, 4
      %s247 = scalar_lea.vmem %s0, %s246
      %p248 = pneg %p39
      %p249 = pneg %p36
      %p250 = pneg %p60
      %p251 = pneg %p57
      %p252 = pneg %p81
      %p253 = pneg %p78
      %p254 = pneg %p102
      %p255 = pneg %p99
      %p256 = pneg %p123
      %p257 = pneg %p120
      %p258 = pneg %p144
      %p259 = pneg %p141
      %p260 = pneg %p165
      %p261 = pneg %p162
      %p262 = pneg %p191
      %p263 = pneg %p188
      %p264 = scmp.lt.s32.totalorder %s18, 1
      %s265 = scalar_select %p264, %s18, 1
      %s266 = smul.addr %s265, 2
      %s267 = smul.addr %s266, 8
      %s268 = scalar_lea.vmem %s7, %s267
      %p269 = scmp.lt.s32.totalorder %s18, 1
      %s270 = scalar_select %p269, %s18, 1
      %s271 = smul.addr %s270, 2
      %s272 = smul.addr %s271, 4
      %s273 = scalar_lea.vmem %s0, %s272
      %p274 = scmp.lt.s32.totalorder %s18, 1
      %s275 = scalar_select %p274, %s18, 1
      %s276 = smul.addr %s275, 2
      %s277 = smul.addr %s276, 8
      %s278 = scalar_lea.vmem %s7, %s277
      %v280 = vld [vmem:[%s273] sm:$0xff]
      %v281 = vlaneseq
      %v282 = vand.u32 %v281, 127
      %v283 = vadd.s32 %v282, 128
      %vm284 = vcmp.lt.s32.totalorder %v282, 0
      %v285 = vsub.s32 0, %v282
      %v286 = vsel %vm284, %v285, %v282
      %v287 = vshrl.u32 %v286, 4
      %v288 = vand.u32 %v286, 15
      %v289 = vsub.s32 0, %v288
      %v290 = vsel %vm284, %v289, %v288
      %vm291 = vcmp.lt.s32.totalorder %v283, 0
      %v292 = vsub.s32 0, %v283
      %v293 = vsel %vm291, %v292, %v283
      %v294 = vshrl.u32 %v293, 4
      %v295 = vand.u32 %v293, 15
      %v296 = vsub.s32 0, %v295
      %v297 = vsel %vm291, %v296, %v295
      %vm298 = vcmp.ne.s32.totalorder %v290, 0
      %vm299 = vcmp.ne.s32.totalorder %v297, 0
      %vm300 = vcmp.lt.s32.totalorder %v290, 0
      %vm301 = vcmp.lt.s32.totalorder %v297, 0
      %vm302 = vmand %vm300, %vm298
      %vm303 = vmand %vm301, %vm299
      %v304 = vadd.s32 %v290, 16
      %v305 = vadd.s32 %v297, 16
      %v306 = vsel %vm302, %v304, %v290
      %v307 = vsel %vm303, %v305, %v297
      %vm308 = vcmp.ge.s32.totalorder %v306, 1
      %vm309 = vcmp.ge.s32.totalorder %v307, 1
      %v310 = vsel %vm308, 1, 0
      %v311 = vsel %vm309, 1, 0
      %v312 = vcvt.s32.f32 %v310
      %v313 = vcvt.s32.f32 %v311
      %v314 = vpack.c.bf16 %v313, %v312
      %vm315 = vcmp.le.s32.totalorder %v306, 14
      %vm316 = vcmp.le.s32.totalorder %v307, 14
      %v317 = vsel %vm315, 1, 0
      %v318 = vsel %vm316, 1, 0
      %v319 = vcvt.s32.f32 %v317
      %v320 = vcvt.s32.f32 %v318
      %v321 = vpack.c.bf16 %v320, %v319
      %v322 = vld [vmem:[%s1] sm:$0xf]
      %v323 = vld [vmem:[%s2] sm:$0xff]
      %v324 = vld [vmem:[%s3] sm:$0xff]
      %326 = vst [vmem:[#allocation1] ss:$2 sm:$0xff] %v280
      %v327 = vld.sshfl [vmem:[#allocation1] sm:$0xff pattern:$0x75316420]
      %v328 = vld.sshfl [vmem:[#allocation1 + $0x8] sm:$0xff pattern:$0x75316420]
      %v331 = vpack.c.bf16 %v328, %v327
      %v333 = vunpack.c.l.b16 %v331
      %v334 = vunpack.c.h.b16 %v331
      %v335 = vpack.c.b16 %v333, %v333
      %v336 = vpack.c.b16 %v334, %v334
      %337 = vrot.lane.b32.xlu0 %v335, 17
      %v338 = vpop.permute.xlu0 %337
      %339 = vrot.lane.b32.xlu0 %v336, 17
      %v340 = vpop.permute.xlu0 %339
      %vm341 = vcmask 138240
      %v342 = vsel %vm341, %v338, %v340
      %vm344 = vcmask 138240
      %v347 = vsel %vm344, 0, %v338
      %v350 = vsel %vm344, %v340, 0
      %v352 = vunpack.c.l.bf16 %v347
      %v353 = vunpack.c.l.bf16 %v342
      %v354 = vunpack.c.l.bf16 %v314
      %v355 = vunpack.c.h.bf16 %v314
      %v356 = vmul.f32 %v352, %v354
      %v357 = vmul.f32 %v353, %v355
      %v358 = vpack.c.bf16 %v357, %v356
      %v359 = vunpack.c.l.bf16 %v350
      %v360 = vunpack.c.l.bf16 %v321
      %v361 = vunpack.c.h.bf16 %v321
      %364 = vrot.lane.b32.xlu0 %v360, 2
      %v365 = vpop.permute.xlu0 %364
      %366 = vrot.lane.b32.xlu0 %v361, 2
      %v367 = vpop.permute.xlu0 %366
      %vm368 = vcmask 15360
      %v369 = vsel %vm368, %v365, %v367
      %v373 = vmul.f32 %v352, %v365
      %v374 = vmul.f32 %v353, %v369
      %v375 = vmul.f32 %v359, %v367
      %v376 = vpack.c.bf16 %v374, %v373
      %v377 = vpack.c.bf16 %v375, %v375
      %380 = vrot.lane.b32.xlu0 %v354, 16
      %v381 = vpop.permute.xlu0 %380
      %382 = vrot.lane.b32.xlu0 %v355, 16
      %v383 = vpop.permute.xlu0 %382
      %vm384 = vcmask 130048
      %v385 = vsel %vm384, %v381, %v383
      %v389 = vmul.f32 %v352, %v381
      %v390 = vmul.f32 %v353, %v385
      %v391 = vmul.f32 %v359, %v383
      %v392 = vpack.c.bf16 %v390, %v389
      %v393 = vpack.c.bf16 %v391, %v391
      %394 = vrot.lane.b32.xlu0 %v360, 18
      %v395 = vpop.permute.xlu0 %394
      %396 = vrot.lane.b32.xlu0 %v361, 18
      %v397 = vpop.permute.xlu0 %396
      %vm398 = vcmask 146432
      %v399 = vsel %vm398, %v395, %v397
      %v403 = vmul.f32 %v352, %v395
      %v404 = vmul.f32 %v353, %v399
      %v405 = vmul.f32 %v359, %v397
      %v406 = vpack.c.bf16 %v404, %v403
      %v407 = vpack.c.bf16 %v405, %v405
      %408 = vrot.lane.b32.xlu0 %v354, 32
      %v409 = vpop.permute.xlu0 %408
      %410 = vrot.lane.b32.xlu0 %v355, 32
      %v411 = vpop.permute.xlu0 %410
      %vm412 = vcmask 261120
      %v413 = vsel %vm412, %v409, %v411
      %v417 = vmul.f32 %v352, %v409
      %v418 = vmul.f32 %v353, %v413
      %v419 = vmul.f32 %v359, %v411
      %v420 = vpack.c.bf16 %v418, %v417
      %v421 = vpack.c.bf16 %v419, %v419
      %422 = vrot.lane.b32.xlu0 %v360, 34
      %v423 = vpop.permute.xlu0 %422
      %424 = vrot.lane.b32.xlu0 %v361, 34
      %v425 = vpop.permute.xlu0 %424
      %vm426 = vcmask 277504
      %v427 = vsel %vm426, %v423, %v425
      %v431 = vmul.f32 %v352, %v423
      %v432 = vmul.f32 %v353, %v427
      %v433 = vmul.f32 %v359, %v425
      %v434 = vpack.c.bf16 %v432, %v431
      %v435 = vpack.c.bf16 %v433, %v433
      %v437 = vunpack.c.l.b16 %v358
      %v438 = vunpack.c.h.b16 %v358
      %v439 = vpack.c.b16 %v437, %v437
      %v440 = vpack.c.b16 %v438, %v438
      %v443 = vrot.slane %v347, 6
      %v444 = vrot.slane %v342, 6
      %v445 = vrot.slane %v350, 6
      %446 = vrot.lane.b32.xlu0 %v443, 127
      %v447 = vpop.permute.xlu0 %446
      %448 = vrot.lane.b32.xlu0 %v444, 127
      %v449 = vpop.permute.xlu0 %448
      %450 = vrot.lane.b32.xlu0 %v445, 127
      %v451 = vpop.permute.xlu0 %450
      %vm452 = vcmask 1039360
      %v453 = vsel %vm452, %v447, %v449
      %v454 = vsel %vm452, %v449, %v451
      %v457 = vunpack.c.l.b16 %v376
      %v458 = vunpack.c.h.b16 %v376
      %v459 = vunpack.c.l.b16 %v377
      %v460 = vpack.c.b16 %v457, %v457
      %v461 = vpack.c.b16 %v458, %v458
      %v462 = vpack.c.b16 %v459, %v459
      %463 = vrot.lane.b32.xlu0 %v460, 126
      %v464 = vpop.permute.xlu0 %463
      %465 = vrot.lane.b32.xlu0 %v461, 126
      %v466 = vpop.permute.xlu0 %465
      %467 = vrot.lane.b32.xlu0 %v462, 126
      %v468 = vpop.permute.xlu0 %467
      %vm469 = vcmask 1031168
      %v470 = vsel %vm469, %v464, %v466
      %v471 = vsel %vm469, %v466, %v468
      %v474 = vunpack.c.l.b16 %v392
      %v475 = vunpack.c.h.b16 %v392
      %v476 = vunpack.c.l.b16 %v393
      %v477 = vpack.c.b16 %v474, %v474
      %v478 = vpack.c.b16 %v475, %v475
      %v479 = vpack.c.b16 %v476, %v476
      %v480 = vrot.slane %v477, 2
      %v481 = vrot.slane %v478, 2
      %v482 = vrot.slane %v479, 2
      %483 = vrot.lane.b32.xlu0 %v480, 112
      %v484 = vpop.permute.xlu0 %483
      %485 = vrot.lane.b32.xlu0 %v481, 112
      %v486 = vpop.permute.xlu0 %485
      %487 = vrot.lane.b32.xlu0 %v482, 112
      %v488 = vpop.permute.xlu0 %487
      %vm489 = vcmask 916480
      %v490 = vsel %vm489, %v484, %v486
      %v491 = vsel %vm489, %v486, %v488
      %492 = vrot.lane.b32.xlu0 %v347, 111
      %v493 = vpop.permute.xlu0 %492
      %494 = vrot.lane.b32.xlu0 %v342, 111
      %v495 = vpop.permute.xlu0 %494
      %496 = vrot.lane.b32.xlu0 %v350, 111
      %v497 = vpop.permute.xlu0 %496
      %vm498 = vcmask 908288
      %v499 = vsel %vm498, %v493, %v495
      %v500 = vsel %vm498, %v495, %v497
      %v503 = vunpack.c.l.b16 %v406
      %v504 = vunpack.c.h.b16 %v406
      %v505 = vunpack.c.l.b16 %v407
      %v506 = vpack.c.b16 %v503, %v503
      %v507 = vpack.c.b16 %v504, %v504
      %v508 = vpack.c.b16 %v505, %v505
      %v509 = vrot.slane %v506, 6
      %v510 = vrot.slane %v507, 6
      %v511 = vrot.slane %v508, 6
      %512 = vrot.lane.b32.xlu0 %v509, 110
      %v513 = vpop.permute.xlu0 %512
      %514 = vrot.lane.b32.xlu0 %v510, 110
      %v515 = vpop.permute.xlu0 %514
      %516 = vrot.lane.b32.xlu0 %v511, 110
      %v517 = vpop.permute.xlu0 %516
      %vm518 = vcmask 900096
      %v519 = vsel %vm518, %v513, %v515
      %v520 = vsel %vm518, %v515, %v517
      %v523 = vunpack.c.l.b16 %v420
      %v524 = vunpack.c.h.b16 %v420
      %v525 = vunpack.c.l.b16 %v421
      %v526 = vpack.c.b16 %v523, %v523
      %v527 = vpack.c.b16 %v524, %v524
      %v528 = vpack.c.b16 %v525, %v525
      %529 = vrot.lane.b32.xlu0 %v526, 96
      %v530 = vpop.permute.xlu0 %529
      %531 = vrot.lane.b32.xlu0 %v527, 96
      %v532 = vpop.permute.xlu0 %531
      %533 = vrot.lane.b32.xlu0 %v528, 96
      %v534 = vpop.permute.xlu0 %533
      %vm535 = vcmask 785408
      %v536 = vsel %vm535, %v530, %v532
      %v537 = vsel %vm535, %v532, %v534
      %v538 = vrot.slane %v347, 2
      %v539 = vrot.slane %v342, 2
      %v540 = vrot.slane %v350, 2
      %541 = vrot.lane.b32.xlu0 %v538, 95
      %v542 = vpop.permute.xlu0 %541
      %543 = vrot.lane.b32.xlu0 %v539, 95
      %v544 = vpop.permute.xlu0 %543
      %545 = vrot.lane.b32.xlu0 %v540, 95
      %v546 = vpop.permute.xlu0 %545
      %vm547 = vcmask 777216
      %v548 = vsel %vm547, %v542, %v544
      %v549 = vsel %vm547, %v544, %v546
      %v552 = vunpack.c.l.b16 %v434
      %v553 = vunpack.c.h.b16 %v434
      %v554 = vunpack.c.l.b16 %v435
      %v555 = vpack.c.b16 %v552, %v552
      %v556 = vpack.c.b16 %v553, %v553
      %v557 = vpack.c.b16 %v554, %v554
      %558 = vrot.lane.b32.xlu0 %v555, 94
      %v559 = vpop.permute.xlu0 %558
      %560 = vrot.lane.b32.xlu0 %v556, 94
      %v561 = vpop.permute.xlu0 %560
      %562 = vrot.lane.b32.xlu0 %v557, 94
      %v563 = vpop.permute.xlu0 %562
      %vm564 = vcmask 769024
      %v565 = vsel %vm564, %v559, %v561
      %v566 = vsel %vm564, %v561, %v563
      %vm567 = vcmask 1041408
      %v570 = vsel %vm567, %v439, %v453
      %v573 = vsel %vm567, %v440, %v454
      %vm574 = vcmask 1043456
      %v576 = vsel %vm574, %v570, %v470
      %v578 = vsel %vm574, %v573, %v471
      %vm579 = vcmask 1045504
      %v581 = vsel %vm579, %v576, %v490
      %v584 = vsel %vm579, %v578, %v491
      %v588 = vsel %vm567, %v499, %v519
      %v591 = vsel %vm567, %v500, %v520
      %v593 = vsel %vm574, %v588, %v536
      %v595 = vsel %vm574, %v591, %v537
      %v597 = vsel %vm579, %v593, %v548
      %v600 = vsel %vm579, %v595, %v549
      %vm602 = vcmask 293888
      %v604 = vsel %vm602, %v322, 0
      %v607 = vsel %vm567, %v565, 0
      %v610 = vsel %vm567, %v566, 0
      %612 = vmatpush.bf16.msra.mxu0 0
      %613 = vmatpush.bf16.msra.mxu0 0
      %614 = vmatpush.bf16.msra.mxu0 0
      %615 = vmatpush.bf16.msra.mxu0 0
      %616 = vmatpush.bf16.msra.mxu0 0
      %617 = vmatpush.bf16.msra.mxu0 %v607
      %618 = vmatpush.bf16.msra.mxu0 %v597
      %619 = vmatpush.bf16.msra.mxu0 %v581
      %620 = vmatmul.bf16.gmra.mxu0 %v604
      %v621 = vpop.f32.mrf.mxu0
      %v622 = vadd.f32 0.0, %v621
      %v623 = vpop.f32.mrf.mxu0
      %624 = vdwg.mxu0
      %625 = vmatpush.bf16.msra.mxu0 0
      %626 = vmatpush.bf16.msra.mxu0 0
      %627 = vmatpush.bf16.msra.mxu0 0
      %628 = vmatpush.bf16.msra.mxu0 0
      %629 = vmatpush.bf16.msra.mxu0 0
      %630 = vmatpush.bf16.msra.mxu0 %v610
      %631 = vmatpush.bf16.msra.mxu0 %v600
      %632 = vmatpush.bf16.msra.mxu0 %v584
      %633 = vmatmul.bf16.gmra.mxu0 %v604
      %v634 = vpop.f32.mrf.mxu0
      %v635 = vadd.f32 0.0, %v634
      %v636 = vpop.f32.mrf.mxu0
      %637 = vdwg.mxu0
      %v638 = vadd.f32 %v622, %v635
      %639 = vadd.xlane.f32.xlu0 %v638
      %v640 = vpop.xlane.xlu0 %639
      %v641 = vmul.f32 %v622, %v622
      %v642 = vmul.f32 %v635, %v635
      %v643 = vadd.f32 %v641, %v642
      %644 = vadd.xlane.f32.xlu0 %v643
      %v645 = vpop.xlane.xlu0 %644
      %v646 = vmul.f32 %v640, 0.00390625
      %v647 = vmul.f32 %v645, 0.00390625
      %v648 = vmul.f32 %v646, %v646
      %v649 = vsub.f32 %v647, %v648
      %v650 = vadd.f32 %v649, 1e-05
      %v651 = vrsqrt.pop %v650
      %v652 = vmul.f32 %v651, %v650
      %v653 = vmul.f32 %v652, %v651
      %v654 = vmul.f32 0.5, %v653
      %v655 = vsub.f32 1.5, %v654
      %v656 = vmul.f32 %v651, %v655
      %vm657 = vweird.f32 %v650
      %vm658 = vweird.f32 %v651
      %vm659 = vmor %vm657, %vm658
      %v660 = vsel %vm659, %v651, %v656
      %v661 = vmul.f32 %v323, %v660
      %v662 = vsub.f32 %v622, %v646
      %v663 = vsub.f32 %v635, %v646
      %665 = vset.pattern.permute.xlu0 0
      %666 = vperm.xlu0 %665, %v661
      %v667 = vpop.permute.xlu0 %666
      %v669 = vmul.f32 %v662, %v667
      %v670 = vmul.f32 %v663, %v667
      %672 = vset.pattern.permute.xlu0 0
      %673 = vperm.xlu0 %672, %v324
      %v674 = vpop.permute.xlu0 %673
      %v676 = vadd.f32 %v669, %v674
      %v677 = vadd.f32 %v670, %v674
      %v678 = vmin.f32 %v676, 0.0
      %v679 = vmin.f32 %v677, 0.0
      %v680 = vmul.f32 %v678, 1.442695
      %v681 = vpow.pop %v680
      %v682 = vmul.f32 %v679, 1.442695
      %v683 = vpow.pop %v682
      %v684 = vsub.f32 %v681, 1.0
      %v685 = vsub.f32 %v683, 1.0
      %v686 = vmul.f32 %v684, 1.6732632
      %v687 = vmul.f32 %v685, 1.6732632
      %vm688 = vcmp.gt.f32.partialorder %v676, 0.0
      %vm689 = vcmp.gt.f32.partialorder %v677, 0.0
      %v690 = vsel %vm688, %v676, %v686
      %v691 = vsel %vm689, %v677, %v687
      %v692 = vmul.f32 %v690, 1.050701
      %v693 = vmul.f32 %v691, 1.050701
      %v694 = vld [vmem:[%s4] sm:$0xf]
      %v695 = vld [vmem:[%s5] sm:$0xff]
      %v696 = vld [vmem:[%s6] sm:$0xff]
      %v697 = vpack.c.bf16 %v693, %v692
      %v699 = vunpack.c.l.b16 %v697
      %v700 = vunpack.c.h.b16 %v697
      %v701 = vpack.c.b16 %v699, %v699
      %v702 = vpack.c.b16 %v700, %v700
      %703 = vrot.lane.b32.xlu0 %v701, 17
      %v704 = vpop.permute.xlu0 %703
      %705 = vrot.lane.b32.xlu0 %v702, 17
      %v706 = vpop.permute.xlu0 %705
      %v707 = vsel %vm341, %v704, %v706
      %v710 = vsel %vm344, 0, %v704
      %v713 = vsel %vm344, %v706, 0
      %v715 = vunpack.c.l.bf16 %v710
      %v716 = vunpack.c.l.bf16 %v707
      %v717 = vmul.f32 %v715, %v354
      %v718 = vmul.f32 %v716, %v355
      %v719 = vpack.c.bf16 %v718, %v717
      %v720 = vunpack.c.l.bf16 %v713
      %v721 = vmul.f32 %v715, %v365
      %v722 = vmul.f32 %v716, %v369
      %v723 = vmul.f32 %v720, %v367
      %v724 = vpack.c.bf16 %v722, %v721
      %v725 = vpack.c.bf16 %v723, %v723
      %v726 = vmul.f32 %v715, %v381
      %v727 = vmul.f32 %v716, %v385
      %v728 = vmul.f32 %v720, %v383
      %v729 = vpack.c.bf16 %v727, %v726
      %v730 = vpack.c.bf16 %v728, %v728
      %v731 = vmul.f32 %v715, %v395
      %v732 = vmul.f32 %v716, %v399
      %v733 = vmul.f32 %v720, %v397
      %v734 = vpack.c.bf16 %v732, %v731
      %v735 = vpack.c.bf16 %v733, %v733
      %v736 = vmul.f32 %v715, %v409
      %v737 = vmul.f32 %v716, %v413
      %v738 = vmul.f32 %v720, %v411
      %v739 = vpack.c.bf16 %v737, %v736
      %v740 = vpack.c.bf16 %v738, %v738
      %v741 = vmul.f32 %v715, %v423
      %v742 = vmul.f32 %v716, %v427
      %v743 = vmul.f32 %v720, %v425
      %v744 = vpack.c.bf16 %v742, %v741
      %v745 = vpack.c.bf16 %v743, %v743
      %v747 = vunpack.c.l.b16 %v719
      %v748 = vunpack.c.h.b16 %v719
      %v749 = vpack.c.b16 %v747, %v747
      %v750 = vpack.c.b16 %v748, %v748
      %v753 = vrot.slane %v710, 4
      %v754 = vrot.slane %v707, 4
      %v755 = vrot.slane %v713, 4
      %756 = vrot.lane.b32.xlu0 %v753, 127
      %v757 = vpop.permute.xlu0 %756
      %758 = vrot.lane.b32.xlu0 %v754, 127
      %v759 = vpop.permute.xlu0 %758
      %760 = vrot.lane.b32.xlu0 %v755, 127
      %v761 = vpop.permute.xlu0 %760
      %v762 = vsel %vm452, %v757, %v759
      %v763 = vsel %vm452, %v759, %v761
      %v766 = vunpack.c.l.b16 %v724
      %v767 = vunpack.c.h.b16 %v724
      %v768 = vunpack.c.l.b16 %v725
      %v769 = vpack.c.b16 %v766, %v766
      %v770 = vpack.c.b16 %v767, %v767
      %v771 = vpack.c.b16 %v768, %v768
      %772 = vrot.lane.b32.xlu0 %v769, 126
      %v773 = vpop.permute.xlu0 %772
      %774 = vrot.lane.b32.xlu0 %v770, 126
      %v775 = vpop.permute.xlu0 %774
      %776 = vrot.lane.b32.xlu0 %v771, 126
      %v777 = vpop.permute.xlu0 %776
      %v778 = vsel %vm469, %v773, %v775
      %v779 = vsel %vm469, %v775, %v777
      %v782 = vunpack.c.l.b16 %v729
      %v783 = vunpack.c.h.b16 %v729
      %v784 = vunpack.c.l.b16 %v730
      %v785 = vpack.c.b16 %v782, %v782
      %v786 = vpack.c.b16 %v783, %v783
      %v787 = vpack.c.b16 %v784, %v784
      %788 = vrot.lane.b32.xlu0 %v785, 112
      %v789 = vpop.permute.xlu0 %788
      %790 = vrot.lane.b32.xlu0 %v786, 112
      %v791 = vpop.permute.xlu0 %790
      %792 = vrot.lane.b32.xlu0 %v787, 112
      %v793 = vpop.permute.xlu0 %792
      %v794 = vsel %vm489, %v789, %v791
      %v795 = vsel %vm489, %v791, %v793
      %796 = vrot.lane.b32.xlu0 %v710, 111
      %v797 = vpop.permute.xlu0 %796
      %798 = vrot.lane.b32.xlu0 %v707, 111
      %v799 = vpop.permute.xlu0 %798
      %800 = vrot.lane.b32.xlu0 %v713, 111
      %v801 = vpop.permute.xlu0 %800
      %v802 = vsel %vm498, %v797, %v799
      %v803 = vsel %vm498, %v799, %v801
      %v806 = vunpack.c.l.b16 %v734
      %v807 = vunpack.c.h.b16 %v734
      %v808 = vunpack.c.l.b16 %v735
      %v809 = vpack.c.b16 %v806, %v806
      %v810 = vpack.c.b16 %v807, %v807
      %v811 = vpack.c.b16 %v808, %v808
      %812 = vrot.lane.b32.xlu0 %v809, 110
      %v813 = vpop.permute.xlu0 %812
      %814 = vrot.lane.b32.xlu0 %v810, 110
      %v815 = vpop.permute.xlu0 %814
      %816 = vrot.lane.b32.xlu0 %v811, 110
      %v817 = vpop.permute.xlu0 %816
      %v818 = vsel %vm518, %v813, %v815
      %v819 = vsel %vm518, %v815, %v817
      %v822 = vunpack.c.l.b16 %v739
      %v823 = vunpack.c.h.b16 %v739
      %v824 = vunpack.c.l.b16 %v740
      %v825 = vpack.c.b16 %v822, %v822
      %v826 = vpack.c.b16 %v823, %v823
      %v827 = vpack.c.b16 %v824, %v824
      %828 = vrot.lane.b32.xlu0 %v825, 96
      %v829 = vpop.permute.xlu0 %828
      %830 = vrot.lane.b32.xlu0 %v826, 96
      %v831 = vpop.permute.xlu0 %830
      %832 = vrot.lane.b32.xlu0 %v827, 96
      %v833 = vpop.permute.xlu0 %832
      %v834 = vsel %vm535, %v829, %v831
      %v835 = vsel %vm535, %v831, %v833
      %836 = vrot.lane.b32.xlu0 %v753, 95
      %v837 = vpop.permute.xlu0 %836
      %838 = vrot.lane.b32.xlu0 %v754, 95
      %v839 = vpop.permute.xlu0 %838
      %840 = vrot.lane.b32.xlu0 %v755, 95
      %v841 = vpop.permute.xlu0 %840
      %v842 = vsel %vm547, %v837, %v839
      %v843 = vsel %vm547, %v839, %v841
      %v846 = vunpack.c.l.b16 %v744
      %v847 = vunpack.c.h.b16 %v744
      %v848 = vunpack.c.l.b16 %v745
      %v849 = vpack.c.b16 %v846, %v846
      %v850 = vpack.c.b16 %v847, %v847
      %v851 = vpack.c.b16 %v848, %v848
      %852 = vrot.lane.b32.xlu0 %v849, 94
      %v853 = vpop.permute.xlu0 %852
      %854 = vrot.lane.b32.xlu0 %v850, 94
      %v855 = vpop.permute.xlu0 %854
      %856 = vrot.lane.b32.xlu0 %v851, 94
      %v857 = vpop.permute.xlu0 %856
      %v858 = vsel %vm564, %v853, %v855
      %v859 = vsel %vm564, %v855, %v857
      %v862 = vsel %vm574, %v749, %v762
      %v866 = vsel %vm574, %v750, %v763
      %v870 = vsel %vm574, %v778, %v794
      %v874 = vsel %vm574, %v779, %v795
      %v878 = vsel %vm574, %v802, %v818
      %v882 = vsel %vm574, %v803, %v819
      %v886 = vsel %vm574, %v834, %v842
      %v890 = vsel %vm574, %v835, %v843
      %vm892 = vcmask 588800
      %v894 = vsel %vm892, %v694, 0
      %v897 = vsel %vm574, %v858, 0
      %v900 = vsel %vm574, %v859, 0
      %902 = vmatpush.bf16.msra.mxu0 0
      %903 = vmatpush.bf16.msra.mxu0 0
      %904 = vmatpush.bf16.msra.mxu0 0
      %905 = vmatpush.bf16.msra.mxu0 %v897
      %906 = vmatpush.bf16.msra.mxu0 %v886
      %907 = vmatpush.bf16.msra.mxu0 %v878
      %908 = vmatpush.bf16.msra.mxu0 %v870
      %909 = vmatpush.bf16.msra.mxu0 %v862
      %910 = vmatmul.bf16.gmra.mxu0 %v894
      %v911 = vpop.f32.mrf.mxu0
      %v912 = vadd.f32 0.0, %v911
      %v913 = vpop.f32.mrf.mxu0
      %914 = vdwg.mxu0
      %915 = vmatpush.bf16.msra.mxu0 0
      %916 = vmatpush.bf16.msra.mxu0 0
      %917 = vmatpush.bf16.msra.mxu0 0
      %918 = vmatpush.bf16.msra.mxu0 %v900
      %919 = vmatpush.bf16.msra.mxu0 %v890
      %920 = vmatpush.bf16.msra.mxu0 %v882
      %921 = vmatpush.bf16.msra.mxu0 %v874
      %922 = vmatpush.bf16.msra.mxu0 %v866
      %923 = vmatmul.bf16.gmra.mxu0 %v894
      %v924 = vpop.f32.mrf.mxu0
      %v925 = vadd.f32 0.0, %v924
      %v926 = vpop.f32.mrf.mxu0
      %927 = vdwg.mxu0
      %v928 = vadd.f32 %v912, %v925
      %929 = vadd.xlane.f32.xlu0 %v928
      %v930 = vpop.xlane.xlu0 %929
      %v931 = vmul.f32 %v912, %v912
      %v932 = vmul.f32 %v925, %v925
      %v933 = vadd.f32 %v931, %v932
      %934 = vadd.xlane.f32.xlu0 %v933
      %v935 = vpop.xlane.xlu0 %934
      %v936 = vmul.f32 %v930, 0.00390625
      %v937 = vmul.f32 %v935, 0.00390625
      %v938 = vmul.f32 %v936, %v936
      %v939 = vsub.f32 %v937, %v938
      %v940 = vadd.f32 %v939, 1e-05
      %v941 = vrsqrt.pop %v940
      %v942 = vmul.f32 %v941, %v940
      %v943 = vmul.f32 %v942, %v941
      %v944 = vmul.f32 0.5, %v943
      %v945 = vsub.f32 1.5, %v944
      %v946 = vmul.f32 %v941, %v945
      %vm947 = vweird.f32 %v940
      %vm948 = vweird.f32 %v941
      %vm949 = vmor %vm947, %vm948
      %v950 = vsel %vm949, %v941, %v946
      %v951 = vmul.f32 %v695, %v950
      %v952 = vsub.f32 %v912, %v936
      %v953 = vsub.f32 %v925, %v936
      %955 = vset.pattern.permute.xlu0 0
      %956 = vperm.xlu0 %955, %v951
      %v957 = vpop.permute.xlu0 %956
      %v959 = vmul.f32 %v952, %v957
      %v960 = vmul.f32 %v953, %v957
      %962 = vset.pattern.permute.xlu0 0
      %963 = vperm.xlu0 %962, %v696
      %v964 = vpop.permute.xlu0 %963
      %v966 = vadd.f32 %v959, %v964
      %v967 = vadd.f32 %v960, %v964
      %v968 = vmin.f32 %v966, 0.0
      %v969 = vmin.f32 %v967, 0.0
      %v970 = vmul.f32 %v968, 1.442695
      %v971 = vpow.pop %v970
      %v972 = vmul.f32 %v969, 1.442695
      %v973 = vpow.pop %v972
      %v974 = vsub.f32 %v971, 1.0
      %v975 = vsub.f32 %v973, 1.0
      %v976 = vmul.f32 %v974, 1.6732632
      %v977 = vmul.f32 %v975, 1.6732632
      %vm978 = vcmp.gt.f32.partialorder %v966, 0.0
      %vm979 = vcmp.gt.f32.partialorder %v967, 0.0
      %v980 = vsel %vm978, %v966, %v976
      %v981 = vsel %vm979, %v967, %v977
      %v982 = vmul.f32 %v980, 1.050701
      %v983 = vmul.f32 %v981, 1.050701
      %984 = vst [vmem:[%s278] sm:$0xff] %v982
      %985 = vst [vmem:[%s278 + $0x8] sm:$0xff] %v983
      %p986 = scmp.lt.s32.totalorder %s18, 1
      %s987 = scalar_select %p986, %s18, 1
      %s988 = smul.addr %s987, 2
      %s989 = smul.addr %s988, 8
      %s990 = scalar_lea.vmem %s7, %s989
      // Predicated region
      $region49: #{encoder_forward.6} parent=47 // pred_check
        %p991 = pneg %p188
      $region50: #{encoder_forward.6} parent=47 // pred_check_branch
        %993 = sbr.rel (%p991) target = $region52
      $region51: #{encoder_forward.6} parent=47 // pred_region
        _
      $region52: #{encoder_forward.6} parent=47 // pred_fallthru
        _
    $region48: #{encoder_forward.6} parent=5 // pred_fallthru
      _
    %p994 = scmp.le.s32.totalorder 2, %s13
    // Predicated region
    $region53: #{encoder_forward.6} parent=5 // pred_check
      %p995 = pneg %p994
    $region54: #{encoder_forward.6} parent=5 // pred_check_branch
      %997 = sbr.rel (%p995) target = $region56
    $region55: #{encoder_forward.6} parent=5 // pred_region
      %s998 = ssub.s32 %s13, 2
      // Predicated region
      $region57: #{encoder_forward.6} parent=55 // pred_check
        %p999 = pneg %p194
      $region58: #{encoder_forward.6} parent=55 // pred_check_branch
        %1001 = sbr.rel (%p999) target = $region60
      $region59: #{encoder_forward.6} parent=55 // pred_region
        %p1002 = scmp.lt.s32.totalorder %s19, 1
        %s1003 = scalar_select %p1002, %s19, 1
        %s1004 = smul.addr %s1003, 2
        %s1005 = smul.addr %s1004, 8
        %s1006 = scalar_lea.vmem %s7, %s1005
      $region60: #{encoder_forward.6} parent=55 // pred_fallthru
        _
    $region56: #{encoder_forward.6} parent=5 // pred_fallthru
      _
  $region6: #{encoder_forward.6} parent=0 // loop_footer
    %s17 = sadd.s32 1, %s13
  $region7: #{encoder_forward.6} parent=0 // loop_footer_branch
    %12 = sbr.rel target = $region3
  $region8: #{encoder_forward.6} parent=0 // loop_exit
    _

// kernel: encoder_forward.5
$region0: #{encoder_forward.5}
  #allocation0 [shape = 'u32[]', space=smem, size = 0x4, offset = 0x4, fixed_abs, tag = 'smem constant byte address 0x4 - core index']
  #allocation1 [shape = 'u32[72,128]{1,0:T(1,128)}', space=vmem, size = 0x9000, scoped, tag = 'internal scratch']
  %s0 = inlined_call_operand.vmem [shape: f32[2,2,1024], index: 0, kind: input, shape index: {}]
  %s1 = inlined_call_operand.vmem [shape: bf16[4,18], index: 1, kind: input, shape index: {}]
  %s2 = inlined_call_operand.vmem [shape: f32[4,1], index: 2, kind: input, shape index: {}]
  %s3 = inlined_call_operand.vmem [shape: f32[4,1], index: 3, kind: input, shape index: {}]
  %s4 = inlined_call_operand.vmem [shape: bf16[4,36], index: 4, kind: input, shape index: {}]
  %s5 = inlined_call_operand.vmem [shape: f32[4,1], index: 5, kind: input, shape index: {}]
  %s6 = inlined_call_operand.vmem [shape: f32[4,1], index: 6, kind: input, shape index: {}]
  %s7 = inlined_call_operand.vmem [shape: f32[2,4,1024], index: 7, kind: output, shape index: {}]
  %s8 = sld [smem:[#allocation0]]
  $region61: #{encoder_forward.5} parent=0
    _
  %s10 = ssub.s32 1, %s8
  %s11 = scalar_select 0, %s10, %s8
  loop: start=0, step=1, limit=4
  $region2: #{encoder_forward.5} parent=0 // loop_pre_header
    _
  $region3: #{encoder_forward.5} parent=0 // loop_header
    %s13 = sphi 0, %s17
    %p14 = scmp.ge.s32.totalorder %s13, 4
    %s23 = sphi 0, %s25
    %s26 = sphi 0, %s23
    %s27 = sphi 0, %s26
    %s43 = sphi 0, %s27
    %s47 = sphi 0, %s47
    %s49 = sphi 0, %s47
    %s50 = sphi 0, %s49
    %s64 = sphi 0, %s50
    %s68 = sphi 0, %s68
    %s70 = sphi 0, %s68
    %s71 = sphi 0, %s70
    %s85 = sphi 0, %s71
    %s89 = sphi 0, %s89
    %s91 = sphi 0, %s89
    %s92 = sphi 0, %s91
    %s106 = sphi 0, %s92
    %s110 = sphi 0, %s110
    %s112 = sphi 0, %s110
    %s113 = sphi 0, %s112
    %s127 = sphi 0, %s113
    %s131 = sphi 0, %s131
    %s133 = sphi 0, %s131
    %s134 = sphi 0, %s133
    %s148 = sphi 0, %s134
    %s152 = sphi 0, %s152
    %s154 = sphi 0, %s152
    %s155 = sphi 0, %s154
    %s169 = sphi 0, %s155
    %s175 = sphi 0, %s177
    %s178 = sphi 0, %s175
    %s179 = sphi 0, %s178
    %s195 = sphi 0, %s179
  $region4: #{encoder_forward.5} parent=0 // loop_header_branch
    %16 = sbr.rel (%p14) target = $region8
  $region5: #{encoder_forward.5} parent=0 // loop_body
    %s18 = ssub.s32 %s13, 1
    %s19 = ssub.s32 %s13, 2
    %s20 = sadd.s32 %s13, 1
    %s21 = ssub.s32 %s13, %s20
    %p22 = scmp.eq.s32.totalorder %s21, 0
    %s24 = sadd.s32 %s23, 1
    %s25 = scalar_select %p22, %s23, %s24
    %p28 = pneg %p22
    %p29 = scmp.eq.s32.totalorder %s13, 1
    %p30 = por %p28, %p29
    %p31 = scmp.ne.s32.totalorder %s23, %s26
    %p32 = scmp.eq.s32.totalorder %s13, 0
    %p33 = por %p31, %p32
    %p34 = scmp.ne.s32.totalorder %s23, %s26
    %p35 = scmp.eq.s32.totalorder %s18, 1
    %p36 = por %p34, %p35
    %p37 = scmp.ne.s32.totalorder %s26, %s27
    %p38 = scmp.eq.s32.totalorder %s18, 0
    %p39 = por %p37, %p38
    %p40 = scmp.ne.s32.totalorder %s26, %s27
    %p41 = scmp.eq.s32.totalorder %s19, 1
    %p42 = por %p40, %p41
    %p44 = scmp.ne.s32.totalorder %s27, %s43
    %p45 = scmp.eq.s32.totalorder %s19, 0
    %p46 = por %p44, %p45
    %s48 = sadd.s32 %s47, 1
    %p51 = scmp.eq.s32.totalorder %s13, 1
    %p52 = scmp.ne.s32.totalorder %s47, %s49
    %p53 = scmp.eq.s32.totalorder %s13, 0
    %p54 = por %p52, %p53
    %p55 = scmp.ne.s32.totalorder %s47, %s49
    %p56 = scmp.eq.s32.totalorder %s18, 1
    %p57 = por %p55, %p56
    %p58 = scmp.ne.s32.totalorder %s49, %s50
    %p59 = scmp.eq.s32.totalorder %s18, 0
    %p60 = por %p58, %p59
    %p61 = scmp.ne.s32.totalorder %s49, %s50
    %p62 = scmp.eq.s32.totalorder %s19, 1
    %p63 = por %p61, %p62
    %p65 = scmp.ne.s32.totalorder %s50, %s64
    %p66 = scmp.eq.s32.totalorder %s19, 0
    %p67 = por %p65, %p66
    %s69 = sadd.s32 %s68, 1
    %p72 = scmp.eq.s32.totalorder %s13, 1
    %p73 = scmp.ne.s32.totalorder %s68, %s70
    %p74 = scmp.eq.s32.totalorder %s13, 0
    %p75 = por %p73, %p74
    %p76 = scmp.ne.s32.totalorder %s68, %s70
    %p77 = scmp.eq.s32.totalorder %s18, 1
    %p78 = por %p76, %p77
    %p79 = scmp.ne.s32.totalorder %s70, %s71
    %p80 = scmp.eq.s32.totalorder %s18, 0
    %p81 = por %p79, %p80
    %p82 = scmp.ne.s32.totalorder %s70, %s71
    %p83 = scmp.eq.s32.totalorder %s19, 1
    %p84 = por %p82, %p83
    %p86 = scmp.ne.s32.totalorder %s71, %s85
    %p87 = scmp.eq.s32.totalorder %s19, 0
    %p88 = por %p86, %p87
    %s90 = sadd.s32 %s89, 1
    %p93 = scmp.eq.s32.totalorder %s13, 1
    %p94 = scmp.ne.s32.totalorder %s89, %s91
    %p95 = scmp.eq.s32.totalorder %s13, 0
    %p96 = por %p94, %p95
    %p97 = scmp.ne.s32.totalorder %s89, %s91
    %p98 = scmp.eq.s32.totalorder %s18, 1
    %p99 = por %p97, %p98
    %p100 = scmp.ne.s32.totalorder %s91, %s92
    %p101 = scmp.eq.s32.totalorder %s18, 0
    %p102 = por %p100, %p101
    %p103 = scmp.ne.s32.totalorder %s91, %s92
    %p104 = scmp.eq.s32.totalorder %s19, 1
    %p105 = por %p103, %p104
    %p107 = scmp.ne.s32.totalorder %s92, %s106
    %p108 = scmp.eq.s32.totalorder %s19, 0
    %p109 = por %p107, %p108
    %s111 = sadd.s32 %s110, 1
    %p114 = scmp.eq.s32.totalorder %s13, 1
    %p115 = scmp.ne.s32.totalorder %s110, %s112
    %p116 = scmp.eq.s32.totalorder %s13, 0
    %p117 = por %p115, %p116
    %p118 = scmp.ne.s32.totalorder %s110, %s112
    %p119 = scmp.eq.s32.totalorder %s18, 1
    %p120 = por %p118, %p119
    %p121 = scmp.ne.s32.totalorder %s112, %s113
    %p122 = scmp.eq.s32.totalorder %s18, 0
    %p123 = por %p121, %p122
    %p124 = scmp.ne.s32.totalorder %s112, %s113
    %p125 = scmp.eq.s32.totalorder %s19, 1
    %p126 = por %p124, %p125
    %p128 = scmp.ne.s32.totalorder %s113, %s127
    %p129 = scmp.eq.s32.totalorder %s19, 0
    %p130 = por %p128, %p129
    %s132 = sadd.s32 %s131, 1
    %p135 = scmp.eq.s32.totalorder %s13, 1
    %p136 = scmp.ne.s32.totalorder %s131, %s133
    %p137 = scmp.eq.s32.totalorder %s13, 0
    %p138 = por %p136, %p137
    %p139 = scmp.ne.s32.totalorder %s131, %s133
    %p140 = scmp.eq.s32.totalorder %s18, 1
    %p141 = por %p139, %p140
    %p142 = scmp.ne.s32.totalorder %s133, %s134
    %p143 = scmp.eq.s32.totalorder %s18, 0
    %p144 = por %p142, %p143
    %p145 = scmp.ne.s32.totalorder %s133, %s134
    %p146 = scmp.eq.s32.totalorder %s19, 1
    %p147 = por %p145, %p146
    %p149 = scmp.ne.s32.totalorder %s134, %s148
    %p150 = scmp.eq.s32.totalorder %s19, 0
    %p151 = por %p149, %p150
    %s153 = sadd.s32 %s152, 1
    %p156 = scmp.eq.s32.totalorder %s13, 1
    %p157 = scmp.ne.s32.totalorder %s152, %s154
    %p158 = scmp.eq.s32.totalorder %s13, 0
    %p159 = por %p157, %p158
    %p160 = scmp.ne.s32.totalorder %s152, %s154
    %p161 = scmp.eq.s32.totalorder %s18, 1
    %p162 = por %p160, %p161
    %p163 = scmp.ne.s32.totalorder %s154, %s155
    %p164 = scmp.eq.s32.totalorder %s18, 0
    %p165 = por %p163, %p164
    %p166 = scmp.ne.s32.totalorder %s154, %s155
    %p167 = scmp.eq.s32.totalorder %s19, 1
    %p168 = por %p166, %p167
    %p170 = scmp.ne.s32.totalorder %s155, %s169
    %p171 = scmp.eq.s32.totalorder %s19, 0
    %p172 = por %p170, %p171
    %s173 = ssub.s32 %s13, %s20
    %p174 = scmp.eq.s32.totalorder %s173, 0
    %s176 = sadd.s32 %s175, 1
    %s177 = scalar_select %p174, %s175, %s176
    %p180 = pneg %p174
    %p181 = scmp.eq.s32.totalorder %s13, 1
    %p182 = por %p180, %p181
    %p183 = scmp.ne.s32.totalorder %s175, %s178
    %p184 = scmp.eq.s32.totalorder %s13, 0
    %p185 = por %p183, %p184
    %p186 = scmp.ne.s32.totalorder %s175, %s178
    %p187 = scmp.eq.s32.totalorder %s18, 1
    %p188 = por %p186, %p187
    %p189 = scmp.ne.s32.totalorder %s178, %s179
    %p190 = scmp.eq.s32.totalorder %s18, 0
    %p191 = por %p189, %p190
    %p192 = scmp.ne.s32.totalorder %s178, %s179
    %p193 = scmp.eq.s32.totalorder %s19, 1
    %p194 = por %p192, %p193
    %p196 = scmp.ne.s32.totalorder %s179, %s195
    %p197 = scmp.eq.s32.totalorder %s19, 0
    %p198 = por %p196, %p197
    %p199 = scmp.le.s32.totalorder 1, %s13
    %p200 = scmp.lt.s32.totalorder %s13, 3
    %p201 = pnand %p199, %p200
    %p202 = pneg %p201
    // Predicated region
    $region9: #{encoder_forward.5} parent=5 // pred_check
      _
    $region10: #{encoder_forward.5} parent=5 // pred_check_branch
      %204 = sbr.rel (%p201) target = $region12
    $region11: #{encoder_forward.5} parent=5 // pred_region
      %s205 = ssub.s32 %s13, 1
      // Predicated region
      $region13: #{encoder_forward.5} parent=11 // pred_check
        %p206 = pneg %p60
      $region14: #{encoder_forward.5} parent=11 // pred_check_branch
        %208 = sbr.rel (%p206) target = $region16
      $region15: #{encoder_forward.5} parent=11 // pred_region
        _
      $region16: #{encoder_forward.5} parent=11 // pred_fallthru
        _
      // Predicated region
      $region17: #{encoder_forward.5} parent=11 // pred_check
        %p209 = pneg %p81
      $region18: #{encoder_forward.5} parent=11 // pred_check_branch
        %211 = sbr.rel (%p209) target = $region20
      $region19: #{encoder_forward.5} parent=11 // pred_region
        _
      $region20: #{encoder_forward.5} parent=11 // pred_fallthru
        _
      // Predicated region
      $region21: #{encoder_forward.5} parent=11 // pred_check
        %p212 = pneg %p102
      $region22: #{encoder_forward.5} parent=11 // pred_check_branch
        %214 = sbr.rel (%p212) target = $region24
      $region23: #{encoder_forward.5} parent=11 // pred_region
        _
      $region24: #{encoder_forward.5} parent=11 // pred_fallthru
        _
      // Predicated region
      $region25: #{encoder_forward.5} parent=11 // pred_check
        %p215 = pneg %p123
      $region26: #{encoder_forward.5} parent=11 // pred_check_branch
        %217 = sbr.rel (%p215) target = $region28
      $region27: #{encoder_forward.5} parent=11 // pred_region
        _
      $region28: #{encoder_forward.5} parent=11 // pred_fallthru
        _
      // Predicated region
      $region29: #{encoder_forward.5} parent=11 // pred_check
        %p218 = pneg %p144
      $region30: #{encoder_forward.5} parent=11 // pred_check_branch
        %220 = sbr.rel (%p218) target = $region32
      $region31: #{encoder_forward.5} parent=11 // pred_region
        _
      $region32: #{encoder_forward.5} parent=11 // pred_fallthru
        _
      // Predicated region
      $region33: #{encoder_forward.5} parent=11 // pred_check
        %p221 = pneg %p165
      $region34: #{encoder_forward.5} parent=11 // pred_check_branch
        %223 = sbr.rel (%p221) target = $region36
      $region35: #{encoder_forward.5} parent=11 // pred_region
        _
      $region36: #{encoder_forward.5} parent=11 // pred_fallthru
        _
    $region12: #{encoder_forward.5} parent=5 // pred_fallthru
      _
    %p224 = scmp.lt.s32.totalorder %s13, 2
    // Predicated region
    $region37: #{encoder_forward.5} parent=5 // pred_check
      %p225 = pneg %p224
    $region38: #{encoder_forward.5} parent=5 // pred_check_branch
      %227 = sbr.rel (%p225) target = $region40
    $region39: #{encoder_forward.5} parent=5 // pred_region
      // Predicated region
      $region41: #{encoder_forward.5} parent=39 // pred_check
        %p228 = pneg %p33
      $region42: #{encoder_forward.5} parent=39 // pred_check_branch
        %230 = sbr.rel (%p228) target = $region44
      $region43: #{encoder_forward.5} parent=39 // pred_region
        %p231 = scmp.lt.s32.totalorder %s13, 1
        %s232 = scalar_select %p231, %s13, 1
        %s233 = smul.addr %s232, 8
        %s234 = smul.addr %s233, 2
        %s235 = scalar_lea.vmem %s0, %s234
      $region44: #{encoder_forward.5} parent=39 // pred_fallthru
        _
    $region40: #{encoder_forward.5} parent=5 // pred_fallthru
      _
    %p236 = scmp.le.s32.totalorder 1, %s13
    %p237 = scmp.lt.s32.totalorder %s13, 3
    %p238 = pnand %p236, %p237
    %p239 = pneg %p238
    // Predicated region
    $region45: #{encoder_forward.5} parent=5 // pred_check
      _
    $region46: #{encoder_forward.5} parent=5 // pred_check_branch
      %241 = sbr.rel (%p238) target = $region48
    $region47: #{encoder_forward.5} parent=5 // pred_region
      %s242 = ssub.s32 %s13, 1
      %p243 = scmp.lt.s32.totalorder %s18, 1
      %s244 = scalar_select %p243, %s18, 1
      %s245 = smul.addr %s244, 8
      %s246 = smul.addr %s245, 2
      %s247 = scalar_lea.vmem %s0, %s246
      %p248 = pneg %p39
      %p249 = pneg %p36
      %p250 = pneg %p60
      %p251 = pneg %p57
      %p252 = pneg %p81
      %p253 = pneg %p78
      %p254 = pneg %p102
      %p255 = pneg %p99
      %p256 = pneg %p123
      %p257 = pneg %p120
      %p258 = pneg %p144
      %p259 = pneg %p141
      %p260 = pneg %p165
      %p261 = pneg %p162
      %p262 = pneg %p191
      %p263 = pneg %p188
      %p264 = scmp.lt.s32.totalorder %s18, 1
      %s265 = scalar_select %p264, %s18, 1
      %s266 = smul.addr %s265, 8
      %s267 = smul.addr %s266, 4
      %s268 = scalar_lea.vmem %s7, %s267
      %p269 = scmp.lt.s32.totalorder %s18, 1
      %s270 = scalar_select %p269, %s18, 1
      %s271 = smul.addr %s270, 8
      %s272 = smul.addr %s271, 2
      %s273 = scalar_lea.vmem %s0, %s272
      %p274 = scmp.lt.s32.totalorder %s18, 1
      %s275 = scalar_select %p274, %s18, 1
      %s276 = smul.addr %s275, 8
      %s277 = smul.addr %s276, 4
      %s278 = scalar_lea.vmem %s7, %s277
      %v280 = vld [vmem:[%s273] sm:$0xff]
      %v281 = vld [vmem:[%s273 + $0x8] sm:$0xff]
      %v282 = vlaneseq
      %v283 = vand.u32 %v282, 127
      %v284 = vadd.s32 %v283, 128
      %v285 = vadd.s32 %v283, 256
      %v286 = vadd.s32 %v283, 384
      %v287 = vadd.s32 %v283, 512
      %v288 = vadd.s32 %v283, 640
      %v289 = vadd.s32 %v283, 768
      %v290 = vadd.s32 %v283, 896
      %vm291 = vcmp.lt.s32.totalorder %v283, 0
      %v292 = vsub.s32 0, %v283
      %v293 = vsel %vm291, %v292, %v283
      %v294 = vshrl.u32 %v293, 5
      %v295 = vand.u32 %v293, 31
      %v296 = vsub.s32 0, %v295
      %v297 = vsel %vm291, %v296, %v295
      %vm298 = vcmp.lt.s32.totalorder %v284, 0
      %v299 = vsub.s32 0, %v284
      %v300 = vsel %vm298, %v299, %v284
      %v301 = vshrl.u32 %v300, 5
      %v302 = vand.u32 %v300, 31
      %v303 = vsub.s32 0, %v302
      %v304 = vsel %vm298, %v303, %v302
      %vm305 = vcmp.lt.s32.totalorder %v285, 0
      %v306 = vsub.s32 0, %v285
      %v307 = vsel %vm305, %v306, %v285
      %v308 = vshrl.u32 %v307, 5
      %v309 = vand.u32 %v307, 31
      %v310 = vsub.s32 0, %v309
      %v311 = vsel %vm305, %v310, %v309
      %vm312 = vcmp.lt.s32.totalorder %v286, 0
      %v313 = vsub.s32 0, %v286
      %v314 = vsel %vm312, %v313, %v286
      %v315 = vshrl.u32 %v314, 5
      %v316 = vand.u32 %v314, 31
      %v317 = vsub.s32 0, %v316
      %v318 = vsel %vm312, %v317, %v316
      %vm319 = vcmp.lt.s32.totalorder %v287, 0
      %v320 = vsub.s32 0, %v287
      %v321 = vsel %vm319, %v320, %v287
      %v322 = vshrl.u32 %v321, 5
      %v323 = vand.u32 %v321, 31
      %v324 = vsub.s32 0, %v323
      %v325 = vsel %vm319, %v324, %v323
      %vm326 = vcmp.lt.s32.totalorder %v288, 0
      %v327 = vsub.s32 0, %v288
      %v328 = vsel %vm326, %v327, %v288
      %v329 = vshrl.u32 %v328, 5
      %v330 = vand.u32 %v328, 31
      %v331 = vsub.s32 0, %v330
      %v332 = vsel %vm326, %v331, %v330
      %vm333 = vcmp.lt.s32.totalorder %v289, 0
      %v334 = vsub.s32 0, %v289
      %v335 = vsel %vm333, %v334, %v289
      %v336 = vshrl.u32 %v335, 5
      %v337 = vand.u32 %v335, 31
      %v338 = vsub.s32 0, %v337
      %v339 = vsel %vm333, %v338, %v337
      %vm340 = vcmp.lt.s32.totalorder %v290, 0
      %v341 = vsub.s32 0, %v290
      %v342 = vsel %vm340, %v341, %v290
      %v343 = vshrl.u32 %v342, 5
      %v344 = vand.u32 %v342, 31
      %v345 = vsub.s32 0, %v344
      %v346 = vsel %vm340, %v345, %v344
      %vm347 = vcmp.ne.s32.totalorder %v297, 0
      %vm348 = vcmp.ne.s32.totalorder %v304, 0
      %vm349 = vcmp.ne.s32.totalorder %v311, 0
      %vm350 = vcmp.ne.s32.totalorder %v318, 0
      %vm351 = vcmp.ne.s32.totalorder %v325, 0
      %vm352 = vcmp.ne.s32.totalorder %v332, 0
      %vm353 = vcmp.ne.s32.totalorder %v339, 0
      %vm354 = vcmp.ne.s32.totalorder %v346, 0
      %vm355 = vcmp.lt.s32.totalorder %v297, 0
      %vm356 = vcmp.lt.s32.totalorder %v304, 0
      %vm357 = vcmp.lt.s32.totalorder %v311, 0
      %vm358 = vcmp.lt.s32.totalorder %v318, 0
      %vm359 = vcmp.lt.s32.totalorder %v325, 0
      %vm360 = vcmp.lt.s32.totalorder %v332, 0
      %vm361 = vcmp.lt.s32.totalorder %v339, 0
      %vm362 = vcmp.lt.s32.totalorder %v346, 0
      %vm363 = vmand %vm355, %vm347
      %vm364 = vmand %vm356, %vm348
      %vm365 = vmand %vm357, %vm349
      %vm366 = vmand %vm358, %vm350
      %vm367 = vmand %vm359, %vm351
      %vm368 = vmand %vm360, %vm352
      %vm369 = vmand %vm361, %vm353
      %vm370 = vmand %vm362, %vm354
      %v371 = vadd.s32 %v297, 32
      %v372 = vadd.s32 %v304, 32
      %v373 = vadd.s32 %v311, 32
      %v374 = vadd.s32 %v318, 32
      %v375 = vadd.s32 %v325, 32
      %v376 = vadd.s32 %v332, 32
      %v377 = vadd.s32 %v339, 32
      %v378 = vadd.s32 %v346, 32
      %v379 = vsel %vm363, %v371, %v297
      %v380 = vsel %vm364, %v372, %v304
      %v381 = vsel %vm365, %v373, %v311
      %v382 = vsel %vm366, %v374, %v318
      %v383 = vsel %vm367, %v375, %v325
      %v384 = vsel %vm368, %v376, %v332
      %v385 = vsel %vm369, %v377, %v339
      %v386 = vsel %vm370, %v378, %v346
      %vm387 = vcmp.ge.s32.totalorder %v379, 1
      %vm388 = vcmp.ge.s32.totalorder %v380, 1
      %vm389 = vcmp.ge.s32.totalorder %v381, 1
      %vm390 = vcmp.ge.s32.totalorder %v382, 1
      %vm391 = vcmp.ge.s32.totalorder %v383, 1
      %vm392 = vcmp.ge.s32.totalorder %v384, 1
      %vm393 = vcmp.ge.s32.totalorder %v385, 1
      %vm394 = vcmp.ge.s32.totalorder %v386, 1
      %v395 = vsel %vm387, 1, 0
      %v396 = vsel %vm388, 1, 0
      %v397 = vsel %vm389, 1, 0
      %v398 = vsel %vm390, 1, 0
      %v399 = vsel %vm391, 1, 0
      %v400 = vsel %vm392, 1, 0
      %v401 = vsel %vm393, 1, 0
      %v402 = vsel %vm394, 1, 0
      %v403 = vcvt.s32.f32 %v395
      %v404 = vcvt.s32.f32 %v396
      %v405 = vcvt.s32.f32 %v397
      %v406 = vcvt.s32.f32 %v398
      %v407 = vcvt.s32.f32 %v399
      %v408 = vcvt.s32.f32 %v400
      %v409 = vcvt.s32.f32 %v401
      %v410 = vcvt.s32.f32 %v402
      %v411 = vpack.c.bf16 %v404, %v403
      %v412 = vpack.c.bf16 %v406, %v405
      %v413 = vpack.c.bf16 %v408, %v407
      %v414 = vpack.c.bf16 %v410, %v409
      %vm415 = vcmp.le.s32.totalorder %v379, 30
      %vm416 = vcmp.le.s32.totalorder %v380, 30
      %vm417 = vcmp.le.s32.totalorder %v381, 30
      %vm418 = vcmp.le.s32.totalorder %v382, 30
      %vm419 = vcmp.le.s32.totalorder %v383, 30
      %vm420 = vcmp.le.s32.totalorder %v384, 30
      %vm421 = vcmp.le.s32.totalorder %v385, 30
      %vm422 = vcmp.le.s32.totalorder %v386, 30
      %v423 = vsel %vm415, 1, 0
      %v424 = vsel %vm416, 1, 0
      %v425 = vsel %vm417, 1, 0
      %v426 = vsel %vm418, 1, 0
      %v427 = vsel %vm419, 1, 0
      %v428 = vsel %vm420, 1, 0
      %v429 = vsel %vm421, 1, 0
      %v430 = vsel %vm422, 1, 0
      %v431 = vcvt.s32.f32 %v423
      %v432 = vcvt.s32.f32 %v424
      %v433 = vcvt.s32.f32 %v425
      %v434 = vcvt.s32.f32 %v426
      %v435 = vcvt.s32.f32 %v427
      %v436 = vcvt.s32.f32 %v428
      %v437 = vcvt.s32.f32 %v429
      %v438 = vcvt.s32.f32 %v430
      %v439 = vpack.c.bf16 %v432, %v431
      %v440 = vpack.c.bf16 %v434, %v433
      %v441 = vpack.c.bf16 %v436, %v435
      %v442 = vpack.c.bf16 %v438, %v437
      %v443 = vld [vmem:[%s1] sm:$0x3]
      %v444 = vld [vmem:[%s2] sm:$0xf]
      %v445 = vld [vmem:[%s3] sm:$0xf]
      %448 = vst [vmem:[#allocation1] ss:$4 sm:$0xff] %v280
      %s449 = scalar_lea.vmem [#allocation1], 32
      %450 = vst [vmem:[%s449] ss:$4 sm:$0xff] %v281
      %v451 = vld.sshfl [vmem:[#allocation1] sm:$0xff pattern:$0x73625140]
      %v452 = vld.sshfl [vmem:[#allocation1 + $0x8] sm:$0xff pattern:$0x73625140]
      %v453 = vld.sshfl [vmem:[#allocation1 + $0x10] sm:$0xff pattern:$0x73625140]
      %v454 = vld.sshfl [vmem:[#allocation1 + $0x18] sm:$0xff pattern:$0x73625140]
      %v455 = vld.sshfl [vmem:[#allocation1 + $0x20] sm:$0xff pattern:$0x73625140]
      %v456 = vld.sshfl [vmem:[#allocation1 + $0x28] sm:$0xff pattern:$0x73625140]
      %v457 = vld.sshfl [vmem:[#allocation1 + $0x30] sm:$0xff pattern:$0x73625140]
      %v458 = vld.sshfl [vmem:[#allocation1 + $0x38] sm:$0xff pattern:$0x73625140]
      %v467 = vpack.c.bf16 %v452, %v451
      %v468 = vpack.c.bf16 %v454, %v453
      %v469 = vpack.c.bf16 %v456, %v455
      %v470 = vpack.c.bf16 %v458, %v457
      %v475 = vunpack.c.l.b16 %v467
      %v476 = vunpack.c.h.b16 %v467
      %v477 = vunpack.c.l.b16 %v468
      %v478 = vunpack.c.h.b16 %v468
      %v479 = vunpack.c.l.b16 %v469
      %v480 = vunpack.c.h.b16 %v469
      %v481 = vunpack.c.l.b16 %v470
      %v482 = vunpack.c.h.b16 %v470
      %v483 = vpack.c.b16 %v475, %v475
      %v484 = vpack.c.b16 %v476, %v476
      %v485 = vpack.c.b16 %v477, %v477
      %v486 = vpack.c.b16 %v478, %v478
      %v487 = vpack.c.b16 %v479, %v479
      %v488 = vpack.c.b16 %v480, %v480
      %v489 = vpack.c.b16 %v481, %v481
      %v490 = vpack.c.b16 %v482, %v482
      %491 = vrot.lane.b32.xlu0 %v483, 33
      %v492 = vpop.permute.xlu0 %491
      %493 = vrot.lane.b32.xlu0 %v484, 33
      %v494 = vpop.permute.xlu0 %493
      %495 = vrot.lane.b32.xlu0 %v485, 33
      %v496 = vpop.permute.xlu0 %495
      %497 = vrot.lane.b32.xlu0 %v486, 33
      %v498 = vpop.permute.xlu0 %497
      %499 = vrot.lane.b32.xlu0 %v487, 33
      %v500 = vpop.permute.xlu0 %499
      %501 = vrot.lane.b32.xlu0 %v488, 33
      %v502 = vpop.permute.xlu0 %501
      %503 = vrot.lane.b32.xlu0 %v489, 33
      %v504 = vpop.permute.xlu0 %503
      %505 = vrot.lane.b32.xlu0 %v490, 33
      %v506 = vpop.permute.xlu0 %505
      %vm507 = vcmask 269312
      %v508 = vsel %vm507, %v492, %v494
      %v509 = vsel %vm507, %v494, %v496
      %v510 = vsel %vm507, %v496, %v498
      %v511 = vsel %vm507, %v498, %v500
      %v512 = vsel %vm507, %v500, %v502
      %v513 = vsel %vm507, %v502, %v504
      %v514 = vsel %vm507, %v504, %v506
      %vm522 = vcmask 269312
      %v525 = vsel %vm522, 0, %v492
      %v528 = vsel %vm522, %v506, 0
      %v530 = vunpack.c.l.bf16 %v525
      %v531 = vunpack.c.l.bf16 %v508
      %v532 = vunpack.c.l.bf16 %v509
      %v533 = vunpack.c.l.bf16 %v510
      %v534 = vunpack.c.l.bf16 %v511
      %v535 = vunpack.c.l.bf16 %v512
      %v536 = vunpack.c.l.bf16 %v513
      %v537 = vunpack.c.l.bf16 %v514
      %v538 = vunpack.c.l.bf16 %v411
      %v539 = vunpack.c.h.bf16 %v411
      %v540 = vunpack.c.l.bf16 %v412
      %v541 = vunpack.c.h.bf16 %v412
      %v542 = vunpack.c.l.bf16 %v413
      %v543 = vunpack.c.h.bf16 %v413
      %v544 = vunpack.c.l.bf16 %v414
      %v545 = vunpack.c.h.bf16 %v414
      %v546 = vmul.f32 %v530, %v538
      %v547 = vmul.f32 %v531, %v539
      %v548 = vmul.f32 %v532, %v540
      %v549 = vmul.f32 %v533, %v541
      %v550 = vmul.f32 %v534, %v542
      %v551 = vmul.f32 %v535, %v543
      %v552 = vmul.f32 %v536, %v544
      %v553 = vmul.f32 %v537, %v545
      %v554 = vpack.c.bf16 %v547, %v546
      %v555 = vpack.c.bf16 %v549, %v548
      %v556 = vpack.c.bf16 %v551, %v550
      %v557 = vpack.c.bf16 %v553, %v552
      %v558 = vunpack.c.l.bf16 %v528
      %v559 = vunpack.c.l.bf16 %v439
      %v560 = vunpack.c.h.bf16 %v439
      %v561 = vunpack.c.l.bf16 %v440
      %v562 = vunpack.c.h.bf16 %v440
      %v563 = vunpack.c.l.bf16 %v441
      %v564 = vunpack.c.h.bf16 %v441
      %v565 = vunpack.c.l.bf16 %v442
      %v566 = vunpack.c.h.bf16 %v442
      %575 = vrot.lane.b32.xlu0 %v559, 2
      %v576 = vpop.permute.xlu0 %575
      %577 = vrot.lane.b32.xlu0 %v560, 2
      %v578 = vpop.permute.xlu0 %577
      %579 = vrot.lane.b32.xlu0 %v561, 2
      %v580 = vpop.permute.xlu0 %579
      %581 = vrot.lane.b32.xlu0 %v562, 2
      %v582 = vpop.permute.xlu0 %581
      %583 = vrot.lane.b32.xlu0 %v563, 2
      %v584 = vpop.permute.xlu0 %583
      %585 = vrot.lane.b32.xlu0 %v564, 2
      %v586 = vpop.permute.xlu0 %585
      %587 = vrot.lane.b32.xlu0 %v565, 2
      %v588 = vpop.permute.xlu0 %587
      %589 = vrot.lane.b32.xlu0 %v566, 2
      %v590 = vpop.permute.xlu0 %589
      %vm591 = vcmask 15360
      %v592 = vsel %vm591, %v576, %v578
      %v593 = vsel %vm591, %v578, %v580
      %v594 = vsel %vm591, %v580, %v582
      %v595 = vsel %vm591, %v582, %v584
      %v596 = vsel %vm591, %v584, %v586
      %v597 = vsel %vm591, %v586, %v588
      %v598 = vsel %vm591, %v588, %v590
      %v608 = vmul.f32 %v530, %v576
      %v609 = vmul.f32 %v531, %v592
      %v610 = vmul.f32 %v532, %v593
      %v611 = vmul.f32 %v533, %v594
      %v612 = vmul.f32 %v534, %v595
      %v613 = vmul.f32 %v535, %v596
      %v614 = vmul.f32 %v536, %v597
      %v615 = vmul.f32 %v537, %v598
      %v616 = vmul.f32 %v558, %v590
      %v617 = vpack.c.bf16 %v609, %v608
      %v618 = vpack.c.bf16 %v611, %v610
      %v619 = vpack.c.bf16 %v613, %v612
      %v620 = vpack.c.bf16 %v615, %v614
      %v621 = vpack.c.bf16 %v616, %v616
      %630 = vrot.lane.b32.xlu0 %v538, 32
      %v631 = vpop.permute.xlu0 %630
      %632 = vrot.lane.b32.xlu0 %v539, 32
      %v633 = vpop.permute.xlu0 %632
      %634 = vrot.lane.b32.xlu0 %v540, 32
      %v635 = vpop.permute.xlu0 %634
      %636 = vrot.lane.b32.xlu0 %v541, 32
      %v637 = vpop.permute.xlu0 %636
      %638 = vrot.lane.b32.xlu0 %v542, 32
      %v639 = vpop.permute.xlu0 %638
      %640 = vrot.lane.b32.xlu0 %v543, 32
      %v641 = vpop.permute.xlu0 %640
      %642 = vrot.lane.b32.xlu0 %v544, 32
      %v643 = vpop.permute.xlu0 %642
      %644 = vrot.lane.b32.xlu0 %v545, 32
      %v645 = vpop.permute.xlu0 %644
      %vm646 = vcmask 261120
      %v647 = vsel %vm646, %v631, %v633
      %v648 = vsel %vm646, %v633, %v635
      %v649 = vsel %vm646, %v635, %v637
      %v650 = vsel %vm646, %v637, %v639
      %v651 = vsel %vm646, %v639, %v641
      %v652 = vsel %vm646, %v641, %v643
      %v653 = vsel %vm646, %v643, %v645
      %v663 = vmul.f32 %v530, %v631
      %v664 = vmul.f32 %v531, %v647
      %v665 = vmul.f32 %v532, %v648
      %v666 = vmul.f32 %v533, %v649
      %v667 = vmul.f32 %v534, %v650
      %v668 = vmul.f32 %v535, %v651
      %v669 = vmul.f32 %v536, %v652
      %v670 = vmul.f32 %v537, %v653
      %v671 = vmul.f32 %v558, %v645
      %v672 = vpack.c.bf16 %v664, %v663
      %v673 = vpack.c.bf16 %v666, %v665
      %v674 = vpack.c.bf16 %v668, %v667
      %v675 = vpack.c.bf16 %v670, %v669
      %v676 = vpack.c.bf16 %v671, %v671
      %677 = vrot.lane.b32.xlu0 %v559, 34
      %v678 = vpop.permute.xlu0 %677
      %679 = vrot.lane.b32.xlu0 %v560, 34
      %v680 = vpop.permute.xlu0 %679
      %681 = vrot.lane.b32.xlu0 %v561, 34
      %v682 = vpop.permute.xlu0 %681
      %683 = vrot.lane.b32.xlu0 %v562, 34
      %v684 = vpop.permute.xlu0 %683
      %685 = vrot.lane.b32.xlu0 %v563, 34
      %v686 = vpop.permute.xlu0 %685
      %687 = vrot.lane.b32.xlu0 %v564, 34
      %v688 = vpop.permute.xlu0 %687
      %689 = vrot.lane.b32.xlu0 %v565, 34
      %v690 = vpop.permute.xlu0 %689
      %691 = vrot.lane.b32.xlu0 %v566, 34
      %v692 = vpop.permute.xlu0 %691
      %vm693 = vcmask 277504
      %v694 = vsel %vm693, %v678, %v680
      %v695 = vsel %vm693, %v680, %v682
      %v696 = vsel %vm693, %v682, %v684
      %v697 = vsel %vm693, %v684, %v686
      %v698 = vsel %vm693, %v686, %v688
      %v699 = vsel %vm693, %v688, %v690
      %v700 = vsel %vm693, %v690, %v692
      %v710 = vmul.f32 %v530, %v678
      %v711 = vmul.f32 %v531, %v694
      %v712 = vmul.f32 %v532, %v695
      %v713 = vmul.f32 %v533, %v696
      %v714 = vmul.f32 %v534, %v697
      %v715 = vmul.f32 %v535, %v698
      %v716 = vmul.f32 %v536, %v699
      %v717 = vmul.f32 %v537, %v700
      %v718 = vmul.f32 %v558, %v692
      %v719 = vpack.c.bf16 %v711, %v710
      %v720 = vpack.c.bf16 %v713, %v712
      %v721 = vpack.c.bf16 %v715, %v714
      %v722 = vpack.c.bf16 %v717, %v716
      %v723 = vpack.c.bf16 %v718, %v718
      %724 = vrot.lane.b32.xlu0 %v538, 64
      %v725 = vpop.permute.xlu0 %724
      %726 = vrot.lane.b32.xlu0 %v539, 64
      %v727 = vpop.permute.xlu0 %726
      %728 = vrot.lane.b32.xlu0 %v540, 64
      %v729 = vpop.permute.xlu0 %728
      %730 = vrot.lane.b32.xlu0 %v541, 64
      %v731 = vpop.permute.xlu0 %730
      %732 = vrot.lane.b32.xlu0 %v542, 64
      %v733 = vpop.permute.xlu0 %732
      %734 = vrot.lane.b32.xlu0 %v543, 64
      %v735 = vpop.permute.xlu0 %734
      %736 = vrot.lane.b32.xlu0 %v544, 64
      %v737 = vpop.permute.xlu0 %736
      %738 = vrot.lane.b32.xlu0 %v545, 64
      %v739 = vpop.permute.xlu0 %738
      %vm740 = vcmask 523264
      %v741 = vsel %vm740, %v725, %v727
      %v742 = vsel %vm740, %v727, %v729
      %v743 = vsel %vm740, %v729, %v731
      %v744 = vsel %vm740, %v731, %v733
      %v745 = vsel %vm740, %v733, %v735
      %v746 = vsel %vm740, %v735, %v737
      %v747 = vsel %vm740, %v737, %v739
      %v757 = vmul.f32 %v530, %v725
      %v758 = vmul.f32 %v531, %v741
      %v759 = vmul.f32 %v532, %v742
      %v760 = vmul.f32 %v533, %v743
      %v761 = vmul.f32 %v534, %v744
      %v762 = vmul.f32 %v535, %v745
      %v763 = vmul.f32 %v536, %v746
      %v764 = vmul.f32 %v537, %v747
      %v765 = vmul.f32 %v558, %v739
      %v766 = vpack.c.bf16 %v758, %v757
      %v767 = vpack.c.bf16 %v760, %v759
      %v768 = vpack.c.bf16 %v762, %v761
      %v769 = vpack.c.bf16 %v764, %v763
      %v770 = vpack.c.bf16 %v765, %v765
      %771 = vrot.lane.b32.xlu0 %v559, 66
      %v772 = vpop.permute.xlu0 %771
      %773 = vrot.lane.b32.xlu0 %v560, 66
      %v774 = vpop.permute.xlu0 %773
      %775 = vrot.lane.b32.xlu0 %v561, 66
      %v776 = vpop.permute.xlu0 %775
      %777 = vrot.lane.b32.xlu0 %v562, 66
      %v778 = vpop.permute.xlu0 %777
      %779 = vrot.lane.b32.xlu0 %v563, 66
      %v780 = vpop.permute.xlu0 %779
      %781 = vrot.lane.b32.xlu0 %v564, 66
      %v782 = vpop.permute.xlu0 %781
      %783 = vrot.lane.b32.xlu0 %v565, 66
      %v784 = vpop.permute.xlu0 %783
      %785 = vrot.lane.b32.xlu0 %v566, 66
      %v786 = vpop.permute.xlu0 %785
      %vm787 = vcmask 539648
      %v788 = vsel %vm787, %v772, %v774
      %v789 = vsel %vm787, %v774, %v776
      %v790 = vsel %vm787, %v776, %v778
      %v791 = vsel %vm787, %v778, %v780
      %v792 = vsel %vm787, %v780, %v782
      %v793 = vsel %vm787, %v782, %v784
      %v794 = vsel %vm787, %v784, %v786
      %v804 = vmul.f32 %v530, %v772
      %v805 = vmul.f32 %v531, %v788
      %v806 = vmul.f32 %v532, %v789
      %v807 = vmul.f32 %v533, %v790
      %v808 = vmul.f32 %v534, %v791
      %v809 = vmul.f32 %v535, %v792
      %v810 = vmul.f32 %v536, %v793
      %v811 = vmul.f32 %v537, %v794
      %v812 = vmul.f32 %v558, %v786
      %v813 = vpack.c.bf16 %v805, %v804
      %v814 = vpack.c.bf16 %v807, %v806
      %v815 = vpack.c.bf16 %v809, %v808
      %v816 = vpack.c.bf16 %v811, %v810
      %v817 = vpack.c.bf16 %v812, %v812
      %v822 = vunpack.c.l.b16 %v554
      %v823 = vunpack.c.h.b16 %v554
      %v824 = vunpack.c.l.b16 %v555
      %v825 = vunpack.c.h.b16 %v555
      %v826 = vunpack.c.l.b16 %v556
      %v827 = vunpack.c.h.b16 %v556
      %v828 = vunpack.c.l.b16 %v557
      %v829 = vunpack.c.h.b16 %v557
      %v830 = vpack.c.b16 %v822, %v822
      %v831 = vpack.c.b16 %v823, %v823
      %v832 = vpack.c.b16 %v824, %v824
      %v833 = vpack.c.b16 %v825, %v825
      %v834 = vpack.c.b16 %v826, %v826
      %v835 = vpack.c.b16 %v827, %v827
      %v836 = vpack.c.b16 %v828, %v828
      %v837 = vpack.c.b16 %v829, %v829
      %v840 = vrot.slane %v525, 7
      %v841 = vrot.slane %v508, 7
      %v842 = vrot.slane %v509, 7
      %v843 = vrot.slane %v510, 7
      %v844 = vrot.slane %v511, 7
      %v845 = vrot.slane %v512, 7
      %v846 = vrot.slane %v513, 7
      %v847 = vrot.slane %v514, 7
      %v848 = vrot.slane %v528, 7
      %849 = vrot.lane.b32.xlu0 %v840, 127
      %v850 = vpop.permute.xlu0 %849
      %851 = vrot.lane.b32.xlu0 %v841, 127
      %v852 = vpop.permute.xlu0 %851
      %853 = vrot.lane.b32.xlu0 %v842, 127
      %v854 = vpop.permute.xlu0 %853
      %855 = vrot.lane.b32.xlu0 %v843, 127
      %v856 = vpop.permute.xlu0 %855
      %857 = vrot.lane.b32.xlu0 %v844, 127
      %v858 = vpop.permute.xlu0 %857
      %859 = vrot.lane.b32.xlu0 %v845, 127
      %v860 = vpop.permute.xlu0 %859
      %861 = vrot.lane.b32.xlu0 %v846, 127
      %v862 = vpop.permute.xlu0 %861
      %863 = vrot.lane.b32.xlu0 %v847, 127
      %v864 = vpop.permute.xlu0 %863
      %865 = vrot.lane.b32.xlu0 %v848, 127
      %v866 = vpop.permute.xlu0 %865
      %vm867 = vcmask 1039360
      %v868 = vsel %vm867, %v850, %v852
      %v869 = vsel %vm867, %v852, %v854
      %v870 = vsel %vm867, %v854, %v856
      %v871 = vsel %vm867, %v856, %v858
      %v872 = vsel %vm867, %v858, %v860
      %v873 = vsel %vm867, %v860, %v862
      %v874 = vsel %vm867, %v862, %v864
      %v875 = vsel %vm867, %v864, %v866
      %v881 = vunpack.c.l.b16 %v617
      %v882 = vunpack.c.h.b16 %v617
      %v883 = vunpack.c.l.b16 %v618
      %v884 = vunpack.c.h.b16 %v618
      %v885 = vunpack.c.l.b16 %v619
      %v886 = vunpack.c.h.b16 %v619
      %v887 = vunpack.c.l.b16 %v620
      %v888 = vunpack.c.h.b16 %v620
      %v889 = vunpack.c.l.b16 %v621
      %v890 = vpack.c.b16 %v881, %v881
      %v891 = vpack.c.b16 %v882, %v882
      %v892 = vpack.c.b16 %v883, %v883
      %v893 = vpack.c.b16 %v884, %v884
      %v894 = vpack.c.b16 %v885, %v885
      %v895 = vpack.c.b16 %v886, %v886
      %v896 = vpack.c.b16 %v887, %v887
      %v897 = vpack.c.b16 %v888, %v888
      %v898 = vpack.c.b16 %v889, %v889
      %v899 = vrot.slane %v890, 6
      %v900 = vrot.slane %v891, 6
      %v901 = vrot.slane %v892, 6
      %v902 = vrot.slane %v893, 6
      %v903 = vrot.slane %v894, 6
      %v904 = vrot.slane %v895, 6
      %v905 = vrot.slane %v896, 6
      %v906 = vrot.slane %v897, 6
      %v907 = vrot.slane %v898, 6
      %908 = vrot.lane.b32.xlu0 %v899, 126
      %v909 = vpop.permute.xlu0 %908
      %910 = vrot.lane.b32.xlu0 %v900, 126
      %v911 = vpop.permute.xlu0 %910
      %912 = vrot.lane.b32.xlu0 %v901, 126
      %v913 = vpop.permute.xlu0 %912
      %914 = vrot.lane.b32.xlu0 %v902, 126
      %v915 = vpop.permute.xlu0 %914
      %916 = vrot.lane.b32.xlu0 %v903, 126
      %v917 = vpop.permute.xlu0 %916
      %918 = vrot.lane.b32.xlu0 %v904, 126
      %v919 = vpop.permute.xlu0 %918
      %920 = vrot.lane.b32.xlu0 %v905, 126
      %v921 = vpop.permute.xlu0 %920
      %922 = vrot.lane.b32.xlu0 %v906, 126
      %v923 = vpop.permute.xlu0 %922
      %924 = vrot.lane.b32.xlu0 %v907, 126
      %v925 = vpop.permute.xlu0 %924
      %vm926 = vcmask 1031168
      %v927 = vsel %vm926, %v909, %v911
      %v928 = vsel %vm926, %v911, %v913
      %v929 = vsel %vm926, %v913, %v915
      %v930 = vsel %vm926, %v915, %v917
      %v931 = vsel %vm926, %v917, %v919
      %v932 = vsel %vm926, %v919, %v921
      %v933 = vsel %vm926, %v921, %v923
      %v934 = vsel %vm926, %v923, %v925
      %v940 = vunpack.c.l.b16 %v672
      %v941 = vunpack.c.h.b16 %v672
      %v942 = vunpack.c.l.b16 %v673
      %v943 = vunpack.c.h.b16 %v673
      %v944 = vunpack.c.l.b16 %v674
      %v945 = vunpack.c.h.b16 %v674
      %v946 = vunpack.c.l.b16 %v675
      %v947 = vunpack.c.h.b16 %v675
      %v948 = vunpack.c.l.b16 %v676
      %v949 = vpack.c.b16 %v940, %v940
      %v950 = vpack.c.b16 %v941, %v941
      %v951 = vpack.c.b16 %v942, %v942
      %v952 = vpack.c.b16 %v943, %v943
      %v953 = vpack.c.b16 %v944, %v944
      %v954 = vpack.c.b16 %v945, %v945
      %v955 = vpack.c.b16 %v946, %v946
      %v956 = vpack.c.b16 %v947, %v947
      %v957 = vpack.c.b16 %v948, %v948
      %v958 = vrot.slane %v949, 5
      %v959 = vrot.slane %v950, 5
      %v960 = vrot.slane %v951, 5
      %v961 = vrot.slane %v952, 5
      %v962 = vrot.slane %v953, 5
      %v963 = vrot.slane %v954, 5
      %v964 = vrot.slane %v955, 5
      %v965 = vrot.slane %v956, 5
      %v966 = vrot.slane %v957, 5
      %967 = vrot.lane.b32.xlu0 %v958, 96
      %v968 = vpop.permute.xlu0 %967
      %969 = vrot.lane.b32.xlu0 %v959, 96
      %v970 = vpop.permute.xlu0 %969
      %971 = vrot.lane.b32.xlu0 %v960, 96
      %v972 = vpop.permute.xlu0 %971
      %973 = vrot.lane.b32.xlu0 %v961, 96
      %v974 = vpop.permute.xlu0 %973
      %975 = vrot.lane.b32.xlu0 %v962, 96
      %v976 = vpop.permute.xlu0 %975
      %977 = vrot.lane.b32.xlu0 %v963, 96
      %v978 = vpop.permute.xlu0 %977
      %979 = vrot.lane.b32.xlu0 %v964, 96
      %v980 = vpop.permute.xlu0 %979
      %981 = vrot.lane.b32.xlu0 %v965, 96
      %v982 = vpop.permute.xlu0 %981
      %983 = vrot.lane.b32.xlu0 %v966, 96
      %v984 = vpop.permute.xlu0 %983
      %vm985 = vcmask 785408
      %v986 = vsel %vm985, %v968, %v970
      %v987 = vsel %vm985, %v970, %v972
      %v988 = vsel %vm985, %v972, %v974
      %v989 = vsel %vm985, %v974, %v976
      %v990 = vsel %vm985, %v976, %v978
      %v991 = vsel %vm985, %v978, %v980
      %v992 = vsel %vm985, %v980, %v982
      %v993 = vsel %vm985, %v982, %v984
      %v994 = vrot.slane %v525, 4
      %v995 = vrot.slane %v508, 4
      %v996 = vrot.slane %v509, 4
      %v997 = vrot.slane %v510, 4
      %v998 = vrot.slane %v511, 4
      %v999 = vrot.slane %v512, 4
      %v1000 = vrot.slane %v513, 4
      %v1001 = vrot.slane %v514, 4
      %v1002 = vrot.slane %v528, 4
      %1003 = vrot.lane.b32.xlu0 %v994, 95
      %v1004 = vpop.permute.xlu0 %1003
      %1005 = vrot.lane.b32.xlu0 %v995, 95
      %v1006 = vpop.permute.xlu0 %1005
      %1007 = vrot.lane.b32.xlu0 %v996, 95
      %v1008 = vpop.permute.xlu0 %1007
      %1009 = vrot.lane.b32.xlu0 %v997, 95
      %v1010 = vpop.permute.xlu0 %1009
      %1011 = vrot.lane.b32.xlu0 %v998, 95
      %v1012 = vpop.permute.xlu0 %1011
      %1013 = vrot.lane.b32.xlu0 %v999, 95
      %v1014 = vpop.permute.xlu0 %1013
      %1015 = vrot.lane.b32.xlu0 %v1000, 95
      %v1016 = vpop.permute.xlu0 %1015
      %1017 = vrot.lane.b32.xlu0 %v1001, 95
      %v1018 = vpop.permute.xlu0 %1017
      %1019 = vrot.lane.b32.xlu0 %v1002, 95
      %v1020 = vpop.permute.xlu0 %1019
      %vm1021 = vcmask 777216
      %v1022 = vsel %vm1021, %v1004, %v1006
      %v1023 = vsel %vm1021, %v1006, %v1008
      %v1024 = vsel %vm1021, %v1008, %v1010
      %v1025 = vsel %vm1021, %v1010, %v1012
      %v1026 = vsel %vm1021, %v1012, %v1014
      %v1027 = vsel %vm1021, %v1014, %v1016
      %v1028 = vsel %vm1021, %v1016, %v1018
      %v1029 = vsel %vm1021, %v1018, %v1020
      %v1035 = vunpack.c.l.b16 %v719
      %v1036 = vunpack.c.h.b16 %v719
      %v1037 = vunpack.c.l.b16 %v720
      %v1038 = vunpack.c.h.b16 %v720
      %v1039 = vunpack.c.l.b16 %v721
      %v1040 = vunpack.c.h.b16 %v721
      %v1041 = vunpack.c.l.b16 %v722
      %v1042 = vunpack.c.h.b16 %v722
      %v1043 = vunpack.c.l.b16 %v723
      %v1044 = vpack.c.b16 %v1035, %v1035
      %v1045 = vpack.c.b16 %v1036, %v1036
      %v1046 = vpack.c.b16 %v1037, %v1037
      %v1047 = vpack.c.b16 %v1038, %v1038
      %v1048 = vpack.c.b16 %v1039, %v1039
      %v1049 = vpack.c.b16 %v1040, %v1040
      %v1050 = vpack.c.b16 %v1041, %v1041
      %v1051 = vpack.c.b16 %v1042, %v1042
      %v1052 = vpack.c.b16 %v1043, %v1043
      %v1053 = vrot.slane %v1044, 3
      %v1054 = vrot.slane %v1045, 3
      %v1055 = vrot.slane %v1046, 3
      %v1056 = vrot.slane %v1047, 3
      %v1057 = vrot.slane %v1048, 3
      %v1058 = vrot.slane %v1049, 3
      %v1059 = vrot.slane %v1050, 3
      %v1060 = vrot.slane %v1051, 3
      %v1061 = vrot.slane %v1052, 3
      %1062 = vrot.lane.b32.xlu0 %v1053, 94
      %v1063 = vpop.permute.xlu0 %1062
      %1064 = vrot.lane.b32.xlu0 %v1054, 94
      %v1065 = vpop.permute.xlu0 %1064
      %1066 = vrot.lane.b32.xlu0 %v1055, 94
      %v1067 = vpop.permute.xlu0 %1066
      %1068 = vrot.lane.b32.xlu0 %v1056, 94
      %v1069 = vpop.permute.xlu0 %1068
      %1070 = vrot.lane.b32.xlu0 %v1057, 94
      %v1071 = vpop.permute.xlu0 %1070
      %1072 = vrot.lane.b32.xlu0 %v1058, 94
      %v1073 = vpop.permute.xlu0 %1072
      %1074 = vrot.lane.b32.xlu0 %v1059, 94
      %v1075 = vpop.permute.xlu0 %1074
      %1076 = vrot.lane.b32.xlu0 %v1060, 94
      %v1077 = vpop.permute.xlu0 %1076
      %1078 = vrot.lane.b32.xlu0 %v1061, 94
      %v1079 = vpop.permute.xlu0 %1078
      %vm1080 = vcmask 769024
      %v1081 = vsel %vm1080, %v1063, %v1065
      %v1082 = vsel %vm1080, %v1065, %v1067
      %v1083 = vsel %vm1080, %v1067, %v1069
      %v1084 = vsel %vm1080, %v1069, %v1071
      %v1085 = vsel %vm1080, %v1071, %v1073
      %v1086 = vsel %vm1080, %v1073, %v1075
      %v1087 = vsel %vm1080, %v1075, %v1077
      %v1088 = vsel %vm1080, %v1077, %v1079
      %v1094 = vunpack.c.l.b16 %v766
      %v1095 = vunpack.c.h.b16 %v766
      %v1096 = vunpack.c.l.b16 %v767
      %v1097 = vunpack.c.h.b16 %v767
      %v1098 = vunpack.c.l.b16 %v768
      %v1099 = vunpack.c.h.b16 %v768
      %v1100 = vunpack.c.l.b16 %v769
      %v1101 = vunpack.c.h.b16 %v769
      %v1102 = vunpack.c.l.b16 %v770
      %v1103 = vpack.c.b16 %v1094, %v1094
      %v1104 = vpack.c.b16 %v1095, %v1095
      %v1105 = vpack.c.b16 %v1096, %v1096
      %v1106 = vpack.c.b16 %v1097, %v1097
      %v1107 = vpack.c.b16 %v1098, %v1098
      %v1108 = vpack.c.b16 %v1099, %v1099
      %v1109 = vpack.c.b16 %v1100, %v1100
      %v1110 = vpack.c.b16 %v1101, %v1101
      %v1111 = vpack.c.b16 %v1102, %v1102
      %v1112 = vrot.slane %v1103, 2
      %v1113 = vrot.slane %v1104, 2
      %v1114 = vrot.slane %v1105, 2
      %v1115 = vrot.slane %v1106, 2
      %v1116 = vrot.slane %v1107, 2
      %v1117 = vrot.slane %v1108, 2
      %v1118 = vrot.slane %v1109, 2
      %v1119 = vrot.slane %v1110, 2
      %v1120 = vrot.slane %v1111, 2
      %1121 = vrot.lane.b32.xlu0 %v1112, 64
      %v1122 = vpop.permute.xlu0 %1121
      %1123 = vrot.lane.b32.xlu0 %v1113, 64
      %v1124 = vpop.permute.xlu0 %1123
      %1125 = vrot.lane.b32.xlu0 %v1114, 64
      %v1126 = vpop.permute.xlu0 %1125
      %1127 = vrot.lane.b32.xlu0 %v1115, 64
      %v1128 = vpop.permute.xlu0 %1127
      %1129 = vrot.lane.b32.xlu0 %v1116, 64
      %v1130 = vpop.permute.xlu0 %1129
      %1131 = vrot.lane.b32.xlu0 %v1117, 64
      %v1132 = vpop.permute.xlu0 %1131
      %1133 = vrot.lane.b32.xlu0 %v1118, 64
      %v1134 = vpop.permute.xlu0 %1133
      %1135 = vrot.lane.b32.xlu0 %v1119, 64
      %v1136 = vpop.permute.xlu0 %1135
      %1137 = vrot.lane.b32.xlu0 %v1120, 64
      %v1138 = vpop.permute.xlu0 %1137
      %vm1139 = vcmask 523264
      %v1140 = vsel %vm1139, %v1122, %v1124
      %v1141 = vsel %vm1139, %v1124, %v1126
      %v1142 = vsel %vm1139, %v1126, %v1128
      %v1143 = vsel %vm1139, %v1128, %v1130
      %v1144 = vsel %vm1139, %v1130, %v1132
      %v1145 = vsel %vm1139, %v1132, %v1134
      %v1146 = vsel %vm1139, %v1134, %v1136
      %v1147 = vsel %vm1139, %v1136, %v1138
      %v1148 = vrot.slane %v525, 1
      %v1149 = vrot.slane %v508, 1
      %v1150 = vrot.slane %v509, 1
      %v1151 = vrot.slane %v510, 1
      %v1152 = vrot.slane %v511, 1
      %v1153 = vrot.slane %v512, 1
      %v1154 = vrot.slane %v513, 1
      %v1155 = vrot.slane %v514, 1
      %v1156 = vrot.slane %v528, 1
      %1157 = vrot.lane.b32.xlu0 %v1148, 63
      %v1158 = vpop.permute.xlu0 %1157
      %1159 = vrot.lane.b32.xlu0 %v1149, 63
      %v1160 = vpop.permute.xlu0 %1159
      %1161 = vrot.lane.b32.xlu0 %v1150, 63
      %v1162 = vpop.permute.xlu0 %1161
      %1163 = vrot.lane.b32.xlu0 %v1151, 63
      %v1164 = vpop.permute.xlu0 %1163
      %1165 = vrot.lane.b32.xlu0 %v1152, 63
      %v1166 = vpop.permute.xlu0 %1165
      %1167 = vrot.lane.b32.xlu0 %v1153, 63
      %v1168 = vpop.permute.xlu0 %1167
      %1169 = vrot.lane.b32.xlu0 %v1154, 63
      %v1170 = vpop.permute.xlu0 %1169
      %1171 = vrot.lane.b32.xlu0 %v1155, 63
      %v1172 = vpop.permute.xlu0 %1171
      %1173 = vrot.lane.b32.xlu0 %v1156, 63
      %v1174 = vpop.permute.xlu0 %1173
      %vm1175 = vcmask 515072
      %v1176 = vsel %vm1175, %v1158, %v1160
      %v1177 = vsel %vm1175, %v1160, %v1162
      %v1178 = vsel %vm1175, %v1162, %v1164
      %v1179 = vsel %vm1175, %v1164, %v1166
      %v1180 = vsel %vm1175, %v1166, %v1168
      %v1181 = vsel %vm1175, %v1168, %v1170
      %v1182 = vsel %vm1175, %v1170, %v1172
      %v1183 = vsel %vm1175, %v1172, %v1174
      %v1189 = vunpack.c.l.b16 %v813
      %v1190 = vunpack.c.h.b16 %v813
      %v1191 = vunpack.c.l.b16 %v814
      %v1192 = vunpack.c.h.b16 %v814
      %v1193 = vunpack.c.l.b16 %v815
      %v1194 = vunpack.c.h.b16 %v815
      %v1195 = vunpack.c.l.b16 %v816
      %v1196 = vunpack.c.h.b16 %v816
      %v1197 = vunpack.c.l.b16 %v817
      %v1198 = vpack.c.b16 %v1189, %v1189
      %v1199 = vpack.c.b16 %v1190, %v1190
      %v1200 = vpack.c.b16 %v1191, %v1191
      %v1201 = vpack.c.b16 %v1192, %v1192
      %v1202 = vpack.c.b16 %v1193, %v1193
      %v1203 = vpack.c.b16 %v1194, %v1194
      %v1204 = vpack.c.b16 %v1195, %v1195
      %v1205 = vpack.c.b16 %v1196, %v1196
      %v1206 = vpack.c.b16 %v1197, %v1197
      %1207 = vrot.lane.b32.xlu0 %v1198, 62
      %v1208 = vpop.permute.xlu0 %1207
      %1209 = vrot.lane.b32.xlu0 %v1199, 62
      %v1210 = vpop.permute.xlu0 %1209
      %1211 = vrot.lane.b32.xlu0 %v1200, 62
      %v1212 = vpop.permute.xlu0 %1211
      %1213 = vrot.lane.b32.xlu0 %v1201, 62
      %v1214 = vpop.permute.xlu0 %1213
      %1215 = vrot.lane.b32.xlu0 %v1202, 62
      %v1216 = vpop.permute.xlu0 %1215
      %1217 = vrot.lane.b32.xlu0 %v1203, 62
      %v1218 = vpop.permute.xlu0 %1217
      %1219 = vrot.lane.b32.xlu0 %v1204, 62
      %v1220 = vpop.permute.xlu0 %1219
      %1221 = vrot.lane.b32.xlu0 %v1205, 62
      %v1222 = vpop.permute.xlu0 %1221
      %1223 = vrot.lane.b32.xlu0 %v1206, 62
      %v1224 = vpop.permute.xlu0 %1223
      %vm1225 = vcmask 506880
      %v1226 = vsel %vm1225, %v1208, %v1210
      %v1227 = vsel %vm1225, %v1210, %v1212
      %v1228 = vsel %vm1225, %v1212, %v1214
      %v1229 = vsel %vm1225, %v1214, %v1216
      %v1230 = vsel %vm1225, %v1216, %v1218
      %v1231 = vsel %vm1225, %v1218, %v1220
      %v1232 = vsel %vm1225, %v1220, %v1222
      %v1233 = vsel %vm1225, %v1222, %v1224
      %vm1234 = vcmask 1040384
      %v1237 = vsel %vm1234, %v830, %v868
      %v1240 = vsel %vm1234, %v831, %v869
      %v1243 = vsel %vm1234, %v832, %v870
      %v1246 = vsel %vm1234, %v833, %v871
      %v1249 = vsel %vm1234, %v834, %v872
      %v1252 = vsel %vm1234, %v835, %v873
      %v1255 = vsel %vm1234, %v836, %v874
      %v1258 = vsel %vm1234, %v837, %v875
      %vm1259 = vcmask 1041408
      %v1261 = vsel %vm1259, %v1237, %v927
      %v1263 = vsel %vm1259, %v1240, %v928
      %v1265 = vsel %vm1259, %v1243, %v929
      %v1267 = vsel %vm1259, %v1246, %v930
      %v1269 = vsel %vm1259, %v1249, %v931
      %v1271 = vsel %vm1259, %v1252, %v932
      %v1273 = vsel %vm1259, %v1255, %v933
      %v1275 = vsel %vm1259, %v1258, %v934
      %vm1276 = vcmask 1042432
      %v1278 = vsel %vm1276, %v1261, %v986
      %v1280 = vsel %vm1276, %v1263, %v987
      %v1282 = vsel %vm1276, %v1265, %v988
      %v1284 = vsel %vm1276, %v1267, %v989
      %v1286 = vsel %vm1276, %v1269, %v990
      %v1288 = vsel %vm1276, %v1271, %v991
      %v1290 = vsel %vm1276, %v1273, %v992
      %v1292 = vsel %vm1276, %v1275, %v993
      %vm1293 = vcmask 1043456
      %v1295 = vsel %vm1293, %v1278, %v1022
      %v1297 = vsel %vm1293, %v1280, %v1023
      %v1299 = vsel %vm1293, %v1282, %v1024
      %v1301 = vsel %vm1293, %v1284, %v1025
      %v1303 = vsel %vm1293, %v1286, %v1026
      %v1305 = vsel %vm1293, %v1288, %v1027
      %v1307 = vsel %vm1293, %v1290, %v1028
      %v1309 = vsel %vm1293, %v1292, %v1029
      %vm1310 = vcmask 1044480
      %v1312 = vsel %vm1310, %v1295, %v1081
      %v1314 = vsel %vm1310, %v1297, %v1082
      %v1316 = vsel %vm1310, %v1299, %v1083
      %v1318 = vsel %vm1310, %v1301, %v1084
      %v1320 = vsel %vm1310, %v1303, %v1085
      %v1322 = vsel %vm1310, %v1305, %v1086
      %v1324 = vsel %vm1310, %v1307, %v1087
      %v1326 = vsel %vm1310, %v1309, %v1088
      %vm1327 = vcmask 1045504
      %v1329 = vsel %vm1327, %v1312, %v1140
      %v1331 = vsel %vm1327, %v1314, %v1141
      %v1333 = vsel %vm1327, %v1316, %v1142
      %v1335 = vsel %vm1327, %v1318, %v1143
      %v1337 = vsel %vm1327, %v1320, %v1144
      %v1339 = vsel %vm1327, %v1322, %v1145
      %v1341 = vsel %vm1327, %v1324, %v1146
      %v1343 = vsel %vm1327, %v1326, %v1147
      %vm1344 = vcmask 1046528
      %v1346 = vsel %vm1344, %v1329, %v1176
      %v1349 = vsel %vm1344, %v1331, %v1177
      %v1352 = vsel %vm1344, %v1333, %v1178
      %v1355 = vsel %vm1344, %v1335, %v1179
      %v1358 = vsel %vm1344, %v1337, %v1180
      %v1361 = vsel %vm1344, %v1339, %v1181
      %v1364 = vsel %vm1344, %v1341, %v1182
      %v1367 = vsel %vm1344, %v1343, %v1183
      %vm1369 = vcmask 146432
      %v1371 = vsel %vm1369, %v443, 0
      %v1374 = vsel %vm1234, %v1226, 0
      %v1377 = vsel %vm1234, %v1227, 0
      %v1380 = vsel %vm1234, %v1228, 0
      %v1383 = vsel %vm1234, %v1229, 0
      %v1386 = vsel %vm1234, %v1230, 0
      %v1389 = vsel %vm1234, %v1231, 0
      %v1392 = vsel %vm1234, %v1232, 0
      %v1395 = vsel %vm1234, %v1233, 0
      %1397 = vmatpush.bf16.msra.mxu0 0
      %1398 = vmatpush.bf16.msra.mxu0 0
      %1399 = vmatpush.bf16.msra.mxu0 0
      %1400 = vmatpush.bf16.msra.mxu0 0
      %1401 = vmatpush.bf16.msra.mxu0 0
      %1402 = vmatpush.bf16.msra.mxu0 0
      %1403 = vmatpush.bf16.msra.mxu0 %v1374
      %1404 = vmatpush.bf16.msra.mxu0 %v1346
      %1405 = vmatmul.bf16.gmra.mxu0 %v1371
      %v1406 = vpop.f32.mrf.mxu0
      %v1407 = vadd.f32 0.0, %v1406
      %v1408 = vpop.f32.mrf.mxu0
      %1409 = vdwg.mxu0
      %1410 = vmatpush.bf16.msra.mxu0 0
      %1411 = vmatpush.bf16.msra.mxu0 0
      %1412 = vmatpush.bf16.msra.mxu0 0
      %1413 = vmatpush.bf16.msra.mxu0 0
      %1414 = vmatpush.bf16.msra.mxu0 0
      %1415 = vmatpush.bf16.msra.mxu0 0
      %1416 = vmatpush.bf16.msra.mxu0 %v1377
      %1417 = vmatpush.bf16.msra.mxu0 %v1349
      %1418 = vmatmul.bf16.gmra.mxu0 %v1371
      %v1419 = vpop.f32.mrf.mxu0
      %v1420 = vadd.f32 0.0, %v1419
      %v1421 = vpop.f32.mrf.mxu0
      %1422 = vdwg.mxu0
      %1423 = vmatpush.bf16.msra.mxu0 0
      %1424 = vmatpush.bf16.msra.mxu0 0
      %1425 = vmatpush.bf16.msra.mxu0 0
      %1426 = vmatpush.bf16.msra.mxu0 0
      %1427 = vmatpush.bf16.msra.mxu0 0
      %1428 = vmatpush.bf16.msra.mxu0 0
      %1429 = vmatpush.bf16.msra.mxu0 %v1380
      %1430 = vmatpush.bf16.msra.mxu0 %v1352
      %1431 = vmatmul.bf16.gmra.mxu0 %v1371
      %v1432 = vpop.f32.mrf.mxu0
      %v1433 = vadd.f32 0.0, %v1432
      %v1434 = vpop.f32.mrf.mxu0
      %1435 = vdwg.mxu0
      %1436 = vmatpush.bf16.msra.mxu0 0
      %1437 = vmatpush.bf16.msra.mxu0 0
      %1438 = vmatpush.bf16.msra.mxu0 0
      %1439 = vmatpush.bf16.msra.mxu0 0
      %1440 = vmatpush.bf16.msra.mxu0 0
      %1441 = vmatpush.bf16.msra.mxu0 0
      %1442 = vmatpush.bf16.msra.mxu0 %v1383
      %1443 = vmatpush.bf16.msra.mxu0 %v1355
      %1444 = vmatmul.bf16.gmra.mxu0 %v1371
      %v1445 = vpop.f32.mrf.mxu0
      %v1446 = vadd.f32 0.0, %v1445
      %v1447 = vpop.f32.mrf.mxu0
      %1448 = vdwg.mxu0
      %1449 = vmatpush.bf16.msra.mxu0 0
      %1450 = vmatpush.bf16.msra.mxu0 0
      %1451 = vmatpush.bf16.msra.mxu0 0
      %1452 = vmatpush.bf16.msra.mxu0 0
      %1453 = vmatpush.bf16.msra.mxu0 0
      %1454 = vmatpush.bf16.msra.mxu0 0
      %1455 = vmatpush.bf16.msra.mxu0 %v1386
      %1456 = vmatpush.bf16.msra.mxu0 %v1358
      %1457 = vmatmul.bf16.gmra.mxu0 %v1371
      %v1458 = vpop.f32.mrf.mxu0
      %v1459 = vadd.f32 0.0, %v1458
      %v1460 = vpop.f32.mrf.mxu0
      %1461 = vdwg.mxu0
      %1462 = vmatpush.bf16.msra.mxu0 0
      %1463 = vmatpush.bf16.msra.mxu0 0
      %1464 = vmatpush.bf16.msra.mxu0 0
      %1465 = vmatpush.bf16.msra.mxu0 0
      %1466 = vmatpush.bf16.msra.mxu0 0
      %1467 = vmatpush.bf16.msra.mxu0 0
      %1468 = vmatpush.bf16.msra.mxu0 %v1389
      %1469 = vmatpush.bf16.msra.mxu0 %v1361
      %1470 = vmatmul.bf16.gmra.mxu0 %v1371
      %v1471 = vpop.f32.mrf.mxu0
      %v1472 = vadd.f32 0.0, %v1471
      %v1473 = vpop.f32.mrf.mxu0
      %1474 = vdwg.mxu0
      %1475 = vmatpush.bf16.msra.mxu0 0
      %1476 = vmatpush.bf16.msra.mxu0 0
      %1477 = vmatpush.bf16.msra.mxu0 0
      %1478 = vmatpush.bf16.msra.mxu0 0
      %1479 = vmatpush.bf16.msra.mxu0 0
      %1480 = vmatpush.bf16.msra.mxu0 0
      %1481 = vmatpush.bf16.msra.mxu0 %v1392
      %1482 = vmatpush.bf16.msra.mxu0 %v1364
      %1483 = vmatmul.bf16.gmra.mxu0 %v1371
      %v1484 = vpop.f32.mrf.mxu0
      %v1485 = vadd.f32 0.0, %v1484
      %v1486 = vpop.f32.mrf.mxu0
      %1487 = vdwg.mxu0
      %1488 = vmatpush.bf16.msra.mxu0 0
      %1489 = vmatpush.bf16.msra.mxu0 0
      %1490 = vmatpush.bf16.msra.mxu0 0
      %1491 = vmatpush.bf16.msra.mxu0 0
      %1492 = vmatpush.bf16.msra.mxu0 0
      %1493 = vmatpush.bf16.msra.mxu0 0
      %1494 = vmatpush.bf16.msra.mxu0 %v1395
      %1495 = vmatpush.bf16.msra.mxu0 %v1367
      %1496 = vmatmul.bf16.gmra.mxu0 %v1371
      %v1497 = vpop.f32.mrf.mxu0
      %v1498 = vadd.f32 0.0, %v1497
      %v1499 = vpop.f32.mrf.mxu0
      %1500 = vdwg.mxu0
      %v1501 = vsel %vm1293, %v1407, 0.0
      %v1502 = vsel %vm1293, %v1420, 0.0
      %v1503 = vadd.f32 %v1501, %v1502
      %v1504 = vsel %vm1293, %v1433, 0.0
      %v1505 = vadd.f32 %v1503, %v1504
      %v1506 = vsel %vm1293, %v1446, 0.0
      %v1507 = vadd.f32 %v1505, %v1506
      %v1508 = vsel %vm1293, %v1459, 0.0
      %v1509 = vadd.f32 %v1507, %v1508
      %v1510 = vsel %vm1293, %v1472, 0.0
      %v1511 = vadd.f32 %v1509, %v1510
      %v1512 = vsel %vm1293, %v1485, 0.0
      %v1513 = vadd.f32 %v1511, %v1512
      %v1514 = vsel %vm1293, %v1498, 0.0
      %v1515 = vadd.f32 %v1513, %v1514
      %1516 = vadd.xlane.f32.xlu0 %v1515
      %v1517 = vpop.xlane.xlu0 %1516
      %v1518 = vmul.f32 %v1407, %v1407
      %v1519 = vmul.f32 %v1420, %v1420
      %v1520 = vmul.f32 %v1433, %v1433
      %v1521 = vmul.f32 %v1446, %v1446
      %v1522 = vmul.f32 %v1459, %v1459
      %v1523 = vmul.f32 %v1472, %v1472
      %v1524 = vmul.f32 %v1485, %v1485
      %v1525 = vmul.f32 %v1498, %v1498
      %v1526 = vsel %vm1293, %v1518, 0.0
      %v1527 = vsel %vm1293, %v1519, 0.0
      %v1528 = vadd.f32 %v1526, %v1527
      %v1529 = vsel %vm1293, %v1520, 0.0
      %v1530 = vadd.f32 %v1528, %v1529
      %v1531 = vsel %vm1293, %v1521, 0.0
      %v1532 = vadd.f32 %v1530, %v1531
      %v1533 = vsel %vm1293, %v1522, 0.0
      %v1534 = vadd.f32 %v1532, %v1533
      %v1535 = vsel %vm1293, %v1523, 0.0
      %v1536 = vadd.f32 %v1534, %v1535
      %v1537 = vsel %vm1293, %v1524, 0.0
      %v1538 = vadd.f32 %v1536, %v1537
      %v1539 = vsel %vm1293, %v1525, 0.0
      %v1540 = vadd.f32 %v1538, %v1539
      %1541 = vadd.xlane.f32.xlu0 %v1540
      %v1542 = vpop.xlane.xlu0 %1541
      %v1543 = vmul.f32 %v1517, 0.0009765625
      %v1544 = vmul.f32 %v1542, 0.0009765625
      %v1545 = vmul.f32 %v1543, %v1543
      %v1546 = vsub.f32 %v1544, %v1545
      %v1547 = vadd.f32 %v1546, 1e-05
      %v1548 = vrsqrt.pop %v1547
      %v1549 = vmul.f32 %v1548, %v1547
      %v1550 = vmul.f32 %v1549, %v1548
      %v1551 = vmul.f32 0.5, %v1550
      %v1552 = vsub.f32 1.5, %v1551
      %v1553 = vmul.f32 %v1548, %v1552
      %vm1554 = vweird.f32 %v1547
      %vm1555 = vweird.f32 %v1548
      %vm1556 = vmor %vm1554, %vm1555
      %v1557 = vsel %vm1556, %v1548, %v1553
      %v1558 = vmul.f32 %v444, %v1557
      %v1559 = vsub.f32 %v1407, %v1543
      %v1560 = vsub.f32 %v1420, %v1543
      %v1561 = vsub.f32 %v1433, %v1543
      %v1562 = vsub.f32 %v1446, %v1543
      %v1563 = vsub.f32 %v1459, %v1543
      %v1564 = vsub.f32 %v1472, %v1543
      %v1565 = vsub.f32 %v1485, %v1543
      %v1566 = vsub.f32 %v1498, %v1543
      %1568 = vset.pattern.permute.xlu0 0
      %1569 = vperm.xlu0 %1568, %v1558
      %v1570 = vpop.permute.xlu0 %1569
      %v1572 = vmul.f32 %v1559, %v1570
      %v1573 = vmul.f32 %v1560, %v1570
      %v1574 = vmul.f32 %v1561, %v1570
      %v1575 = vmul.f32 %v1562, %v1570
      %v1576 = vmul.f32 %v1563, %v1570
      %v1577 = vmul.f32 %v1564, %v1570
      %v1578 = vmul.f32 %v1565, %v1570
      %v1579 = vmul.f32 %v1566, %v1570
      %1581 = vset.pattern.permute.xlu0 0
      %1582 = vperm.xlu0 %1581, %v445
      %v1583 = vpop.permute.xlu0 %1582
      %v1585 = vadd.f32 %v1572, %v1583
      %v1586 = vadd.f32 %v1573, %v1583
      %v1587 = vadd.f32 %v1574, %v1583
      %v1588 = vadd.f32 %v1575, %v1583
      %v1589 = vadd.f32 %v1576, %v1583
      %v1590 = vadd.f32 %v1577, %v1583
      %v1591 = vadd.f32 %v1578, %v1583
      %v1592 = vadd.f32 %v1579, %v1583
      %v1593 = vmin.f32 %v1585, 0.0
      %v1594 = vmin.f32 %v1586, 0.0
      %v1595 = vmin.f32 %v1587, 0.0
      %v1596 = vmin.f32 %v1588, 0.0
      %v1597 = vmin.f32 %v1589, 0.0
      %v1598 = vmin.f32 %v1590, 0.0
      %v1599 = vmin.f32 %v1591, 0.0
      %v1600 = vmin.f32 %v1592, 0.0
      %v1601 = vmul.f32 %v1593, 1.442695
      %v1602 = vpow.pop %v1601
      %v1603 = vmul.f32 %v1594, 1.442695
      %v1604 = vpow.pop %v1603
      %v1605 = vmul.f32 %v1595, 1.442695
      %v1606 = vpow.pop %v1605
      %v1607 = vmul.f32 %v1596, 1.442695
      %v1608 = vpow.pop %v1607
      %v1609 = vmul.f32 %v1597, 1.442695
      %v1610 = vpow.pop %v1609
      %v1611 = vmul.f32 %v1598, 1.442695
      %v1612 = vpow.pop %v1611
      %v1613 = vmul.f32 %v1599, 1.442695
      %v1614 = vpow.pop %v1613
      %v1615 = vmul.f32 %v1600, 1.442695
      %v1616 = vpow.pop %v1615
      %v1617 = vsub.f32 %v1602, 1.0
      %v1618 = vsub.f32 %v1604, 1.0
      %v1619 = vsub.f32 %v1606, 1.0
      %v1620 = vsub.f32 %v1608, 1.0
      %v1621 = vsub.f32 %v1610, 1.0
      %v1622 = vsub.f32 %v1612, 1.0
      %v1623 = vsub.f32 %v1614, 1.0
      %v1624 = vsub.f32 %v1616, 1.0
      %v1625 = vmul.f32 %v1617, 1.6732632
      %v1626 = vmul.f32 %v1618, 1.6732632
      %v1627 = vmul.f32 %v1619, 1.6732632
      %v1628 = vmul.f32 %v1620, 1.6732632
      %v1629 = vmul.f32 %v1621, 1.6732632
      %v1630 = vmul.f32 %v1622, 1.6732632
      %v1631 = vmul.f32 %v1623, 1.6732632
      %v1632 = vmul.f32 %v1624, 1.6732632
      %vm1633 = vcmp.gt.f32.partialorder %v1585, 0.0
      %vm1634 = vcmp.gt.f32.partialorder %v1586, 0.0
      %vm1635 = vcmp.gt.f32.partialorder %v1587, 0.0
      %vm1636 = vcmp.gt.f32.partialorder %v1588, 0.0
      %vm1637 = vcmp.gt.f32.partialorder %v1589, 0.0
      %vm1638 = vcmp.gt.f32.partialorder %v1590, 0.0
      %vm1639 = vcmp.gt.f32.partialorder %v1591, 0.0
      %vm1640 = vcmp.gt.f32.partialorder %v1592, 0.0
      %v1641 = vsel %vm1633, %v1585, %v1625
      %v1642 = vsel %vm1634, %v1586, %v1626
      %v1643 = vsel %vm1635, %v1587, %v1627
      %v1644 = vsel %vm1636, %v1588, %v1628
      %v1645 = vsel %vm1637, %v1589, %v1629
      %v1646 = vsel %vm1638, %v1590, %v1630
      %v1647 = vsel %vm1639, %v1591, %v1631
      %v1648 = vsel %vm1640, %v1592, %v1632
      %v1649 = vmul.f32 %v1641, 1.050701
      %v1650 = vmul.f32 %v1642, 1.050701
      %v1651 = vmul.f32 %v1643, 1.050701
      %v1652 = vmul.f32 %v1644, 1.050701
      %v1653 = vmul.f32 %v1645, 1.050701
      %v1654 = vmul.f32 %v1646, 1.050701
      %v1655 = vmul.f32 %v1647, 1.050701
      %v1656 = vmul.f32 %v1648, 1.050701
      %v1657 = vld [vmem:[%s4] sm:$0x3]
      %v1658 = vld [vmem:[%s5] sm:$0xf]
      %v1659 = vld [vmem:[%s6] sm:$0xf]
      %v1660 = vpack.c.bf16 %v1650, %v1649
      %v1661 = vpack.c.bf16 %v1652, %v1651
      %v1662 = vpack.c.bf16 %v1654, %v1653
      %v1663 = vpack.c.bf16 %v1656, %v1655
      %v1668 = vunpack.c.l.b16 %v1660
      %v1669 = vunpack.c.h.b16 %v1660
      %v1670 = vunpack.c.l.b16 %v1661
      %v1671 = vunpack.c.h.b16 %v1661
      %v1672 = vunpack.c.l.b16 %v1662
      %v1673 = vunpack.c.h.b16 %v1662
      %v1674 = vunpack.c.l.b16 %v1663
      %v1675 = vunpack.c.h.b16 %v1663
      %v1676 = vpack.c.b16 %v1668, %v1668
      %v1677 = vpack.c.b16 %v1669, %v1669
      %v1678 = vpack.c.b16 %v1670, %v1670
      %v1679 = vpack.c.b16 %v1671, %v1671
      %v1680 = vpack.c.b16 %v1672, %v1672
      %v1681 = vpack.c.b16 %v1673, %v1673
      %v1682 = vpack.c.b16 %v1674, %v1674
      %v1683 = vpack.c.b16 %v1675, %v1675
      %1684 = vrot.lane.b32.xlu0 %v1676, 33
      %v1685 = vpop.permute.xlu0 %1684
      %1686 = vrot.lane.b32.xlu0 %v1677, 33
      %v1687 = vpop.permute.xlu0 %1686
      %1688 = vrot.lane.b32.xlu0 %v1678, 33
      %v1689 = vpop.permute.xlu0 %1688
      %1690 = vrot.lane.b32.xlu0 %v1679, 33
      %v1691 = vpop.permute.xlu0 %1690
      %1692 = vrot.lane.b32.xlu0 %v1680, 33
      %v1693 = vpop.permute.xlu0 %1692
      %1694 = vrot.lane.b32.xlu0 %v1681, 33
      %v1695 = vpop.permute.xlu0 %1694
      %1696 = vrot.lane.b32.xlu0 %v1682, 33
      %v1697 = vpop.permute.xlu0 %1696
      %1698 = vrot.lane.b32.xlu0 %v1683, 33
      %v1699 = vpop.permute.xlu0 %1698
      %v1700 = vsel %vm507, %v1685, %v1687
      %v1701 = vsel %vm507, %v1687, %v1689
      %v1702 = vsel %vm507, %v1689, %v1691
      %v1703 = vsel %vm507, %v1691, %v1693
      %v1704 = vsel %vm507, %v1693, %v1695
      %v1705 = vsel %vm507, %v1695, %v1697
      %v1706 = vsel %vm507, %v1697, %v1699
      %v1715 = vsel %vm522, 0, %v1685
      %v1718 = vsel %vm522, %v1699, 0
      %v1720 = vunpack.c.l.bf16 %v1715
      %v1721 = vunpack.c.l.bf16 %v1700
      %v1722 = vunpack.c.l.bf16 %v1701
      %v1723 = vunpack.c.l.bf16 %v1702
      %v1724 = vunpack.c.l.bf16 %v1703
      %v1725 = vunpack.c.l.bf16 %v1704
      %v1726 = vunpack.c.l.bf16 %v1705
      %v1727 = vunpack.c.l.bf16 %v1706
      %v1728 = vmul.f32 %v1720, %v538
      %v1729 = vmul.f32 %v1721, %v539
      %v1730 = vmul.f32 %v1722, %v540
      %v1731 = vmul.f32 %v1723, %v541
      %v1732 = vmul.f32 %v1724, %v542
      %v1733 = vmul.f32 %v1725, %v543
      %v1734 = vmul.f32 %v1726, %v544
      %v1735 = vmul.f32 %v1727, %v545
      %v1736 = vpack.c.bf16 %v1729, %v1728
      %v1737 = vpack.c.bf16 %v1731, %v1730
      %v1738 = vpack.c.bf16 %v1733, %v1732
      %v1739 = vpack.c.bf16 %v1735, %v1734
      %v1740 = vunpack.c.l.bf16 %v1718
      %v1741 = vmul.f32 %v1720, %v576
      %v1742 = vmul.f32 %v1721, %v592
      %v1743 = vmul.f32 %v1722, %v593
      %v1744 = vmul.f32 %v1723, %v594
      %v1745 = vmul.f32 %v1724, %v595
      %v1746 = vmul.f32 %v1725, %v596
      %v1747 = vmul.f32 %v1726, %v597
      %v1748 = vmul.f32 %v1727, %v598
      %v1749 = vmul.f32 %v1740, %v590
      %v1750 = vpack.c.bf16 %v1742, %v1741
      %v1751 = vpack.c.bf16 %v1744, %v1743
      %v1752 = vpack.c.bf16 %v1746, %v1745
      %v1753 = vpack.c.bf16 %v1748, %v1747
      %v1754 = vpack.c.bf16 %v1749, %v1749
      %v1755 = vmul.f32 %v1720, %v631
      %v1756 = vmul.f32 %v1721, %v647
      %v1757 = vmul.f32 %v1722, %v648
      %v1758 = vmul.f32 %v1723, %v649
      %v1759 = vmul.f32 %v1724, %v650
      %v1760 = vmul.f32 %v1725, %v651
      %v1761 = vmul.f32 %v1726, %v652
      %v1762 = vmul.f32 %v1727, %v653
      %v1763 = vmul.f32 %v1740, %v645
      %v1764 = vpack.c.bf16 %v1756, %v1755
      %v1765 = vpack.c.bf16 %v1758, %v1757
      %v1766 = vpack.c.bf16 %v1760, %v1759
      %v1767 = vpack.c.bf16 %v1762, %v1761
      %v1768 = vpack.c.bf16 %v1763, %v1763
      %v1769 = vmul.f32 %v1720, %v678
      %v1770 = vmul.f32 %v1721, %v694
      %v1771 = vmul.f32 %v1722, %v695
      %v1772 = vmul.f32 %v1723, %v696
      %v1773 = vmul.f32 %v1724, %v697
      %v1774 = vmul.f32 %v1725, %v698
      %v1775 = vmul.f32 %v1726, %v699
      %v1776 = vmul.f32 %v1727, %v700
      %v1777 = vmul.f32 %v1740, %v692
      %v1778 = vpack.c.bf16 %v1770, %v1769
      %v1779 = vpack.c.bf16 %v1772, %v1771
      %v1780 = vpack.c.bf16 %v1774, %v1773
      %v1781 = vpack.c.bf16 %v1776, %v1775
      %v1782 = vpack.c.bf16 %v1777, %v1777
      %v1783 = vmul.f32 %v1720, %v725
      %v1784 = vmul.f32 %v1721, %v741
      %v1785 = vmul.f32 %v1722, %v742
      %v1786 = vmul.f32 %v1723, %v743
      %v1787 = vmul.f32 %v1724, %v744
      %v1788 = vmul.f32 %v1725, %v745
      %v1789 = vmul.f32 %v1726, %v746
      %v1790 = vmul.f32 %v1727, %v747
      %v1791 = vmul.f32 %v1740, %v739
      %v1792 = vpack.c.bf16 %v1784, %v1783
      %v1793 = vpack.c.bf16 %v1786, %v1785
      %v1794 = vpack.c.bf16 %v1788, %v1787
      %v1795 = vpack.c.bf16 %v1790, %v1789
      %v1796 = vpack.c.bf16 %v1791, %v1791
      %v1797 = vmul.f32 %v1720, %v772
      %v1798 = vmul.f32 %v1721, %v788
      %v1799 = vmul.f32 %v1722, %v789
      %v1800 = vmul.f32 %v1723, %v790
      %v1801 = vmul.f32 %v1724, %v791
      %v1802 = vmul.f32 %v1725, %v792
      %v1803 = vmul.f32 %v1726, %v793
      %v1804 = vmul.f32 %v1727, %v794
      %v1805 = vmul.f32 %v1740, %v786
      %v1806 = vpack.c.bf16 %v1798, %v1797
      %v1807 = vpack.c.bf16 %v1800, %v1799
      %v1808 = vpack.c.bf16 %v1802, %v1801
      %v1809 = vpack.c.bf16 %v1804, %v1803
      %v1810 = vpack.c.bf16 %v1805, %v1805
      %v1815 = vunpack.c.l.b16 %v1736
      %v1816 = vunpack.c.h.b16 %v1736
      %v1817 = vunpack.c.l.b16 %v1737
      %v1818 = vunpack.c.h.b16 %v1737
      %v1819 = vunpack.c.l.b16 %v1738
      %v1820 = vunpack.c.h.b16 %v1738
      %v1821 = vunpack.c.l.b16 %v1739
      %v1822 = vunpack.c.h.b16 %v1739
      %v1823 = vpack.c.b16 %v1815, %v1815
      %v1824 = vpack.c.b16 %v1816, %v1816
      %v1825 = vpack.c.b16 %v1817, %v1817
      %v1826 = vpack.c.b16 %v1818, %v1818
      %v1827 = vpack.c.b16 %v1819, %v1819
      %v1828 = vpack.c.b16 %v1820, %v1820
      %v1829 = vpack.c.b16 %v1821, %v1821
      %v1830 = vpack.c.b16 %v1822, %v1822
      %v1833 = vrot.slane %v1715, 6
      %v1834 = vrot.slane %v1700, 6
      %v1835 = vrot.slane %v1701, 6
      %v1836 = vrot.slane %v1702, 6
      %v1837 = vrot.slane %v1703, 6
      %v1838 = vrot.slane %v1704, 6
      %v1839 = vrot.slane %v1705, 6
      %v1840 = vrot.slane %v1706, 6
      %v1841 = vrot.slane %v1718, 6
      %1842 = vrot.lane.b32.xlu0 %v1833, 127
      %v1843 = vpop.permute.xlu0 %1842
      %1844 = vrot.lane.b32.xlu0 %v1834, 127
      %v1845 = vpop.permute.xlu0 %1844
      %1846 = vrot.lane.b32.xlu0 %v1835, 127
      %v1847 = vpop.permute.xlu0 %1846
      %1848 = vrot.lane.b32.xlu0 %v1836, 127
      %v1849 = vpop.permute.xlu0 %1848
      %1850 = vrot.lane.b32.xlu0 %v1837, 127
      %v1851 = vpop.permute.xlu0 %1850
      %1852 = vrot.lane.b32.xlu0 %v1838, 127
      %v1853 = vpop.permute.xlu0 %1852
      %1854 = vrot.lane.b32.xlu0 %v1839, 127
      %v1855 = vpop.permute.xlu0 %1854
      %1856 = vrot.lane.b32.xlu0 %v1840, 127
      %v1857 = vpop.permute.xlu0 %1856
      %1858 = vrot.lane.b32.xlu0 %v1841, 127
      %v1859 = vpop.permute.xlu0 %1858
      %v1860 = vsel %vm867, %v1843, %v1845
      %v1861 = vsel %vm867, %v1845, %v1847
      %v1862 = vsel %vm867, %v1847, %v1849
      %v1863 = vsel %vm867, %v1849, %v1851
      %v1864 = vsel %vm867, %v1851, %v1853
      %v1865 = vsel %vm867, %v1853, %v1855
      %v1866 = vsel %vm867, %v1855, %v1857
      %v1867 = vsel %vm867, %v1857, %v1859
      %v1873 = vunpack.c.l.b16 %v1750
      %v1874 = vunpack.c.h.b16 %v1750
      %v1875 = vunpack.c.l.b16 %v1751
      %v1876 = vunpack.c.h.b16 %v1751
      %v1877 = vunpack.c.l.b16 %v1752
      %v1878 = vunpack.c.h.b16 %v1752
      %v1879 = vunpack.c.l.b16 %v1753
      %v1880 = vunpack.c.h.b16 %v1753
      %v1881 = vunpack.c.l.b16 %v1754
      %v1882 = vpack.c.b16 %v1873, %v1873
      %v1883 = vpack.c.b16 %v1874, %v1874
      %v1884 = vpack.c.b16 %v1875, %v1875
      %v1885 = vpack.c.b16 %v1876, %v1876
      %v1886 = vpack.c.b16 %v1877, %v1877
      %v1887 = vpack.c.b16 %v1878, %v1878
      %v1888 = vpack.c.b16 %v1879, %v1879
      %v1889 = vpack.c.b16 %v1880, %v1880
      %v1890 = vpack.c.b16 %v1881, %v1881
      %1891 = vrot.lane.b32.xlu0 %v1882, 126
      %v1892 = vpop.permute.xlu0 %1891
      %1893 = vrot.lane.b32.xlu0 %v1883, 126
      %v1894 = vpop.permute.xlu0 %1893
      %1895 = vrot.lane.b32.xlu0 %v1884, 126
      %v1896 = vpop.permute.xlu0 %1895
      %1897 = vrot.lane.b32.xlu0 %v1885, 126
      %v1898 = vpop.permute.xlu0 %1897
      %1899 = vrot.lane.b32.xlu0 %v1886, 126
      %v1900 = vpop.permute.xlu0 %1899
      %1901 = vrot.lane.b32.xlu0 %v1887, 126
      %v1902 = vpop.permute.xlu0 %1901
      %1903 = vrot.lane.b32.xlu0 %v1888, 126
      %v1904 = vpop.permute.xlu0 %1903
      %1905 = vrot.lane.b32.xlu0 %v1889, 126
      %v1906 = vpop.permute.xlu0 %1905
      %1907 = vrot.lane.b32.xlu0 %v1890, 126
      %v1908 = vpop.permute.xlu0 %1907
      %v1909 = vsel %vm926, %v1892, %v1894
      %v1910 = vsel %vm926, %v1894, %v1896
      %v1911 = vsel %vm926, %v1896, %v1898
      %v1912 = vsel %vm926, %v1898, %v1900
      %v1913 = vsel %vm926, %v1900, %v1902
      %v1914 = vsel %vm926, %v1902, %v1904
      %v1915 = vsel %vm926, %v1904, %v1906
      %v1916 = vsel %vm926, %v1906, %v1908
      %v1922 = vunpack.c.l.b16 %v1764
      %v1923 = vunpack.c.h.b16 %v1764
      %v1924 = vunpack.c.l.b16 %v1765
      %v1925 = vunpack.c.h.b16 %v1765
      %v1926 = vunpack.c.l.b16 %v1766
      %v1927 = vunpack.c.h.b16 %v1766
      %v1928 = vunpack.c.l.b16 %v1767
      %v1929 = vunpack.c.h.b16 %v1767
      %v1930 = vunpack.c.l.b16 %v1768
      %v1931 = vpack.c.b16 %v1922, %v1922
      %v1932 = vpack.c.b16 %v1923, %v1923
      %v1933 = vpack.c.b16 %v1924, %v1924
      %v1934 = vpack.c.b16 %v1925, %v1925
      %v1935 = vpack.c.b16 %v1926, %v1926
      %v1936 = vpack.c.b16 %v1927, %v1927
      %v1937 = vpack.c.b16 %v1928, %v1928
      %v1938 = vpack.c.b16 %v1929, %v1929
      %v1939 = vpack.c.b16 %v1930, %v1930
      %v1940 = vrot.slane %v1931, 2
      %v1941 = vrot.slane %v1932, 2
      %v1942 = vrot.slane %v1933, 2
      %v1943 = vrot.slane %v1934, 2
      %v1944 = vrot.slane %v1935, 2
      %v1945 = vrot.slane %v1936, 2
      %v1946 = vrot.slane %v1937, 2
      %v1947 = vrot.slane %v1938, 2
      %v1948 = vrot.slane %v1939, 2
      %1949 = vrot.lane.b32.xlu0 %v1940, 96
      %v1950 = vpop.permute.xlu0 %1949
      %1951 = vrot.lane.b32.xlu0 %v1941, 96
      %v1952 = vpop.permute.xlu0 %1951
      %1953 = vrot.lane.b32.xlu0 %v1942, 96
      %v1954 = vpop.permute.xlu0 %1953
      %1955 = vrot.lane.b32.xlu0 %v1943, 96
      %v1956 = vpop.permute.xlu0 %1955
      %1957 = vrot.lane.b32.xlu0 %v1944, 96
      %v1958 = vpop.permute.xlu0 %1957
      %1959 = vrot.lane.b32.xlu0 %v1945, 96
      %v1960 = vpop.permute.xlu0 %1959
      %1961 = vrot.lane.b32.xlu0 %v1946, 96
      %v1962 = vpop.permute.xlu0 %1961
      %1963 = vrot.lane.b32.xlu0 %v1947, 96
      %v1964 = vpop.permute.xlu0 %1963
      %1965 = vrot.lane.b32.xlu0 %v1948, 96
      %v1966 = vpop.permute.xlu0 %1965
      %v1967 = vsel %vm985, %v1950, %v1952
      %v1968 = vsel %vm985, %v1952, %v1954
      %v1969 = vsel %vm985, %v1954, %v1956
      %v1970 = vsel %vm985, %v1956, %v1958
      %v1971 = vsel %vm985, %v1958, %v1960
      %v1972 = vsel %vm985, %v1960, %v1962
      %v1973 = vsel %vm985, %v1962, %v1964
      %v1974 = vsel %vm985, %v1964, %v1966
      %1975 = vrot.lane.b32.xlu0 %v1715, 95
      %v1976 = vpop.permute.xlu0 %1975
      %1977 = vrot.lane.b32.xlu0 %v1700, 95
      %v1978 = vpop.permute.xlu0 %1977
      %1979 = vrot.lane.b32.xlu0 %v1701, 95
      %v1980 = vpop.permute.xlu0 %1979
      %1981 = vrot.lane.b32.xlu0 %v1702, 95
      %v1982 = vpop.permute.xlu0 %1981
      %1983 = vrot.lane.b32.xlu0 %v1703, 95
      %v1984 = vpop.permute.xlu0 %1983
      %1985 = vrot.lane.b32.xlu0 %v1704, 95
      %v1986 = vpop.permute.xlu0 %1985
      %1987 = vrot.lane.b32.xlu0 %v1705, 95
      %v1988 = vpop.permute.xlu0 %1987
      %1989 = vrot.lane.b32.xlu0 %v1706, 95
      %v1990 = vpop.permute.xlu0 %1989
      %1991 = vrot.lane.b32.xlu0 %v1718, 95
      %v1992 = vpop.permute.xlu0 %1991
      %v1993 = vsel %vm1021, %v1976, %v1978
      %v1994 = vsel %vm1021, %v1978, %v1980
      %v1995 = vsel %vm1021, %v1980, %v1982
      %v1996 = vsel %vm1021, %v1982, %v1984
      %v1997 = vsel %vm1021, %v1984, %v1986
      %v1998 = vsel %vm1021, %v1986, %v1988
      %v1999 = vsel %vm1021, %v1988, %v1990
      %v2000 = vsel %vm1021, %v1990, %v1992
      %v2006 = vunpack.c.l.b16 %v1778
      %v2007 = vunpack.c.h.b16 %v1778
      %v2008 = vunpack.c.l.b16 %v1779
      %v2009 = vunpack.c.h.b16 %v1779
      %v2010 = vunpack.c.l.b16 %v1780
      %v2011 = vunpack.c.h.b16 %v1780
      %v2012 = vunpack.c.l.b16 %v1781
      %v2013 = vunpack.c.h.b16 %v1781
      %v2014 = vunpack.c.l.b16 %v1782
      %v2015 = vpack.c.b16 %v2006, %v2006
      %v2016 = vpack.c.b16 %v2007, %v2007
      %v2017 = vpack.c.b16 %v2008, %v2008
      %v2018 = vpack.c.b16 %v2009, %v2009
      %v2019 = vpack.c.b16 %v2010, %v2010
      %v2020 = vpack.c.b16 %v2011, %v2011
      %v2021 = vpack.c.b16 %v2012, %v2012
      %v2022 = vpack.c.b16 %v2013, %v2013
      %v2023 = vpack.c.b16 %v2014, %v2014
      %v2024 = vrot.slane %v2015, 6
      %v2025 = vrot.slane %v2016, 6
      %v2026 = vrot.slane %v2017, 6
      %v2027 = vrot.slane %v2018, 6
      %v2028 = vrot.slane %v2019, 6
      %v2029 = vrot.slane %v2020, 6
      %v2030 = vrot.slane %v2021, 6
      %v2031 = vrot.slane %v2022, 6
      %v2032 = vrot.slane %v2023, 6
      %2033 = vrot.lane.b32.xlu0 %v2024, 94
      %v2034 = vpop.permute.xlu0 %2033
      %2035 = vrot.lane.b32.xlu0 %v2025, 94
      %v2036 = vpop.permute.xlu0 %2035
      %2037 = vrot.lane.b32.xlu0 %v2026, 94
      %v2038 = vpop.permute.xlu0 %2037
      %2039 = vrot.lane.b32.xlu0 %v2027, 94
      %v2040 = vpop.permute.xlu0 %2039
      %2041 = vrot.lane.b32.xlu0 %v2028, 94
      %v2042 = vpop.permute.xlu0 %2041
      %2043 = vrot.lane.b32.xlu0 %v2029, 94
      %v2044 = vpop.permute.xlu0 %2043
      %2045 = vrot.lane.b32.xlu0 %v2030, 94
      %v2046 = vpop.permute.xlu0 %2045
      %2047 = vrot.lane.b32.xlu0 %v2031, 94
      %v2048 = vpop.permute.xlu0 %2047
      %2049 = vrot.lane.b32.xlu0 %v2032, 94
      %v2050 = vpop.permute.xlu0 %2049
      %v2051 = vsel %vm1080, %v2034, %v2036
      %v2052 = vsel %vm1080, %v2036, %v2038
      %v2053 = vsel %vm1080, %v2038, %v2040
      %v2054 = vsel %vm1080, %v2040, %v2042
      %v2055 = vsel %vm1080, %v2042, %v2044
      %v2056 = vsel %vm1080, %v2044, %v2046
      %v2057 = vsel %vm1080, %v2046, %v2048
      %v2058 = vsel %vm1080, %v2048, %v2050
      %v2064 = vunpack.c.l.b16 %v1792
      %v2065 = vunpack.c.h.b16 %v1792
      %v2066 = vunpack.c.l.b16 %v1793
      %v2067 = vunpack.c.h.b16 %v1793
      %v2068 = vunpack.c.l.b16 %v1794
      %v2069 = vunpack.c.h.b16 %v1794
      %v2070 = vunpack.c.l.b16 %v1795
      %v2071 = vunpack.c.h.b16 %v1795
      %v2072 = vunpack.c.l.b16 %v1796
      %v2073 = vpack.c.b16 %v2064, %v2064
      %v2074 = vpack.c.b16 %v2065, %v2065
      %v2075 = vpack.c.b16 %v2066, %v2066
      %v2076 = vpack.c.b16 %v2067, %v2067
      %v2077 = vpack.c.b16 %v2068, %v2068
      %v2078 = vpack.c.b16 %v2069, %v2069
      %v2079 = vpack.c.b16 %v2070, %v2070
      %v2080 = vpack.c.b16 %v2071, %v2071
      %v2081 = vpack.c.b16 %v2072, %v2072
      %2082 = vrot.lane.b32.xlu0 %v2073, 64
      %v2083 = vpop.permute.xlu0 %2082
      %2084 = vrot.lane.b32.xlu0 %v2074, 64
      %v2085 = vpop.permute.xlu0 %2084
      %2086 = vrot.lane.b32.xlu0 %v2075, 64
      %v2087 = vpop.permute.xlu0 %2086
      %2088 = vrot.lane.b32.xlu0 %v2076, 64
      %v2089 = vpop.permute.xlu0 %2088
      %2090 = vrot.lane.b32.xlu0 %v2077, 64
      %v2091 = vpop.permute.xlu0 %2090
      %2092 = vrot.lane.b32.xlu0 %v2078, 64
      %v2093 = vpop.permute.xlu0 %2092
      %2094 = vrot.lane.b32.xlu0 %v2079, 64
      %v2095 = vpop.permute.xlu0 %2094
      %2096 = vrot.lane.b32.xlu0 %v2080, 64
      %v2097 = vpop.permute.xlu0 %2096
      %2098 = vrot.lane.b32.xlu0 %v2081, 64
      %v2099 = vpop.permute.xlu0 %2098
      %v2100 = vsel %vm1139, %v2083, %v2085
      %v2101 = vsel %vm1139, %v2085, %v2087
      %v2102 = vsel %vm1139, %v2087, %v2089
      %v2103 = vsel %vm1139, %v2089, %v2091
      %v2104 = vsel %vm1139, %v2091, %v2093
      %v2105 = vsel %vm1139, %v2093, %v2095
      %v2106 = vsel %vm1139, %v2095, %v2097
      %v2107 = vsel %vm1139, %v2097, %v2099
      %v2108 = vrot.slane %v1715, 2
      %v2109 = vrot.slane %v1700, 2
      %v2110 = vrot.slane %v1701, 2
      %v2111 = vrot.slane %v1702, 2
      %v2112 = vrot.slane %v1703, 2
      %v2113 = vrot.slane %v1704, 2
      %v2114 = vrot.slane %v1705, 2
      %v2115 = vrot.slane %v1706, 2
      %v2116 = vrot.slane %v1718, 2
      %2117 = vrot.lane.b32.xlu0 %v2108, 63
      %v2118 = vpop.permute.xlu0 %2117
      %2119 = vrot.lane.b32.xlu0 %v2109, 63
      %v2120 = vpop.permute.xlu0 %2119
      %2121 = vrot.lane.b32.xlu0 %v2110, 63
      %v2122 = vpop.permute.xlu0 %2121
      %2123 = vrot.lane.b32.xlu0 %v2111, 63
      %v2124 = vpop.permute.xlu0 %2123
      %2125 = vrot.lane.b32.xlu0 %v2112, 63
      %v2126 = vpop.permute.xlu0 %2125
      %2127 = vrot.lane.b32.xlu0 %v2113, 63
      %v2128 = vpop.permute.xlu0 %2127
      %2129 = vrot.lane.b32.xlu0 %v2114, 63
      %v2130 = vpop.permute.xlu0 %2129
      %2131 = vrot.lane.b32.xlu0 %v2115, 63
      %v2132 = vpop.permute.xlu0 %2131
      %2133 = vrot.lane.b32.xlu0 %v2116, 63
      %v2134 = vpop.permute.xlu0 %2133
      %v2135 = vsel %vm1175, %v2118, %v2120
      %v2136 = vsel %vm1175, %v2120, %v2122
      %v2137 = vsel %vm1175, %v2122, %v2124
      %v2138 = vsel %vm1175, %v2124, %v2126
      %v2139 = vsel %vm1175, %v2126, %v2128
      %v2140 = vsel %vm1175, %v2128, %v2130
      %v2141 = vsel %vm1175, %v2130, %v2132
      %v2142 = vsel %vm1175, %v2132, %v2134
      %v2148 = vunpack.c.l.b16 %v1806
      %v2149 = vunpack.c.h.b16 %v1806
      %v2150 = vunpack.c.l.b16 %v1807
      %v2151 = vunpack.c.h.b16 %v1807
      %v2152 = vunpack.c.l.b16 %v1808
      %v2153 = vunpack.c.h.b16 %v1808
      %v2154 = vunpack.c.l.b16 %v1809
      %v2155 = vunpack.c.h.b16 %v1809
      %v2156 = vunpack.c.l.b16 %v1810
      %v2157 = vpack.c.b16 %v2148, %v2148
      %v2158 = vpack.c.b16 %v2149, %v2149
      %v2159 = vpack.c.b16 %v2150, %v2150
      %v2160 = vpack.c.b16 %v2151, %v2151
      %v2161 = vpack.c.b16 %v2152, %v2152
      %v2162 = vpack.c.b16 %v2153, %v2153
      %v2163 = vpack.c.b16 %v2154, %v2154
      %v2164 = vpack.c.b16 %v2155, %v2155
      %v2165 = vpack.c.b16 %v2156, %v2156
      %2166 = vrot.lane.b32.xlu0 %v2157, 62
      %v2167 = vpop.permute.xlu0 %2166
      %2168 = vrot.lane.b32.xlu0 %v2158, 62
      %v2169 = vpop.permute.xlu0 %2168
      %2170 = vrot.lane.b32.xlu0 %v2159, 62
      %v2171 = vpop.permute.xlu0 %2170
      %2172 = vrot.lane.b32.xlu0 %v2160, 62
      %v2173 = vpop.permute.xlu0 %2172
      %2174 = vrot.lane.b32.xlu0 %v2161, 62
      %v2175 = vpop.permute.xlu0 %2174
      %2176 = vrot.lane.b32.xlu0 %v2162, 62
      %v2177 = vpop.permute.xlu0 %2176
      %2178 = vrot.lane.b32.xlu0 %v2163, 62
      %v2179 = vpop.permute.xlu0 %2178
      %2180 = vrot.lane.b32.xlu0 %v2164, 62
      %v2181 = vpop.permute.xlu0 %2180
      %2182 = vrot.lane.b32.xlu0 %v2165, 62
      %v2183 = vpop.permute.xlu0 %2182
      %v2184 = vsel %vm1225, %v2167, %v2169
      %v2185 = vsel %vm1225, %v2169, %v2171
      %v2186 = vsel %vm1225, %v2171, %v2173
      %v2187 = vsel %vm1225, %v2173, %v2175
      %v2188 = vsel %vm1225, %v2175, %v2177
      %v2189 = vsel %vm1225, %v2177, %v2179
      %v2190 = vsel %vm1225, %v2179, %v2181
      %v2191 = vsel %vm1225, %v2181, %v2183
      %v2194 = vsel %vm1259, %v1823, %v1860
      %v2197 = vsel %vm1259, %v1824, %v1861
      %v2200 = vsel %vm1259, %v1825, %v1862
      %v2203 = vsel %vm1259, %v1826, %v1863
      %v2206 = vsel %vm1259, %v1827, %v1864
      %v2209 = vsel %vm1259, %v1828, %v1865
      %v2212 = vsel %vm1259, %v1829, %v1866
      %v2215 = vsel %vm1259, %v1830, %v1867
      %v2217 = vsel %vm1293, %v2194, %v1909
      %v2219 = vsel %vm1293, %v2197, %v1910
      %v2221 = vsel %vm1293, %v2200, %v1911
      %v2223 = vsel %vm1293, %v2203, %v1912
      %v2225 = vsel %vm1293, %v2206, %v1913
      %v2227 = vsel %vm1293, %v2209, %v1914
      %v2229 = vsel %vm1293, %v2212, %v1915
      %v2231 = vsel %vm1293, %v2215, %v1916
      %v2233 = vsel %vm1327, %v2217, %v1967
      %v2236 = vsel %vm1327, %v2219, %v1968
      %v2239 = vsel %vm1327, %v2221, %v1969
      %v2242 = vsel %vm1327, %v2223, %v1970
      %v2245 = vsel %vm1327, %v2225, %v1971
      %v2248 = vsel %vm1327, %v2227, %v1972
      %v2251 = vsel %vm1327, %v2229, %v1973
      %v2254 = vsel %vm1327, %v2231, %v1974
      %v2258 = vsel %vm1259, %v1993, %v2051
      %v2261 = vsel %vm1259, %v1994, %v2052
      %v2264 = vsel %vm1259, %v1995, %v2053
      %v2267 = vsel %vm1259, %v1996, %v2054
      %v2270 = vsel %vm1259, %v1997, %v2055
      %v2273 = vsel %vm1259, %v1998, %v2056
      %v2276 = vsel %vm1259, %v1999, %v2057
      %v2279 = vsel %vm1259, %v2000, %v2058
      %v2281 = vsel %vm1293, %v2258, %v2100
      %v2283 = vsel %vm1293, %v2261, %v2101
      %v2285 = vsel %vm1293, %v2264, %v2102
      %v2287 = vsel %vm1293, %v2267, %v2103
      %v2289 = vsel %vm1293, %v2270, %v2104
      %v2291 = vsel %vm1293, %v2273, %v2105
      %v2293 = vsel %vm1293, %v2276, %v2106
      %v2295 = vsel %vm1293, %v2279, %v2107
      %v2297 = vsel %vm1327, %v2281, %v2135
      %v2300 = vsel %vm1327, %v2283, %v2136
      %v2303 = vsel %vm1327, %v2285, %v2137
      %v2306 = vsel %vm1327, %v2287, %v2138
      %v2309 = vsel %vm1327, %v2289, %v2139
      %v2312 = vsel %vm1327, %v2291, %v2140
      %v2315 = vsel %vm1327, %v2293, %v2141
      %v2318 = vsel %vm1327, %v2295, %v2142
      %vm2320 = vcmask 293888
      %v2322 = vsel %vm2320, %v1657, 0
      %v2325 = vsel %vm1259, %v2184, 0
      %v2328 = vsel %vm1259, %v2185, 0
      %v2331 = vsel %vm1259, %v2186, 0
      %v2334 = vsel %vm1259, %v2187, 0
      %v2337 = vsel %vm1259, %v2188, 0
      %v2340 = vsel %vm1259, %v2189, 0
      %v2343 = vsel %vm1259, %v2190, 0
      %v2346 = vsel %vm1259, %v2191, 0
      %2348 = vmatpush.bf16.msra.mxu0 0
      %2349 = vmatpush.bf16.msra.mxu0 0
      %2350 = vmatpush.bf16.msra.mxu0 0
      %2351 = vmatpush.bf16.msra.mxu0 0
      %2352 = vmatpush.bf16.msra.mxu0 0
      %2353 = vmatpush.bf16.msra.mxu0 %v2325
      %2354 = vmatpush.bf16.msra.mxu0 %v2297
      %2355 = vmatpush.bf16.msra.mxu0 %v2233
      %2356 = vmatmul.bf16.gmra.mxu0 %v2322
      %v2357 = vpop.f32.mrf.mxu0
      %v2358 = vadd.f32 0.0, %v2357
      %v2359 = vpop.f32.mrf.mxu0
      %2360 = vdwg.mxu0
      %2361 = vmatpush.bf16.msra.mxu0 0
      %2362 = vmatpush.bf16.msra.mxu0 0
      %2363 = vmatpush.bf16.msra.mxu0 0
      %2364 = vmatpush.bf16.msra.mxu0 0
      %2365 = vmatpush.bf16.msra.mxu0 0
      %2366 = vmatpush.bf16.msra.mxu0 %v2328
      %2367 = vmatpush.bf16.msra.mxu0 %v2300
      %2368 = vmatpush.bf16.msra.mxu0 %v2236
      %2369 = vmatmul.bf16.gmra.mxu0 %v2322
      %v2370 = vpop.f32.mrf.mxu0
      %v2371 = vadd.f32 0.0, %v2370
      %v2372 = vpop.f32.mrf.mxu0
      %2373 = vdwg.mxu0
      %2374 = vmatpush.bf16.msra.mxu0 0
      %2375 = vmatpush.bf16.msra.mxu0 0
      %2376 = vmatpush.bf16.msra.mxu0 0
      %2377 = vmatpush.bf16.msra.mxu0 0
      %2378 = vmatpush.bf16.msra.mxu0 0
      %2379 = vmatpush.bf16.msra.mxu0 %v2331
      %2380 = vmatpush.bf16.msra.mxu0 %v2303
      %2381 = vmatpush.bf16.msra.mxu0 %v2239
      %2382 = vmatmul.bf16.gmra.mxu0 %v2322
      %v2383 = vpop.f32.mrf.mxu0
      %v2384 = vadd.f32 0.0, %v2383
      %v2385 = vpop.f32.mrf.mxu0
      %2386 = vdwg.mxu0
      %2387 = vmatpush.bf16.msra.mxu0 0
      %2388 = vmatpush.bf16.msra.mxu0 0
      %2389 = vmatpush.bf16.msra.mxu0 0
      %2390 = vmatpush.bf16.msra.mxu0 0
      %2391 = vmatpush.bf16.msra.mxu0 0
      %2392 = vmatpush.bf16.msra.mxu0 %v2334
      %2393 = vmatpush.bf16.msra.mxu0 %v2306
      %2394 = vmatpush.bf16.msra.mxu0 %v2242
      %2395 = vmatmul.bf16.gmra.mxu0 %v2322
      %v2396 = vpop.f32.mrf.mxu0
      %v2397 = vadd.f32 0.0, %v2396
      %v2398 = vpop.f32.mrf.mxu0
      %2399 = vdwg.mxu0
      %2400 = vmatpush.bf16.msra.mxu0 0
      %2401 = vmatpush.bf16.msra.mxu0 0
      %2402 = vmatpush.bf16.msra.mxu0 0
      %2403 = vmatpush.bf16.msra.mxu0 0
      %2404 = vmatpush.bf16.msra.mxu0 0
      %2405 = vmatpush.bf16.msra.mxu0 %v2337
      %2406 = vmatpush.bf16.msra.mxu0 %v2309
      %2407 = vmatpush.bf16.msra.mxu0 %v2245
      %2408 = vmatmul.bf16.gmra.mxu0 %v2322
      %v2409 = vpop.f32.mrf.mxu0
      %v2410 = vadd.f32 0.0, %v2409
      %v2411 = vpop.f32.mrf.mxu0
      %2412 = vdwg.mxu0
      %2413 = vmatpush.bf16.msra.mxu0 0
      %2414 = vmatpush.bf16.msra.mxu0 0
      %2415 = vmatpush.bf16.msra.mxu0 0
      %2416 = vmatpush.bf16.msra.mxu0 0
      %2417 = vmatpush.bf16.msra.mxu0 0
      %2418 = vmatpush.bf16.msra.mxu0 %v2340
      %2419 = vmatpush.bf16.msra.mxu0 %v2312
      %2420 = vmatpush.bf16.msra.mxu0 %v2248
      %2421 = vmatmul.bf16.gmra.mxu0 %v2322
      %v2422 = vpop.f32.mrf.mxu0
      %v2423 = vadd.f32 0.0, %v2422
      %v2424 = vpop.f32.mrf.mxu0
      %2425 = vdwg.mxu0
      %2426 = vmatpush.bf16.msra.mxu0 0
      %2427 = vmatpush.bf16.msra.mxu0 0
      %2428 = vmatpush.bf16.msra.mxu0 0
      %2429 = vmatpush.bf16.msra.mxu0 0
      %2430 = vmatpush.bf16.msra.mxu0 0
      %2431 = vmatpush.bf16.msra.mxu0 %v2343
      %2432 = vmatpush.bf16.msra.mxu0 %v2315
      %2433 = vmatpush.bf16.msra.mxu0 %v2251
      %2434 = vmatmul.bf16.gmra.mxu0 %v2322
      %v2435 = vpop.f32.mrf.mxu0
      %v2436 = vadd.f32 0.0, %v2435
      %v2437 = vpop.f32.mrf.mxu0
      %2438 = vdwg.mxu0
      %2439 = vmatpush.bf16.msra.mxu0 0
      %2440 = vmatpush.bf16.msra.mxu0 0
      %2441 = vmatpush.bf16.msra.mxu0 0
      %2442 = vmatpush.bf16.msra.mxu0 0
      %2443 = vmatpush.bf16.msra.mxu0 0
      %2444 = vmatpush.bf16.msra.mxu0 %v2346
      %2445 = vmatpush.bf16.msra.mxu0 %v2318
      %2446 = vmatpush.bf16.msra.mxu0 %v2254
      %2447 = vmatmul.bf16.gmra.mxu0 %v2322
      %v2448 = vpop.f32.mrf.mxu0
      %v2449 = vadd.f32 0.0, %v2448
      %v2450 = vpop.f32.mrf.mxu0
      %2451 = vdwg.mxu0
      %v2452 = vsel %vm1293, %v2358, 0.0
      %v2453 = vsel %vm1293, %v2371, 0.0
      %v2454 = vadd.f32 %v2452, %v2453
      %v2455 = vsel %vm1293, %v2384, 0.0
      %v2456 = vadd.f32 %v2454, %v2455
      %v2457 = vsel %vm1293, %v2397, 0.0
      %v2458 = vadd.f32 %v2456, %v2457
      %v2459 = vsel %vm1293, %v2410, 0.0
      %v2460 = vadd.f32 %v2458, %v2459
      %v2461 = vsel %vm1293, %v2423, 0.0
      %v2462 = vadd.f32 %v2460, %v2461
      %v2463 = vsel %vm1293, %v2436, 0.0
      %v2464 = vadd.f32 %v2462, %v2463
      %v2465 = vsel %vm1293, %v2449, 0.0
      %v2466 = vadd.f32 %v2464, %v2465
      %2467 = vadd.xlane.f32.xlu0 %v2466
      %v2468 = vpop.xlane.xlu0 %2467
      %v2469 = vmul.f32 %v2358, %v2358
      %v2470 = vmul.f32 %v2371, %v2371
      %v2471 = vmul.f32 %v2384, %v2384
      %v2472 = vmul.f32 %v2397, %v2397
      %v2473 = vmul.f32 %v2410, %v2410
      %v2474 = vmul.f32 %v2423, %v2423
      %v2475 = vmul.f32 %v2436, %v2436
      %v2476 = vmul.f32 %v2449, %v2449
      %v2477 = vsel %vm1293, %v2469, 0.0
      %v2478 = vsel %vm1293, %v2470, 0.0
      %v2479 = vadd.f32 %v2477, %v2478
      %v2480 = vsel %vm1293, %v2471, 0.0
      %v2481 = vadd.f32 %v2479, %v2480
      %v2482 = vsel %vm1293, %v2472, 0.0
      %v2483 = vadd.f32 %v2481, %v2482
      %v2484 = vsel %vm1293, %v2473, 0.0
      %v2485 = vadd.f32 %v2483, %v2484
      %v2486 = vsel %vm1293, %v2474, 0.0
      %v2487 = vadd.f32 %v2485, %v2486
      %v2488 = vsel %vm1293, %v2475, 0.0
      %v2489 = vadd.f32 %v2487, %v2488
      %v2490 = vsel %vm1293, %v2476, 0.0
      %v2491 = vadd.f32 %v2489, %v2490
      %2492 = vadd.xlane.f32.xlu0 %v2491
      %v2493 = vpop.xlane.xlu0 %2492
      %v2494 = vmul.f32 %v2468, 0.0009765625
      %v2495 = vmul.f32 %v2493, 0.0009765625
      %v2496 = vmul.f32 %v2494, %v2494
      %v2497 = vsub.f32 %v2495, %v2496
      %v2498 = vadd.f32 %v2497, 1e-05
      %v2499 = vrsqrt.pop %v2498
      %v2500 = vmul.f32 %v2499, %v2498
      %v2501 = vmul.f32 %v2500, %v2499
      %v2502 = vmul.f32 0.5, %v2501
      %v2503 = vsub.f32 1.5, %v2502
      %v2504 = vmul.f32 %v2499, %v2503
      %vm2505 = vweird.f32 %v2498
      %vm2506 = vweird.f32 %v2499
      %vm2507 = vmor %vm2505, %vm2506
      %v2508 = vsel %vm2507, %v2499, %v2504
      %v2509 = vmul.f32 %v1658, %v2508
      %v2510 = vsub.f32 %v2358, %v2494
      %v2511 = vsub.f32 %v2371, %v2494
      %v2512 = vsub.f32 %v2384, %v2494
      %v2513 = vsub.f32 %v2397, %v2494
      %v2514 = vsub.f32 %v2410, %v2494
      %v2515 = vsub.f32 %v2423, %v2494
      %v2516 = vsub.f32 %v2436, %v2494
      %v2517 = vsub.f32 %v2449, %v2494
      %2519 = vset.pattern.permute.xlu0 0
      %2520 = vperm.xlu0 %2519, %v2509
      %v2521 = vpop.permute.xlu0 %2520
      %v2523 = vmul.f32 %v2510, %v2521
      %v2524 = vmul.f32 %v2511, %v2521
      %v2525 = vmul.f32 %v2512, %v2521
      %v2526 = vmul.f32 %v2513, %v2521
      %v2527 = vmul.f32 %v2514, %v2521
      %v2528 = vmul.f32 %v2515, %v2521
      %v2529 = vmul.f32 %v2516, %v2521
      %v2530 = vmul.f32 %v2517, %v2521
      %2532 = vset.pattern.permute.xlu0 0
      %2533 = vperm.xlu0 %2532, %v1659
      %v2534 = vpop.permute.xlu0 %2533
      %v2536 = vadd.f32 %v2523, %v2534
      %v2537 = vadd.f32 %v2524, %v2534
      %v2538 = vadd.f32 %v2525, %v2534
      %v2539 = vadd.f32 %v2526, %v2534
      %v2540 = vadd.f32 %v2527, %v2534
      %v2541 = vadd.f32 %v2528, %v2534
      %v2542 = vadd.f32 %v2529, %v2534
      %v2543 = vadd.f32 %v2530, %v2534
      %v2544 = vmin.f32 %v2536, 0.0
      %v2545 = vmin.f32 %v2537, 0.0
      %v2546 = vmin.f32 %v2538, 0.0
      %v2547 = vmin.f32 %v2539, 0.0
      %v2548 = vmin.f32 %v2540, 0.0
      %v2549 = vmin.f32 %v2541, 0.0
      %v2550 = vmin.f32 %v2542, 0.0
      %v2551 = vmin.f32 %v2543, 0.0
      %v2552 = vmul.f32 %v2544, 1.442695
      %v2553 = vpow.pop %v2552
      %v2554 = vmul.f32 %v2545, 1.442695
      %v2555 = vpow.pop %v2554
      %v2556 = vmul.f32 %v2546, 1.442695
      %v2557 = vpow.pop %v2556
      %v2558 = vmul.f32 %v2547, 1.442695
      %v2559 = vpow.pop %v2558
      %v2560 = vmul.f32 %v2548, 1.442695
      %v2561 = vpow.pop %v2560
      %v2562 = vmul.f32 %v2549, 1.442695
      %v2563 = vpow.pop %v2562
      %v2564 = vmul.f32 %v2550, 1.442695
      %v2565 = vpow.pop %v2564
      %v2566 = vmul.f32 %v2551, 1.442695
      %v2567 = vpow.pop %v2566
      %v2568 = vsub.f32 %v2553, 1.0
      %v2569 = vsub.f32 %v2555, 1.0
      %v2570 = vsub.f32 %v2557, 1.0
      %v2571 = vsub.f32 %v2559, 1.0
      %v2572 = vsub.f32 %v2561, 1.0
      %v2573 = vsub.f32 %v2563, 1.0
      %v2574 = vsub.f32 %v2565, 1.0
      %v2575 = vsub.f32 %v2567, 1.0
      %v2576 = vmul.f32 %v2568, 1.6732632
      %v2577 = vmul.f32 %v2569, 1.6732632
      %v2578 = vmul.f32 %v2570, 1.6732632
      %v2579 = vmul.f32 %v2571, 1.6732632
      %v2580 = vmul.f32 %v2572, 1.6732632
      %v2581 = vmul.f32 %v2573, 1.6732632
      %v2582 = vmul.f32 %v2574, 1.6732632
      %v2583 = vmul.f32 %v2575, 1.6732632
      %vm2584 = vcmp.gt.f32.partialorder %v2536, 0.0
      %vm2585 = vcmp.gt.f32.partialorder %v2537, 0.0
      %vm2586 = vcmp.gt.f32.partialorder %v2538, 0.0
      %vm2587 = vcmp.gt.f32.partialorder %v2539, 0.0
      %vm2588 = vcmp.gt.f32.partialorder %v2540, 0.0
      %vm2589 = vcmp.gt.f32.partialorder %v2541, 0.0
      %vm2590 = vcmp.gt.f32.partialorder %v2542, 0.0
      %vm2591 = vcmp.gt.f32.partialorder %v2543, 0.0
      %v2592 = vsel %vm2584, %v2536, %v2576
      %v2593 = vsel %vm2585, %v2537, %v2577
      %v2594 = vsel %vm2586, %v2538, %v2578
      %v2595 = vsel %vm2587, %v2539, %v2579
      %v2596 = vsel %vm2588, %v2540, %v2580
      %v2597 = vsel %vm2589, %v2541, %v2581
      %v2598 = vsel %vm2590, %v2542, %v2582
      %v2599 = vsel %vm2591, %v2543, %v2583
      %v2600 = vmul.f32 %v2592, 1.050701
      %v2601 = vmul.f32 %v2593, 1.050701
      %v2602 = vmul.f32 %v2594, 1.050701
      %v2603 = vmul.f32 %v2595, 1.050701
      %v2604 = vmul.f32 %v2596, 1.050701
      %v2605 = vmul.f32 %v2597, 1.050701
      %v2606 = vmul.f32 %v2598, 1.050701
      %v2607 = vmul.f32 %v2599, 1.050701
      %v2616 = vrot.slane %v2601, 4
      %v2617 = vrot.slane %v2603, 4
      %v2618 = vrot.slane %v2605, 4
      %v2619 = vrot.slane %v2607, 4
      %v2620 = vsel %vm1293, %v2600, %v2616
      %v2621 = vsel %vm1293, %v2602, %v2617
      %v2622 = vsel %vm1293, %v2604, %v2618
      %v2623 = vsel %vm1293, %v2606, %v2619
      %2628 = vst [vmem:[%s278] sm:$0xff] %v2620
      %2629 = vst [vmem:[%s278 + $0x8] sm:$0xff] %v2621
      %2630 = vst [vmem:[%s278 + $0x10] sm:$0xff] %v2622
      %2631 = vst [vmem:[%s278 + $0x18] sm:$0xff] %v2623
      %p2632 = scmp.lt.s32.totalorder %s18, 1
      %s2633 = scalar_select %p2632, %s18, 1
      %s2634 = smul.addr %s2633, 8
      %s2635 = smul.addr %s2634, 4
      %s2636 = scalar_lea.vmem %s7, %s2635
      // Predicated region
      $region49: #{encoder_forward.5} parent=47 // pred_check
        %p2637 = pneg %p188
      $region50: #{encoder_forward.5} parent=47 // pred_check_branch
        %2639 = sbr.rel (%p2637) target = $region52
      $region51: #{encoder_forward.5} parent=47 // pred_region
        _
      $region52: #{encoder_forward.5} parent=47 // pred_fallthru
        _
    $region48: #{encoder_forward.5} parent=5 // pred_fallthru
      _
    %p2640 = scmp.le.s32.totalorder 2, %s13
    // Predicated region
    $region53: #{encoder_forward.5} parent=5 // pred_check
      %p2641 = pneg %p2640
    $region54: #{encoder_forward.5} parent=5 // pred_check_branch
      %2643 = sbr.rel (%p2641) target = $region56
    $region55: #{encoder_forward.5} parent=5 // pred_region
      %s2644 = ssub.s32 %s13, 2
      // Predicated region
      $region57: #{encoder_forward.5} parent=55 // pred_check
        %p2645 = pneg %p194
      $region58: #{encoder_forward.5} parent=55 // pred_check_branch
        %2647 = sbr.rel (%p2645) target = $region60
      $region59: #{encoder_forward.5} parent=55 // pred_region
        %p2648 = scmp.lt.s32.totalorder %s19, 1
        %s2649 = scalar_select %p2648, %s19, 1
        %s2650 = smul.addr %s2649, 8
        %s2651 = smul.addr %s2650, 4
        %s2652 = scalar_lea.vmem %s7, %s2651
      $region60: #{encoder_forward.5} parent=55 // pred_fallthru
        _
    $region56: #{encoder_forward.5} parent=5 // pred_fallthru
      _
  $region6: #{encoder_forward.5} parent=0 // loop_footer
    %s17 = sadd.s32 1, %s13
  $region7: #{encoder_forward.5} parent=0 // loop_footer_branch
    %12 = sbr.rel target = $region3
  $region8: #{encoder_forward.5} parent=0 // loop_exit
    _

// kernel: encoder_forward.7
$region0: #{encoder_forward.7}
  #allocation0 [shape = 'u32[]', space=smem, size = 0x4, offset = 0x4, fixed_abs, tag = 'smem constant byte address 0x4 - core index']
  #allocation1 [shape = 'u32[72,128]{1,0:T(1,128)}', space=vmem, size = 0x9000, scoped, tag = 'internal scratch']
  %s0 = inlined_call_operand.vmem [shape: f32[2,8,64], index: 0, kind: input, shape index: {}]
  %s1 = inlined_call_operand.vmem [shape: bf16[16,72], index: 1, kind: input, shape index: {}]
  %s2 = inlined_call_operand.vmem [shape: f32[16,1], index: 2, kind: input, shape index: {}]
  %s3 = inlined_call_operand.vmem [shape: f32[16,1], index: 3, kind: input, shape index: {}]
  %s4 = inlined_call_operand.vmem [shape: bf16[16,144], index: 4, kind: input, shape index: {}]
  %s5 = inlined_call_operand.vmem [shape: f32[16,1], index: 5, kind: input, shape index: {}]
  %s6 = inlined_call_operand.vmem [shape: f32[16,1], index: 6, kind: input, shape index: {}]
  %s7 = inlined_call_operand.vmem [shape: f32[2,16,64], index: 7, kind: output, shape index: {}]
  %s8 = sld [smem:[#allocation0]]
  $region61: #{encoder_forward.7} parent=0
    _
  %s10 = ssub.s32 1, %s8
  %s11 = scalar_select 0, %s10, %s8
  loop: start=0, step=1, limit=4
  $region2: #{encoder_forward.7} parent=0 // loop_pre_header
    _
  $region3: #{encoder_forward.7} parent=0 // loop_header
    %s13 = sphi 0, %s17
    %p14 = scmp.ge.s32.totalorder %s13, 4
    %s23 = sphi 0, %s25
    %s26 = sphi 0, %s23
    %s27 = sphi 0, %s26
    %s43 = sphi 0, %s27
    %s47 = sphi 0, %s47
    %s49 = sphi 0, %s47
    %s50 = sphi 0, %s49
    %s64 = sphi 0, %s50
    %s68 = sphi 0, %s68
    %s70 = sphi 0, %s68
    %s71 = sphi 0, %s70
    %s85 = sphi 0, %s71
    %s89 = sphi 0, %s89
    %s91 = sphi 0, %s89
    %s92 = sphi 0, %s91
    %s106 = sphi 0, %s92
    %s110 = sphi 0, %s110
    %s112 = sphi 0, %s110
    %s113 = sphi 0, %s112
    %s127 = sphi 0, %s113
    %s131 = sphi 0, %s131
    %s133 = sphi 0, %s131
    %s134 = sphi 0, %s133
    %s148 = sphi 0, %s134
    %s152 = sphi 0, %s152
    %s154 = sphi 0, %s152
    %s155 = sphi 0, %s154
    %s169 = sphi 0, %s155
    %s175 = sphi 0, %s177
    %s178 = sphi 0, %s175
    %s179 = sphi 0, %s178
    %s195 = sphi 0, %s179
  $region4: #{encoder_forward.7} parent=0 // loop_header_branch
    %16 = sbr.rel (%p14) target = $region8
  $region5: #{encoder_forward.7} parent=0 // loop_body
    %s18 = ssub.s32 %s13, 1
    %s19 = ssub.s32 %s13, 2
    %s20 = sadd.s32 %s13, 1
    %s21 = ssub.s32 %s13, %s20
    %p22 = scmp.eq.s32.totalorder %s21, 0
    %s24 = sadd.s32 %s23, 1
    %s25 = scalar_select %p22, %s23, %s24
    %p28 = pneg %p22
    %p29 = scmp.eq.s32.totalorder %s13, 1
    %p30 = por %p28, %p29
    %p31 = scmp.ne.s32.totalorder %s23, %s26
    %p32 = scmp.eq.s32.totalorder %s13, 0
    %p33 = por %p31, %p32
    %p34 = scmp.ne.s32.totalorder %s23, %s26
    %p35 = scmp.eq.s32.totalorder %s18, 1
    %p36 = por %p34, %p35
    %p37 = scmp.ne.s32.totalorder %s26, %s27
    %p38 = scmp.eq.s32.totalorder %s18, 0
    %p39 = por %p37, %p38
    %p40 = scmp.ne.s32.totalorder %s26, %s27
    %p41 = scmp.eq.s32.totalorder %s19, 1
    %p42 = por %p40, %p41
    %p44 = scmp.ne.s32.totalorder %s27, %s43
    %p45 = scmp.eq.s32.totalorder %s19, 0
    %p46 = por %p44, %p45
    %s48 = sadd.s32 %s47, 1
    %p51 = scmp.eq.s32.totalorder %s13, 1
    %p52 = scmp.ne.s32.totalorder %s47, %s49
    %p53 = scmp.eq.s32.totalorder %s13, 0
    %p54 = por %p52, %p53
    %p55 = scmp.ne.s32.totalorder %s47, %s49
    %p56 = scmp.eq.s32.totalorder %s18, 1
    %p57 = por %p55, %p56
    %p58 = scmp.ne.s32.totalorder %s49, %s50
    %p59 = scmp.eq.s32.totalorder %s18, 0
    %p60 = por %p58, %p59
    %p61 = scmp.ne.s32.totalorder %s49, %s50
    %p62 = scmp.eq.s32.totalorder %s19, 1
    %p63 = por %p61, %p62
    %p65 = scmp.ne.s32.totalorder %s50, %s64
    %p66 = scmp.eq.s32.totalorder %s19, 0
    %p67 = por %p65, %p66
    %s69 = sadd.s32 %s68, 1
    %p72 = scmp.eq.s32.totalorder %s13, 1
    %p73 = scmp.ne.s32.totalorder %s68, %s70
    %p74 = scmp.eq.s32.totalorder %s13, 0
    %p75 = por %p73, %p74
    %p76 = scmp.ne.s32.totalorder %s68, %s70
    %p77 = scmp.eq.s32.totalorder %s18, 1
    %p78 = por %p76, %p77
    %p79 = scmp.ne.s32.totalorder %s70, %s71
    %p80 = scmp.eq.s32.totalorder %s18, 0
    %p81 = por %p79, %p80
    %p82 = scmp.ne.s32.totalorder %s70, %s71
    %p83 = scmp.eq.s32.totalorder %s19, 1
    %p84 = por %p82, %p83
    %p86 = scmp.ne.s32.totalorder %s71, %s85
    %p87 = scmp.eq.s32.totalorder %s19, 0
    %p88 = por %p86, %p87
    %s90 = sadd.s32 %s89, 1
    %p93 = scmp.eq.s32.totalorder %s13, 1
    %p94 = scmp.ne.s32.totalorder %s89, %s91
    %p95 = scmp.eq.s32.totalorder %s13, 0
    %p96 = por %p94, %p95
    %p97 = scmp.ne.s32.totalorder %s89, %s91
    %p98 = scmp.eq.s32.totalorder %s18, 1
    %p99 = por %p97, %p98
    %p100 = scmp.ne.s32.totalorder %s91, %s92
    %p101 = scmp.eq.s32.totalorder %s18, 0
    %p102 = por %p100, %p101
    %p103 = scmp.ne.s32.totalorder %s91, %s92
    %p104 = scmp.eq.s32.totalorder %s19, 1
    %p105 = por %p103, %p104
    %p107 = scmp.ne.s32.totalorder %s92, %s106
    %p108 = scmp.eq.s32.totalorder %s19, 0
    %p109 = por %p107, %p108
    %s111 = sadd.s32 %s110, 1
    %p114 = scmp.eq.s32.totalorder %s13, 1
    %p115 = scmp.ne.s32.totalorder %s110, %s112
    %p116 = scmp.eq.s32.totalorder %s13, 0
    %p117 = por %p115, %p116
    %p118 = scmp.ne.s32.totalorder %s110, %s112
    %p119 = scmp.eq.s32.totalorder %s18, 1
    %p120 = por %p118, %p119
    %p121 = scmp.ne.s32.totalorder %s112, %s113
    %p122 = scmp.eq.s32.totalorder %s18, 0
    %p123 = por %p121, %p122
    %p124 = scmp.ne.s32.totalorder %s112, %s113
    %p125 = scmp.eq.s32.totalorder %s19, 1
    %p126 = por %p124, %p125
    %p128 = scmp.ne.s32.totalorder %s113, %s127
    %p129 = scmp.eq.s32.totalorder %s19, 0
    %p130 = por %p128, %p129
    %s132 = sadd.s32 %s131, 1
    %p135 = scmp.eq.s32.totalorder %s13, 1
    %p136 = scmp.ne.s32.totalorder %s131, %s133
    %p137 = scmp.eq.s32.totalorder %s13, 0
    %p138 = por %p136, %p137
    %p139 = scmp.ne.s32.totalorder %s131, %s133
    %p140 = scmp.eq.s32.totalorder %s18, 1
    %p141 = por %p139, %p140
    %p142 = scmp.ne.s32.totalorder %s133, %s134
    %p143 = scmp.eq.s32.totalorder %s18, 0
    %p144 = por %p142, %p143
    %p145 = scmp.ne.s32.totalorder %s133, %s134
    %p146 = scmp.eq.s32.totalorder %s19, 1
    %p147 = por %p145, %p146
    %p149 = scmp.ne.s32.totalorder %s134, %s148
    %p150 = scmp.eq.s32.totalorder %s19, 0
    %p151 = por %p149, %p150
    %s153 = sadd.s32 %s152, 1
    %p156 = scmp.eq.s32.totalorder %s13, 1
    %p157 = scmp.ne.s32.totalorder %s152, %s154
    %p158 = scmp.eq.s32.totalorder %s13, 0
    %p159 = por %p157, %p158
    %p160 = scmp.ne.s32.totalorder %s152, %s154
    %p161 = scmp.eq.s32.totalorder %s18, 1
    %p162 = por %p160, %p161
    %p163 = scmp.ne.s32.totalorder %s154, %s155
    %p164 = scmp.eq.s32.totalorder %s18, 0
    %p165 = por %p163, %p164
    %p166 = scmp.ne.s32.totalorder %s154, %s155
    %p167 = scmp.eq.s32.totalorder %s19, 1
    %p168 = por %p166, %p167
    %p170 = scmp.ne.s32.totalorder %s155, %s169
    %p171 = scmp.eq.s32.totalorder %s19, 0
    %p172 = por %p170, %p171
    %s173 = ssub.s32 %s13, %s20
    %p174 = scmp.eq.s32.totalorder %s173, 0
    %s176 = sadd.s32 %s175, 1
    %s177 = scalar_select %p174, %s175, %s176
    %p180 = pneg %p174
    %p181 = scmp.eq.s32.totalorder %s13, 1
    %p182 = por %p180, %p181
    %p183 = scmp.ne.s32.totalorder %s175, %s178
    %p184 = scmp.eq.s32.totalorder %s13, 0
    %p185 = por %p183, %p184
    %p186 = scmp.ne.s32.totalorder %s175, %s178
    %p187 = scmp.eq.s32.totalorder %s18, 1
    %p188 = por %p186, %p187
    %p189 = scmp.ne.s32.totalorder %s178, %s179
    %p190 = scmp.eq.s32.totalorder %s18, 0
    %p191 = por %p189, %p190
    %p192 = scmp.ne.s32.totalorder %s178, %s179
    %p193 = scmp.eq.s32.totalorder %s19, 1
    %p194 = por %p192, %p193
    %p196 = scmp.ne.s32.totalorder %s179, %s195
    %p197 = scmp.eq.s32.totalorder %s19, 0
    %p198 = por %p196, %p197
    %p199 = scmp.le.s32.totalorder 1, %s13
    %p200 = scmp.lt.s32.totalorder %s13, 3
    %p201 = pnand %p199, %p200
    %p202 = pneg %p201
    // Predicated region
    $region9: #{encoder_forward.7} parent=5 // pred_check
      _
    $region10: #{encoder_forward.7} parent=5 // pred_check_branch
      %204 = sbr.rel (%p201) target = $region12
    $region11: #{encoder_forward.7} parent=5 // pred_region
      %s205 = ssub.s32 %s13, 1
      // Predicated region
      $region13: #{encoder_forward.7} parent=11 // pred_check
        %p206 = pneg %p60
      $region14: #{encoder_forward.7} parent=11 // pred_check_branch
        %208 = sbr.rel (%p206) target = $region16
      $region15: #{encoder_forward.7} parent=11 // pred_region
        _
      $region16: #{encoder_forward.7} parent=11 // pred_fallthru
        _
      // Predicated region
      $region17: #{encoder_forward.7} parent=11 // pred_check
        %p209 = pneg %p81
      $region18: #{encoder_forward.7} parent=11 // pred_check_branch
        %211 = sbr.rel (%p209) target = $region20
      $region19: #{encoder_forward.7} parent=11 // pred_region
        _
      $region20: #{encoder_forward.7} parent=11 // pred_fallthru
        _
      // Predicated region
      $region21: #{encoder_forward.7} parent=11 // pred_check
        %p212 = pneg %p102
      $region22: #{encoder_forward.7} parent=11 // pred_check_branch
        %214 = sbr.rel (%p212) target = $region24
      $region23: #{encoder_forward.7} parent=11 // pred_region
        _
      $region24: #{encoder_forward.7} parent=11 // pred_fallthru
        _
      // Predicated region
      $region25: #{encoder_forward.7} parent=11 // pred_check
        %p215 = pneg %p123
      $region26: #{encoder_forward.7} parent=11 // pred_check_branch
        %217 = sbr.rel (%p215) target = $region28
      $region27: #{encoder_forward.7} parent=11 // pred_region
        _
      $region28: #{encoder_forward.7} parent=11 // pred_fallthru
        _
      // Predicated region
      $region29: #{encoder_forward.7} parent=11 // pred_check
        %p218 = pneg %p144
      $region30: #{encoder_forward.7} parent=11 // pred_check_branch
        %220 = sbr.rel (%p218) target = $region32
      $region31: #{encoder_forward.7} parent=11 // pred_region
        _
      $region32: #{encoder_forward.7} parent=11 // pred_fallthru
        _
      // Predicated region
      $region33: #{encoder_forward.7} parent=11 // pred_check
        %p221 = pneg %p165
      $region34: #{encoder_forward.7} parent=11 // pred_check_branch
        %223 = sbr.rel (%p221) target = $region36
      $region35: #{encoder_forward.7} parent=11 // pred_region
        _
      $region36: #{encoder_forward.7} parent=11 // pred_fallthru
        _
    $region12: #{encoder_forward.7} parent=5 // pred_fallthru
      _
    %p224 = scmp.lt.s32.totalorder %s13, 2
    // Predicated region
    $region37: #{encoder_forward.7} parent=5 // pred_check
      %p225 = pneg %p224
    $region38: #{encoder_forward.7} parent=5 // pred_check_branch
      %227 = sbr.rel (%p225) target = $region40
    $region39: #{encoder_forward.7} parent=5 // pred_region
      // Predicated region
      $region41: #{encoder_forward.7} parent=39 // pred_check
        %p228 = pneg %p33
      $region42: #{encoder_forward.7} parent=39 // pred_check_branch
        %230 = sbr.rel (%p228) target = $region44
      $region43: #{encoder_forward.7} parent=39 // pred_region
        %p231 = scmp.lt.s32.totalorder %s13, 1
        %s232 = scalar_select %p231, %s13, 1
        %s233 = smul.addr %s232, 8
        %s234 = scalar_lea.vmem %s0, %s233
      $region44: #{encoder_forward.7} parent=39 // pred_fallthru
        _
    $region40: #{encoder_forward.7} parent=5 // pred_fallthru
      _
    %p235 = scmp.le.s32.totalorder 1, %s13
    %p236 = scmp.lt.s32.totalorder %s13, 3
    %p237 = pnand %p235, %p236
    %p238 = pneg %p237
    // Predicated region
    $region45: #{encoder_forward.7} parent=5 // pred_check
      _
    $region46: #{encoder_forward.7} parent=5 // pred_check_branch
      %240 = sbr.rel (%p237) target = $region48
    $region47: #{encoder_forward.7} parent=5 // pred_region
      %s241 = ssub.s32 %s13, 1
      %p242 = scmp.lt.s32.totalorder %s18, 1
      %s243 = scalar_select %p242, %s18, 1
      %s244 = smul.addr %s243, 8
      %s245 = scalar_lea.vmem %s0, %s244
      %p246 = pneg %p39
      %p247 = pneg %p36
      %p248 = pneg %p60
      %p249 = pneg %p57
      %p250 = pneg %p81
      %p251 = pneg %p78
      %p252 = pneg %p102
      %p253 = pneg %p99
      %p254 = pneg %p123
      %p255 = pneg %p120
      %p256 = pneg %p144
      %p257 = pneg %p141
      %p258 = pneg %p165
      %p259 = pneg %p162
      %p260 = pneg %p191
      %p261 = pneg %p188
      %p262 = scmp.lt.s32.totalorder %s18, 1
      %s263 = scalar_select %p262, %s18, 1
      %s264 = smul.addr %s263, 2
      %s265 = smul.addr %s264, 8
      %s266 = scalar_lea.vmem %s7, %s265
      %p267 = scmp.lt.s32.totalorder %s18, 1
      %s268 = scalar_select %p267, %s18, 1
      %s269 = smul.addr %s268, 8
      %s270 = scalar_lea.vmem %s0, %s269
      %p271 = scmp.lt.s32.totalorder %s18, 1
      %s272 = scalar_select %p271, %s18, 1
      %s273 = smul.addr %s272, 2
      %s274 = smul.addr %s273, 8
      %s275 = scalar_lea.vmem %s7, %s274
      %v277 = vld [vmem:[%s270] sm:$0xff]
      %v278 = vlaneseq
      %v279 = vand.u32 %v278, 127
      %vm280 = vcmp.lt.s32.totalorder %v279, 0
      %v281 = vsub.s32 0, %v279
      %v282 = vsel %vm280, %v281, %v279
      %v283 = vshrl.u32 %v282, 3
      %v284 = vand.u32 %v282, 7
      %v285 = vsub.s32 0, %v284
      %v286 = vsel %vm280, %v285, %v284
      %vm287 = vcmp.ne.s32.totalorder %v286, 0
      %vm288 = vcmp.lt.s32.totalorder %v286, 0
      %vm289 = vmand %vm288, %vm287
      %v290 = vadd.s32 %v286, 8
      %v291 = vsel %vm289, %v290, %v286
      %vm292 = vcmp.ge.s32.totalorder %v291, 1
      %v293 = vsel %vm292, 1, 0
      %v294 = vcvt.s32.f32 %v293
      %v295 = vpack.c.bf16 %v294, %v294
      %vm296 = vcmp.le.s32.totalorder %v291, 6
      %v297 = vsel %vm296, 1, 0
      %v298 = vcvt.s32.f32 %v297
      %v299 = vpack.c.bf16 %v298, %v298
      %v300 = vld [vmem:[%s1] sm:$0xf]
      %v301 = vld [vmem:[%s1 + $0x4] sm:$0xf]
      %v302 = vld [vmem:[%s2] sm:$0xff]
      %v303 = vld [vmem:[%s2 + $0x8] sm:$0xff]
      %v304 = vld [vmem:[%s3] sm:$0xff]
      %v305 = vld [vmem:[%s3 + $0x8] sm:$0xff]
      %v306 = vpack.c.bf16 %v277, %v277
      %v308 = vunpack.c.l.b16 %v306
      %v309 = vpack.c.b16 %v308, %v308
      %310 = vrot.lane.b32.xlu0 %v309, 9
      %v311 = vpop.permute.xlu0 %310
      %vm312 = vcmask 72704
      %v315 = vsel %vm312, 0, %v311
      %vm316 = vcmask 596992
      %v317 = vsel %vm316, %v315, 0
      %v319 = vunpack.c.l.bf16 %v317
      %v320 = vunpack.c.l.bf16 %v295
      %v321 = vmul.f32 %v319, %v320
      %v322 = vpack.c.bf16 %v321, %v321
      %v323 = vunpack.c.l.bf16 %v299
      %325 = vrot.lane.b32.xlu0 %v323, 2
      %v326 = vpop.permute.xlu0 %325
      %v328 = vmul.f32 %v319, %v326
      %v329 = vpack.c.bf16 %v328, %v328
      %331 = vrot.lane.b32.xlu0 %v320, 8
      %v332 = vpop.permute.xlu0 %331
      %v334 = vmul.f32 %v319, %v332
      %v335 = vpack.c.bf16 %v334, %v334
      %336 = vrot.lane.b32.xlu0 %v323, 10
      %v337 = vpop.permute.xlu0 %336
      %v339 = vmul.f32 %v319, %v337
      %v340 = vpack.c.bf16 %v339, %v339
      %341 = vrot.lane.b32.xlu0 %v320, 16
      %v342 = vpop.permute.xlu0 %341
      %v344 = vmul.f32 %v319, %v342
      %v345 = vpack.c.bf16 %v344, %v344
      %346 = vrot.lane.b32.xlu0 %v323, 18
      %v347 = vpop.permute.xlu0 %346
      %v349 = vmul.f32 %v319, %v347
      %v350 = vpack.c.bf16 %v349, %v349
      %v352 = vrot.slane %v317, 4
      %353 = vrot.lane.b32.xlu0 %v352, 127
      %v354 = vpop.permute.xlu0 %353
      %v356 = vunpack.c.l.b16 %v329
      %v357 = vpack.c.b16 %v356, %v356
      %358 = vrot.lane.b32.xlu0 %v357, 126
      %v359 = vpop.permute.xlu0 %358
      %v361 = vunpack.c.l.b16 %v335
      %v362 = vpack.c.b16 %v361, %v361
      %363 = vrot.lane.b32.xlu0 %v362, 120
      %v364 = vpop.permute.xlu0 %363
      %365 = vrot.lane.b32.xlu0 %v317, 119
      %v366 = vpop.permute.xlu0 %365
      %v368 = vunpack.c.l.b16 %v340
      %v369 = vpack.c.b16 %v368, %v368
      %370 = vrot.lane.b32.xlu0 %v369, 118
      %v371 = vpop.permute.xlu0 %370
      %v373 = vunpack.c.l.b16 %v345
      %v374 = vpack.c.b16 %v373, %v373
      %375 = vrot.lane.b32.xlu0 %v374, 112
      %v376 = vpop.permute.xlu0 %375
      %377 = vrot.lane.b32.xlu0 %v352, 111
      %v378 = vpop.permute.xlu0 %377
      %v380 = vunpack.c.l.b16 %v350
      %v381 = vpack.c.b16 %v380, %v380
      %382 = vrot.lane.b32.xlu0 %v381, 110
      %v383 = vpop.permute.xlu0 %382
      %vm384 = vcmask 1043456
      %v387 = vsel %vm384, %v322, %v354
      %v391 = vsel %vm384, %v359, %v364
      %v395 = vsel %vm384, %v366, %v371
      %v399 = vsel %vm384, %v376, %v378
      %v403 = vunpack.c.l.b16 %v300
      %v404 = vunpack.c.l.b16 %v301
      %v405 = vpack.c.b16 %v404, %v403
      %vm406 = vcmask 588800
      %v408 = vsel %vm406, %v405, 0
      %v411 = vsel %vm384, %v383, 0
      %413 = vmatpush.bf16.msra.mxu0 0
      %414 = vmatpush.bf16.msra.mxu0 0
      %415 = vmatpush.bf16.msra.mxu0 0
      %416 = vmatpush.bf16.msra.mxu0 %v411
      %417 = vmatpush.bf16.msra.mxu0 %v399
      %418 = vmatpush.bf16.msra.mxu0 %v395
      %419 = vmatpush.bf16.msra.mxu0 %v391
      %420 = vmatpush.bf16.msra.mxu0 %v387
      %421 = vmatmul.bf16.gmra.mxu0 %v408
      %v422 = vpop.f32.mrf.mxu0
      %v423 = vadd.f32 0.0, %v422
      %v424 = vpop.f32.mrf.mxu0
      %v425 = vadd.f32 0.0, %v424
      %426 = vdwg.mxu0
      %vm427 = vcmask 523264
      %v428 = vsel %vm427, %v423, 0.0
      %429 = vadd.xlane.f32.xlu0 %v428
      %v430 = vpop.xlane.xlu0 %429
      %v431 = vsel %vm427, %v425, 0.0
      %432 = vadd.xlane.f32.xlu0 %v431
      %v433 = vpop.xlane.xlu0 %432
      %v434 = vmul.f32 %v423, %v423
      %v435 = vmul.f32 %v425, %v425
      %v436 = vsel %vm427, %v434, 0.0
      %437 = vadd.xlane.f32.xlu0 %v436
      %v438 = vpop.xlane.xlu0 %437
      %v439 = vsel %vm427, %v435, 0.0
      %440 = vadd.xlane.f32.xlu0 %v439
      %v441 = vpop.xlane.xlu0 %440
      %v442 = vmul.f32 %v430, 0.015625
      %v443 = vmul.f32 %v433, 0.015625
      %v444 = vmul.f32 %v438, 0.015625
      %v445 = vmul.f32 %v441, 0.015625
      %v446 = vmul.f32 %v442, %v442
      %v447 = vmul.f32 %v443, %v443
      %v448 = vsub.f32 %v444, %v446
      %v449 = vsub.f32 %v445, %v447
      %v450 = vadd.f32 %v448, 1e-05
      %v451 = vadd.f32 %v449, 1e-05
      %v452 = vrsqrt.pop %v450
      %v453 = vmul.f32 %v452, %v450
      %v454 = vmul.f32 %v453, %v452
      %v455 = vmul.f32 0.5, %v454
      %v456 = vsub.f32 1.5, %v455
      %v457 = vmul.f32 %v452, %v456
      %vm458 = vweird.f32 %v450
      %vm459 = vweird.f32 %v452
      %vm460 = vmor %vm458, %vm459
      %v461 = vsel %vm460, %v452, %v457
      %v462 = vrsqrt.pop %v451
      %v463 = vmul.f32 %v462, %v451
      %v464 = vmul.f32 %v463, %v462
      %v465 = vmul.f32 0.5, %v464
      %v466 = vsub.f32 1.5, %v465
      %v467 = vmul.f32 %v462, %v466
      %vm468 = vweird.f32 %v451
      %vm469 = vweird.f32 %v462
      %vm470 = vmor %vm468, %vm469
      %v471 = vsel %vm470, %v462, %v467
      %v472 = vmul.f32 %v302, %v461
      %v473 = vmul.f32 %v303, %v471
      %v474 = vsub.f32 %v423, %v442
      %v475 = vsub.f32 %v425, %v443
      %477 = vset.pattern.permute.xlu0 0
      %478 = vperm.xlu0 %477, %v472
      %v479 = vpop.permute.xlu0 %478
      %482 = vset.pattern.permute.xlu0 0
      %483 = vperm.xlu0 %482, %v473
      %v484 = vpop.permute.xlu0 %483
      %v486 = vmul.f32 %v474, %v479
      %v487 = vmul.f32 %v475, %v484
      %489 = vset.pattern.permute.xlu0 0
      %490 = vperm.xlu0 %489, %v304
      %v491 = vpop.permute.xlu0 %490
      %494 = vset.pattern.permute.xlu0 0
      %495 = vperm.xlu0 %494, %v305
      %v496 = vpop.permute.xlu0 %495
      %v498 = vadd.f32 %v486, %v491
      %v499 = vadd.f32 %v487, %v496
      %v500 = vmin.f32 %v498, 0.0
      %v501 = vmin.f32 %v499, 0.0
      %v502 = vmul.f32 %v500, 1.442695
      %v503 = vpow.pop %v502
      %v504 = vmul.f32 %v501, 1.442695
      %v505 = vpow.pop %v504
      %v506 = vsub.f32 %v503, 1.0
      %v507 = vsub.f32 %v505, 1.0
      %v508 = vmul.f32 %v506, 1.6732632
      %v509 = vmul.f32 %v507, 1.6732632
      %vm510 = vcmp.gt.f32.partialorder %v498, 0.0
      %vm511 = vcmp.gt.f32.partialorder %v499, 0.0
      %v512 = vsel %vm510, %v498, %v508
      %v513 = vsel %vm511, %v499, %v509
      %v514 = vmul.f32 %v512, 1.050701
      %v515 = vmul.f32 %v513, 1.050701
      %v516 = vld [vmem:[%s4] sm:$0xff]
      %v517 = vld [vmem:[%s4 + $0x8] sm:$0xff]
      %v518 = vld [vmem:[%s5] sm:$0xff]
      %v519 = vld [vmem:[%s5 + $0x8] sm:$0xff]
      %v520 = vld [vmem:[%s6] sm:$0xff]
      %v521 = vld [vmem:[%s6 + $0x8] sm:$0xff]
      %v522 = vpack.c.bf16 %v514, %v514
      %v523 = vpack.c.bf16 %v515, %v515
      %v526 = vunpack.c.l.b16 %v522
      %v527 = vunpack.c.l.b16 %v523
      %v528 = vpack.c.b16 %v527, %v526
      %529 = vrot.lane.b32.xlu0 %v528, 9
      %v530 = vpop.permute.xlu0 %529
      %v532 = vsel %vm312, 0, %v530
      %v533 = vsel %vm316, %v532, 0
      %v535 = vunpack.c.l.bf16 %v533
      %v536 = vunpack.c.h.bf16 %v533
      %v537 = vmul.f32 %v535, %v320
      %v538 = vmul.f32 %v536, %v320
      %v539 = vpack.c.bf16 %v537, %v537
      %v540 = vpack.c.bf16 %v538, %v538
      %v541 = vmul.f32 %v535, %v326
      %v542 = vmul.f32 %v536, %v326
      %v543 = vpack.c.bf16 %v541, %v541
      %v544 = vpack.c.bf16 %v542, %v542
      %v545 = vmul.f32 %v535, %v332
      %v546 = vmul.f32 %v536, %v332
      %v547 = vpack.c.bf16 %v545, %v545
      %v548 = vpack.c.bf16 %v546, %v546
      %v549 = vmul.f32 %v535, %v337
      %v550 = vmul.f32 %v536, %v337
      %v551 = vpack.c.bf16 %v549, %v549
      %v552 = vpack.c.bf16 %v550, %v550
      %v553 = vmul.f32 %v535, %v342
      %v554 = vmul.f32 %v536, %v342
      %v555 = vpack.c.bf16 %v553, %v553
      %v556 = vpack.c.bf16 %v554, %v554
      %v557 = vmul.f32 %v535, %v347
      %v558 = vmul.f32 %v536, %v347
      %v559 = vpack.c.bf16 %v557, %v557
      %v560 = vpack.c.bf16 %v558, %v558
      %v563 = vunpack.c.l.b16 %v539
      %v564 = vunpack.c.l.b16 %v540
      %v565 = vpack.c.b16 %v564, %v563
      %568 = vrot.lane.b32.xlu0 %v533, 127
      %v569 = vpop.permute.xlu0 %568
      %v573 = vunpack.c.l.b16 %v543
      %v574 = vunpack.c.l.b16 %v544
      %v575 = vpack.c.b16 %v574, %v573
      %576 = vrot.lane.b32.xlu0 %v575, 126
      %v577 = vpop.permute.xlu0 %576
      %v581 = vunpack.c.l.b16 %v547
      %v582 = vunpack.c.l.b16 %v548
      %v583 = vpack.c.b16 %v582, %v581
      %584 = vrot.lane.b32.xlu0 %v583, 120
      %v585 = vpop.permute.xlu0 %584
      %587 = vrot.lane.b32.xlu0 %v533, 119
      %v588 = vpop.permute.xlu0 %587
      %v592 = vunpack.c.l.b16 %v551
      %v593 = vunpack.c.l.b16 %v552
      %v594 = vpack.c.b16 %v593, %v592
      %595 = vrot.lane.b32.xlu0 %v594, 118
      %v596 = vpop.permute.xlu0 %595
      %v600 = vunpack.c.l.b16 %v555
      %v601 = vunpack.c.l.b16 %v556
      %v602 = vpack.c.b16 %v601, %v600
      %603 = vrot.lane.b32.xlu0 %v602, 112
      %v604 = vpop.permute.xlu0 %603
      %606 = vrot.lane.b32.xlu0 %v533, 111
      %v607 = vpop.permute.xlu0 %606
      %v611 = vunpack.c.l.b16 %v559
      %v612 = vunpack.c.l.b16 %v560
      %v613 = vpack.c.b16 %v612, %v611
      %614 = vrot.lane.b32.xlu0 %v613, 110
      %v615 = vpop.permute.xlu0 %614
      %v619 = vunpack.c.l.b16 %v516
      %v620 = vunpack.c.h.b16 %v516
      %v621 = vunpack.c.l.b16 %v517
      %v622 = vunpack.c.h.b16 %v517
      %v623 = vpack.c.b16 %v621, %v619
      %v624 = vpack.c.b16 %v622, %v620
      %vm626 = vcmask 130048
      %v628 = vsel %vm626, %v624, 0
      %630 = vmatpush.bf16.msra.mxu0 %v607
      %631 = vmatpush.bf16.msra.mxu0 %v604
      %632 = vmatpush.bf16.msra.mxu0 %v596
      %633 = vmatpush.bf16.msra.mxu0 %v588
      %634 = vmatpush.bf16.msra.mxu0 %v585
      %635 = vmatpush.bf16.msra.mxu0 %v577
      %636 = vmatpush.bf16.msra.mxu0 %v569
      %637 = vmatpush.bf16.msra.mxu0 %v565
      %638 = vmatmul.bf16.gmra.mxu0 %v623
      %v639 = vpop.f32.mrf.mxu0
      %v640 = vadd.f32 0.0, %v639
      %v641 = vpop.f32.mrf.mxu0
      %v642 = vadd.f32 0.0, %v641
      %643 = vdwg.mxu0
      %644 = vmatpush.bf16.msra.mxu0 0
      %645 = vmatpush.bf16.msra.mxu0 0
      %646 = vmatpush.bf16.msra.mxu0 0
      %647 = vmatpush.bf16.msra.mxu0 0
      %648 = vmatpush.bf16.msra.mxu0 0
      %649 = vmatpush.bf16.msra.mxu0 0
      %650 = vmatpush.bf16.msra.mxu0 0
      %651 = vmatpush.bf16.msra.mxu0 %v615
      %652 = vmatmul.bf16.gmra.mxu0 %v628
      %v653 = vpop.f32.mrf.mxu0
      %v654 = vadd.f32 %v640, %v653
      %v655 = vpop.f32.mrf.mxu0
      %v656 = vadd.f32 %v642, %v655
      %657 = vdwg.mxu0
      %v658 = vsel %vm427, %v654, 0.0
      %659 = vadd.xlane.f32.xlu0 %v658
      %v660 = vpop.xlane.xlu0 %659
      %v661 = vsel %vm427, %v656, 0.0
      %662 = vadd.xlane.f32.xlu0 %v661
      %v663 = vpop.xlane.xlu0 %662
      %v664 = vmul.f32 %v654, %v654
      %v665 = vmul.f32 %v656, %v656
      %v666 = vsel %vm427, %v664, 0.0
      %667 = vadd.xlane.f32.xlu0 %v666
      %v668 = vpop.xlane.xlu0 %667
      %v669 = vsel %vm427, %v665, 0.0
      %670 = vadd.xlane.f32.xlu0 %v669
      %v671 = vpop.xlane.xlu0 %670
      %v672 = vmul.f32 %v660, 0.015625
      %v673 = vmul.f32 %v663, 0.015625
      %v674 = vmul.f32 %v668, 0.015625
      %v675 = vmul.f32 %v671, 0.015625
      %v676 = vmul.f32 %v672, %v672
      %v677 = vmul.f32 %v673, %v673
      %v678 = vsub.f32 %v674, %v676
      %v679 = vsub.f32 %v675, %v677
      %v680 = vadd.f32 %v678, 1e-05
      %v681 = vadd.f32 %v679, 1e-05
      %v682 = vrsqrt.pop %v680
      %v683 = vmul.f32 %v682, %v680
      %v684 = vmul.f32 %v683, %v682
      %v685 = vmul.f32 0.5, %v684
      %v686 = vsub.f32 1.5, %v685
      %v687 = vmul.f32 %v682, %v686
      %vm688 = vweird.f32 %v680
      %vm689 = vweird.f32 %v682
      %vm690 = vmor %vm688, %vm689
      %v691 = vsel %vm690, %v682, %v687
      %v692 = vrsqrt.pop %v681
      %v693 = vmul.f32 %v692, %v681
      %v694 = vmul.f32 %v693, %v692
      %v695 = vmul.f32 0.5, %v694
      %v696 = vsub.f32 1.5, %v695
      %v697 = vmul.f32 %v692, %v696
      %vm698 = vweird.f32 %v681
      %vm699 = vweird.f32 %v692
      %vm700 = vmor %vm698, %vm699
      %v701 = vsel %vm700, %v692, %v697
      %v702 = vmul.f32 %v518, %v691
      %v703 = vmul.f32 %v519, %v701
      %v704 = vsub.f32 %v654, %v672
      %v705 = vsub.f32 %v656, %v673
      %707 = vset.pattern.permute.xlu0 0
      %708 = vperm.xlu0 %707, %v702
      %v709 = vpop.permute.xlu0 %708
      %712 = vset.pattern.permute.xlu0 0
      %713 = vperm.xlu0 %712, %v703
      %v714 = vpop.permute.xlu0 %713
      %v716 = vmul.f32 %v704, %v709
      %v717 = vmul.f32 %v705, %v714
      %719 = vset.pattern.permute.xlu0 0
      %720 = vperm.xlu0 %719, %v520
      %v721 = vpop.permute.xlu0 %720
      %724 = vset.pattern.permute.xlu0 0
      %725 = vperm.xlu0 %724, %v521
      %v726 = vpop.permute.xlu0 %725
      %v728 = vadd.f32 %v716, %v721
      %v729 = vadd.f32 %v717, %v726
      %v730 = vmin.f32 %v728, 0.0
      %v731 = vmin.f32 %v729, 0.0
      %v732 = vmul.f32 %v730, 1.442695
      %v733 = vpow.pop %v732
      %v734 = vmul.f32 %v731, 1.442695
      %v735 = vpow.pop %v734
      %v736 = vsub.f32 %v733, 1.0
      %v737 = vsub.f32 %v735, 1.0
      %v738 = vmul.f32 %v736, 1.6732632
      %v739 = vmul.f32 %v737, 1.6732632
      %vm740 = vcmp.gt.f32.partialorder %v728, 0.0
      %vm741 = vcmp.gt.f32.partialorder %v729, 0.0
      %v742 = vsel %vm740, %v728, %v738
      %v743 = vsel %vm741, %v729, %v739
      %v744 = vmul.f32 %v742, 1.050701
      %v745 = vmul.f32 %v743, 1.050701
      %746 = vst.msk [vmem:[%s275] sm:$0xff] %vm427, %v744
      %747 = vst.msk [vmem:[%s275 + $0x8] sm:$0xff] %vm427, %v745
      %p748 = scmp.lt.s32.totalorder %s18, 1
      %s749 = scalar_select %p748, %s18, 1
      %s750 = smul.addr %s749, 2
      %s751 = smul.addr %s750, 8
      %s752 = scalar_lea.vmem %s7, %s751
      // Predicated region
      $region49: #{encoder_forward.7} parent=47 // pred_check
        %p753 = pneg %p188
      $region50: #{encoder_forward.7} parent=47 // pred_check_branch
        %755 = sbr.rel (%p753) target = $region52
      $region51: #{encoder_forward.7} parent=47 // pred_region
        _
      $region52: #{encoder_forward.7} parent=47 // pred_fallthru
        _
    $region48: #{encoder_forward.7} parent=5 // pred_fallthru
      _
    %p756 = scmp.le.s32.totalorder 2, %s13
    // Predicated region
    $region53: #{encoder_forward.7} parent=5 // pred_check
      %p757 = pneg %p756
    $region54: #{encoder_forward.7} parent=5 // pred_check_branch
      %759 = sbr.rel (%p757) target = $region56
    $region55: #{encoder_forward.7} parent=5 // pred_region
      %s760 = ssub.s32 %s13, 2
      // Predicated region
      $region57: #{encoder_forward.7} parent=55 // pred_check
        %p761 = pneg %p194
      $region58: #{encoder_forward.7} parent=55 // pred_check_branch
        %763 = sbr.rel (%p761) target = $region60
      $region59: #{encoder_forward.7} parent=55 // pred_region
        %p764 = scmp.lt.s32.totalorder %s19, 1
        %s765 = scalar_select %p764, %s19, 1
        %s766 = smul.addr %s765, 2
        %s767 = smul.addr %s766, 8
        %s768 = scalar_lea.vmem %s7, %s767
      $region60: #{encoder_forward.7} parent=55 // pred_fallthru
        _
    $region56: #{encoder_forward.7} parent=5 // pred_fallthru
      _
  $region6: #{encoder_forward.7} parent=0 // loop_footer
    %s17 = sadd.s32 1, %s13
  $region7: #{encoder_forward.7} parent=0 // loop_footer_branch
    %12 = sbr.rel target = $region3
  $region8: #{encoder_forward.7} parent=0 // loop_exit
    _

// kernel: encoder_forward.8
$region0: #{encoder_forward.8}
  #allocation0 [shape = 'u32[]', space=smem, size = 0x4, offset = 0x4, fixed_abs, tag = 'smem constant byte address 0x4 - core index']
  #allocation1 [shape = 'u32[72,128]{1,0:T(1,128)}', space=vmem, size = 0x9000, scoped, tag = 'internal scratch']
  %s0 = inlined_call_operand.vmem [shape: f32[2,16,16], index: 0, kind: input, shape index: {}]
  %s1 = inlined_call_operand.vmem [shape: bf16[32,144], index: 1, kind: input, shape index: {}]
  %s2 = inlined_call_operand.vmem [shape: f32[32,1], index: 2, kind: input, shape index: {}]
  %s3 = inlined_call_operand.vmem [shape: f32[32,1], index: 3, kind: input, shape index: {}]
  %s4 = inlined_call_operand.vmem [shape: bf16[32,288], index: 4, kind: input, shape index: {}]
  %s5 = inlined_call_operand.vmem [shape: f32[32,1], index: 5, kind: input, shape index: {}]
  %s6 = inlined_call_operand.vmem [shape: f32[32,1], index: 6, kind: input, shape index: {}]
  %s7 = inlined_call_operand.vmem [shape: f32[2,32,16], index: 7, kind: output, shape index: {}]
  %s8 = sld [smem:[#allocation0]]
  $region61: #{encoder_forward.8} parent=0
    _
  %s10 = ssub.s32 1, %s8
  %s11 = scalar_select 0, %s10, %s8
  loop: start=0, step=1, limit=4
  $region2: #{encoder_forward.8} parent=0 // loop_pre_header
    _
  $region3: #{encoder_forward.8} parent=0 // loop_header
    %s13 = sphi 0, %s17
    %p14 = scmp.ge.s32.totalorder %s13, 4
    %s23 = sphi 0, %s25
    %s26 = sphi 0, %s23
    %s27 = sphi 0, %s26
    %s43 = sphi 0, %s27
    %s47 = sphi 0, %s47
    %s49 = sphi 0, %s47
    %s50 = sphi 0, %s49
    %s64 = sphi 0, %s50
    %s68 = sphi 0, %s68
    %s70 = sphi 0, %s68
    %s71 = sphi 0, %s70
    %s85 = sphi 0, %s71
    %s89 = sphi 0, %s89
    %s91 = sphi 0, %s89
    %s92 = sphi 0, %s91
    %s106 = sphi 0, %s92
    %s110 = sphi 0, %s110
    %s112 = sphi 0, %s110
    %s113 = sphi 0, %s112
    %s127 = sphi 0, %s113
    %s131 = sphi 0, %s131
    %s133 = sphi 0, %s131
    %s134 = sphi 0, %s133
    %s148 = sphi 0, %s134
    %s152 = sphi 0, %s152
    %s154 = sphi 0, %s152
    %s155 = sphi 0, %s154
    %s169 = sphi 0, %s155
    %s175 = sphi 0, %s177
    %s178 = sphi 0, %s175
    %s179 = sphi 0, %s178
    %s195 = sphi 0, %s179
  $region4: #{encoder_forward.8} parent=0 // loop_header_branch
    %16 = sbr.rel (%p14) target = $region8
  $region5: #{encoder_forward.8} parent=0 // loop_body
    %s18 = ssub.s32 %s13, 1
    %s19 = ssub.s32 %s13, 2
    %s20 = sadd.s32 %s13, 1
    %s21 = ssub.s32 %s13, %s20
    %p22 = scmp.eq.s32.totalorder %s21, 0
    %s24 = sadd.s32 %s23, 1
    %s25 = scalar_select %p22, %s23, %s24
    %p28 = pneg %p22
    %p29 = scmp.eq.s32.totalorder %s13, 1
    %p30 = por %p28, %p29
    %p31 = scmp.ne.s32.totalorder %s23, %s26
    %p32 = scmp.eq.s32.totalorder %s13, 0
    %p33 = por %p31, %p32
    %p34 = scmp.ne.s32.totalorder %s23, %s26
    %p35 = scmp.eq.s32.totalorder %s18, 1
    %p36 = por %p34, %p35
    %p37 = scmp.ne.s32.totalorder %s26, %s27
    %p38 = scmp.eq.s32.totalorder %s18, 0
    %p39 = por %p37, %p38
    %p40 = scmp.ne.s32.totalorder %s26, %s27
    %p41 = scmp.eq.s32.totalorder %s19, 1
    %p42 = por %p40, %p41
    %p44 = scmp.ne.s32.totalorder %s27, %s43
    %p45 = scmp.eq.s32.totalorder %s19, 0
    %p46 = por %p44, %p45
    %s48 = sadd.s32 %s47, 1
    %p51 = scmp.eq.s32.totalorder %s13, 1
    %p52 = scmp.ne.s32.totalorder %s47, %s49
    %p53 = scmp.eq.s32.totalorder %s13, 0
    %p54 = por %p52, %p53
    %p55 = scmp.ne.s32.totalorder %s47, %s49
    %p56 = scmp.eq.s32.totalorder %s18, 1
    %p57 = por %p55, %p56
    %p58 = scmp.ne.s32.totalorder %s49, %s50
    %p59 = scmp.eq.s32.totalorder %s18, 0
    %p60 = por %p58, %p59
    %p61 = scmp.ne.s32.totalorder %s49, %s50
    %p62 = scmp.eq.s32.totalorder %s19, 1
    %p63 = por %p61, %p62
    %p65 = scmp.ne.s32.totalorder %s50, %s64
    %p66 = scmp.eq.s32.totalorder %s19, 0
    %p67 = por %p65, %p66
    %s69 = sadd.s32 %s68, 1
    %p72 = scmp.eq.s32.totalorder %s13, 1
    %p73 = scmp.ne.s32.totalorder %s68, %s70
    %p74 = scmp.eq.s32.totalorder %s13, 0
    %p75 = por %p73, %p74
    %p76 = scmp.ne.s32.totalorder %s68, %s70
    %p77 = scmp.eq.s32.totalorder %s18, 1
    %p78 = por %p76, %p77
    %p79 = scmp.ne.s32.totalorder %s70, %s71
    %p80 = scmp.eq.s32.totalorder %s18, 0
    %p81 = por %p79, %p80
    %p82 = scmp.ne.s32.totalorder %s70, %s71
    %p83 = scmp.eq.s32.totalorder %s19, 1
    %p84 = por %p82, %p83
    %p86 = scmp.ne.s32.totalorder %s71, %s85
    %p87 = scmp.eq.s32.totalorder %s19, 0
    %p88 = por %p86, %p87
    %s90 = sadd.s32 %s89, 1
    %p93 = scmp.eq.s32.totalorder %s13, 1
    %p94 = scmp.ne.s32.totalorder %s89, %s91
    %p95 = scmp.eq.s32.totalorder %s13, 0
    %p96 = por %p94, %p95
    %p97 = scmp.ne.s32.totalorder %s89, %s91
    %p98 = scmp.eq.s32.totalorder %s18, 1
    %p99 = por %p97, %p98
    %p100 = scmp.ne.s32.totalorder %s91, %s92
    %p101 = scmp.eq.s32.totalorder %s18, 0
    %p102 = por %p100, %p101
    %p103 = scmp.ne.s32.totalorder %s91, %s92
    %p104 = scmp.eq.s32.totalorder %s19, 1
    %p105 = por %p103, %p104
    %p107 = scmp.ne.s32.totalorder %s92, %s106
    %p108 = scmp.eq.s32.totalorder %s19, 0
    %p109 = por %p107, %p108
    %s111 = sadd.s32 %s110, 1
    %p114 = scmp.eq.s32.totalorder %s13, 1
    %p115 = scmp.ne.s32.totalorder %s110, %s112
    %p116 = scmp.eq.s32.totalorder %s13, 0
    %p117 = por %p115, %p116
    %p118 = scmp.ne.s32.totalorder %s110, %s112
    %p119 = scmp.eq.s32.totalorder %s18, 1
    %p120 = por %p118, %p119
    %p121 = scmp.ne.s32.totalorder %s112, %s113
    %p122 = scmp.eq.s32.totalorder %s18, 0
    %p123 = por %p121, %p122
    %p124 = scmp.ne.s32.totalorder %s112, %s113
    %p125 = scmp.eq.s32.totalorder %s19, 1
    %p126 = por %p124, %p125
    %p128 = scmp.ne.s32.totalorder %s113, %s127
    %p129 = scmp.eq.s32.totalorder %s19, 0
    %p130 = por %p128, %p129
    %s132 = sadd.s32 %s131, 1
    %p135 = scmp.eq.s32.totalorder %s13, 1
    %p136 = scmp.ne.s32.totalorder %s131, %s133
    %p137 = scmp.eq.s32.totalorder %s13, 0
    %p138 = por %p136, %p137
    %p139 = scmp.ne.s32.totalorder %s131, %s133
    %p140 = scmp.eq.s32.totalorder %s18, 1
    %p141 = por %p139, %p140
    %p142 = scmp.ne.s32.totalorder %s133, %s134
    %p143 = scmp.eq.s32.totalorder %s18, 0
    %p144 = por %p142, %p143
    %p145 = scmp.ne.s32.totalorder %s133, %s134
    %p146 = scmp.eq.s32.totalorder %s19, 1
    %p147 = por %p145, %p146
    %p149 = scmp.ne.s32.totalorder %s134, %s148
    %p150 = scmp.eq.s32.totalorder %s19, 0
    %p151 = por %p149, %p150
    %s153 = sadd.s32 %s152, 1
    %p156 = scmp.eq.s32.totalorder %s13, 1
    %p157 = scmp.ne.s32.totalorder %s152, %s154
    %p158 = scmp.eq.s32.totalorder %s13, 0
    %p159 = por %p157, %p158
    %p160 = scmp.ne.s32.totalorder %s152, %s154
    %p161 = scmp.eq.s32.totalorder %s18, 1
    %p162 = por %p160, %p161
    %p163 = scmp.ne.s32.totalorder %s154, %s155
    %p164 = scmp.eq.s32.totalorder %s18, 0
    %p165 = por %p163, %p164
    %p166 = scmp.ne.s32.totalorder %s154, %s155
    %p167 = scmp.eq.s32.totalorder %s19, 1
    %p168 = por %p166, %p167
    %p170 = scmp.ne.s32.totalorder %s155, %s169
    %p171 = scmp.eq.s32.totalorder %s19, 0
    %p172 = por %p170, %p171
    %s173 = ssub.s32 %s13, %s20
    %p174 = scmp.eq.s32.totalorder %s173, 0
    %s176 = sadd.s32 %s175, 1
    %s177 = scalar_select %p174, %s175, %s176
    %p180 = pneg %p174
    %p181 = scmp.eq.s32.totalorder %s13, 1
    %p182 = por %p180, %p181
    %p183 = scmp.ne.s32.totalorder %s175, %s178
    %p184 = scmp.eq.s32.totalorder %s13, 0
    %p185 = por %p183, %p184
    %p186 = scmp.ne.s32.totalorder %s175, %s178
    %p187 = scmp.eq.s32.totalorder %s18, 1
    %p188 = por %p186, %p187
    %p189 = scmp.ne.s32.totalorder %s178, %s179
    %p190 = scmp.eq.s32.totalorder %s18, 0
    %p191 = por %p189, %p190
    %p192 = scmp.ne.s32.totalorder %s178, %s179
    %p193 = scmp.eq.s32.totalorder %s19, 1
    %p194 = por %p192, %p193
    %p196 = scmp.ne.s32.totalorder %s179, %s195
    %p197 = scmp.eq.s32.totalorder %s19, 0
    %p198 = por %p196, %p197
    %p199 = scmp.le.s32.totalorder 1, %s13
    %p200 = scmp.lt.s32.totalorder %s13, 3
    %p201 = pnand %p199, %p200
    %p202 = pneg %p201
    // Predicated region
    $region9: #{encoder_forward.8} parent=5 // pred_check
      _
    $region10: #{encoder_forward.8} parent=5 // pred_check_branch
      %204 = sbr.rel (%p201) target = $region12
    $region11: #{encoder_forward.8} parent=5 // pred_region
      %s205 = ssub.s32 %s13, 1
      // Predicated region
      $region13: #{encoder_forward.8} parent=11 // pred_check
        %p206 = pneg %p60
      $region14: #{encoder_forward.8} parent=11 // pred_check_branch
        %208 = sbr.rel (%p206) target = $region16
      $region15: #{encoder_forward.8} parent=11 // pred_region
        _
      $region16: #{encoder_forward.8} parent=11 // pred_fallthru
        _
      // Predicated region
      $region17: #{encoder_forward.8} parent=11 // pred_check
        %p209 = pneg %p81
      $region18: #{encoder_forward.8} parent=11 // pred_check_branch
        %211 = sbr.rel (%p209) target = $region20
      $region19: #{encoder_forward.8} parent=11 // pred_region
        _
      $region20: #{encoder_forward.8} parent=11 // pred_fallthru
        _
      // Predicated region
      $region21: #{encoder_forward.8} parent=11 // pred_check
        %p212 = pneg %p102
      $region22: #{encoder_forward.8} parent=11 // pred_check_branch
        %214 = sbr.rel (%p212) target = $region24
      $region23: #{encoder_forward.8} parent=11 // pred_region
        _
      $region24: #{encoder_forward.8} parent=11 // pred_fallthru
        _
      // Predicated region
      $region25: #{encoder_forward.8} parent=11 // pred_check
        %p215 = pneg %p123
      $region26: #{encoder_forward.8} parent=11 // pred_check_branch
        %217 = sbr.rel (%p215) target = $region28
      $region27: #{encoder_forward.8} parent=11 // pred_region
        _
      $region28: #{encoder_forward.8} parent=11 // pred_fallthru
        _
      // Predicated region
      $region29: #{encoder_forward.8} parent=11 // pred_check
        %p218 = pneg %p144
      $region30: #{encoder_forward.8} parent=11 // pred_check_branch
        %220 = sbr.rel (%p218) target = $region32
      $region31: #{encoder_forward.8} parent=11 // pred_region
        _
      $region32: #{encoder_forward.8} parent=11 // pred_fallthru
        _
      // Predicated region
      $region33: #{encoder_forward.8} parent=11 // pred_check
        %p221 = pneg %p165
      $region34: #{encoder_forward.8} parent=11 // pred_check_branch
        %223 = sbr.rel (%p221) target = $region36
      $region35: #{encoder_forward.8} parent=11 // pred_region
        _
      $region36: #{encoder_forward.8} parent=11 // pred_fallthru
        _
    $region12: #{encoder_forward.8} parent=5 // pred_fallthru
      _
    %p224 = scmp.lt.s32.totalorder %s13, 2
    // Predicated region
    $region37: #{encoder_forward.8} parent=5 // pred_check
      %p225 = pneg %p224
    $region38: #{encoder_forward.8} parent=5 // pred_check_branch
      %227 = sbr.rel (%p225) target = $region40
    $region39: #{encoder_forward.8} parent=5 // pred_region
      // Predicated region
      $region41: #{encoder_forward.8} parent=39 // pred_check
        %p228 = pneg %p33
      $region42: #{encoder_forward.8} parent=39 // pred_check_branch
        %230 = sbr.rel (%p228) target = $region44
      $region43: #{encoder_forward.8} parent=39 // pred_region
        %p231 = scmp.lt.s32.totalorder %s13, 1
        %s232 = scalar_select %p231, %s13, 1
        %s233 = smul.addr %s232, 2
        %s234 = smul.addr %s233, 8
        %s235 = scalar_lea.vmem %s0, %s234
      $region44: #{encoder_forward.8} parent=39 // pred_fallthru
        _
    $region40: #{encoder_forward.8} parent=5 // pred_fallthru
      _
    %p236 = scmp.le.s32.totalorder 1, %s13
    %p237 = scmp.lt.s32.totalorder %s13, 3
    %p238 = pnand %p236, %p237
    %p239 = pneg %p238
    // Predicated region
    $region45: #{encoder_forward.8} parent=5 // pred_check
      _
    $region46: #{encoder_forward.8} parent=5 // pred_check_branch
      %241 = sbr.rel (%p238) target = $region48
    $region47: #{encoder_forward.8} parent=5 // pred_region
      %s242 = ssub.s32 %s13, 1
      %p243 = scmp.lt.s32.totalorder %s18, 1
      %s244 = scalar_select %p243, %s18, 1
      %s245 = smul.addr %s244, 2
      %s246 = smul.addr %s245, 8
      %s247 = scalar_lea.vmem %s0, %s246
      %p248 = pneg %p39
      %p249 = pneg %p36
      %p250 = pneg %p60
      %p251 = pneg %p57
      %p252 = pneg %p81
      %p253 = pneg %p78
      %p254 = pneg %p102
      %p255 = pneg %p99
      %p256 = pneg %p123
      %p257 = pneg %p120
      %p258 = pneg %p144
      %p259 = pneg %p141
      %p260 = pneg %p165
      %p261 = pneg %p162
      %p262 = pneg %p191
      %p263 = pneg %p188
      %p264 = scmp.lt.s32.totalorder %s18, 1
      %s265 = scalar_select %p264, %s18, 1
      %s266 = smul.addr %s265, 4
      %s267 = smul.addr %s266, 8
      %s268 = scalar_lea.vmem %s7, %s267
      %p269 = scmp.lt.s32.totalorder %s18, 1
      %s270 = scalar_select %p269, %s18, 1
      %s271 = smul.addr %s270, 2
      %s272 = smul.addr %s271, 8
      %s273 = scalar_lea.vmem %s0, %s272
      %p274 = scmp.lt.s32.totalorder %s18, 1
      %s275 = scalar_select %p274, %s18, 1
      %s276 = smul.addr %s275, 4
      %s277 = smul.addr %s276, 8
      %s278 = scalar_lea.vmem %s7, %s277
      %v280 = vld [vmem:[%s273] sm:$0xff]
      %v281 = vld [vmem:[%s273 + $0x8] sm:$0xff]
      %v282 = vlaneseq
      %v283 = vand.u32 %v282, 127
      %vm284 = vcmp.lt.s32.totalorder %v283, 0
      %v285 = vsub.s32 0, %v283
      %v286 = vsel %vm284, %v285, %v283
      %v287 = vshrl.u32 %v286, 2
      %v288 = vand.u32 %v286, 3
      %v289 = vsub.s32 0, %v288
      %v290 = vsel %vm284, %v289, %v288
      %vm291 = vcmp.ne.s32.totalorder %v290, 0
      %vm292 = vcmp.lt.s32.totalorder %v290, 0
      %vm293 = vmand %vm292, %vm291
      %v294 = vadd.s32 %v290, 4
      %v295 = vsel %vm293, %v294, %v290
      %vm296 = vcmp.ge.s32.totalorder %v295, 1
      %v297 = vsel %vm296, 1, 0
      %v298 = vcvt.s32.f32 %v297
      %v299 = vpack.c.bf16 %v298, %v298
      %vm300 = vcmp.le.s32.totalorder %v295, 2
      %v301 = vsel %vm300, 1, 0
      %v302 = vcvt.s32.f32 %v301
      %v303 = vpack.c.bf16 %v302, %v302
      %v304 = vld [vmem:[%s1] sm:$0xff]
      %v305 = vld [vmem:[%s1 + $0x8] sm:$0xff]
      %v306 = vld [vmem:[%s1 + $0x10] sm:$0xff]
      %v307 = vld [vmem:[%s1 + $0x18] sm:$0xff]
      %v308 = vld [vmem:[%s2] sm:$0xff]
      %v309 = vld [vmem:[%s2 + $0x8] sm:$0xff]
      %v310 = vld [vmem:[%s2 + $0x10] sm:$0xff]
      %v311 = vld [vmem:[%s2 + $0x18] sm:$0xff]
      %v312 = vld [vmem:[%s3] sm:$0xff]
      %v313 = vld [vmem:[%s3 + $0x8] sm:$0xff]
      %v314 = vld [vmem:[%s3 + $0x10] sm:$0xff]
      %v315 = vld [vmem:[%s3 + $0x18] sm:$0xff]
      %v316 = vpack.c.bf16 %v280, %v280
      %v317 = vpack.c.bf16 %v281, %v281
      %v320 = vunpack.c.l.b16 %v316
      %v321 = vunpack.c.l.b16 %v317
      %v322 = vpack.c.b16 %v321, %v320
      %323 = vrot.lane.b32.xlu0 %v322, 5
      %v324 = vpop.permute.xlu0 %323
      %vm325 = vcmask 39936
      %v328 = vsel %vm325, 0, %v324
      %vm329 = vcmask 171008
      %v330 = vsel %vm329, %v328, 0
      %v332 = vunpack.c.l.bf16 %v330
      %v333 = vunpack.c.h.bf16 %v330
      %v334 = vunpack.c.l.bf16 %v299
      %v335 = vmul.f32 %v332, %v334
      %v336 = vmul.f32 %v333, %v334
      %v337 = vpack.c.bf16 %v335, %v335
      %v338 = vpack.c.bf16 %v336, %v336
      %v339 = vunpack.c.l.bf16 %v303
      %341 = vrot.lane.b32.xlu0 %v339, 2
      %v342 = vpop.permute.xlu0 %341
      %v344 = vmul.f32 %v332, %v342
      %v345 = vmul.f32 %v333, %v342
      %v346 = vpack.c.bf16 %v344, %v344
      %v347 = vpack.c.bf16 %v345, %v345
      %349 = vrot.lane.b32.xlu0 %v334, 4
      %v350 = vpop.permute.xlu0 %349
      %v352 = vmul.f32 %v332, %v350
      %v353 = vmul.f32 %v333, %v350
      %v354 = vpack.c.bf16 %v352, %v352
      %v355 = vpack.c.bf16 %v353, %v353
      %356 = vrot.lane.b32.xlu0 %v339, 6
      %v357 = vpop.permute.xlu0 %356
      %v359 = vmul.f32 %v332, %v357
      %v360 = vmul.f32 %v333, %v357
      %v361 = vpack.c.bf16 %v359, %v359
      %v362 = vpack.c.bf16 %v360, %v360
      %363 = vrot.lane.b32.xlu0 %v334, 8
      %v364 = vpop.permute.xlu0 %363
      %v366 = vmul.f32 %v332, %v364
      %v367 = vmul.f32 %v333, %v364
      %v368 = vpack.c.bf16 %v366, %v366
      %v369 = vpack.c.bf16 %v367, %v367
      %370 = vrot.lane.b32.xlu0 %v339, 10
      %v371 = vpop.permute.xlu0 %370
      %v373 = vmul.f32 %v332, %v371
      %v374 = vmul.f32 %v333, %v371
      %v375 = vpack.c.bf16 %v373, %v373
      %v376 = vpack.c.bf16 %v374, %v374
      %v379 = vunpack.c.l.b16 %v337
      %v380 = vunpack.c.l.b16 %v338
      %v381 = vpack.c.b16 %v380, %v379
      %384 = vrot.lane.b32.xlu0 %v330, 127
      %v385 = vpop.permute.xlu0 %384
      %v389 = vunpack.c.l.b16 %v346
      %v390 = vunpack.c.l.b16 %v347
      %v391 = vpack.c.b16 %v390, %v389
      %392 = vrot.lane.b32.xlu0 %v391, 126
      %v393 = vpop.permute.xlu0 %392
      %v397 = vunpack.c.l.b16 %v354
      %v398 = vunpack.c.l.b16 %v355
      %v399 = vpack.c.b16 %v398, %v397
      %400 = vrot.lane.b32.xlu0 %v399, 124
      %v401 = vpop.permute.xlu0 %400
      %403 = vrot.lane.b32.xlu0 %v330, 123
      %v404 = vpop.permute.xlu0 %403
      %v408 = vunpack.c.l.b16 %v361
      %v409 = vunpack.c.l.b16 %v362
      %v410 = vpack.c.b16 %v409, %v408
      %411 = vrot.lane.b32.xlu0 %v410, 122
      %v412 = vpop.permute.xlu0 %411
      %v416 = vunpack.c.l.b16 %v368
      %v417 = vunpack.c.l.b16 %v369
      %v418 = vpack.c.b16 %v417, %v416
      %419 = vrot.lane.b32.xlu0 %v418, 120
      %v420 = vpop.permute.xlu0 %419
      %422 = vrot.lane.b32.xlu0 %v330, 119
      %v423 = vpop.permute.xlu0 %422
      %v427 = vunpack.c.l.b16 %v375
      %v428 = vunpack.c.l.b16 %v376
      %v429 = vpack.c.b16 %v428, %v427
      %430 = vrot.lane.b32.xlu0 %v429, 118
      %v431 = vpop.permute.xlu0 %430
      %v437 = vunpack.c.l.b16 %v304
      %v438 = vunpack.c.h.b16 %v304
      %v439 = vunpack.c.l.b16 %v305
      %v440 = vunpack.c.h.b16 %v305
      %v441 = vunpack.c.l.b16 %v306
      %v442 = vunpack.c.h.b16 %v306
      %v443 = vunpack.c.l.b16 %v307
      %v444 = vunpack.c.h.b16 %v307
      %v445 = vpack.c.b16 %v439, %v437
      %v446 = vpack.c.b16 %v440, %v438
      %v447 = vpack.c.b16 %v443, %v441
      %v448 = vpack.c.b16 %v444, %v442
      %vm451 = vcmask 130048
      %v453 = vsel %vm451, %v446, 0
      %v456 = vsel %vm451, %v448, 0
      %458 = vmatpush.bf16.msra.mxu0 %v423
      %459 = vmatpush.bf16.msra.mxu0 %v420
      %460 = vmatpush.bf16.msra.mxu0 %v412
      %461 = vmatpush.bf16.msra.mxu0 %v404
      %462 = vmatpush.bf16.msra.mxu0 %v401
      %463 = vmatpush.bf16.msra.mxu0 %v393
      %464 = vmatpush.bf16.msra.mxu0 %v385
      %465 = vmatpush.bf16.msra.mxu0 %v381
      %466 = vmatmul.bf16.gmra.mxu0 %v445
      %v467 = vpop.f32.mrf.mxu0
      %v468 = vadd.f32 0.0, %v467
      %v469 = vpop.f32.mrf.mxu0
      %v470 = vadd.f32 0.0, %v469
      %471 = vmatmul.bf16.gmra.mxu0 %v447
      %v472 = vpop.f32.mrf.mxu0
      %v473 = vadd.f32 0.0, %v472
      %v474 = vpop.f32.mrf.mxu0
      %v475 = vadd.f32 0.0, %v474
      %476 = vdwg.mxu0
      %477 = vmatpush.bf16.msra.mxu0 0
      %478 = vmatpush.bf16.msra.mxu0 0
      %479 = vmatpush.bf16.msra.mxu0 0
      %480 = vmatpush.bf16.msra.mxu0 0
      %481 = vmatpush.bf16.msra.mxu0 0
      %482 = vmatpush.bf16.msra.mxu0 0
      %483 = vmatpush.bf16.msra.mxu0 0
      %484 = vmatpush.bf16.msra.mxu0 %v431
      %485 = vmatmul.bf16.gmra.mxu0 %v453
      %v486 = vpop.f32.mrf.mxu0
      %v487 = vadd.f32 %v468, %v486
      %v488 = vpop.f32.mrf.mxu0
      %v489 = vadd.f32 %v470, %v488
      %490 = vmatmul.bf16.gmra.mxu0 %v456
      %v491 = vpop.f32.mrf.mxu0
      %v492 = vadd.f32 %v473, %v491
      %v493 = vpop.f32.mrf.mxu0
      %v494 = vadd.f32 %v475, %v493
      %495 = vdwg.mxu0
      %v496 = vsel %vm451, %v487, 0.0
      %497 = vadd.xlane.f32.xlu0 %v496
      %v498 = vpop.xlane.xlu0 %497
      %v499 = vsel %vm451, %v489, 0.0
      %500 = vadd.xlane.f32.xlu0 %v499
      %v501 = vpop.xlane.xlu0 %500
      %v502 = vsel %vm451, %v492, 0.0
      %503 = vadd.xlane.f32.xlu0 %v502
      %v504 = vpop.xlane.xlu0 %503
      %v505 = vsel %vm451, %v494, 0.0
      %506 = vadd.xlane.f32.xlu0 %v505
      %v507 = vpop.xlane.xlu0 %506
      %v508 = vmul.f32 %v487, %v487
      %v509 = vmul.f32 %v489, %v489
      %v510 = vmul.f32 %v492, %v492
      %v511 = vmul.f32 %v494, %v494
      %v512 = vsel %vm451, %v508, 0.0
      %513 = vadd.xlane.f32.xlu0 %v512
      %v514 = vpop.xlane.xlu0 %513
      %v515 = vsel %vm451, %v509, 0.0
      %516 = vadd.xlane.f32.xlu0 %v515
      %v517 = vpop.xlane.xlu0 %516
      %v518 = vsel %vm451, %v510, 0.0
      %519 = vadd.xlane.f32.xlu0 %v518
      %v520 = vpop.xlane.xlu0 %519
      %v521 = vsel %vm451, %v511, 0.0
      %522 = vadd.xlane.f32.xlu0 %v521
      %v523 = vpop.xlane.xlu0 %522
      %v524 = vmul.f32 %v498, 0.0625
      %v525 = vmul.f32 %v501, 0.0625
      %v526 = vmul.f32 %v504, 0.0625
      %v527 = vmul.f32 %v507, 0.0625
      %v528 = vmul.f32 %v514, 0.0625
      %v529 = vmul.f32 %v517, 0.0625
      %v530 = vmul.f32 %v520, 0.0625
      %v531 = vmul.f32 %v523, 0.0625
      %v532 = vmul.f32 %v524, %v524
      %v533 = vmul.f32 %v525, %v525
      %v534 = vmul.f32 %v526, %v526
      %v535 = vmul.f32 %v527, %v527
      %v536 = vsub.f32 %v528, %v532
      %v537 = vsub.f32 %v529, %v533
      %v538 = vsub.f32 %v530, %v534
      %v539 = vsub.f32 %v531, %v535
      %v540 = vadd.f32 %v536, 1e-05
      %v541 = vadd.f32 %v537, 1e-05
      %v542 = vadd.f32 %v538, 1e-05
      %v543 = vadd.f32 %v539, 1e-05
      %v544 = vrsqrt.pop %v540
      %v545 = vmul.f32 %v544, %v540
      %v546 = vmul.f32 %v545, %v544
      %v547 = vmul.f32 0.5, %v546
      %v548 = vsub.f32 1.5, %v547
      %v549 = vmul.f32 %v544, %v548
      %vm550 = vweird.f32 %v540
      %vm551 = vweird.f32 %v544
      %vm552 = vmor %vm550, %vm551
      %v553 = vsel %vm552, %v544, %v549
      %v554 = vrsqrt.pop %v541
      %v555 = vmul.f32 %v554, %v541
      %v556 = vmul.f32 %v555, %v554
      %v557 = vmul.f32 0.5, %v556
      %v558 = vsub.f32 1.5, %v557
      %v559 = vmul.f32 %v554, %v558
      %vm560 = vweird.f32 %v541
      %vm561 = vweird.f32 %v554
      %vm562 = vmor %vm560, %vm561
      %v563 = vsel %vm562, %v554, %v559
      %v564 = vrsqrt.pop %v542
      %v565 = vmul.f32 %v564, %v542
      %v566 = vmul.f32 %v565, %v564
      %v567 = vmul.f32 0.5, %v566
      %v568 = vsub.f32 1.5, %v567
      %v569 = vmul.f32 %v564, %v568
      %vm570 = vweird.f32 %v542
      %vm571 = vweird.f32 %v564
      %vm572 = vmor %vm570, %vm571
      %v573 = vsel %vm572, %v564, %v569
      %v574 = vrsqrt.pop %v543
      %v575 = vmul.f32 %v574, %v543
      %v576 = vmul.f32 %v575, %v574
      %v577 = vmul.f32 0.5, %v576
      %v578 = vsub.f32 1.5, %v577
      %v579 = vmul.f32 %v574, %v578
      %vm580 = vweird.f32 %v543
      %vm581 = vweird.f32 %v574
      %vm582 = vmor %vm580, %vm581
      %v583 = vsel %vm582, %v574, %v579
      %v584 = vmul.f32 %v308, %v553
      %v585 = vmul.f32 %v309, %v563
      %v586 = vmul.f32 %v310, %v573
      %v587 = vmul.f32 %v311, %v583
      %v588 = vsub.f32 %v487, %v524
      %v589 = vsub.f32 %v489, %v525
      %v590 = vsub.f32 %v492, %v526
      %v591 = vsub.f32 %v494, %v527
      %593 = vset.pattern.permute.xlu0 0
      %594 = vperm.xlu0 %593, %v584
      %v595 = vpop.permute.xlu0 %594
      %598 = vset.pattern.permute.xlu0 0
      %599 = vperm.xlu0 %598, %v585
      %v600 = vpop.permute.xlu0 %599
      %603 = vset.pattern.permute.xlu0 0
      %604 = vperm.xlu0 %603, %v586
      %v605 = vpop.permute.xlu0 %604
      %608 = vset.pattern.permute.xlu0 0
      %609 = vperm.xlu0 %608, %v587
      %v610 = vpop.permute.xlu0 %609
      %v612 = vmul.f32 %v588, %v595
      %v613 = vmul.f32 %v589, %v600
      %v614 = vmul.f32 %v590, %v605
      %v615 = vmul.f32 %v591, %v610
      %617 = vset.pattern.permute.xlu0 0
      %618 = vperm.xlu0 %617, %v312
      %v619 = vpop.permute.xlu0 %618
      %622 = vset.pattern.permute.xlu0 0
      %623 = vperm.xlu0 %622, %v313
      %v624 = vpop.permute.xlu0 %623
      %627 = vset.pattern.permute.xlu0 0
      %628 = vperm.xlu0 %627, %v314
      %v629 = vpop.permute.xlu0 %628
      %632 = vset.pattern.permute.xlu0 0
      %633 = vperm.xlu0 %632, %v315
      %v634 = vpop.permute.xlu0 %633
      %v636 = vadd.f32 %v612, %v619
      %v637 = vadd.f32 %v613, %v624
      %v638 = vadd.f32 %v614, %v629
      %v639 = vadd.f32 %v615, %v634
      %v640 = vmin.f32 %v636, 0.0
      %v641 = vmin.f32 %v637, 0.0
      %v642 = vmin.f32 %v638, 0.0
      %v643 = vmin.f32 %v639, 0.0
      %v644 = vmul.f32 %v640, 1.442695
      %v645 = vpow.pop %v644
      %v646 = vmul.f32 %v641, 1.442695
      %v647 = vpow.pop %v646
      %v648 = vmul.f32 %v642, 1.442695
      %v649 = vpow.pop %v648
      %v650 = vmul.f32 %v643, 1.442695
      %v651 = vpow.pop %v650
      %v652 = vsub.f32 %v645, 1.0
      %v653 = vsub.f32 %v647, 1.0
      %v654 = vsub.f32 %v649, 1.0
      %v655 = vsub.f32 %v651, 1.0
      %v656 = vmul.f32 %v652, 1.6732632
      %v657 = vmul.f32 %v653, 1.6732632
      %v658 = vmul.f32 %v654, 1.6732632
      %v659 = vmul.f32 %v655, 1.6732632
      %vm660 = vcmp.gt.f32.partialorder %v636, 0.0
      %vm661 = vcmp.gt.f32.partialorder %v637, 0.0
      %vm662 = vcmp.gt.f32.partialorder %v638, 0.0
      %vm663 = vcmp.gt.f32.partialorder %v639, 0.0
      %v664 = vsel %vm660, %v636, %v656
      %v665 = vsel %vm661, %v637, %v657
      %v666 = vsel %vm662, %v638, %v658
      %v667 = vsel %vm663, %v639, %v659
      %v668 = vmul.f32 %v664, 1.050701
      %v669 = vmul.f32 %v665, 1.050701
      %v670 = vmul.f32 %v666, 1.050701
      %v671 = vmul.f32 %v667, 1.050701
      %v672 = vld [vmem:[%s4] sm:$0xff]
      %v673 = vld [vmem:[%s4 + $0x8] sm:$0xf]
      %v674 = vld [vmem:[%s4 + $0xc] sm:$0xff]
      %v675 = vld [vmem:[%s4 + $0x14] sm:$0xf]
      %v676 = vld [vmem:[%s4 + $0x18] sm:$0xff]
      %v677 = vld [vmem:[%s4 + $0x20] sm:$0xf]
      %v678 = vld [vmem:[%s4 + $0x24] sm:$0xff]
      %v679 = vld [vmem:[%s4 + $0x2c] sm:$0xf]
      %v680 = vld [vmem:[%s5] sm:$0xff]
      %v681 = vld [vmem:[%s5 + $0x8] sm:$0xff]
      %v682 = vld [vmem:[%s5 + $0x10] sm:$0xff]
      %v683 = vld [vmem:[%s5 + $0x18] sm:$0xff]
      %v684 = vld [vmem:[%s6] sm:$0xff]
      %v685 = vld [vmem:[%s6 + $0x8] sm:$0xff]
      %v686 = vld [vmem:[%s6 + $0x10] sm:$0xff]
      %v687 = vld [vmem:[%s6 + $0x18] sm:$0xff]
      %v688 = vpack.c.bf16 %v668, %v668
      %v689 = vpack.c.bf16 %v669, %v669
      %v690 = vpack.c.bf16 %v670, %v670
      %v691 = vpack.c.bf16 %v671, %v671
      %v696 = vunpack.c.l.b16 %v688
      %v697 = vunpack.c.l.b16 %v689
      %v698 = vunpack.c.l.b16 %v690
      %v699 = vunpack.c.l.b16 %v691
      %v700 = vpack.c.b16 %v697, %v696
      %v701 = vpack.c.b16 %v699, %v698
      %702 = vrot.lane.b32.xlu0 %v700, 5
      %v703 = vpop.permute.xlu0 %702
      %704 = vrot.lane.b32.xlu0 %v701, 5
      %v705 = vpop.permute.xlu0 %704
      %v707 = vsel %vm325, 0, %v703
      %v709 = vsel %vm325, 0, %v705
      %v710 = vsel %vm329, %v707, 0
      %v712 = vsel %vm329, %v709, 0
      %v714 = vunpack.c.l.bf16 %v710
      %v715 = vunpack.c.h.bf16 %v710
      %v716 = vunpack.c.l.bf16 %v712
      %v717 = vunpack.c.h.bf16 %v712
      %v718 = vmul.f32 %v714, %v334
      %v719 = vmul.f32 %v715, %v334
      %v720 = vmul.f32 %v716, %v334
      %v721 = vmul.f32 %v717, %v334
      %v722 = vpack.c.bf16 %v718, %v718
      %v723 = vpack.c.bf16 %v719, %v719
      %v724 = vpack.c.bf16 %v720, %v720
      %v725 = vpack.c.bf16 %v721, %v721
      %v726 = vmul.f32 %v714, %v342
      %v727 = vmul.f32 %v715, %v342
      %v728 = vmul.f32 %v716, %v342
      %v729 = vmul.f32 %v717, %v342
      %v730 = vpack.c.bf16 %v726, %v726
      %v731 = vpack.c.bf16 %v727, %v727
      %v732 = vpack.c.bf16 %v728, %v728
      %v733 = vpack.c.bf16 %v729, %v729
      %v734 = vmul.f32 %v714, %v350
      %v735 = vmul.f32 %v715, %v350
      %v736 = vmul.f32 %v716, %v350
      %v737 = vmul.f32 %v717, %v350
      %v738 = vpack.c.bf16 %v734, %v734
      %v739 = vpack.c.bf16 %v735, %v735
      %v740 = vpack.c.bf16 %v736, %v736
      %v741 = vpack.c.bf16 %v737, %v737
      %v742 = vmul.f32 %v714, %v357
      %v743 = vmul.f32 %v715, %v357
      %v744 = vmul.f32 %v716, %v357
      %v745 = vmul.f32 %v717, %v357
      %v746 = vpack.c.bf16 %v742, %v742
      %v747 = vpack.c.bf16 %v743, %v743
      %v748 = vpack.c.bf16 %v744, %v744
      %v749 = vpack.c.bf16 %v745, %v745
      %v750 = vmul.f32 %v714, %v364
      %v751 = vmul.f32 %v715, %v364
      %v752 = vmul.f32 %v716, %v364
      %v753 = vmul.f32 %v717, %v364
      %v754 = vpack.c.bf16 %v750, %v750
      %v755 = vpack.c.bf16 %v751, %v751
      %v756 = vpack.c.bf16 %v752, %v752
      %v757 = vpack.c.bf16 %v753, %v753
      %v758 = vmul.f32 %v714, %v371
      %v759 = vmul.f32 %v715, %v371
      %v760 = vmul.f32 %v716, %v371
      %v761 = vmul.f32 %v717, %v371
      %v762 = vpack.c.bf16 %v758, %v758
      %v763 = vpack.c.bf16 %v759, %v759
      %v764 = vpack.c.bf16 %v760, %v760
      %v765 = vpack.c.bf16 %v761, %v761
      %v770 = vunpack.c.l.b16 %v722
      %v771 = vunpack.c.l.b16 %v723
      %v772 = vunpack.c.l.b16 %v724
      %v773 = vunpack.c.l.b16 %v725
      %v774 = vpack.c.b16 %v771, %v770
      %v775 = vpack.c.b16 %v773, %v772
      %780 = vrot.lane.b32.xlu0 %v710, 127
      %v781 = vpop.permute.xlu0 %780
      %782 = vrot.lane.b32.xlu0 %v712, 127
      %v783 = vpop.permute.xlu0 %782
      %v790 = vunpack.c.l.b16 %v730
      %v791 = vunpack.c.l.b16 %v731
      %v792 = vunpack.c.l.b16 %v732
      %v793 = vunpack.c.l.b16 %v733
      %v794 = vpack.c.b16 %v791, %v790
      %v795 = vpack.c.b16 %v793, %v792
      %796 = vrot.lane.b32.xlu0 %v794, 126
      %v797 = vpop.permute.xlu0 %796
      %798 = vrot.lane.b32.xlu0 %v795, 126
      %v799 = vpop.permute.xlu0 %798
      %v806 = vunpack.c.l.b16 %v738
      %v807 = vunpack.c.l.b16 %v739
      %v808 = vunpack.c.l.b16 %v740
      %v809 = vunpack.c.l.b16 %v741
      %v810 = vpack.c.b16 %v807, %v806
      %v811 = vpack.c.b16 %v809, %v808
      %812 = vrot.lane.b32.xlu0 %v810, 124
      %v813 = vpop.permute.xlu0 %812
      %814 = vrot.lane.b32.xlu0 %v811, 124
      %v815 = vpop.permute.xlu0 %814
      %818 = vrot.lane.b32.xlu0 %v710, 123
      %v819 = vpop.permute.xlu0 %818
      %820 = vrot.lane.b32.xlu0 %v712, 123
      %v821 = vpop.permute.xlu0 %820
      %v828 = vunpack.c.l.b16 %v746
      %v829 = vunpack.c.l.b16 %v747
      %v830 = vunpack.c.l.b16 %v748
      %v831 = vunpack.c.l.b16 %v749
      %v832 = vpack.c.b16 %v829, %v828
      %v833 = vpack.c.b16 %v831, %v830
      %834 = vrot.lane.b32.xlu0 %v832, 122
      %v835 = vpop.permute.xlu0 %834
      %836 = vrot.lane.b32.xlu0 %v833, 122
      %v837 = vpop.permute.xlu0 %836
      %v844 = vunpack.c.l.b16 %v754
      %v845 = vunpack.c.l.b16 %v755
      %v846 = vunpack.c.l.b16 %v756
      %v847 = vunpack.c.l.b16 %v757
      %v848 = vpack.c.b16 %v845, %v844
      %v849 = vpack.c.b16 %v847, %v846
      %850 = vrot.lane.b32.xlu0 %v848, 120
      %v851 = vpop.permute.xlu0 %850
      %852 = vrot.lane.b32.xlu0 %v849, 120
      %v853 = vpop.permute.xlu0 %852
      %856 = vrot.lane.b32.xlu0 %v710, 119
      %v857 = vpop.permute.xlu0 %856
      %858 = vrot.lane.b32.xlu0 %v712, 119
      %v859 = vpop.permute.xlu0 %858
      %v866 = vunpack.c.l.b16 %v762
      %v867 = vunpack.c.l.b16 %v763
      %v868 = vunpack.c.l.b16 %v764
      %v869 = vunpack.c.l.b16 %v765
      %v870 = vpack.c.b16 %v867, %v866
      %v871 = vpack.c.b16 %v869, %v868
      %872 = vrot.lane.b32.xlu0 %v870, 118
      %v873 = vpop.permute.xlu0 %872
      %874 = vrot.lane.b32.xlu0 %v871, 118
      %v875 = vpop.permute.xlu0 %874
      %v886 = vunpack.c.l.b16 %v672
      %v887 = vunpack.c.h.b16 %v672
      %v888 = vunpack.c.l.b16 %v673
      %v889 = vunpack.c.l.b16 %v674
      %v890 = vunpack.c.h.b16 %v674
      %v891 = vunpack.c.l.b16 %v675
      %v892 = vunpack.c.l.b16 %v676
      %v893 = vunpack.c.h.b16 %v676
      %v894 = vunpack.c.l.b16 %v677
      %v895 = vunpack.c.l.b16 %v678
      %v896 = vunpack.c.h.b16 %v678
      %v897 = vunpack.c.l.b16 %v679
      %v898 = vpack.c.b16 %v889, %v886
      %v899 = vpack.c.b16 %v890, %v887
      %v900 = vpack.c.b16 %v891, %v888
      %v901 = vpack.c.b16 %v895, %v892
      %v902 = vpack.c.b16 %v896, %v893
      %v903 = vpack.c.b16 %v897, %v894
      %vm908 = vcmask 261120
      %v910 = vsel %vm908, %v900, 0
      %v913 = vsel %vm908, %v903, 0
      %915 = vmatpush.bf16.msra.mxu0 %v815
      %916 = vmatpush.bf16.msra.mxu0 %v813
      %917 = vmatpush.bf16.msra.mxu0 %v799
      %918 = vmatpush.bf16.msra.mxu0 %v797
      %919 = vmatpush.bf16.msra.mxu0 %v783
      %920 = vmatpush.bf16.msra.mxu0 %v781
      %921 = vmatpush.bf16.msra.mxu0 %v775
      %922 = vmatpush.bf16.msra.mxu0 %v774
      %923 = vmatmul.bf16.gmra.mxu0 %v898
      %v924 = vpop.f32.mrf.mxu0
      %v925 = vadd.f32 0.0, %v924
      %v926 = vpop.f32.mrf.mxu0
      %v927 = vadd.f32 0.0, %v926
      %928 = vmatmul.bf16.gmra.mxu0 %v901
      %v929 = vpop.f32.mrf.mxu0
      %v930 = vadd.f32 0.0, %v929
      %v931 = vpop.f32.mrf.mxu0
      %v932 = vadd.f32 0.0, %v931
      %933 = vdwg.mxu0
      %934 = vmatpush.bf16.msra.mxu0 %v859
      %935 = vmatpush.bf16.msra.mxu0 %v857
      %936 = vmatpush.bf16.msra.mxu0 %v853
      %937 = vmatpush.bf16.msra.mxu0 %v851
      %938 = vmatpush.bf16.msra.mxu0 %v837
      %939 = vmatpush.bf16.msra.mxu0 %v835
      %940 = vmatpush.bf16.msra.mxu0 %v821
      %941 = vmatpush.bf16.msra.mxu0 %v819
      %942 = vmatmul.bf16.gmra.mxu0 %v899
      %v943 = vpop.f32.mrf.mxu0
      %v944 = vadd.f32 %v925, %v943
      %v945 = vpop.f32.mrf.mxu0
      %v946 = vadd.f32 %v927, %v945
      %947 = vmatmul.bf16.gmra.mxu0 %v902
      %v948 = vpop.f32.mrf.mxu0
      %v949 = vadd.f32 %v930, %v948
      %v950 = vpop.f32.mrf.mxu0
      %v951 = vadd.f32 %v932, %v950
      %952 = vdwg.mxu0
      %953 = vmatpush.bf16.msra.mxu0 0
      %954 = vmatpush.bf16.msra.mxu0 0
      %955 = vmatpush.bf16.msra.mxu0 0
      %956 = vmatpush.bf16.msra.mxu0 0
      %957 = vmatpush.bf16.msra.mxu0 0
      %958 = vmatpush.bf16.msra.mxu0 0
      %959 = vmatpush.bf16.msra.mxu0 %v875
      %960 = vmatpush.bf16.msra.mxu0 %v873
      %961 = vmatmul.bf16.gmra.mxu0 %v910
      %v962 = vpop.f32.mrf.mxu0
      %v963 = vadd.f32 %v944, %v962
      %v964 = vpop.f32.mrf.mxu0
      %v965 = vadd.f32 %v946, %v964
      %966 = vmatmul.bf16.gmra.mxu0 %v913
      %v967 = vpop.f32.mrf.mxu0
      %v968 = vadd.f32 %v949, %v967
      %v969 = vpop.f32.mrf.mxu0
      %v970 = vadd.f32 %v951, %v969
      %971 = vdwg.mxu0
      %v972 = vsel %vm451, %v963, 0.0
      %973 = vadd.xlane.f32.xlu0 %v972
      %v974 = vpop.xlane.xlu0 %973
      %v975 = vsel %vm451, %v965, 0.0
      %976 = vadd.xlane.f32.xlu0 %v975
      %v977 = vpop.xlane.xlu0 %976
      %v978 = vsel %vm451, %v968, 0.0
      %979 = vadd.xlane.f32.xlu0 %v978
      %v980 = vpop.xlane.xlu0 %979
      %v981 = vsel %vm451, %v970, 0.0
      %982 = vadd.xlane.f32.xlu0 %v981
      %v983 = vpop.xlane.xlu0 %982
      %v984 = vmul.f32 %v963, %v963
      %v985 = vmul.f32 %v965, %v965
      %v986 = vmul.f32 %v968, %v968
      %v987 = vmul.f32 %v970, %v970
      %v988 = vsel %vm451, %v984, 0.0
      %989 = vadd.xlane.f32.xlu0 %v988
      %v990 = vpop.xlane.xlu0 %989
      %v991 = vsel %vm451, %v985, 0.0
      %992 = vadd.xlane.f32.xlu0 %v991
      %v993 = vpop.xlane.xlu0 %992
      %v994 = vsel %vm451, %v986, 0.0
      %995 = vadd.xlane.f32.xlu0 %v994
      %v996 = vpop.xlane.xlu0 %995
      %v997 = vsel %vm451, %v987, 0.0
      %998 = vadd.xlane.f32.xlu0 %v997
      %v999 = vpop.xlane.xlu0 %998
      %v1000 = vmul.f32 %v974, 0.0625
      %v1001 = vmul.f32 %v977, 0.0625
      %v1002 = vmul.f32 %v980, 0.0625
      %v1003 = vmul.f32 %v983, 0.0625
      %v1004 = vmul.f32 %v990, 0.0625
      %v1005 = vmul.f32 %v993, 0.0625
      %v1006 = vmul.f32 %v996, 0.0625
      %v1007 = vmul.f32 %v999, 0.0625
      %v1008 = vmul.f32 %v1000, %v1000
      %v1009 = vmul.f32 %v1001, %v1001
      %v1010 = vmul.f32 %v1002, %v1002
      %v1011 = vmul.f32 %v1003, %v1003
      %v1012 = vsub.f32 %v1004, %v1008
      %v1013 = vsub.f32 %v1005, %v1009
      %v1014 = vsub.f32 %v1006, %v1010
      %v1015 = vsub.f32 %v1007, %v1011
      %v1016 = vadd.f32 %v1012, 1e-05
      %v1017 = vadd.f32 %v1013, 1e-05
      %v1018 = vadd.f32 %v1014, 1e-05
      %v1019 = vadd.f32 %v1015, 1e-05
      %v1020 = vrsqrt.pop %v1016
      %v1021 = vmul.f32 %v1020, %v1016
      %v1022 = vmul.f32 %v1021, %v1020
      %v1023 = vmul.f32 0.5, %v1022
      %v1024 = vsub.f32 1.5, %v1023
      %v1025 = vmul.f32 %v1020, %v1024
      %vm1026 = vweird.f32 %v1016
      %vm1027 = vweird.f32 %v1020
      %vm1028 = vmor %vm1026, %vm1027
      %v1029 = vsel %vm1028, %v1020, %v1025
      %v1030 = vrsqrt.pop %v1017
      %v1031 = vmul.f32 %v1030, %v1017
      %v1032 = vmul.f32 %v1031, %v1030
      %v1033 = vmul.f32 0.5, %v1032
      %v1034 = vsub.f32 1.5, %v1033
      %v1035 = vmul.f32 %v1030, %v1034
      %vm1036 = vweird.f32 %v1017
      %vm1037 = vweird.f32 %v1030
      %vm1038 = vmor %vm1036, %vm1037
      %v1039 = vsel %vm1038, %v1030, %v1035
      %v1040 = vrsqrt.pop %v1018
      %v1041 = vmul.f32 %v1040, %v1018
      %v1042 = vmul.f32 %v1041, %v1040
      %v1043 = vmul.f32 0.5, %v1042
      %v1044 = vsub.f32 1.5, %v1043
      %v1045 = vmul.f32 %v1040, %v1044
      %vm1046 = vweird.f32 %v1018
      %vm1047 = vweird.f32 %v1040
      %vm1048 = vmor %vm1046, %vm1047
      %v1049 = vsel %vm1048, %v1040, %v1045
      %v1050 = vrsqrt.pop %v1019
      %v1051 = vmul.f32 %v1050, %v1019
      %v1052 = vmul.f32 %v1051, %v1050
      %v1053 = vmul.f32 0.5, %v1052
      %v1054 = vsub.f32 1.5, %v1053
      %v1055 = vmul.f32 %v1050, %v1054
      %vm1056 = vweird.f32 %v1019
      %vm1057 = vweird.f32 %v1050
      %vm1058 = vmor %vm1056, %vm1057
      %v1059 = vsel %vm1058, %v1050, %v1055
      %v1060 = vmul.f32 %v680, %v1029
      %v1061 = vmul.f32 %v681, %v1039
      %v1062 = vmul.f32 %v682, %v1049
      %v1063 = vmul.f32 %v683, %v1059
      %v1064 = vsub.f32 %v963, %v1000
      %v1065 = vsub.f32 %v965, %v1001
      %v1066 = vsub.f32 %v968, %v1002
      %v1067 = vsub.f32 %v970, %v1003
      %1069 = vset.pattern.permute.xlu0 0
      %1070 = vperm.xlu0 %1069, %v1060
      %v1071 = vpop.permute.xlu0 %1070
      %1074 = vset.pattern.permute.xlu0 0
      %1075 = vperm.xlu0 %1074, %v1061
      %v1076 = vpop.permute.xlu0 %1075
      %1079 = vset.pattern.permute.xlu0 0
      %1080 = vperm.xlu0 %1079, %v1062
      %v1081 = vpop.permute.xlu0 %1080
      %1084 = vset.pattern.permute.xlu0 0
      %1085 = vperm.xlu0 %1084, %v1063
      %v1086 = vpop.permute.xlu0 %1085
      %v1088 = vmul.f32 %v1064, %v1071
      %v1089 = vmul.f32 %v1065, %v1076
      %v1090 = vmul.f32 %v1066, %v1081
      %v1091 = vmul.f32 %v1067, %v1086
      %1093 = vset.pattern.permute.xlu0 0
      %1094 = vperm.xlu0 %1093, %v684
      %v1095 = vpop.permute.xlu0 %1094
      %1098 = vset.pattern.permute.xlu0 0
      %1099 = vperm.xlu0 %1098, %v685
      %v1100 = vpop.permute.xlu0 %1099
      %1103 = vset.pattern.permute.xlu0 0
      %1104 = vperm.xlu0 %1103, %v686
      %v1105 = vpop.permute.xlu0 %1104
      %1108 = vset.pattern.permute.xlu0 0
      %1109 = vperm.xlu0 %1108, %v687
      %v1110 = vpop.permute.xlu0 %1109
      %v1112 = vadd.f32 %v1088, %v1095
      %v1113 = vadd.f32 %v1089, %v1100
      %v1114 = vadd.f32 %v1090, %v1105
      %v1115 = vadd.f32 %v1091, %v1110
      %v1116 = vmin.f32 %v1112, 0.0
      %v1117 = vmin.f32 %v1113, 0.0
      %v1118 = vmin.f32 %v1114, 0.0
      %v1119 = vmin.f32 %v1115, 0.0
      %v1120 = vmul.f32 %v1116, 1.442695
      %v1121 = vpow.pop %v1120
      %v1122 = vmul.f32 %v1117, 1.442695
      %v1123 = vpow.pop %v1122
      %v1124 = vmul.f32 %v1118, 1.442695
      %v1125 = vpow.pop %v1124
      %v1126 = vmul.f32 %v1119, 1.442695
      %v1127 = vpow.pop %v1126
      %v1128 = vsub.f32 %v1121, 1.0
      %v1129 = vsub.f32 %v1123, 1.0
      %v1130 = vsub.f32 %v1125, 1.0
      %v1131 = vsub.f32 %v1127, 1.0
      %v1132 = vmul.f32 %v1128, 1.6732632
      %v1133 = vmul.f32 %v1129, 1.6732632
      %v1134 = vmul.f32 %v1130, 1.6732632
      %v1135 = vmul.f32 %v1131, 1.6732632
      %vm1136 = vcmp.gt.f32.partialorder %v1112, 0.0
      %vm1137 = vcmp.gt.f32.partialorder %v1113, 0.0
      %vm1138 = vcmp.gt.f32.partialorder %v1114, 0.0
      %vm1139 = vcmp.gt.f32.partialorder %v1115, 0.0
      %v1140 = vsel %vm1136, %v1112, %v1132
      %v1141 = vsel %vm1137, %v1113, %v1133
      %v1142 = vsel %vm1138, %v1114, %v1134
      %v1143 = vsel %vm1139, %v1115, %v1135
      %v1144 = vmul.f32 %v1140, 1.050701
      %v1145 = vmul.f32 %v1141, 1.050701
      %v1146 = vmul.f32 %v1142, 1.050701
      %v1147 = vmul.f32 %v1143, 1.050701
      %1148 = vst.msk [vmem:[%s278] sm:$0xff] %vm451, %v1144
      %1149 = vst.msk [vmem:[%s278 + $0x8] sm:$0xff] %vm451, %v1145
      %1150 = vst.msk [vmem:[%s278 + $0x10] sm:$0xff] %vm451, %v1146
      %1151 = vst.msk [vmem:[%s278 + $0x18] sm:$0xff] %vm451, %v1147
      %p1152 = scmp.lt.s32.totalorder %s18, 1
      %s1153 = scalar_select %p1152, %s18, 1
      %s1154 = smul.addr %s1153, 4
      %s1155 = smul.addr %s1154, 8
      %s1156 = scalar_lea.vmem %s7, %s1155
      // Predicated region
      $region49: #{encoder_forward.8} parent=47 // pred_check
        %p1157 = pneg %p188
      $region50: #{encoder_forward.8} parent=47 // pred_check_branch
        %1159 = sbr.rel (%p1157) target = $region52
      $region51: #{encoder_forward.8} parent=47 // pred_region
        _
      $region52: #{encoder_forward.8} parent=47 // pred_fallthru
        _
    $region48: #{encoder_forward.8} parent=5 // pred_fallthru
      _
    %p1160 = scmp.le.s32.totalorder 2, %s13
    // Predicated region
    $region53: #{encoder_forward.8} parent=5 // pred_check
      %p1161 = pneg %p1160
    $region54: #{encoder_forward.8} parent=5 // pred_check_branch
      %1163 = sbr.rel (%p1161) target = $region56
    $region55: #{encoder_forward.8} parent=5 // pred_region
      %s1164 = ssub.s32 %s13, 2
      // Predicated region
      $region57: #{encoder_forward.8} parent=55 // pred_check
        %p1165 = pneg %p194
      $region58: #{encoder_forward.8} parent=55 // pred_check_branch
        %1167 = sbr.rel (%p1165) target = $region60
      $region59: #{encoder_forward.8} parent=55 // pred_region
        %p1168 = scmp.lt.s32.totalorder %s19, 1
        %s1169 = scalar_select %p1168, %s19, 1
        %s1170 = smul.addr %s1169, 4
        %s1171 = smul.addr %s1170, 8
        %s1172 = scalar_lea.vmem %s7, %s1171
      $region60: #{encoder_forward.8} parent=55 // pred_fallthru
        _
    $region56: #{encoder_forward.8} parent=5 // pred_fallthru
      _
  $region6: #{encoder_forward.8} parent=0 // loop_footer
    %s17 = sadd.s32 1, %s13
  $region7: #{encoder_forward.8} parent=0 // loop_footer_branch
    %12 = sbr.rel target = $region3
  $region8: #{encoder_forward.8} parent=0 // loop_exit
    _

// kernel: encoder_forward.9
$region0: #{encoder_forward.9}
  #allocation0 [shape = 'u32[]', space=smem, size = 0x4, offset = 0x4, fixed_abs, tag = 'smem constant byte address 0x4 - core index']
  #allocation1 [shape = 'u32[72,128]{1,0:T(1,128)}', space=vmem, size = 0x9000, scoped, tag = 'internal scratch']
  %s0 = inlined_call_operand.vmem [shape: f32[2,32,4], index: 0, kind: input, shape index: {}]
  %s1 = inlined_call_operand.vmem [shape: bf16[32,288], index: 1, kind: input, shape index: {}]
  %s2 = inlined_call_operand.vmem [shape: f32[32,1], index: 2, kind: input, shape index: {}]
  %s3 = inlined_call_operand.vmem [shape: f32[32,1], index: 3, kind: input, shape index: {}]
  %s4 = inlined_call_operand.vmem [shape: bf16[32,288], index: 4, kind: input, shape index: {}]
  %s5 = inlined_call_operand.vmem [shape: f32[32,1], index: 5, kind: input, shape index: {}]
  %s6 = inlined_call_operand.vmem [shape: f32[32,1], index: 6, kind: input, shape index: {}]
  %s7 = inlined_call_operand.vmem [shape: f32[2,32,4], index: 7, kind: output, shape index: {}]
  %s8 = sld [smem:[#allocation0]]
  $region61: #{encoder_forward.9} parent=0
    _
  %s10 = ssub.s32 1, %s8
  %s11 = scalar_select 0, %s10, %s8
  loop: start=0, step=1, limit=4
  $region2: #{encoder_forward.9} parent=0 // loop_pre_header
    _
  $region3: #{encoder_forward.9} parent=0 // loop_header
    %s13 = sphi 0, %s17
    %p14 = scmp.ge.s32.totalorder %s13, 4
    %s23 = sphi 0, %s25
    %s26 = sphi 0, %s23
    %s27 = sphi 0, %s26
    %s43 = sphi 0, %s27
    %s47 = sphi 0, %s47
    %s49 = sphi 0, %s47
    %s50 = sphi 0, %s49
    %s64 = sphi 0, %s50
    %s68 = sphi 0, %s68
    %s70 = sphi 0, %s68
    %s71 = sphi 0, %s70
    %s85 = sphi 0, %s71
    %s89 = sphi 0, %s89
    %s91 = sphi 0, %s89
    %s92 = sphi 0, %s91
    %s106 = sphi 0, %s92
    %s110 = sphi 0, %s110
    %s112 = sphi 0, %s110
    %s113 = sphi 0, %s112
    %s127 = sphi 0, %s113
    %s131 = sphi 0, %s131
    %s133 = sphi 0, %s131
    %s134 = sphi 0, %s133
    %s148 = sphi 0, %s134
    %s152 = sphi 0, %s152
    %s154 = sphi 0, %s152
    %s155 = sphi 0, %s154
    %s169 = sphi 0, %s155
    %s175 = sphi 0, %s177
    %s178 = sphi 0, %s175
    %s179 = sphi 0, %s178
    %s195 = sphi 0, %s179
  $region4: #{encoder_forward.9} parent=0 // loop_header_branch
    %16 = sbr.rel (%p14) target = $region8
  $region5: #{encoder_forward.9} parent=0 // loop_body
    %s18 = ssub.s32 %s13, 1
    %s19 = ssub.s32 %s13, 2
    %s20 = sadd.s32 %s13, 1
    %s21 = ssub.s32 %s13, %s20
    %p22 = scmp.eq.s32.totalorder %s21, 0
    %s24 = sadd.s32 %s23, 1
    %s25 = scalar_select %p22, %s23, %s24
    %p28 = pneg %p22
    %p29 = scmp.eq.s32.totalorder %s13, 1
    %p30 = por %p28, %p29
    %p31 = scmp.ne.s32.totalorder %s23, %s26
    %p32 = scmp.eq.s32.totalorder %s13, 0
    %p33 = por %p31, %p32
    %p34 = scmp.ne.s32.totalorder %s23, %s26
    %p35 = scmp.eq.s32.totalorder %s18, 1
    %p36 = por %p34, %p35
    %p37 = scmp.ne.s32.totalorder %s26, %s27
    %p38 = scmp.eq.s32.totalorder %s18, 0
    %p39 = por %p37, %p38
    %p40 = scmp.ne.s32.totalorder %s26, %s27
    %p41 = scmp.eq.s32.totalorder %s19, 1
    %p42 = por %p40, %p41
    %p44 = scmp.ne.s32.totalorder %s27, %s43
    %p45 = scmp.eq.s32.totalorder %s19, 0
    %p46 = por %p44, %p45
    %s48 = sadd.s32 %s47, 1
    %p51 = scmp.eq.s32.totalorder %s13, 1
    %p52 = scmp.ne.s32.totalorder %s47, %s49
    %p53 = scmp.eq.s32.totalorder %s13, 0
    %p54 = por %p52, %p53
    %p55 = scmp.ne.s32.totalorder %s47, %s49
    %p56 = scmp.eq.s32.totalorder %s18, 1
    %p57 = por %p55, %p56
    %p58 = scmp.ne.s32.totalorder %s49, %s50
    %p59 = scmp.eq.s32.totalorder %s18, 0
    %p60 = por %p58, %p59
    %p61 = scmp.ne.s32.totalorder %s49, %s50
    %p62 = scmp.eq.s32.totalorder %s19, 1
    %p63 = por %p61, %p62
    %p65 = scmp.ne.s32.totalorder %s50, %s64
    %p66 = scmp.eq.s32.totalorder %s19, 0
    %p67 = por %p65, %p66
    %s69 = sadd.s32 %s68, 1
    %p72 = scmp.eq.s32.totalorder %s13, 1
    %p73 = scmp.ne.s32.totalorder %s68, %s70
    %p74 = scmp.eq.s32.totalorder %s13, 0
    %p75 = por %p73, %p74
    %p76 = scmp.ne.s32.totalorder %s68, %s70
    %p77 = scmp.eq.s32.totalorder %s18, 1
    %p78 = por %p76, %p77
    %p79 = scmp.ne.s32.totalorder %s70, %s71
    %p80 = scmp.eq.s32.totalorder %s18, 0
    %p81 = por %p79, %p80
    %p82 = scmp.ne.s32.totalorder %s70, %s71
    %p83 = scmp.eq.s32.totalorder %s19, 1
    %p84 = por %p82, %p83
    %p86 = scmp.ne.s32.totalorder %s71, %s85
    %p87 = scmp.eq.s32.totalorder %s19, 0
    %p88 = por %p86, %p87
    %s90 = sadd.s32 %s89, 1
    %p93 = scmp.eq.s32.totalorder %s13, 1
    %p94 = scmp.ne.s32.totalorder %s89, %s91
    %p95 = scmp.eq.s32.totalorder %s13, 0
    %p96 = por %p94, %p95
    %p97 = scmp.ne.s32.totalorder %s89, %s91
    %p98 = scmp.eq.s32.totalorder %s18, 1
    %p99 = por %p97, %p98
    %p100 = scmp.ne.s32.totalorder %s91, %s92
    %p101 = scmp.eq.s32.totalorder %s18, 0
    %p102 = por %p100, %p101
    %p103 = scmp.ne.s32.totalorder %s91, %s92
    %p104 = scmp.eq.s32.totalorder %s19, 1
    %p105 = por %p103, %p104
    %p107 = scmp.ne.s32.totalorder %s92, %s106
    %p108 = scmp.eq.s32.totalorder %s19, 0
    %p109 = por %p107, %p108
    %s111 = sadd.s32 %s110, 1
    %p114 = scmp.eq.s32.totalorder %s13, 1
    %p115 = scmp.ne.s32.totalorder %s110, %s112
    %p116 = scmp.eq.s32.totalorder %s13, 0
    %p117 = por %p115, %p116
    %p118 = scmp.ne.s32.totalorder %s110, %s112
    %p119 = scmp.eq.s32.totalorder %s18, 1
    %p120 = por %p118, %p119
    %p121 = scmp.ne.s32.totalorder %s112, %s113
    %p122 = scmp.eq.s32.totalorder %s18, 0
    %p123 = por %p121, %p122
    %p124 = scmp.ne.s32.totalorder %s112, %s113
    %p125 = scmp.eq.s32.totalorder %s19, 1
    %p126 = por %p124, %p125
    %p128 = scmp.ne.s32.totalorder %s113, %s127
    %p129 = scmp.eq.s32.totalorder %s19, 0
    %p130 = por %p128, %p129
    %s132 = sadd.s32 %s131, 1
    %p135 = scmp.eq.s32.totalorder %s13, 1
    %p136 = scmp.ne.s32.totalorder %s131, %s133
    %p137 = scmp.eq.s32.totalorder %s13, 0
    %p138 = por %p136, %p137
    %p139 = scmp.ne.s32.totalorder %s131, %s133
    %p140 = scmp.eq.s32.totalorder %s18, 1
    %p141 = por %p139, %p140
    %p142 = scmp.ne.s32.totalorder %s133, %s134
    %p143 = scmp.eq.s32.totalorder %s18, 0
    %p144 = por %p142, %p143
    %p145 = scmp.ne.s32.totalorder %s133, %s134
    %p146 = scmp.eq.s32.totalorder %s19, 1
    %p147 = por %p145, %p146
    %p149 = scmp.ne.s32.totalorder %s134, %s148
    %p150 = scmp.eq.s32.totalorder %s19, 0
    %p151 = por %p149, %p150
    %s153 = sadd.s32 %s152, 1
    %p156 = scmp.eq.s32.totalorder %s13, 1
    %p157 = scmp.ne.s32.totalorder %s152, %s154
    %p158 = scmp.eq.s32.totalorder %s13, 0
    %p159 = por %p157, %p158
    %p160 = scmp.ne.s32.totalorder %s152, %s154
    %p161 = scmp.eq.s32.totalorder %s18, 1
    %p162 = por %p160, %p161
    %p163 = scmp.ne.s32.totalorder %s154, %s155
    %p164 = scmp.eq.s32.totalorder %s18, 0
    %p165 = por %p163, %p164
    %p166 = scmp.ne.s32.totalorder %s154, %s155
    %p167 = scmp.eq.s32.totalorder %s19, 1
    %p168 = por %p166, %p167
    %p170 = scmp.ne.s32.totalorder %s155, %s169
    %p171 = scmp.eq.s32.totalorder %s19, 0
    %p172 = por %p170, %p171
    %s173 = ssub.s32 %s13, %s20
    %p174 = scmp.eq.s32.totalorder %s173, 0
    %s176 = sadd.s32 %s175, 1
    %s177 = scalar_select %p174, %s175, %s176
    %p180 = pneg %p174
    %p181 = scmp.eq.s32.totalorder %s13, 1
    %p182 = por %p180, %p181
    %p183 = scmp.ne.s32.totalorder %s175, %s178
    %p184 = scmp.eq.s32.totalorder %s13, 0
    %p185 = por %p183, %p184
    %p186 = scmp.ne.s32.totalorder %s175, %s178
    %p187 = scmp.eq.s32.totalorder %s18, 1
    %p188 = por %p186, %p187
    %p189 = scmp.ne.s32.totalorder %s178, %s179
    %p190 = scmp.eq.s32.totalorder %s18, 0
    %p191 = por %p189, %p190
    %p192 = scmp.ne.s32.totalorder %s178, %s179
    %p193 = scmp.eq.s32.totalorder %s19, 1
    %p194 = por %p192, %p193
    %p196 = scmp.ne.s32.totalorder %s179, %s195
    %p197 = scmp.eq.s32.totalorder %s19, 0
    %p198 = por %p196, %p197
    %p199 = scmp.le.s32.totalorder 1, %s13
    %p200 = scmp.lt.s32.totalorder %s13, 3
    %p201 = pnand %p199, %p200
    %p202 = pneg %p201
    // Predicated region
    $region9: #{encoder_forward.9} parent=5 // pred_check
      _
    $region10: #{encoder_forward.9} parent=5 // pred_check_branch
      %204 = sbr.rel (%p201) target = $region12
    $region11: #{encoder_forward.9} parent=5 // pred_region
      %s205 = ssub.s32 %s13, 1
      // Predicated region
      $region13: #{encoder_forward.9} parent=11 // pred_check
        %p206 = pneg %p60
      $region14: #{encoder_forward.9} parent=11 // pred_check_branch
        %208 = sbr.rel (%p206) target = $region16
      $region15: #{encoder_forward.9} parent=11 // pred_region
        _
      $region16: #{encoder_forward.9} parent=11 // pred_fallthru
        _
      // Predicated region
      $region17: #{encoder_forward.9} parent=11 // pred_check
        %p209 = pneg %p81
      $region18: #{encoder_forward.9} parent=11 // pred_check_branch
        %211 = sbr.rel (%p209) target = $region20
      $region19: #{encoder_forward.9} parent=11 // pred_region
        _
      $region20: #{encoder_forward.9} parent=11 // pred_fallthru
        _
      // Predicated region
      $region21: #{encoder_forward.9} parent=11 // pred_check
        %p212 = pneg %p102
      $region22: #{encoder_forward.9} parent=11 // pred_check_branch
        %214 = sbr.rel (%p212) target = $region24
      $region23: #{encoder_forward.9} parent=11 // pred_region
        _
      $region24: #{encoder_forward.9} parent=11 // pred_fallthru
        _
      // Predicated region
      $region25: #{encoder_forward.9} parent=11 // pred_check
        %p215 = pneg %p123
      $region26: #{encoder_forward.9} parent=11 // pred_check_branch
        %217 = sbr.rel (%p215) target = $region28
      $region27: #{encoder_forward.9} parent=11 // pred_region
        _
      $region28: #{encoder_forward.9} parent=11 // pred_fallthru
        _
      // Predicated region
      $region29: #{encoder_forward.9} parent=11 // pred_check
        %p218 = pneg %p144
      $region30: #{encoder_forward.9} parent=11 // pred_check_branch
        %220 = sbr.rel (%p218) target = $region32
      $region31: #{encoder_forward.9} parent=11 // pred_region
        _
      $region32: #{encoder_forward.9} parent=11 // pred_fallthru
        _
      // Predicated region
      $region33: #{encoder_forward.9} parent=11 // pred_check
        %p221 = pneg %p165
      $region34: #{encoder_forward.9} parent=11 // pred_check_branch
        %223 = sbr.rel (%p221) target = $region36
      $region35: #{encoder_forward.9} parent=11 // pred_region
        _
      $region36: #{encoder_forward.9} parent=11 // pred_fallthru
        _
    $region12: #{encoder_forward.9} parent=5 // pred_fallthru
      _
    %p224 = scmp.lt.s32.totalorder %s13, 2
    // Predicated region
    $region37: #{encoder_forward.9} parent=5 // pred_check
      %p225 = pneg %p224
    $region38: #{encoder_forward.9} parent=5 // pred_check_branch
      %227 = sbr.rel (%p225) target = $region40
    $region39: #{encoder_forward.9} parent=5 // pred_region
      // Predicated region
      $region41: #{encoder_forward.9} parent=39 // pred_check
        %p228 = pneg %p33
      $region42: #{encoder_forward.9} parent=39 // pred_check_branch
        %230 = sbr.rel (%p228) target = $region44
      $region43: #{encoder_forward.9} parent=39 // pred_region
        %p231 = scmp.lt.s32.totalorder %s13, 1
        %s232 = scalar_select %p231, %s13, 1
        %s233 = smul.addr %s232, 4
        %s234 = smul.addr %s233, 8
        %s235 = scalar_lea.vmem %s0, %s234
      $region44: #{encoder_forward.9} parent=39 // pred_fallthru
        _
    $region40: #{encoder_forward.9} parent=5 // pred_fallthru
      _
    %p236 = scmp.le.s32.totalorder 1, %s13
    %p237 = scmp.lt.s32.totalorder %s13, 3
    %p238 = pnand %p236, %p237
    %p239 = pneg %p238
    // Predicated region
    $region45: #{encoder_forward.9} parent=5 // pred_check
      _
    $region46: #{encoder_forward.9} parent=5 // pred_check_branch
      %241 = sbr.rel (%p238) target = $region48
    $region47: #{encoder_forward.9} parent=5 // pred_region
      %s242 = ssub.s32 %s13, 1
      %p243 = scmp.lt.s32.totalorder %s18, 1
      %s244 = scalar_select %p243, %s18, 1
      %s245 = smul.addr %s244, 4
      %s246 = smul.addr %s245, 8
      %s247 = scalar_lea.vmem %s0, %s246
      %p248 = pneg %p39
      %p249 = pneg %p36
      %p250 = pneg %p60
      %p251 = pneg %p57
      %p252 = pneg %p81
      %p253 = pneg %p78
      %p254 = pneg %p102
      %p255 = pneg %p99
      %p256 = pneg %p123
      %p257 = pneg %p120
      %p258 = pneg %p144
      %p259 = pneg %p141
      %p260 = pneg %p165
      %p261 = pneg %p162
      %p262 = pneg %p191
      %p263 = pneg %p188
      %p264 = scmp.lt.s32.totalorder %s18, 1
      %s265 = scalar_select %p264, %s18, 1
      %s266 = smul.addr %s265, 4
      %s267 = smul.addr %s266, 8
      %s268 = scalar_lea.vmem %s7, %s267
      %p269 = scmp.lt.s32.totalorder %s18, 1
      %s270 = scalar_select %p269, %s18, 1
      %s271 = smul.addr %s270, 4
      %s272 = smul.addr %s271, 8
      %s273 = scalar_lea.vmem %s0, %s272
      %p274 = scmp.lt.s32.totalorder %s18, 1
      %s275 = scalar_select %p274, %s18, 1
      %s276 = smul.addr %s275, 4
      %s277 = smul.addr %s276, 8
      %s278 = scalar_lea.vmem %s7, %s277
      %v280 = vld [vmem:[%s273] sm:$0xff]
      %v281 = vld [vmem:[%s273 + $0x8] sm:$0xff]
      %v282 = vld [vmem:[%s273 + $0x10] sm:$0xff]
      %v283 = vld [vmem:[%s273 + $0x18] sm:$0xff]
      %v284 = vlaneseq
      %v285 = vand.u32 %v284, 127
      %vm286 = vcmp.lt.s32.totalorder %v285, 0
      %v287 = vsub.s32 0, %v285
      %v288 = vsel %vm286, %v287, %v285
      %v289 = vshrl.u32 %v288, 1
      %v290 = vand.u32 %v288, 1
      %v291 = vsub.s32 0, %v290
      %v292 = vsel %vm286, %v291, %v290
      %vm293 = vcmp.ne.s32.totalorder %v292, 0
      %vm294 = vcmp.lt.s32.totalorder %v292, 0
      %vm295 = vmand %vm294, %vm293
      %v296 = vadd.s32 %v292, 2
      %v297 = vsel %vm295, %v296, %v292
      %vm298 = vcmp.ge.s32.totalorder %v297, 1
      %v299 = vsel %vm298, 1, 0
      %v300 = vcvt.s32.f32 %v299
      %v301 = vpack.c.bf16 %v300, %v300
      %vm302 = vcmp.le.s32.totalorder %v297, 0
      %v303 = vsel %vm302, 1, 0
      %v304 = vcvt.s32.f32 %v303
      %v305 = vpack.c.bf16 %v304, %v304
      %v306 = vld [vmem:[%s1] sm:$0xff]
      %v307 = vld [vmem:[%s1 + $0x8] sm:$0xf]
      %v308 = vld [vmem:[%s1 + $0xc] sm:$0xff]
      %v309 = vld [vmem:[%s1 + $0x14] sm:$0xf]
      %v310 = vld [vmem:[%s1 + $0x18] sm:$0xff]
      %v311 = vld [vmem:[%s1 + $0x20] sm:$0xf]
      %v312 = vld [vmem:[%s1 + $0x24] sm:$0xff]
      %v313 = vld [vmem:[%s1 + $0x2c] sm:$0xf]
      %v314 = vld [vmem:[%s2] sm:$0xff]
      %v315 = vld [vmem:[%s2 + $0x8] sm:$0xff]
      %v316 = vld [vmem:[%s2 + $0x10] sm:$0xff]
      %v317 = vld [vmem:[%s2 + $0x18] sm:$0xff]
      %v318 = vld [vmem:[%s3] sm:$0xff]
      %v319 = vld [vmem:[%s3 + $0x8] sm:$0xff]
      %v320 = vld [vmem:[%s3 + $0x10] sm:$0xff]
      %v321 = vld [vmem:[%s3 + $0x18] sm:$0xff]
      %v322 = vpack.c.bf16 %v280, %v280
      %v323 = vpack.c.bf16 %v281, %v281
      %v324 = vpack.c.bf16 %v282, %v282
      %v325 = vpack.c.bf16 %v283, %v283
      %v330 = vunpack.c.l.b16 %v322
      %v331 = vunpack.c.l.b16 %v323
      %v332 = vunpack.c.l.b16 %v324
      %v333 = vunpack.c.l.b16 %v325
      %v334 = vpack.c.b16 %v331, %v330
      %v335 = vpack.c.b16 %v333, %v332
      %336 = vrot.lane.b32.xlu0 %v334, 3
      %v337 = vpop.permute.xlu0 %336
      %338 = vrot.lane.b32.xlu0 %v335, 3
      %v339 = vpop.permute.xlu0 %338
      %vm340 = vcmask 23552
      %v343 = vsel %vm340, 0, %v337
      %v345 = vsel %vm340, 0, %v339
      %vm346 = vcmask 56320
      %v347 = vsel %vm346, %v343, 0
      %v349 = vsel %vm346, %v345, 0
      %v351 = vunpack.c.l.bf16 %v347
      %v352 = vunpack.c.h.bf16 %v347
      %v353 = vunpack.c.l.bf16 %v349
      %v354 = vunpack.c.h.bf16 %v349
      %v355 = vunpack.c.l.bf16 %v301
      %v356 = vmul.f32 %v351, %v355
      %v357 = vmul.f32 %v352, %v355
      %v358 = vmul.f32 %v353, %v355
      %v359 = vmul.f32 %v354, %v355
      %v360 = vpack.c.bf16 %v356, %v356
      %v361 = vpack.c.bf16 %v357, %v357
      %v362 = vpack.c.bf16 %v358, %v358
      %v363 = vpack.c.bf16 %v359, %v359
      %v364 = vunpack.c.l.bf16 %v305
      %366 = vrot.lane.b32.xlu0 %v364, 2
      %v367 = vpop.permute.xlu0 %366
      %v369 = vmul.f32 %v351, %v367
      %v370 = vmul.f32 %v352, %v367
      %v371 = vmul.f32 %v353, %v367
      %v372 = vmul.f32 %v354, %v367
      %v373 = vpack.c.bf16 %v369, %v369
      %v374 = vpack.c.bf16 %v370, %v370
      %v375 = vpack.c.bf16 %v371, %v371
      %v376 = vpack.c.bf16 %v372, %v372
      %378 = vrot.lane.b32.xlu0 %v355, 2
      %v379 = vpop.permute.xlu0 %378
      %v381 = vmul.f32 %v351, %v379
      %v382 = vmul.f32 %v352, %v379
      %v383 = vmul.f32 %v353, %v379
      %v384 = vmul.f32 %v354, %v379
      %v385 = vpack.c.bf16 %v381, %v381
      %v386 = vpack.c.bf16 %v382, %v382
      %v387 = vpack.c.bf16 %v383, %v383
      %v388 = vpack.c.bf16 %v384, %v384
      %389 = vrot.lane.b32.xlu0 %v364, 4
      %v390 = vpop.permute.xlu0 %389
      %v392 = vmul.f32 %v351, %v390
      %v393 = vmul.f32 %v352, %v390
      %v394 = vmul.f32 %v353, %v390
      %v395 = vmul.f32 %v354, %v390
      %v396 = vpack.c.bf16 %v392, %v392
      %v397 = vpack.c.bf16 %v393, %v393
      %v398 = vpack.c.bf16 %v394, %v394
      %v399 = vpack.c.bf16 %v395, %v395
      %400 = vrot.lane.b32.xlu0 %v355, 4
      %v401 = vpop.permute.xlu0 %400
      %v403 = vmul.f32 %v351, %v401
      %v404 = vmul.f32 %v352, %v401
      %v405 = vmul.f32 %v353, %v401
      %v406 = vmul.f32 %v354, %v401
      %v407 = vpack.c.bf16 %v403, %v403
      %v408 = vpack.c.bf16 %v404, %v404
      %v409 = vpack.c.bf16 %v405, %v405
      %v410 = vpack.c.bf16 %v406, %v406
      %411 = vrot.lane.b32.xlu0 %v364, 6
      %v412 = vpop.permute.xlu0 %411
      %v414 = vmul.f32 %v351, %v412
      %v415 = vmul.f32 %v352, %v412
      %v416 = vmul.f32 %v353, %v412
      %v417 = vmul.f32 %v354, %v412
      %v418 = vpack.c.bf16 %v414, %v414
      %v419 = vpack.c.bf16 %v415, %v415
      %v420 = vpack.c.bf16 %v416, %v416
      %v421 = vpack.c.bf16 %v417, %v417
      %v426 = vunpack.c.l.b16 %v360
      %v427 = vunpack.c.l.b16 %v361
      %v428 = vunpack.c.l.b16 %v362
      %v429 = vunpack.c.l.b16 %v363
      %v430 = vpack.c.b16 %v427, %v426
      %v431 = vpack.c.b16 %v429, %v428
      %436 = vrot.lane.b32.xlu0 %v347, 127
      %v437 = vpop.permute.xlu0 %436
      %438 = vrot.lane.b32.xlu0 %v349, 127
      %v439 = vpop.permute.xlu0 %438
      %v446 = vunpack.c.l.b16 %v373
      %v447 = vunpack.c.l.b16 %v374
      %v448 = vunpack.c.l.b16 %v375
      %v449 = vunpack.c.l.b16 %v376
      %v450 = vpack.c.b16 %v447, %v446
      %v451 = vpack.c.b16 %v449, %v448
      %452 = vrot.lane.b32.xlu0 %v450, 126
      %v453 = vpop.permute.xlu0 %452
      %454 = vrot.lane.b32.xlu0 %v451, 126
      %v455 = vpop.permute.xlu0 %454
      %v462 = vunpack.c.l.b16 %v385
      %v463 = vunpack.c.l.b16 %v386
      %v464 = vunpack.c.l.b16 %v387
      %v465 = vunpack.c.l.b16 %v388
      %v466 = vpack.c.b16 %v463, %v462
      %v467 = vpack.c.b16 %v465, %v464
      %468 = vrot.lane.b32.xlu0 %v466, 126
      %v469 = vpop.permute.xlu0 %468
      %470 = vrot.lane.b32.xlu0 %v467, 126
      %v471 = vpop.permute.xlu0 %470
      %474 = vrot.lane.b32.xlu0 %v347, 125
      %v475 = vpop.permute.xlu0 %474
      %476 = vrot.lane.b32.xlu0 %v349, 125
      %v477 = vpop.permute.xlu0 %476
      %v484 = vunpack.c.l.b16 %v396
      %v485 = vunpack.c.l.b16 %v397
      %v486 = vunpack.c.l.b16 %v398
      %v487 = vunpack.c.l.b16 %v399
      %v488 = vpack.c.b16 %v485, %v484
      %v489 = vpack.c.b16 %v487, %v486
      %490 = vrot.lane.b32.xlu0 %v488, 124
      %v491 = vpop.permute.xlu0 %490
      %492 = vrot.lane.b32.xlu0 %v489, 124
      %v493 = vpop.permute.xlu0 %492
      %v500 = vunpack.c.l.b16 %v407
      %v501 = vunpack.c.l.b16 %v408
      %v502 = vunpack.c.l.b16 %v409
      %v503 = vunpack.c.l.b16 %v410
      %v504 = vpack.c.b16 %v501, %v500
      %v505 = vpack.c.b16 %v503, %v502
      %506 = vrot.lane.b32.xlu0 %v504, 124
      %v507 = vpop.permute.xlu0 %506
      %508 = vrot.lane.b32.xlu0 %v505, 124
      %v509 = vpop.permute.xlu0 %508
      %512 = vrot.lane.b32.xlu0 %v347, 123
      %v513 = vpop.permute.xlu0 %512
      %514 = vrot.lane.b32.xlu0 %v349, 123
      %v515 = vpop.permute.xlu0 %514
      %v522 = vunpack.c.l.b16 %v418
      %v523 = vunpack.c.l.b16 %v419
      %v524 = vunpack.c.l.b16 %v420
      %v525 = vunpack.c.l.b16 %v421
      %v526 = vpack.c.b16 %v523, %v522
      %v527 = vpack.c.b16 %v525, %v524
      %528 = vrot.lane.b32.xlu0 %v526, 122
      %v529 = vpop.permute.xlu0 %528
      %530 = vrot.lane.b32.xlu0 %v527, 122
      %v531 = vpop.permute.xlu0 %530
      %v542 = vunpack.c.l.b16 %v306
      %v543 = vunpack.c.h.b16 %v306
      %v544 = vunpack.c.l.b16 %v307
      %v545 = vunpack.c.l.b16 %v308
      %v546 = vunpack.c.h.b16 %v308
      %v547 = vunpack.c.l.b16 %v309
      %v548 = vunpack.c.l.b16 %v310
      %v549 = vunpack.c.h.b16 %v310
      %v550 = vunpack.c.l.b16 %v311
      %v551 = vunpack.c.l.b16 %v312
      %v552 = vunpack.c.h.b16 %v312
      %v553 = vunpack.c.l.b16 %v313
      %v554 = vpack.c.b16 %v545, %v542
      %v555 = vpack.c.b16 %v546, %v543
      %v556 = vpack.c.b16 %v547, %v544
      %v557 = vpack.c.b16 %v551, %v548
      %v558 = vpack.c.b16 %v552, %v549
      %v559 = vpack.c.b16 %v553, %v550
      %vm564 = vcmask 261120
      %v566 = vsel %vm564, %v556, 0
      %v569 = vsel %vm564, %v559, 0
      %571 = vmatpush.bf16.msra.mxu0 %v471
      %572 = vmatpush.bf16.msra.mxu0 %v469
      %573 = vmatpush.bf16.msra.mxu0 %v455
      %574 = vmatpush.bf16.msra.mxu0 %v453
      %575 = vmatpush.bf16.msra.mxu0 %v439
      %576 = vmatpush.bf16.msra.mxu0 %v437
      %577 = vmatpush.bf16.msra.mxu0 %v431
      %578 = vmatpush.bf16.msra.mxu0 %v430
      %579 = vmatmul.bf16.gmra.mxu0 %v554
      %v580 = vpop.f32.mrf.mxu0
      %v581 = vadd.f32 0.0, %v580
      %v582 = vpop.f32.mrf.mxu0
      %v583 = vadd.f32 0.0, %v582
      %584 = vmatmul.bf16.gmra.mxu0 %v557
      %v585 = vpop.f32.mrf.mxu0
      %v586 = vadd.f32 0.0, %v585
      %v587 = vpop.f32.mrf.mxu0
      %v588 = vadd.f32 0.0, %v587
      %589 = vdwg.mxu0
      %590 = vmatpush.bf16.msra.mxu0 %v515
      %591 = vmatpush.bf16.msra.mxu0 %v513
      %592 = vmatpush.bf16.msra.mxu0 %v509
      %593 = vmatpush.bf16.msra.mxu0 %v507
      %594 = vmatpush.bf16.msra.mxu0 %v493
      %595 = vmatpush.bf16.msra.mxu0 %v491
      %596 = vmatpush.bf16.msra.mxu0 %v477
      %597 = vmatpush.bf16.msra.mxu0 %v475
      %598 = vmatmul.bf16.gmra.mxu0 %v555
      %v599 = vpop.f32.mrf.mxu0
      %v600 = vadd.f32 %v581, %v599
      %v601 = vpop.f32.mrf.mxu0
      %v602 = vadd.f32 %v583, %v601
      %603 = vmatmul.bf16.gmra.mxu0 %v558
      %v604 = vpop.f32.mrf.mxu0
      %v605 = vadd.f32 %v586, %v604
      %v606 = vpop.f32.mrf.mxu0
      %v607 = vadd.f32 %v588, %v606
      %608 = vdwg.mxu0
      %609 = vmatpush.bf16.msra.mxu0 0
      %610 = vmatpush.bf16.msra.mxu0 0
      %611 = vmatpush.bf16.msra.mxu0 0
      %612 = vmatpush.bf16.msra.mxu0 0
      %613 = vmatpush.bf16.msra.mxu0 0
      %614 = vmatpush.bf16.msra.mxu0 0
      %615 = vmatpush.bf16.msra.mxu0 %v531
      %616 = vmatpush.bf16.msra.mxu0 %v529
      %617 = vmatmul.bf16.gmra.mxu0 %v566
      %v618 = vpop.f32.mrf.mxu0
      %v619 = vadd.f32 %v600, %v618
      %v620 = vpop.f32.mrf.mxu0
      %v621 = vadd.f32 %v602, %v620
      %622 = vmatmul.bf16.gmra.mxu0 %v569
      %v623 = vpop.f32.mrf.mxu0
      %v624 = vadd.f32 %v605, %v623
      %v625 = vpop.f32.mrf.mxu0
      %v626 = vadd.f32 %v607, %v625
      %627 = vdwg.mxu0
      %vm628 = vcmask 31744
      %v629 = vsel %vm628, %v619, 0.0
      %630 = vadd.xlane.f32.xlu0 %v629
      %v631 = vpop.xlane.xlu0 %630
      %v632 = vsel %vm628, %v621, 0.0
      %633 = vadd.xlane.f32.xlu0 %v632
      %v634 = vpop.xlane.xlu0 %633
      %v635 = vsel %vm628, %v624, 0.0
      %636 = vadd.xlane.f32.xlu0 %v635
      %v637 = vpop.xlane.xlu0 %636
      %v638 = vsel %vm628, %v626, 0.0
      %639 = vadd.xlane.f32.xlu0 %v638
      %v640 = vpop.xlane.xlu0 %639
      %v641 = vmul.f32 %v619, %v619
      %v642 = vmul.f32 %v621, %v621
      %v643 = vmul.f32 %v624, %v624
      %v644 = vmul.f32 %v626, %v626
      %v645 = vsel %vm628, %v641, 0.0
      %646 = vadd.xlane.f32.xlu0 %v645
      %v647 = vpop.xlane.xlu0 %646
      %v648 = vsel %vm628, %v642, 0.0
      %649 = vadd.xlane.f32.xlu0 %v648
      %v650 = vpop.xlane.xlu0 %649
      %v651 = vsel %vm628, %v643, 0.0
      %652 = vadd.xlane.f32.xlu0 %v651
      %v653 = vpop.xlane.xlu0 %652
      %v654 = vsel %vm628, %v644, 0.0
      %655 = vadd.xlane.f32.xlu0 %v654
      %v656 = vpop.xlane.xlu0 %655
      %v657 = vmul.f32 %v631, 0.25
      %v658 = vmul.f32 %v634, 0.25
      %v659 = vmul.f32 %v637, 0.25
      %v660 = vmul.f32 %v640, 0.25
      %v661 = vmul.f32 %v647, 0.25
      %v662 = vmul.f32 %v650, 0.25
      %v663 = vmul.f32 %v653, 0.25
      %v664 = vmul.f32 %v656, 0.25
      %v665 = vmul.f32 %v657, %v657
      %v666 = vmul.f32 %v658, %v658
      %v667 = vmul.f32 %v659, %v659
      %v668 = vmul.f32 %v660, %v660
      %v669 = vsub.f32 %v661, %v665
      %v670 = vsub.f32 %v662, %v666
      %v671 = vsub.f32 %v663, %v667
      %v672 = vsub.f32 %v664, %v668
      %v673 = vadd.f32 %v669, 1e-05
      %v674 = vadd.f32 %v670, 1e-05
      %v675 = vadd.f32 %v671, 1e-05
      %v676 = vadd.f32 %v672, 1e-05
      %v677 = vrsqrt.pop %v673
      %v678 = vmul.f32 %v677, %v673
      %v679 = vmul.f32 %v678, %v677
      %v680 = vmul.f32 0.5, %v679
      %v681 = vsub.f32 1.5, %v680
      %v682 = vmul.f32 %v677, %v681
      %vm683 = vweird.f32 %v673
      %vm684 = vweird.f32 %v677
      %vm685 = vmor %vm683, %vm684
      %v686 = vsel %vm685, %v677, %v682
      %v687 = vrsqrt.pop %v674
      %v688 = vmul.f32 %v687, %v674
      %v689 = vmul.f32 %v688, %v687
      %v690 = vmul.f32 0.5, %v689
      %v691 = vsub.f32 1.5, %v690
      %v692 = vmul.f32 %v687, %v691
      %vm693 = vweird.f32 %v674
      %vm694 = vweird.f32 %v687
      %vm695 = vmor %vm693, %vm694
      %v696 = vsel %vm695, %v687, %v692
      %v697 = vrsqrt.pop %v675
      %v698 = vmul.f32 %v697, %v675
      %v699 = vmul.f32 %v698, %v697
      %v700 = vmul.f32 0.5, %v699
      %v701 = vsub.f32 1.5, %v700
      %v702 = vmul.f32 %v697, %v701
      %vm703 = vweird.f32 %v675
      %vm704 = vweird.f32 %v697
      %vm705 = vmor %vm703, %vm704
      %v706 = vsel %vm705, %v697, %v702
      %v707 = vrsqrt.pop %v676
      %v708 = vmul.f32 %v707, %v676
      %v709 = vmul.f32 %v708, %v707
      %v710 = vmul.f32 0.5, %v709
      %v711 = vsub.f32 1.5, %v710
      %v712 = vmul.f32 %v707, %v711
      %vm713 = vweird.f32 %v676
      %vm714 = vweird.f32 %v707
      %vm715 = vmor %vm713, %vm714
      %v716 = vsel %vm715, %v707, %v712
      %v717 = vmul.f32 %v314, %v686
      %v718 = vmul.f32 %v315, %v696
      %v719 = vmul.f32 %v316, %v706
      %v720 = vmul.f32 %v317, %v716
      %v721 = vsub.f32 %v619, %v657
      %v722 = vsub.f32 %v621, %v658
      %v723 = vsub.f32 %v624, %v659
      %v724 = vsub.f32 %v626, %v660
      %726 = vset.pattern.permute.xlu0 0
      %727 = vperm.xlu0 %726, %v717
      %v728 = vpop.permute.xlu0 %727
      %731 = vset.pattern.permute.xlu0 0
      %732 = vperm.xlu0 %731, %v718
      %v733 = vpop.permute.xlu0 %732
      %736 = vset.pattern.permute.xlu0 0
      %737 = vperm.xlu0 %736, %v719
      %v738 = vpop.permute.xlu0 %737
      %741 = vset.pattern.permute.xlu0 0
      %742 = vperm.xlu0 %741, %v720
      %v743 = vpop.permute.xlu0 %742
      %v745 = vmul.f32 %v721, %v728
      %v746 = vmul.f32 %v722, %v733
      %v747 = vmul.f32 %v723, %v738
      %v748 = vmul.f32 %v724, %v743
      %750 = vset.pattern.permute.xlu0 0
      %751 = vperm.xlu0 %750, %v318
      %v752 = vpop.permute.xlu0 %751
      %755 = vset.pattern.permute.xlu0 0
      %756 = vperm.xlu0 %755, %v319
      %v757 = vpop.permute.xlu0 %756
      %760 = vset.pattern.permute.xlu0 0
      %761 = vperm.xlu0 %760, %v320
      %v762 = vpop.permute.xlu0 %761
      %765 = vset.pattern.permute.xlu0 0
      %766 = vperm.xlu0 %765, %v321
      %v767 = vpop.permute.xlu0 %766
      %v769 = vadd.f32 %v745, %v752
      %v770 = vadd.f32 %v746, %v757
      %v771 = vadd.f32 %v747, %v762
      %v772 = vadd.f32 %v748, %v767
      %v773 = vmin.f32 %v769, 0.0
      %v774 = vmin.f32 %v770, 0.0
      %v775 = vmin.f32 %v771, 0.0
      %v776 = vmin.f32 %v772, 0.0
      %v777 = vmul.f32 %v773, 1.442695
      %v778 = vpow.pop %v777
      %v779 = vmul.f32 %v774, 1.442695
      %v780 = vpow.pop %v779
      %v781 = vmul.f32 %v775, 1.442695
      %v782 = vpow.pop %v781
      %v783 = vmul.f32 %v776, 1.442695
      %v784 = vpow.pop %v783
      %v785 = vsub.f32 %v778, 1.0
      %v786 = vsub.f32 %v780, 1.0
      %v787 = vsub.f32 %v782, 1.0
      %v788 = vsub.f32 %v784, 1.0
      %v789 = vmul.f32 %v785, 1.6732632
      %v790 = vmul.f32 %v786, 1.6732632
      %v791 = vmul.f32 %v787, 1.6732632
      %v792 = vmul.f32 %v788, 1.6732632
      %vm793 = vcmp.gt.f32.partialorder %v769, 0.0
      %vm794 = vcmp.gt.f32.partialorder %v770, 0.0
      %vm795 = vcmp.gt.f32.partialorder %v771, 0.0
      %vm796 = vcmp.gt.f32.partialorder %v772, 0.0
      %v797 = vsel %vm793, %v769, %v789
      %v798 = vsel %vm794, %v770, %v790
      %v799 = vsel %vm795, %v771, %v791
      %v800 = vsel %vm796, %v772, %v792
      %v801 = vmul.f32 %v797, 1.050701
      %v802 = vmul.f32 %v798, 1.050701
      %v803 = vmul.f32 %v799, 1.050701
      %v804 = vmul.f32 %v800, 1.050701
      %v805 = vld [vmem:[%s4] sm:$0xff]
      %v806 = vld [vmem:[%s4 + $0x8] sm:$0xf]
      %v807 = vld [vmem:[%s4 + $0xc] sm:$0xff]
      %v808 = vld [vmem:[%s4 + $0x14] sm:$0xf]
      %v809 = vld [vmem:[%s4 + $0x18] sm:$0xff]
      %v810 = vld [vmem:[%s4 + $0x20] sm:$0xf]
      %v811 = vld [vmem:[%s4 + $0x24] sm:$0xff]
      %v812 = vld [vmem:[%s4 + $0x2c] sm:$0xf]
      %v813 = vld [vmem:[%s5] sm:$0xff]
      %v814 = vld [vmem:[%s5 + $0x8] sm:$0xff]
      %v815 = vld [vmem:[%s5 + $0x10] sm:$0xff]
      %v816 = vld [vmem:[%s5 + $0x18] sm:$0xff]
      %v817 = vld [vmem:[%s6] sm:$0xff]
      %v818 = vld [vmem:[%s6 + $0x8] sm:$0xff]
      %v819 = vld [vmem:[%s6 + $0x10] sm:$0xff]
      %v820 = vld [vmem:[%s6 + $0x18] sm:$0xff]
      %v821 = vpack.c.bf16 %v801, %v801
      %v822 = vpack.c.bf16 %v802, %v802
      %v823 = vpack.c.bf16 %v803, %v803
      %v824 = vpack.c.bf16 %v804, %v804
      %v829 = vunpack.c.l.b16 %v821
      %v830 = vunpack.c.l.b16 %v822
      %v831 = vunpack.c.l.b16 %v823
      %v832 = vunpack.c.l.b16 %v824
      %v833 = vpack.c.b16 %v830, %v829
      %v834 = vpack.c.b16 %v832, %v831
      %835 = vrot.lane.b32.xlu0 %v833, 3
      %v836 = vpop.permute.xlu0 %835
      %837 = vrot.lane.b32.xlu0 %v834, 3
      %v838 = vpop.permute.xlu0 %837
      %v840 = vsel %vm340, 0, %v836
      %v842 = vsel %vm340, 0, %v838
      %v843 = vsel %vm346, %v840, 0
      %v845 = vsel %vm346, %v842, 0
      %v847 = vunpack.c.l.bf16 %v843
      %v848 = vunpack.c.h.bf16 %v843
      %v849 = vunpack.c.l.bf16 %v845
      %v850 = vunpack.c.h.bf16 %v845
      %v851 = vmul.f32 %v847, %v355
      %v852 = vmul.f32 %v848, %v355
      %v853 = vmul.f32 %v849, %v355
      %v854 = vmul.f32 %v850, %v355
      %v855 = vpack.c.bf16 %v851, %v851
      %v856 = vpack.c.bf16 %v852, %v852
      %v857 = vpack.c.bf16 %v853, %v853
      %v858 = vpack.c.bf16 %v854, %v854
      %v859 = vmul.f32 %v847, %v367
      %v860 = vmul.f32 %v848, %v367
      %v861 = vmul.f32 %v849, %v367
      %v862 = vmul.f32 %v850, %v367
      %v863 = vpack.c.bf16 %v859, %v859
      %v864 = vpack.c.bf16 %v860, %v860
      %v865 = vpack.c.bf16 %v861, %v861
      %v866 = vpack.c.bf16 %v862, %v862
      %v867 = vmul.f32 %v847, %v379
      %v868 = vmul.f32 %v848, %v379
      %v869 = vmul.f32 %v849, %v379
      %v870 = vmul.f32 %v850, %v379
      %v871 = vpack.c.bf16 %v867, %v867
      %v872 = vpack.c.bf16 %v868, %v868
      %v873 = vpack.c.bf16 %v869, %v869
      %v874 = vpack.c.bf16 %v870, %v870
      %v875 = vmul.f32 %v847, %v390
      %v876 = vmul.f32 %v848, %v390
      %v877 = vmul.f32 %v849, %v390
      %v878 = vmul.f32 %v850, %v390
      %v879 = vpack.c.bf16 %v875, %v875
      %v880 = vpack.c.bf16 %v876, %v876
      %v881 = vpack.c.bf16 %v877, %v877
      %v882 = vpack.c.bf16 %v878, %v878
      %v883 = vmul.f32 %v847, %v401
      %v884 = vmul.f32 %v848, %v401
      %v885 = vmul.f32 %v849, %v401
      %v886 = vmul.f32 %v850, %v401
      %v887 = vpack.c.bf16 %v883, %v883
      %v888 = vpack.c.bf16 %v884, %v884
      %v889 = vpack.c.bf16 %v885, %v885
      %v890 = vpack.c.bf16 %v886, %v886
      %v891 = vmul.f32 %v847, %v412
      %v892 = vmul.f32 %v848, %v412
      %v893 = vmul.f32 %v849, %v412
      %v894 = vmul.f32 %v850, %v412
      %v895 = vpack.c.bf16 %v891, %v891
      %v896 = vpack.c.bf16 %v892, %v892
      %v897 = vpack.c.bf16 %v893, %v893
      %v898 = vpack.c.bf16 %v894, %v894
      %v903 = vunpack.c.l.b16 %v855
      %v904 = vunpack.c.l.b16 %v856
      %v905 = vunpack.c.l.b16 %v857
      %v906 = vunpack.c.l.b16 %v858
      %v907 = vpack.c.b16 %v904, %v903
      %v908 = vpack.c.b16 %v906, %v905
      %913 = vrot.lane.b32.xlu0 %v843, 127
      %v914 = vpop.permute.xlu0 %913
      %915 = vrot.lane.b32.xlu0 %v845, 127
      %v916 = vpop.permute.xlu0 %915
      %v923 = vunpack.c.l.b16 %v863
      %v924 = vunpack.c.l.b16 %v864
      %v925 = vunpack.c.l.b16 %v865
      %v926 = vunpack.c.l.b16 %v866
      %v927 = vpack.c.b16 %v924, %v923
      %v928 = vpack.c.b16 %v926, %v925
      %929 = vrot.lane.b32.xlu0 %v927, 126
      %v930 = vpop.permute.xlu0 %929
      %931 = vrot.lane.b32.xlu0 %v928, 126
      %v932 = vpop.permute.xlu0 %931
      %v939 = vunpack.c.l.b16 %v871
      %v940 = vunpack.c.l.b16 %v872
      %v941 = vunpack.c.l.b16 %v873
      %v942 = vunpack.c.l.b16 %v874
      %v943 = vpack.c.b16 %v940, %v939
      %v944 = vpack.c.b16 %v942, %v941
      %945 = vrot.lane.b32.xlu0 %v943, 126
      %v946 = vpop.permute.xlu0 %945
      %947 = vrot.lane.b32.xlu0 %v944, 126
      %v948 = vpop.permute.xlu0 %947
      %951 = vrot.lane.b32.xlu0 %v843, 125
      %v952 = vpop.permute.xlu0 %951
      %953 = vrot.lane.b32.xlu0 %v845, 125
      %v954 = vpop.permute.xlu0 %953
      %v961 = vunpack.c.l.b16 %v879
      %v962 = vunpack.c.l.b16 %v880
      %v963 = vunpack.c.l.b16 %v881
      %v964 = vunpack.c.l.b16 %v882
      %v965 = vpack.c.b16 %v962, %v961
      %v966 = vpack.c.b16 %v964, %v963
      %967 = vrot.lane.b32.xlu0 %v965, 124
      %v968 = vpop.permute.xlu0 %967
      %969 = vrot.lane.b32.xlu0 %v966, 124
      %v970 = vpop.permute.xlu0 %969
      %v977 = vunpack.c.l.b16 %v887
      %v978 = vunpack.c.l.b16 %v888
      %v979 = vunpack.c.l.b16 %v889
      %v980 = vunpack.c.l.b16 %v890
      %v981 = vpack.c.b16 %v978, %v977
      %v982 = vpack.c.b16 %v980, %v979
      %983 = vrot.lane.b32.xlu0 %v981, 124
      %v984 = vpop.permute.xlu0 %983
      %985 = vrot.lane.b32.xlu0 %v982, 124
      %v986 = vpop.permute.xlu0 %985
      %989 = vrot.lane.b32.xlu0 %v843, 123
      %v990 = vpop.permute.xlu0 %989
      %991 = vrot.lane.b32.xlu0 %v845, 123
      %v992 = vpop.permute.xlu0 %991
      %v999 = vunpack.c.l.b16 %v895
      %v1000 = vunpack.c.l.b16 %v896
      %v1001 = vunpack.c.l.b16 %v897
      %v1002 = vunpack.c.l.b16 %v898
      %v1003 = vpack.c.b16 %v1000, %v999
      %v1004 = vpack.c.b16 %v1002, %v1001
      %1005 = vrot.lane.b32.xlu0 %v1003, 122
      %v1006 = vpop.permute.xlu0 %1005
      %1007 = vrot.lane.b32.xlu0 %v1004, 122
      %v1008 = vpop.permute.xlu0 %1007
      %v1019 = vunpack.c.l.b16 %v805
      %v1020 = vunpack.c.h.b16 %v805
      %v1021 = vunpack.c.l.b16 %v806
      %v1022 = vunpack.c.l.b16 %v807
      %v1023 = vunpack.c.h.b16 %v807
      %v1024 = vunpack.c.l.b16 %v808
      %v1025 = vunpack.c.l.b16 %v809
      %v1026 = vunpack.c.h.b16 %v809
      %v1027 = vunpack.c.l.b16 %v810
      %v1028 = vunpack.c.l.b16 %v811
      %v1029 = vunpack.c.h.b16 %v811
      %v1030 = vunpack.c.l.b16 %v812
      %v1031 = vpack.c.b16 %v1022, %v1019
      %v1032 = vpack.c.b16 %v1023, %v1020
      %v1033 = vpack.c.b16 %v1024, %v1021
      %v1034 = vpack.c.b16 %v1028, %v1025
      %v1035 = vpack.c.b16 %v1029, %v1026
      %v1036 = vpack.c.b16 %v1030, %v1027
      %v1042 = vsel %vm564, %v1033, 0
      %v1045 = vsel %vm564, %v1036, 0
      %1047 = vmatpush.bf16.msra.mxu0 %v948
      %1048 = vmatpush.bf16.msra.mxu0 %v946
      %1049 = vmatpush.bf16.msra.mxu0 %v932
      %1050 = vmatpush.bf16.msra.mxu0 %v930
      %1051 = vmatpush.bf16.msra.mxu0 %v916
      %1052 = vmatpush.bf16.msra.mxu0 %v914
      %1053 = vmatpush.bf16.msra.mxu0 %v908
      %1054 = vmatpush.bf16.msra.mxu0 %v907
      %1055 = vmatmul.bf16.gmra.mxu0 %v1031
      %v1056 = vpop.f32.mrf.mxu0
      %v1057 = vadd.f32 0.0, %v1056
      %v1058 = vpop.f32.mrf.mxu0
      %v1059 = vadd.f32 0.0, %v1058
      %1060 = vmatmul.bf16.gmra.mxu0 %v1034
      %v1061 = vpop.f32.mrf.mxu0
      %v1062 = vadd.f32 0.0, %v1061
      %v1063 = vpop.f32.mrf.mxu0
      %v1064 = vadd.f32 0.0, %v1063
      %1065 = vdwg.mxu0
      %1066 = vmatpush.bf16.msra.mxu0 %v992
      %1067 = vmatpush.bf16.msra.mxu0 %v990
      %1068 = vmatpush.bf16.msra.mxu0 %v986
      %1069 = vmatpush.bf16.msra.mxu0 %v984
      %1070 = vmatpush.bf16.msra.mxu0 %v970
      %1071 = vmatpush.bf16.msra.mxu0 %v968
      %1072 = vmatpush.bf16.msra.mxu0 %v954
      %1073 = vmatpush.bf16.msra.mxu0 %v952
      %1074 = vmatmul.bf16.gmra.mxu0 %v1032
      %v1075 = vpop.f32.mrf.mxu0
      %v1076 = vadd.f32 %v1057, %v1075
      %v1077 = vpop.f32.mrf.mxu0
      %v1078 = vadd.f32 %v1059, %v1077
      %1079 = vmatmul.bf16.gmra.mxu0 %v1035
      %v1080 = vpop.f32.mrf.mxu0
      %v1081 = vadd.f32 %v1062, %v1080
      %v1082 = vpop.f32.mrf.mxu0
      %v1083 = vadd.f32 %v1064, %v1082
      %1084 = vdwg.mxu0
      %1085 = vmatpush.bf16.msra.mxu0 0
      %1086 = vmatpush.bf16.msra.mxu0 0
      %1087 = vmatpush.bf16.msra.mxu0 0
      %1088 = vmatpush.bf16.msra.mxu0 0
      %1089 = vmatpush.bf16.msra.mxu0 0
      %1090 = vmatpush.bf16.msra.mxu0 0
      %1091 = vmatpush.bf16.msra.mxu0 %v1008
      %1092 = vmatpush.bf16.msra.mxu0 %v1006
      %1093 = vmatmul.bf16.gmra.mxu0 %v1042
      %v1094 = vpop.f32.mrf.mxu0
      %v1095 = vadd.f32 %v1076, %v1094
      %v1096 = vpop.f32.mrf.mxu0
      %v1097 = vadd.f32 %v1078, %v1096
      %1098 = vmatmul.bf16.gmra.mxu0 %v1045
      %v1099 = vpop.f32.mrf.mxu0
      %v1100 = vadd.f32 %v1081, %v1099
      %v1101 = vpop.f32.mrf.mxu0
      %v1102 = vadd.f32 %v1083, %v1101
      %1103 = vdwg.mxu0
      %v1104 = vsel %vm628, %v1095, 0.0
      %1105 = vadd.xlane.f32.xlu0 %v1104
      %v1106 = vpop.xlane.xlu0 %1105
      %v1107 = vsel %vm628, %v1097, 0.0
      %1108 = vadd.xlane.f32.xlu0 %v1107
      %v1109 = vpop.xlane.xlu0 %1108
      %v1110 = vsel %vm628, %v1100, 0.0
      %1111 = vadd.xlane.f32.xlu0 %v1110
      %v1112 = vpop.xlane.xlu0 %1111
      %v1113 = vsel %vm628, %v1102, 0.0
      %1114 = vadd.xlane.f32.xlu0 %v1113
      %v1115 = vpop.xlane.xlu0 %1114
      %v1116 = vmul.f32 %v1095, %v1095
      %v1117 = vmul.f32 %v1097, %v1097
      %v1118 = vmul.f32 %v1100, %v1100
      %v1119 = vmul.f32 %v1102, %v1102
      %v1120 = vsel %vm628, %v1116, 0.0
      %1121 = vadd.xlane.f32.xlu0 %v1120
      %v1122 = vpop.xlane.xlu0 %1121
      %v1123 = vsel %vm628, %v1117, 0.0
      %1124 = vadd.xlane.f32.xlu0 %v1123
      %v1125 = vpop.xlane.xlu0 %1124
      %v1126 = vsel %vm628, %v1118, 0.0
      %1127 = vadd.xlane.f32.xlu0 %v1126
      %v1128 = vpop.xlane.xlu0 %1127
      %v1129 = vsel %vm628, %v1119, 0.0
      %1130 = vadd.xlane.f32.xlu0 %v1129
      %v1131 = vpop.xlane.xlu0 %1130
      %v1132 = vmul.f32 %v1106, 0.25
      %v1133 = vmul.f32 %v1109, 0.25
      %v1134 = vmul.f32 %v1112, 0.25
      %v1135 = vmul.f32 %v1115, 0.25
      %v1136 = vmul.f32 %v1122, 0.25
      %v1137 = vmul.f32 %v1125, 0.25
      %v1138 = vmul.f32 %v1128, 0.25
      %v1139 = vmul.f32 %v1131, 0.25
      %v1140 = vmul.f32 %v1132, %v1132
      %v1141 = vmul.f32 %v1133, %v1133
      %v1142 = vmul.f32 %v1134, %v1134
      %v1143 = vmul.f32 %v1135, %v1135
      %v1144 = vsub.f32 %v1136, %v1140
      %v1145 = vsub.f32 %v1137, %v1141
      %v1146 = vsub.f32 %v1138, %v1142
      %v1147 = vsub.f32 %v1139, %v1143
      %v1148 = vadd.f32 %v1144, 1e-05
      %v1149 = vadd.f32 %v1145, 1e-05
      %v1150 = vadd.f32 %v1146, 1e-05
      %v1151 = vadd.f32 %v1147, 1e-05
      %v1152 = vrsqrt.pop %v1148
      %v1153 = vmul.f32 %v1152, %v1148
      %v1154 = vmul.f32 %v1153, %v1152
      %v1155 = vmul.f32 0.5, %v1154
      %v1156 = vsub.f32 1.5, %v1155
      %v1157 = vmul.f32 %v1152, %v1156
      %vm1158 = vweird.f32 %v1148
      %vm1159 = vweird.f32 %v1152
      %vm1160 = vmor %vm1158, %vm1159
      %v1161 = vsel %vm1160, %v1152, %v1157
      %v1162 = vrsqrt.pop %v1149
      %v1163 = vmul.f32 %v1162, %v1149
      %v1164 = vmul.f32 %v1163, %v1162
      %v1165 = vmul.f32 0.5, %v1164
      %v1166 = vsub.f32 1.5, %v1165
      %v1167 = vmul.f32 %v1162, %v1166
      %vm1168 = vweird.f32 %v1149
      %vm1169 = vweird.f32 %v1162
      %vm1170 = vmor %vm1168, %vm1169
      %v1171 = vsel %vm1170, %v1162, %v1167
      %v1172 = vrsqrt.pop %v1150
      %v1173 = vmul.f32 %v1172, %v1150
      %v1174 = vmul.f32 %v1173, %v1172
      %v1175 = vmul.f32 0.5, %v1174
      %v1176 = vsub.f32 1.5, %v1175
      %v1177 = vmul.f32 %v1172, %v1176
      %vm1178 = vweird.f32 %v1150
      %vm1179 = vweird.f32 %v1172
      %vm1180 = vmor %vm1178, %vm1179
      %v1181 = vsel %vm1180, %v1172, %v1177
      %v1182 = vrsqrt.pop %v1151
      %v1183 = vmul.f32 %v1182, %v1151
      %v1184 = vmul.f32 %v1183, %v1182
      %v1185 = vmul.f32 0.5, %v1184
      %v1186 = vsub.f32 1.5, %v1185
      %v1187 = vmul.f32 %v1182, %v1186
      %vm1188 = vweird.f32 %v1151
      %vm1189 = vweird.f32 %v1182
      %vm1190 = vmor %vm1188, %vm1189
      %v1191 = vsel %vm1190, %v1182, %v1187
      %v1192 = vmul.f32 %v813, %v1161
      %v1193 = vmul.f32 %v814, %v1171
      %v1194 = vmul.f32 %v815, %v1181
      %v1195 = vmul.f32 %v816, %v1191
      %v1196 = vsub.f32 %v1095, %v1132
      %v1197 = vsub.f32 %v1097, %v1133
      %v1198 = vsub.f32 %v1100, %v1134
      %v1199 = vsub.f32 %v1102, %v1135
      %1201 = vset.pattern.permute.xlu0 0
      %1202 = vperm.xlu0 %1201, %v1192
      %v1203 = vpop.permute.xlu0 %1202
      %1206 = vset.pattern.permute.xlu0 0
      %1207 = vperm.xlu0 %1206, %v1193
      %v1208 = vpop.permute.xlu0 %1207
      %1211 = vset.pattern.permute.xlu0 0
      %1212 = vperm.xlu0 %1211, %v1194
      %v1213 = vpop.permute.xlu0 %1212
      %1216 = vset.pattern.permute.xlu0 0
      %1217 = vperm.xlu0 %1216, %v1195
      %v1218 = vpop.permute.xlu0 %1217
      %v1220 = vmul.f32 %v1196, %v1203
      %v1221 = vmul.f32 %v1197, %v1208
      %v1222 = vmul.f32 %v1198, %v1213
      %v1223 = vmul.f32 %v1199, %v1218
      %1225 = vset.pattern.permute.xlu0 0
      %1226 = vperm.xlu0 %1225, %v817
      %v1227 = vpop.permute.xlu0 %1226
      %1230 = vset.pattern.permute.xlu0 0
      %1231 = vperm.xlu0 %1230, %v818
      %v1232 = vpop.permute.xlu0 %1231
      %1235 = vset.pattern.permute.xlu0 0
      %1236 = vperm.xlu0 %1235, %v819
      %v1237 = vpop.permute.xlu0 %1236
      %1240 = vset.pattern.permute.xlu0 0
      %1241 = vperm.xlu0 %1240, %v820
      %v1242 = vpop.permute.xlu0 %1241
      %v1244 = vadd.f32 %v1220, %v1227
      %v1245 = vadd.f32 %v1221, %v1232
      %v1246 = vadd.f32 %v1222, %v1237
      %v1247 = vadd.f32 %v1223, %v1242
      %v1248 = vmin.f32 %v1244, 0.0
      %v1249 = vmin.f32 %v1245, 0.0
      %v1250 = vmin.f32 %v1246, 0.0
      %v1251 = vmin.f32 %v1247, 0.0
      %v1252 = vmul.f32 %v1248, 1.442695
      %v1253 = vpow.pop %v1252
      %v1254 = vmul.f32 %v1249, 1.442695
      %v1255 = vpow.pop %v1254
      %v1256 = vmul.f32 %v1250, 1.442695
      %v1257 = vpow.pop %v1256
      %v1258 = vmul.f32 %v1251, 1.442695
      %v1259 = vpow.pop %v1258
      %v1260 = vsub.f32 %v1253, 1.0
      %v1261 = vsub.f32 %v1255, 1.0
      %v1262 = vsub.f32 %v1257, 1.0
      %v1263 = vsub.f32 %v1259, 1.0
      %v1264 = vmul.f32 %v1260, 1.6732632
      %v1265 = vmul.f32 %v1261, 1.6732632
      %v1266 = vmul.f32 %v1262, 1.6732632
      %v1267 = vmul.f32 %v1263, 1.6732632
      %vm1268 = vcmp.gt.f32.partialorder %v1244, 0.0
      %vm1269 = vcmp.gt.f32.partialorder %v1245, 0.0
      %vm1270 = vcmp.gt.f32.partialorder %v1246, 0.0
      %vm1271 = vcmp.gt.f32.partialorder %v1247, 0.0
      %v1272 = vsel %vm1268, %v1244, %v1264
      %v1273 = vsel %vm1269, %v1245, %v1265
      %v1274 = vsel %vm1270, %v1246, %v1266
      %v1275 = vsel %vm1271, %v1247, %v1267
      %v1276 = vmul.f32 %v1272, 1.050701
      %v1277 = vmul.f32 %v1273, 1.050701
      %v1278 = vmul.f32 %v1274, 1.050701
      %v1279 = vmul.f32 %v1275, 1.050701
      %1280 = vst.msk [vmem:[%s278] sm:$0xff] %vm628, %v1276
      %1281 = vst.msk [vmem:[%s278 + $0x8] sm:$0xff] %vm628, %v1277
      %1282 = vst.msk [vmem:[%s278 + $0x10] sm:$0xff] %vm628, %v1278
      %1283 = vst.msk [vmem:[%s278 + $0x18] sm:$0xff] %vm628, %v1279
      %p1284 = scmp.lt.s32.totalorder %s18, 1
      %s1285 = scalar_select %p1284, %s18, 1
      %s1286 = smul.addr %s1285, 4
      %s1287 = smul.addr %s1286, 8
      %s1288 = scalar_lea.vmem %s7, %s1287
      // Predicated region
      $region49: #{encoder_forward.9} parent=47 // pred_check
        %p1289 = pneg %p188
      $region50: #{encoder_forward.9} parent=47 // pred_check_branch
        %1291 = sbr.rel (%p1289) target = $region52
      $region51: #{encoder_forward.9} parent=47 // pred_region
        _
      $region52: #{encoder_forward.9} parent=47 // pred_fallthru
        _
    $region48: #{encoder_forward.9} parent=5 // pred_fallthru
      _
    %p1292 = scmp.le.s32.totalorder 2, %s13
    // Predicated region
    $region53: #{encoder_forward.9} parent=5 // pred_check
      %p1293 = pneg %p1292
    $region54: #{encoder_forward.9} parent=5 // pred_check_branch
      %1295 = sbr.rel (%p1293) target = $region56
    $region55: #{encoder_forward.9} parent=5 // pred_region
      %s1296 = ssub.s32 %s13, 2
      // Predicated region
      $region57: #{encoder_forward.9} parent=55 // pred_check
        %p1297 = pneg %p194
      $region58: #{encoder_forward.9} parent=55 // pred_check_branch
        %1299 = sbr.rel (%p1297) target = $region60
      $region59: #{encoder_forward.9} parent=55 // pred_region
        %p1300 = scmp.lt.s32.totalorder %s19, 1
        %s1301 = scalar_select %p1300, %s19, 1
        %s1302 = smul.addr %s1301, 4
        %s1303 = smul.addr %s1302, 8
        %s1304 = scalar_lea.vmem %s7, %s1303
      $region60: #{encoder_forward.9} parent=55 // pred_fallthru
        _
    $region56: #{encoder_forward.9} parent=5 // pred_fallthru
      _
  $region6: #{encoder_forward.9} parent=0 // loop_footer
    %s17 = sadd.s32 1, %s13
  $region7: #{encoder_forward.9} parent=0 // loop_footer_branch
    %12 = sbr.rel target = $region3
  $region8: #{encoder_forward.9} parent=0 // loop_exit
    _

</llo_original>
